<compile_context>
chip_gen: v6e
topology: v6e:2x2x1
jax: 0.10.0
libtpu: 0.0.40
codegen_flags: <defaults>
</compile_context>

<pallas_src>
import functools
import numpy as np
import jax
import jax.numpy as jnp
from jax import lax
from jax.experimental import pallas as pl
from jax.experimental.pallas import tpu as pltpu

EPS = 1e-5  # PyTorch LayerNorm default eps


# ----------------------------- glue helpers -----------------------------
def window_partition_3d(x, ws):
    B, T, H, W, C = x.shape
    x = x.reshape(B, T // ws[0], ws[0], H // ws[1], ws[1], W // ws[2], ws[2], C)
    x = x.transpose(0, 1, 3, 5, 2, 4, 6, 7)
    return x.reshape(-1, ws[0] * ws[1] * ws[2], C)


def window_reverse_3d(windows, ws, B, T, H, W):
    C = windows.shape[-1]
    x = windows.reshape(B, T // ws[0], H // ws[1], W // ws[2], ws[0], ws[1], ws[2], C)
    x = x.transpose(0, 1, 4, 2, 5, 3, 6, 7)
    return x.reshape(B, T, H, W, C)


def relative_position_index_3d(ws):
    coords = np.stack(np.meshgrid(np.arange(ws[0]), np.arange(ws[1]),
                                  np.arange(ws[2]), indexing="ij"))
    cf = coords.reshape(3, -1)
    rel = cf[:, :, None] - cf[:, None, :]
    rel = rel.transpose(1, 2, 0).astype(np.int64)
    rel[..., 0] += ws[0] - 1
    rel[..., 1] += ws[1] - 1
    rel[..., 2] += ws[2] - 1
    rel[..., 0] *= (2 * ws[1] - 1) * (2 * ws[2] - 1)
    rel[..., 1] *= (2 * ws[2] - 1)
    return rel.sum(-1).astype(np.int32)  # (N, N)


def compute_mask_3d(T, H, W, ws, ss):
    img_mask = np.zeros((1, T, H, W, 1), dtype=np.float32)
    cnt = 0
    for d in (slice(-ws[0]), slice(-ws[0], -ss[0]), slice(-ss[0], None)):
        for h in (slice(-ws[1]), slice(-ws[1], -ss[1]), slice(-ss[1], None)):
            for w in (slice(-ws[2]), slice(-ws[2], -ss[2]), slice(-ss[2], None)):
                img_mask[:, d, h, w, :] = cnt
                cnt += 1
    mask_windows = window_partition_3d(img_mask, ws).squeeze(-1)  # (nW, N)
    attn_mask = mask_windows[:, None, :] - mask_windows[:, :, None]
    return np.where(attn_mask != 0, -100.0, 0.0).astype(np.float32)


# ----------------------------- one-time parameter prep -----------------------------
def prepare_block_params(params, *, num_heads, window_size):
    """Hoisted per-parameter-set prep: rel-bias gather, Wproj folded into the V
    weights, kron-folded lane-dense MLP weights, bf16 casts of MXU operands."""
    ws = window_size
    N = ws[0] * ws[1] * ws[2]
    C = params["wqkv"].shape[0]
    hd = C // num_heads
    f32, bf16 = jnp.float32, jnp.bfloat16

    # relative position bias gathered once -> (nH, N, N), f32 (added to scores)
    rel_idx = jnp.asarray(relative_position_index_3d(ws).reshape(-1))
    rel_bias = params["rel_table"][rel_idx].reshape(N, N, num_heads)
    rel_bias = jnp.transpose(rel_bias, (2, 0, 1)).astype(f32)

    wqkv = params["wqkv"].astype(f32)
    bqkv = params["bqkv"].astype(f32)
    wproj = params["wproj"].astype(f32)
    wqk = wqkv[:, :2 * C]                             # Q|K weights
    bqk = bqkv[:2 * C].reshape(1, 2 * C)
    # Fold Wproj into V:  (P_h @ (Y Wv_h + bv_h)) Wproj_h == P_h @ (Y Wv'_h + bv'_h)
    # with Wv'_h = Wv_h @ Wproj_h, bv'_h = bv_h @ Wproj_h  -> removes the per-head
    # K=head_dim projection matmuls and widens the PV matmul output to C lanes.
    wv_parts, bv_parts = [], []
    for h in range(num_heads):
        wp_h = wproj[h * hd:(h + 1) * hd, :]
        wv_parts.append(wqkv[:, 2 * C + h * hd:2 * C + (h + 1) * hd] @ wp_h)
        bv_parts.append(bqkv[2 * C + h * hd:2 * C + (h + 1) * hd] @ wp_h)
    wv_fold = jnp.concatenate(wv_parts, axis=1)       # (C, nH*C)
    bv_fold = jnp.concatenate(bv_parts, axis=0).reshape(1, num_heads * C)

    # K2 lane-dense fold: pack `fold` tokens per 128-lane row (block-diag weights)
    fold = 128 // C if (C < 128 and 128 % C == 0) else 1
    Cm = params["w1"].shape[1]
    eye = jnp.eye(fold, dtype=f32)
    seg = jnp.kron(eye, jnp.ones((C, 1), f32))        # (fold*C, fold) segment-sum
    segt = jnp.transpose(seg)                         # (fold, fold*C) spread-back
    # TODO(synk): production widths need a k grid axis over the hidden dim instead
    # of whole-array weight blocks (v7x 64 MiB VMEM) + explicit vmem_limit_bytes.
    w1f = jnp.kron(eye, params["w1"].astype(f32)).astype(bf16)   # (fold*C, fold*Cm)
    w2f = jnp.kron(eye, params["w2"].astype(f32)).astype(bf16)   # (fold*Cm, fold*C)

    return dict(
        rel_bias=rel_bias,
        norm1_g=params["norm1_g"].astype(f32).reshape(1, C),
        norm1_b=params["norm1_b"].astype(f32).reshape(1, C),
        wqk=wqk.astype(bf16), bqk=bqk,
        wv_fold=wv_fold.astype(bf16), bv_fold=bv_fold,
        bproj=params["bproj"].astype(f32).reshape(1, C),
        seg=seg, segt=segt,
        ln2_g=jnp.tile(params["norm2_g"].astype(f32), fold).reshape(1, fold * C),
        ln2_b=jnp.tile(params["norm2_b"].astype(f32), fold).reshape(1, fold * C),
        w1f=w1f, b1f=jnp.tile(params["b1"].astype(f32), fold).reshape(1, fold * Cm),
        w2f=w2f, b2f=jnp.tile(params["b2"].astype(f32), fold).reshape(1, fold * C),
    )


# ============================ Kernel 1: fused LN1 + window MHSA ============================
def _fused_ln_window_attn_kernel(*refs, num_heads, head_dim, G, N, has_mask):
    if has_mask:
        (xw_ref, rel_ref, g_ref, b_ref, wqk_ref, bqk_ref,
         wv_ref, bv_ref, bproj_ref, mask_ref, o_ref) = refs
    else:
        (xw_ref, rel_ref, g_ref, b_ref, wqk_ref, bqk_ref,
         wv_ref, bv_ref, bproj_ref, o_ref) = refs
        mask_ref = None

    C = num_heads * head_dim
    scale = float(head_dim) ** -0.5
    f32, bf16 = jnp.float32, jnp.bfloat16

    # LN1 fused here (per-token op commutes with roll / window partition).
    # Elementwise math kept f32 (v5e VPU/EUP have no bf16); MXU operands bf16.
    x = xw_ref[...].astype(f32).reshape(G * N, C)
    mean = jnp.mean(x, axis=-1, keepdims=True)
    var = jnp.mean((x - mean) ** 2, axis=-1, keepdims=True)
    y = (x - mean) * lax.rsqrt(var + EPS) * g_ref[...] + b_ref[...]
    y_bf = y.astype(bf16)

    # Q,K for all heads in one matmul; Wproj pre-folded V' for all heads in one matmul.
    qk = jnp.dot(y_bf, wqk_ref[...], preferred_element_type=f32) + bqk_ref[...]
    vall = jnp.dot(y_bf, wv_ref[...], preferred_element_type=f32) + bv_ref[...]

    acc = jnp.zeros((G, N, C), f32)
    # static unroll over heads; every dot is batched over the G windows.
    for h in range(num_heads):
        q = (qk[:, h * head_dim:(h + 1) * head_dim] * scale
             ).reshape(G, N, head_dim).astype(bf16)
        k = qk[:, C + h * head_dim:C + (h + 1) * head_dim
               ].reshape(G, N, head_dim).astype(bf16)
        v = vall[:, h * C:(h + 1) * C].reshape(G, N, C).astype(bf16)

        s = lax.dot_general(q, k, (((2,), (2,)), ((0,), (0,))),
                            preferred_element_type=f32)            # (G, N, N)
        s = s + rel_ref[h][None, :, :]
        if has_mask:
            s = s + mask_ref[...]
        s = s - jnp.max(s, axis=-1, keepdims=True)
        p = jnp.exp(s)
        # normalize via approx reciprocal (EUP slot) instead of a VALU divide
        p = p * pl.reciprocal(jnp.sum(p, axis=-1, keepdims=True), approx=True)

        acc = acc + lax.dot_general(p.astype(bf16), v, (((2,), (1,)), ((0,), (0,))),
                                    preferred_element_type=f32)    # (G, N, C)

    out = acc + bproj_ref[...].reshape(1, 1, C)
    # lane-dense store: (G, N*C) slab -> unmasked vst (no 32-lane partial stores)
    o_ref[...] = out.reshape(G, N * C).astype(o_ref.dtype)


def window_attention_pallas(xw, mask, rel_bias, norm1_g, norm1_b,
                            wqk, bqk, wv_fold, bv_fold, bproj, num_heads, G):
    Bw, N, C = xw.shape
    nH = num_heads
    has_mask = mask is not None

    kernel = functools.partial(_fused_ln_window_attn_kernel, num_heads=nH,
                               head_dim=C // nH, G=G, N=N, has_mask=has_mask)
    in_specs = [
        pl.BlockSpec((G, N, C), lambda i: (i, 0, 0)),      # raw x windows
        pl.BlockSpec((nH, N, N), lambda i: (0, 0, 0)),     # rel-pos bias, VMEM resident
        pl.BlockSpec((1, C), lambda i: (0, 0)),            # norm1 gamma
        pl.BlockSpec((1, C), lambda i: (0, 0)),            # norm1 beta
        pl.BlockSpec((C, 2 * C), lambda i: (0, 0)),        # Wq|Wk (bf16)
        pl.BlockSpec((1, 2 * C), lambda i: (0, 0)),
        pl.BlockSpec((C, nH * C), lambda i: (0, 0)),       # V weights folded w/ Wproj (bf16)
        pl.BlockSpec((1, nH * C), lambda i: (0, 0)),
        pl.BlockSpec((1, C), lambda i: (0, 0)),            # proj bias
    ]
    args = [xw, rel_bias, norm1_g, norm1_b, wqk, bqk, wv_fold, bv_fold, bproj]
    if has_mask:
        # mask is (G, N, N) with a constant index_map -> VMEM resident, no per-step DMA
        in_specs.append(pl.BlockSpec((G, N, N), lambda i: (0, 0, 0)))
        args.append(mask)

    out = pl.pallas_call(
        kernel,
        out_shape=jax.ShapeDtypeStruct((Bw, N * C), xw.dtype),  # lane-dense slab
        grid=(Bw // G,),
        in_specs=in_specs,
        out_specs=pl.BlockSpec((G, N * C), lambda i: (i, 0)),
        compiler_params=pltpu.CompilerParams(
            dimension_semantics=("parallel",)),                  # windows independent
    )(*args)
    return out.reshape(Bw, N, C)   # free row-major reshape on HBM


# ============================ Kernel 2: fused LN2 + MLP + residual ============================
def _norm_mlp_residual_kernel(x_ref, z_ref, seg_ref, segt_ref, g_ref, b_ref,
                              w1_ref, b1_ref, w2_ref, b2_ref, o_ref, *, inv_c):
    f32, bf16 = jnp.float32, jnp.bfloat16
    # Folded layout: each 128-lane row holds `fold` tokens; per-token LayerNorm
    # stats via segment-ones matmuls (kept f32 -- tiny, preserves stat accuracy),
    # MLP via block-diagonal weights -> identical math, fully lane-dense I/O.
    x = x_ref[...].astype(f32)                       # (tr, fold*C)
    s = x + z_ref[...].astype(f32)
    seg = seg_ref[...]                               # (fold*C, fold)
    segt = segt_ref[...]                             # (fold, fold*C)

    mean = jnp.dot(s, seg, preferred_element_type=f32) * inv_c
    d = s - jnp.dot(mean, segt, preferred_element_type=f32)
    var = jnp.dot(d * d, seg, preferred_element_type=f32) * inv_c
    inv = jnp.dot(lax.rsqrt(var + EPS), segt, preferred_element_type=f32)
    y = d * inv * g_ref[...] + b_ref[...]

    # MLP matmuls on bf16 operands (MXU native), f32 accumulate
    h = jnp.dot(y.astype(bf16), w1_ref[...], preferred_element_type=f32) + b1_ref[...]
    # tanh-approx GELU: one EUP op instead of a long erf VALU polynomial
    h = 0.5 * h * (1.0 + jnp.tanh(0.7978845608028654 * (h + 0.044715 * h * h * h)))
    m = jnp.dot(h.astype(bf16), w2_ref[...], preferred_element_type=f32) + b2_ref[...]
    o_ref[...] = (x + m).astype(o_ref.dtype)


def norm_mlp_residual_pallas(x2d, z2d, prep, tm_tokens=128):
    M, C = x2d.shape
    fold = prep["seg"].shape[1]
    Cf = fold * C
    Cmf = prep["w1f"].shape[1]
    tm_tokens = max(fold, tm_tokens)

    # Pad token rows to a multiple of tm_tokens.  Padded rows run through
    # rsqrt(var=0+EPS) producing large-but-finite garbage that is sliced off
    # below -- do NOT remove the final slice.
    Mp = pl.cdiv(M, tm_tokens) * tm_tokens
    if Mp != M:
        pad = ((0, Mp - M), (0, 0))
        x2d = jnp.pad(x2d, pad)
        z2d = jnp.pad(z2d, pad)

    Rf = Mp // fold
    tr = tm_tokens // fold
    xf = x2d.reshape(Rf, Cf)                 # free row-major reshape on HBM
    zf = z2d.reshape(Rf, Cf)

    kernel = functools.partial(_norm_mlp_residual_kernel, inv_c=1.0 / C)
    out = pl.pallas_call(
        kernel,
        out_shape=jax.ShapeDtypeStruct((Rf, Cf), x2d.dtype),
        grid=(Rf // tr,),                    # tm_tokens=128 -> >=4 steps at M=512
        in_specs=[
            pl.BlockSpec((tr, Cf), lambda i: (i, 0)),
            pl.BlockSpec((tr, Cf), lambda i: (i, 0)),
            pl.BlockSpec((Cf, fold), lambda i: (0, 0)),
            pl.BlockSpec((fold, Cf), lambda i: (0, 0)),
            pl.BlockSpec((1, Cf), lambda i: (0, 0)),
            pl.BlockSpec((1, Cf), lambda i: (0, 0)),
            pl.BlockSpec((Cf, Cmf), lambda i: (0, 0)),
            pl.BlockSpec((1, Cmf), lambda i: (0, 0)),
            pl.BlockSpec((Cmf, Cf), lambda i: (0, 0)),
            pl.BlockSpec((1, Cf), lambda i: (0, 0)),
        ],
        out_specs=pl.BlockSpec((tr, Cf), lambda i: (i, 0)),
        compiler_params=pltpu.CompilerParams(
            dimension_semantics=("parallel",)),
    )(xf, zf, prep["seg"], prep["segt"], prep["ln2_g"], prep["ln2_b"],
      prep["w1f"], prep["b1f"], prep["w2f"], prep["b2f"])

    out = out.reshape(Mp, C)
    return out[:M] if Mp != M else out


# ----------------------------- full block forward -----------------------------
def swin_block_forward(x, attn_mask, prep, *, num_heads, window_size, shift_size):
    B, T, H, W, C = x.shape
    ws, ss = window_size, shift_size
    N = ws[0] * ws[1] * ws[2]
    nW = (T // ws[0]) * (H // ws[1]) * (W // ws[2])

    shifted = any(s > 0 for s in ss)
    use_mask = shifted and attn_mask is not None

    xs = jnp.roll(x, shift=(-ss[0], -ss[1], -ss[2]), axis=(1, 2, 3)) if shifted else x
    # TODO(synk): roll + window partition / reverse are full-tensor permutations done by
    # XLA between the kernels; fusing them into K1/K2 DMA needs a manual row-gather.
    xw = window_partition_3d(xs, ws)                  # (Bw, N, C) raw x windows
    Bw = xw.shape[0]

    # Windows-per-step G: aim for ~256 matmul rows. With a shift mask keep G a
    # multiple of nW so the (G,N,N) mask is VMEM-resident via a constant index_map.
    GT = max(1, 256 // N)
    if use_mask:
        kb = max(1, GT // nW)
        while B % kb:
            kb -= 1
        G = kb * nW
        mask_in = attn_mask.astype(jnp.float32)
        if kb > 1:
            mask_in = jnp.tile(mask_in, (kb, 1, 1))   # small (G,N,N), stays resident
    else:
        G = min(GT, Bw)
        mask_in = None
    Bw_pad = pl.cdiv(Bw, G) * G
    if Bw_pad != Bw:      # pad (instead of shrinking G) to keep MXU M-fill
        xw = jnp.pad(xw, ((0, Bw_pad - Bw), (0, 0), (0, 0)))

    # K1: fused LN1 + window MHSA (+bias, +optional mask) with folded projection
    attn_windows = window_attention_pallas(
        xw, mask_in, prep["rel_bias"], prep["norm1_g"], prep["norm1_b"],
        prep["wqk"], prep["bqk"], prep["wv_fold"], prep["bv_fold"], prep["bproj"],
        num_heads, G)
    if Bw_pad != Bw:
        attn_windows = attn_windows[:Bw]

    z = window_reverse_3d(attn_windows, ws, B, T, H, W)
    if shifted:
        z = jnp.roll(z, shift=(ss[0], ss[1], ss[2]), axis=(1, 2, 3))

    # K2: fused LN2 + MLP + residual (lane-dense folded layout)
    out2d = norm_mlp_residual_pallas(x.reshape(-1, C), z.reshape(-1, C), prep)
    return out2d.reshape(B, T, H, W, C)


# ----------------------------- pure-JAX reference -----------------------------
def _ref_ln(x, g, b):
    mean = x.mean(-1, keepdims=True)
    var = ((x - mean) ** 2).mean(-1, keepdims=True)
    return (x - mean) / jnp.sqrt(var + EPS) * g + b


def ref_forward(x, attn_mask, params, *, num_heads, window_size, shift_size):
    B, T, H, W, C = x.shape
    ws, ss = window_size, shift_size
    N = ws[0] * ws[1] * ws[2]
    hd = C // num_heads

    z = _ref_ln(x, params["norm1_g"], params["norm1_b"])
    shifted = any(s > 0 for s in ss)
    if shifted:
        z = jnp.roll(z, shift=(-ss[0], -ss[1], -ss[2]), axis=(1, 2, 3))
    win = window_partition_3d(z, ws)
    Bw = win.shape[0]

    qkv = win @ params["wqkv"] + params["bqkv"]
    qkv = qkv.reshape(Bw, N, 3, num_heads, hd).transpose(2, 0, 3, 1, 4)
    q, k, v = qkv[0], qkv[1], qkv[2]
    attn = jnp.einsum("bhqd,bhkd->bhqk", q * hd ** -0.5, k)
    rel_idx = jnp.asarray(relative_position_index_3d(ws).reshape(-1))
    rel_bias = params["rel_table"][rel_idx].reshape(N, N, num_heads).transpose(2, 0, 1)
    attn = attn + rel_bias[None]
    if shifted and attn_mask is not None:
        nW = attn_mask.shape[0]
        attn = attn.reshape(Bw // nW, nW, num_heads, N, N) + attn_mask[None, :, None]
        attn = attn.reshape(Bw, num_heads, N, N)
    attn = jax.nn.softmax(attn, axis=-1)
    o = jnp.einsum("bhqk,bhkd->bhqd", attn, v).transpose(0, 2, 1, 3).reshape(Bw, N, C)
    o = o @ params["wproj"] + params["bproj"]

    z = window_reverse_3d(o, ws, B, T, H, W)
    if shifted:
        z = jnp.roll(z, shift=(ss[0], ss[1], ss[2]), axis=(1, 2, 3))

    y = _ref_ln(z + x, params["norm2_g"], params["norm2_b"])
    h = y @ params["w1"] + params["b1"]
    h = 0.5 * h * (1.0 + lax.erf(h * 0.7071067811865476))
    return x + (h @ params["w2"] + params["b2"])


# ----------------------------- params -----------------------------
def init_params(key, dim, num_heads, window_size, mlp_hidden):
    ws = window_size
    num_rel = (2 * ws[0] - 1) * (2 * ws[1] - 1) * (2 * ws[2] - 1)
    ks = jax.random.split(key, 8)
    f32 = jnp.float32
    return dict(
        norm1_g=jnp.ones((dim,), f32), norm1_b=jnp.zeros((dim,), f32),
        wqkv=0.1 * jax.random.normal(ks[0], (dim, 3 * dim), f32),
        bqkv=0.05 * jax.random.normal(ks[1], (3 * dim,), f32),   # qkv_bias=True
        rel_table=0.1 * jax.random.normal(ks[2], (num_rel, num_heads), f32),
        wproj=0.1 * jax.random.normal(ks[3], (dim, dim), f32),
        bproj=0.05 * jax.random.normal(ks[4], (dim,), f32),
        norm2_g=jnp.ones((dim,), f32), norm2_b=jnp.zeros((dim,), f32),
        w1=0.1 * jax.random.normal(ks[5], (dim, mlp_hidden), f32),
        b1=0.05 * jax.random.normal(ks[6], (mlp_hidden,), f32),
        w2=0.1 * jax.random.normal(ks[7], (mlp_hidden, dim), f32),
        b2=jnp.zeros((dim,), f32),
    )


if __name__ == "__main__":
    # module config
    dim, num_heads = 32, 4
    window_size = (2, 4, 4)
    shift_size = (1, 2, 2)
    mlp_ratio = 2.0
    mlp_hidden = int(dim * mlp_ratio)

    # small input: (B, T, H, W, C)
    B, T, H, W = 2, 4, 8, 8
    key = jax.random.PRNGKey(0)
    kx, kp = jax.random.split(key)
    x = jax.random.normal(kx, (B, T, H, W, dim), jnp.float32)

    attn_mask = jnp.asarray(compute_mask_3d(T, H, W, window_size, shift_size))  # (nW, N, N)
    params = init_params(kp, dim, num_heads, window_size, mlp_hidden)
    prep = prepare_block_params(params, num_heads=num_heads, window_size=window_size)

    # shifted (masked) variant
    fwd = jax.jit(functools.partial(swin_block_forward, num_heads=num_heads,
                                    window_size=window_size, shift_size=shift_size))
    out = jax.block_until_ready(fwd(x, attn_mask, prep))
    assert out.shape == x.shape and out.dtype == x.dtype
    ref = jax.block_until_ready(
        ref_forward(x, attn_mask, params, num_heads=num_heads,
                    window_size=window_size, shift_size=shift_size))
    np.testing.assert_allclose(np.asarray(out), np.asarray(ref), atol=5e-2, rtol=5e-2)

    # unshifted (mask-free) kernel variant
    fwd0 = jax.jit(functools.partial(swin_block_forward, num_heads=num_heads,
                                     window_size=window_size, shift_size=(0, 0, 0)))
    out0 = jax.block_until_ready(fwd0(x, None, prep))
    ref0 = ref_forward(x, None, params, num_heads=num_heads,
                       window_size=window_size, shift_size=(0, 0, 0))
    np.testing.assert_allclose(np.asarray(out0), np.asarray(ref0), atol=5e-2, rtol=5e-2)

    print("KERNEL_OK")
</pallas_src>

<mosaic_0001>
module attributes {stable_mosaic.version = 11 : i64} {
  func.func @_fused_ln_window_attn_kernel(%arg0: i32, %arg1: memref<8x32x32xf32, #tpu.memory_space<vmem>>, %arg2: memref<4x32x32xf32, #tpu.memory_space<vmem>>, %arg3: memref<1x32xf32, #tpu.memory_space<vmem>>, %arg4: memref<1x32xf32, #tpu.memory_space<vmem>>, %arg5: memref<32x64xbf16, #tpu.memory_space<vmem>>, %arg6: memref<1x64xf32, #tpu.memory_space<vmem>>, %arg7: memref<32x128xbf16, #tpu.memory_space<vmem>>, %arg8: memref<1x128xf32, #tpu.memory_space<vmem>>, %arg9: memref<1x32xf32, #tpu.memory_space<vmem>>, %arg10: memref<8x32x32xf32, #tpu.memory_space<vmem>>, %arg11: memref<8x1024xf32, #tpu.memory_space<vmem>>) attributes {dimension_semantics = [#tpu.dimension_semantics<parallel>], iteration_bounds = array<i64: 2>, scalar_prefetch = 0 : i64, scratch_operands = 0 : i64, tpu.core_type = #tpu.core_type<tc>, window_params = [{transform_indices = @transform_0, window_bounds = array<i64: 8, 32, 32>}, {pipeline_mode = #tpu.pipeline_mode<synchronous>, transform_indices = @transform_1, window_bounds = array<i64: 4, 32, 32>}, {pipeline_mode = #tpu.pipeline_mode<synchronous>, transform_indices = @transform_2, window_bounds = array<i64: 1, 32>}, {pipeline_mode = #tpu.pipeline_mode<synchronous>, transform_indices = @transform_3, window_bounds = array<i64: 1, 32>}, {pipeline_mode = #tpu.pipeline_mode<synchronous>, transform_indices = @transform_4, window_bounds = array<i64: 32, 64>}, {pipeline_mode = #tpu.pipeline_mode<synchronous>, transform_indices = @transform_5, window_bounds = array<i64: 1, 64>}, {pipeline_mode = #tpu.pipeline_mode<synchronous>, transform_indices = @transform_6, window_bounds = array<i64: 32, 128>}, {pipeline_mode = #tpu.pipeline_mode<synchronous>, transform_indices = @transform_7, window_bounds = array<i64: 1, 128>}, {pipeline_mode = #tpu.pipeline_mode<synchronous>, transform_indices = @transform_8, window_bounds = array<i64: 1, 32>}, {pipeline_mode = #tpu.pipeline_mode<synchronous>, transform_indices = @transform_9, window_bounds = array<i64: 8, 32, 32>}, {transform_indices = @transform_10, window_bounds = array<i64: 8, 1024>}]} {
    %c0 = arith.constant 0 : index
    %c0_0 = arith.constant 0 : index
    %c0_1 = arith.constant 0 : index
    %0 = vector.load %arg1[%c0, %c0_0, %c0_1] : memref<8x32x32xf32, #tpu.memory_space<vmem>>, vector<8x32x32xf32>
    %1 = vector.shape_cast %0 : vector<8x32x32xf32> to vector<256x32xf32>
    %cst = arith.constant dense<0.000000e+00> : vector<256xf32>
    %2 = vector.multi_reduction <add>, %1, %cst [1] : vector<256x32xf32> to vector<256xf32>
    %3 = vector.shape_cast %2 : vector<256xf32> to vector<256x1xf32>
    %cst_2 = arith.constant 3.200000e+01 : f32
    %4 = vector.broadcast %cst_2 : f32 to vector<256x1xf32>
    %5 = arith.divf %3, %4 : vector<256x1xf32>
    %6 = vector.broadcast %5 : vector<256x1xf32> to vector<256x32xf32>
    %7 = arith.subf %1, %6 : vector<256x32xf32>
    %8 = arith.mulf %7, %7 : vector<256x32xf32>
    %cst_3 = arith.constant dense<0.000000e+00> : vector<256xf32>
    %9 = vector.multi_reduction <add>, %8, %cst_3 [1] : vector<256x32xf32> to vector<256xf32>
    %10 = vector.shape_cast %9 : vector<256xf32> to vector<256x1xf32>
    %cst_4 = arith.constant 3.200000e+01 : f32
    %11 = vector.broadcast %cst_4 : f32 to vector<256x1xf32>
    %12 = arith.divf %10, %11 : vector<256x1xf32>
    %13 = vector.broadcast %5 : vector<256x1xf32> to vector<256x32xf32>
    %14 = arith.subf %1, %13 : vector<256x32xf32>
    %cst_5 = arith.constant 9.99999974E-6 : f32
    %15 = vector.broadcast %cst_5 : f32 to vector<256x1xf32>
    %16 = arith.addf %12, %15 : vector<256x1xf32>
    %17 = math.rsqrt %16 : vector<256x1xf32>
    %18 = vector.broadcast %17 : vector<256x1xf32> to vector<256x32xf32>
    %19 = arith.mulf %14, %18 : vector<256x32xf32>
    %c0_6 = arith.constant 0 : index
    %c0_7 = arith.constant 0 : index
    %20 = vector.load %arg3[%c0_6, %c0_7] : memref<1x32xf32, #tpu.memory_space<vmem>>, vector<1x32xf32>
    %21 = vector.broadcast %20 : vector<1x32xf32> to vector<256x32xf32>
    %22 = arith.mulf %19, %21 : vector<256x32xf32>
    %c0_8 = arith.constant 0 : index
    %c0_9 = arith.constant 0 : index
    %23 = vector.load %arg4[%c0_8, %c0_9] : memref<1x32xf32, #tpu.memory_space<vmem>>, vector<1x32xf32>
    %24 = vector.broadcast %23 : vector<1x32xf32> to vector<256x32xf32>
    %25 = arith.addf %22, %24 : vector<256x32xf32>
    %26 = arith.truncf %25 : vector<256x32xf32> to vector<256x32xbf16>
    %c0_10 = arith.constant 0 : index
    %c0_11 = arith.constant 0 : index
    %27 = vector.load %arg5[%c0_10, %c0_11] : memref<32x64xbf16, #tpu.memory_space<vmem>>, vector<32x64xbf16>
    %cst_12 = arith.constant dense<0.000000e+00> : vector<256x64xf32>
    %28 = tpu.matmul %26, %27, %cst_12 {dimension_numbers = #tpu.dot_dimension_numbers<[1], [0], [0], [1], [0, 0, 1, 1], [], []>} : vector<256x32xbf16>, vector<32x64xbf16>, vector<256x64xf32> -> vector<256x64xf32>
    %c0_13 = arith.constant 0 : index
    %c0_14 = arith.constant 0 : index
    %29 = vector.load %arg6[%c0_13, %c0_14] : memref<1x64xf32, #tpu.memory_space<vmem>>, vector<1x64xf32>
    %30 = vector.broadcast %29 : vector<1x64xf32> to vector<256x64xf32>
    %31 = arith.addf %28, %30 : vector<256x64xf32>
    %c0_15 = arith.constant 0 : index
    %c0_16 = arith.constant 0 : index
    %32 = vector.load %arg7[%c0_15, %c0_16] : memref<32x128xbf16, #tpu.memory_space<vmem>>, vector<32x128xbf16>
    %cst_17 = arith.constant dense<0.000000e+00> : vector<256x128xf32>
    %33 = tpu.matmul %26, %32, %cst_17 {dimension_numbers = #tpu.dot_dimension_numbers<[1], [0], [0], [1], [0, 0, 1, 1], [], []>} : vector<256x32xbf16>, vector<32x128xbf16>, vector<256x128xf32> -> vector<256x128xf32>
    %c0_18 = arith.constant 0 : index
    %c0_19 = arith.constant 0 : index
    %34 = vector.load %arg8[%c0_18, %c0_19] : memref<1x128xf32, #tpu.memory_space<vmem>>, vector<1x128xf32>
    %35 = vector.broadcast %34 : vector<1x128xf32> to vector<256x128xf32>
    %36 = arith.addf %33, %35 : vector<256x128xf32>
    %cst_20 = arith.constant 0.000000e+00 : f32
    %37 = vector.broadcast %cst_20 : f32 to vector<8x32x32xf32>
    %38 = vector.extract_strided_slice %31 {offsets = [0, 0], sizes = [256, 8], strides = [1, 1]} : vector<256x64xf32> to vector<256x8xf32>
    %cst_21 = arith.constant 0.353553385 : f32
    %39 = vector.broadcast %cst_21 : f32 to vector<256x8xf32>
    %40 = arith.mulf %38, %39 : vector<256x8xf32>
    %41 = vector.shape_cast %40 : vector<256x8xf32> to vector<8x32x8xf32>
    %42 = arith.truncf %41 : vector<8x32x8xf32> to vector<8x32x8xbf16>
    %43 = vector.extract_strided_slice %31 {offsets = [0, 32], sizes = [256, 8], strides = [1, 1]} : vector<256x64xf32> to vector<256x8xf32>
    %44 = vector.shape_cast %43 : vector<256x8xf32> to vector<8x32x8xf32>
    %45 = arith.truncf %44 : vector<8x32x8xf32> to vector<8x32x8xbf16>
    %46 = vector.extract_strided_slice %36 {offsets = [0, 0], sizes = [256, 32], strides = [1, 1]} : vector<256x128xf32> to vector<256x32xf32>
    %47 = vector.shape_cast %46 : vector<256x32xf32> to vector<8x32x32xf32>
    %48 = arith.truncf %47 : vector<8x32x32xf32> to vector<8x32x32xbf16>
    %cst_22 = arith.constant dense<0.000000e+00> : vector<8x32x32xf32>
    %49 = tpu.matmul %42, %45, %cst_22 {dimension_numbers = #tpu.dot_dimension_numbers<[2], [2], [1], [1], [0, 0, 0, 1, 1, 1], [0], [0]>} : vector<8x32x8xbf16>, vector<8x32x8xbf16>, vector<8x32x32xf32> -> vector<8x32x32xf32>
    %c0_23 = arith.constant 0 : index
    %c0_24 = arith.constant 0 : index
    %c0_25 = arith.constant 0 : index
    %50 = vector.load %arg2[%c0_23, %c0_24, %c0_25] : memref<4x32x32xf32, #tpu.memory_space<vmem>>, vector<1x32x32xf32>
    %51 = vector.shape_cast %50 : vector<1x32x32xf32> to vector<32x32xf32>
    %52 = vector.shape_cast %51 : vector<32x32xf32> to vector<1x32x32xf32>
    %53 = vector.broadcast %52 : vector<1x32x32xf32> to vector<8x32x32xf32>
    %54 = arith.addf %49, %53 : vector<8x32x32xf32>
    %c0_26 = arith.constant 0 : index
    %c0_27 = arith.constant 0 : index
    %c0_28 = arith.constant 0 : index
    %55 = vector.load %arg10[%c0_26, %c0_27, %c0_28] : memref<8x32x32xf32, #tpu.memory_space<vmem>>, vector<8x32x32xf32>
    %56 = arith.addf %54, %55 : vector<8x32x32xf32>
    %cst_29 = arith.constant dense<0xFF800000> : vector<8x32xf32>
    %57 = vector.multi_reduction <maximumf>, %56, %cst_29 [2] : vector<8x32x32xf32> to vector<8x32xf32>
    %58 = vector.shape_cast %57 : vector<8x32xf32> to vector<8x32x1xf32>
    %59 = vector.broadcast %58 : vector<8x32x1xf32> to vector<8x32x32xf32>
    %60 = arith.subf %56, %59 : vector<8x32x32xf32>
    %61 = math.exp %60 : vector<8x32x32xf32>
    %cst_30 = arith.constant dense<0.000000e+00> : vector<8x32xf32>
    %62 = vector.multi_reduction <add>, %61, %cst_30 [2] : vector<8x32x32xf32> to vector<8x32xf32>
    %63 = vector.shape_cast %62 : vector<8x32xf32> to vector<8x32x1xf32>
    %64 = tpu.reciprocal %63 {approx = true} : vector<8x32x1xf32> -> vector<8x32x1xf32>
    %65 = vector.broadcast %64 : vector<8x32x1xf32> to vector<8x32x32xf32>
    %66 = arith.mulf %61, %65 : vector<8x32x32xf32>
    %67 = arith.truncf %66 : vector<8x32x32xf32> to vector<8x32x32xbf16>
    %cst_31 = arith.constant dense<0.000000e+00> : vector<8x32x32xf32>
    %68 = tpu.matmul %67, %48, %cst_31 {dimension_numbers = #tpu.dot_dimension_numbers<[2], [1], [1], [2], [0, 0, 0, 1, 1, 2], [0], [0]>} : vector<8x32x32xbf16>, vector<8x32x32xbf16>, vector<8x32x32xf32> -> vector<8x32x32xf32>
    %69 = arith.addf %37, %68 : vector<8x32x32xf32>
    %70 = vector.extract_strided_slice %31 {offsets = [0, 8], sizes = [256, 8], strides = [1, 1]} : vector<256x64xf32> to vector<256x8xf32>
    %cst_32 = arith.constant 0.353553385 : f32
    %71 = vector.broadcast %cst_32 : f32 to vector<256x8xf32>
    %72 = arith.mulf %70, %71 : vector<256x8xf32>
    %73 = vector.shape_cast %72 : vector<256x8xf32> to vector<8x32x8xf32>
    %74 = arith.truncf %73 : vector<8x32x8xf32> to vector<8x32x8xbf16>
    %75 = vector.extract_strided_slice %31 {offsets = [0, 40], sizes = [256, 8], strides = [1, 1]} : vector<256x64xf32> to vector<256x8xf32>
    %76 = vector.shape_cast %75 : vector<256x8xf32> to vector<8x32x8xf32>
    %77 = arith.truncf %76 : vector<8x32x8xf32> to vector<8x32x8xbf16>
    %78 = vector.extract_strided_slice %36 {offsets = [0, 32], sizes = [256, 32], strides = [1, 1]} : vector<256x128xf32> to vector<256x32xf32>
    %79 = vector.shape_cast %78 : vector<256x32xf32> to vector<8x32x32xf32>
    %80 = arith.truncf %79 : vector<8x32x32xf32> to vector<8x32x32xbf16>
    %cst_33 = arith.constant dense<0.000000e+00> : vector<8x32x32xf32>
    %81 = tpu.matmul %74, %77, %cst_33 {dimension_numbers = #tpu.dot_dimension_numbers<[2], [2], [1], [1], [0, 0, 0, 1, 1, 1], [0], [0]>} : vector<8x32x8xbf16>, vector<8x32x8xbf16>, vector<8x32x32xf32> -> vector<8x32x32xf32>
    %c1 = arith.constant 1 : index
    %c0_34 = arith.constant 0 : index
    %c0_35 = arith.constant 0 : index
    %82 = vector.load %arg2[%c1, %c0_34, %c0_35] : memref<4x32x32xf32, #tpu.memory_space<vmem>>, vector<1x32x32xf32>
    %83 = vector.shape_cast %82 : vector<1x32x32xf32> to vector<32x32xf32>
    %84 = vector.shape_cast %83 : vector<32x32xf32> to vector<1x32x32xf32>
    %85 = vector.broadcast %84 : vector<1x32x32xf32> to vector<8x32x32xf32>
    %86 = arith.addf %81, %85 : vector<8x32x32xf32>
    %c0_36 = arith.constant 0 : index
    %c0_37 = arith.constant 0 : index
    %c0_38 = arith.constant 0 : index
    %87 = vector.load %arg10[%c0_36, %c0_37, %c0_38] : memref<8x32x32xf32, #tpu.memory_space<vmem>>, vector<8x32x32xf32>
    %88 = arith.addf %86, %87 : vector<8x32x32xf32>
    %cst_39 = arith.constant dense<0xFF800000> : vector<8x32xf32>
    %89 = vector.multi_reduction <maximumf>, %88, %cst_39 [2] : vector<8x32x32xf32> to vector<8x32xf32>
    %90 = vector.shape_cast %89 : vector<8x32xf32> to vector<8x32x1xf32>
    %91 = vector.broadcast %90 : vector<8x32x1xf32> to vector<8x32x32xf32>
    %92 = arith.subf %88, %91 : vector<8x32x32xf32>
    %93 = math.exp %92 : vector<8x32x32xf32>
    %cst_40 = arith.constant dense<0.000000e+00> : vector<8x32xf32>
    %94 = vector.multi_reduction <add>, %93, %cst_40 [2] : vector<8x32x32xf32> to vector<8x32xf32>
    %95 = vector.shape_cast %94 : vector<8x32xf32> to vector<8x32x1xf32>
    %96 = tpu.reciprocal %95 {approx = true} : vector<8x32x1xf32> -> vector<8x32x1xf32>
    %97 = vector.broadcast %96 : vector<8x32x1xf32> to vector<8x32x32xf32>
    %98 = arith.mulf %93, %97 : vector<8x32x32xf32>
    %99 = arith.truncf %98 : vector<8x32x32xf32> to vector<8x32x32xbf16>
    %cst_41 = arith.constant dense<0.000000e+00> : vector<8x32x32xf32>
    %100 = tpu.matmul %99, %80, %cst_41 {dimension_numbers = #tpu.dot_dimension_numbers<[2], [1], [1], [2], [0, 0, 0, 1, 1, 2], [0], [0]>} : vector<8x32x32xbf16>, vector<8x32x32xbf16>, vector<8x32x32xf32> -> vector<8x32x32xf32>
    %101 = arith.addf %69, %100 : vector<8x32x32xf32>
    %102 = vector.extract_strided_slice %31 {offsets = [0, 16], sizes = [256, 8], strides = [1, 1]} : vector<256x64xf32> to vector<256x8xf32>
    %cst_42 = arith.constant 0.353553385 : f32
    %103 = vector.broadcast %cst_42 : f32 to vector<256x8xf32>
    %104 = arith.mulf %102, %103 : vector<256x8xf32>
    %105 = vector.shape_cast %104 : vector<256x8xf32> to vector<8x32x8xf32>
    %106 = arith.truncf %105 : vector<8x32x8xf32> to vector<8x32x8xbf16>
    %107 = vector.extract_strided_slice %31 {offsets = [0, 48], sizes = [256, 8], strides = [1, 1]} : vector<256x64xf32> to vector<256x8xf32>
    %108 = vector.shape_cast %107 : vector<256x8xf32> to vector<8x32x8xf32>
    %109 = arith.truncf %108 : vector<8x32x8xf32> to vector<8x32x8xbf16>
    %110 = vector.extract_strided_slice %36 {offsets = [0, 64], sizes = [256, 32], strides = [1, 1]} : vector<256x128xf32> to vector<256x32xf32>
    %111 = vector.shape_cast %110 : vector<256x32xf32> to vector<8x32x32xf32>
    %112 = arith.truncf %111 : vector<8x32x32xf32> to vector<8x32x32xbf16>
    %cst_43 = arith.constant dense<0.000000e+00> : vector<8x32x32xf32>
    %113 = tpu.matmul %106, %109, %cst_43 {dimension_numbers = #tpu.dot_dimension_numbers<[2], [2], [1], [1], [0, 0, 0, 1, 1, 1], [0], [0]>} : vector<8x32x8xbf16>, vector<8x32x8xbf16>, vector<8x32x32xf32> -> vector<8x32x32xf32>
    %c2 = arith.constant 2 : index
    %c0_44 = arith.constant 0 : index
    %c0_45 = arith.constant 0 : index
    %114 = vector.load %arg2[%c2, %c0_44, %c0_45] : memref<4x32x32xf32, #tpu.memory_space<vmem>>, vector<1x32x32xf32>
    %115 = vector.shape_cast %114 : vector<1x32x32xf32> to vector<32x32xf32>
    %116 = vector.shape_cast %115 : vector<32x32xf32> to vector<1x32x32xf32>
    %117 = vector.broadcast %116 : vector<1x32x32xf32> to vector<8x32x32xf32>
    %118 = arith.addf %113, %117 : vector<8x32x32xf32>
    %c0_46 = arith.constant 0 : index
    %c0_47 = arith.constant 0 : index
    %c0_48 = arith.constant 0 : index
    %119 = vector.load %arg10[%c0_46, %c0_47, %c0_48] : memref<8x32x32xf32, #tpu.memory_space<vmem>>, vector<8x32x32xf32>
    %120 = arith.addf %118, %119 : vector<8x32x32xf32>
    %cst_49 = arith.constant dense<0xFF800000> : vector<8x32xf32>
    %121 = vector.multi_reduction <maximumf>, %120, %cst_49 [2] : vector<8x32x32xf32> to vector<8x32xf32>
    %122 = vector.shape_cast %121 : vector<8x32xf32> to vector<8x32x1xf32>
    %123 = vector.broadcast %122 : vector<8x32x1xf32> to vector<8x32x32xf32>
    %124 = arith.subf %120, %123 : vector<8x32x32xf32>
    %125 = math.exp %124 : vector<8x32x32xf32>
    %cst_50 = arith.constant dense<0.000000e+00> : vector<8x32xf32>
    %126 = vector.multi_reduction <add>, %125, %cst_50 [2] : vector<8x32x32xf32> to vector<8x32xf32>
    %127 = vector.shape_cast %126 : vector<8x32xf32> to vector<8x32x1xf32>
    %128 = tpu.reciprocal %127 {approx = true} : vector<8x32x1xf32> -> vector<8x32x1xf32>
    %129 = vector.broadcast %128 : vector<8x32x1xf32> to vector<8x32x32xf32>
    %130 = arith.mulf %125, %129 : vector<8x32x32xf32>
    %131 = arith.truncf %130 : vector<8x32x32xf32> to vector<8x32x32xbf16>
    %cst_51 = arith.constant dense<0.000000e+00> : vector<8x32x32xf32>
    %132 = tpu.matmul %131, %112, %cst_51 {dimension_numbers = #tpu.dot_dimension_numbers<[2], [1], [1], [2], [0, 0, 0, 1, 1, 2], [0], [0]>} : vector<8x32x32xbf16>, vector<8x32x32xbf16>, vector<8x32x32xf32> -> vector<8x32x32xf32>
    %133 = arith.addf %101, %132 : vector<8x32x32xf32>
    %134 = vector.extract_strided_slice %31 {offsets = [0, 24], sizes = [256, 8], strides = [1, 1]} : vector<256x64xf32> to vector<256x8xf32>
    %cst_52 = arith.constant 0.353553385 : f32
    %135 = vector.broadcast %cst_52 : f32 to vector<256x8xf32>
    %136 = arith.mulf %134, %135 : vector<256x8xf32>
    %137 = vector.shape_cast %136 : vector<256x8xf32> to vector<8x32x8xf32>
    %138 = arith.truncf %137 : vector<8x32x8xf32> to vector<8x32x8xbf16>
    %139 = vector.extract_strided_slice %31 {offsets = [0, 56], sizes = [256, 8], strides = [1, 1]} : vector<256x64xf32> to vector<256x8xf32>
    %140 = vector.shape_cast %139 : vector<256x8xf32> to vector<8x32x8xf32>
    %141 = arith.truncf %140 : vector<8x32x8xf32> to vector<8x32x8xbf16>
    %142 = vector.extract_strided_slice %36 {offsets = [0, 96], sizes = [256, 32], strides = [1, 1]} : vector<256x128xf32> to vector<256x32xf32>
    %143 = vector.shape_cast %142 : vector<256x32xf32> to vector<8x32x32xf32>
    %144 = arith.truncf %143 : vector<8x32x32xf32> to vector<8x32x32xbf16>
    %cst_53 = arith.constant dense<0.000000e+00> : vector<8x32x32xf32>
    %145 = tpu.matmul %138, %141, %cst_53 {dimension_numbers = #tpu.dot_dimension_numbers<[2], [2], [1], [1], [0, 0, 0, 1, 1, 1], [0], [0]>} : vector<8x32x8xbf16>, vector<8x32x8xbf16>, vector<8x32x32xf32> -> vector<8x32x32xf32>
    %c3 = arith.constant 3 : index
    %c0_54 = arith.constant 0 : index
    %c0_55 = arith.constant 0 : index
    %146 = vector.load %arg2[%c3, %c0_54, %c0_55] : memref<4x32x32xf32, #tpu.memory_space<vmem>>, vector<1x32x32xf32>
    %147 = vector.shape_cast %146 : vector<1x32x32xf32> to vector<32x32xf32>
    %148 = vector.shape_cast %147 : vector<32x32xf32> to vector<1x32x32xf32>
    %149 = vector.broadcast %148 : vector<1x32x32xf32> to vector<8x32x32xf32>
    %150 = arith.addf %145, %149 : vector<8x32x32xf32>
    %c0_56 = arith.constant 0 : index
    %c0_57 = arith.constant 0 : index
    %c0_58 = arith.constant 0 : index
    %151 = vector.load %arg10[%c0_56, %c0_57, %c0_58] : memref<8x32x32xf32, #tpu.memory_space<vmem>>, vector<8x32x32xf32>
    %152 = arith.addf %150, %151 : vector<8x32x32xf32>
    %cst_59 = arith.constant dense<0xFF800000> : vector<8x32xf32>
    %153 = vector.multi_reduction <maximumf>, %152, %cst_59 [2] : vector<8x32x32xf32> to vector<8x32xf32>
    %154 = vector.shape_cast %153 : vector<8x32xf32> to vector<8x32x1xf32>
    %155 = vector.broadcast %154 : vector<8x32x1xf32> to vector<8x32x32xf32>
    %156 = arith.subf %152, %155 : vector<8x32x32xf32>
    %157 = math.exp %156 : vector<8x32x32xf32>
    %cst_60 = arith.constant dense<0.000000e+00> : vector<8x32xf32>
    %158 = vector.multi_reduction <add>, %157, %cst_60 [2] : vector<8x32x32xf32> to vector<8x32xf32>
    %159 = vector.shape_cast %158 : vector<8x32xf32> to vector<8x32x1xf32>
    %160 = tpu.reciprocal %159 {approx = true} : vector<8x32x1xf32> -> vector<8x32x1xf32>
    %161 = vector.broadcast %160 : vector<8x32x1xf32> to vector<8x32x32xf32>
    %162 = arith.mulf %157, %161 : vector<8x32x32xf32>
    %163 = arith.truncf %162 : vector<8x32x32xf32> to vector<8x32x32xbf16>
    %cst_61 = arith.constant dense<0.000000e+00> : vector<8x32x32xf32>
    %164 = tpu.matmul %163, %144, %cst_61 {dimension_numbers = #tpu.dot_dimension_numbers<[2], [1], [1], [2], [0, 0, 0, 1, 1, 2], [0], [0]>} : vector<8x32x32xbf16>, vector<8x32x32xbf16>, vector<8x32x32xf32> -> vector<8x32x32xf32>
    %165 = arith.addf %133, %164 : vector<8x32x32xf32>
    %c0_62 = arith.constant 0 : index
    %c0_63 = arith.constant 0 : index
    %166 = vector.load %arg9[%c0_62, %c0_63] : memref<1x32xf32, #tpu.memory_space<vmem>>, vector<1x32xf32>
    %167 = vector.shape_cast %166 : vector<1x32xf32> to vector<1x1x32xf32>
    %168 = vector.broadcast %167 : vector<1x1x32xf32> to vector<8x32x32xf32>
    %169 = arith.addf %165, %168 : vector<8x32x32xf32>
    %170 = vector.shape_cast %169 : vector<8x32x32xf32> to vector<8x1024xf32>
    %c0_64 = arith.constant 0 : index
    %c0_65 = arith.constant 0 : index
    %171 = vector.load %arg11[%c0_64, %c0_65] : memref<8x1024xf32, #tpu.memory_space<vmem>>, vector<8x1024xf32>
    tpu.vector_store %arg11[%c0_64, %c0_65], %170 {strides = array<i32>} : memref<8x1024xf32, #tpu.memory_space<vmem>>, vector<8x1024xf32>,
    return
  }
  func.func @transform_0(%arg0: i32) -> (i32, i32, i32) {
    %c0_i32 = arith.constant 0 : i32
    %c0_i32_0 = arith.constant 0 : i32
    %c0_i32_1 = arith.constant 0 : i32
    return %arg0, %c0_i32, %c0_i32_0 : i32, i32, i32
  }
  func.func @transform_1(%arg0: i32) -> (i32, i32, i32) {
    %c0_i32 = arith.constant 0 : i32
    %c0_i32_0 = arith.constant 0 : i32
    %c0_i32_1 = arith.constant 0 : i32
    %c0_i32_2 = arith.constant 0 : i32
    return %c0_i32, %c0_i32_0, %c0_i32_1 : i32, i32, i32
  }
  func.func @transform_2(%arg0: i32) -> (i32, i32) {
    %c0_i32 = arith.constant 0 : i32
    %c0_i32_0 = arith.constant 0 : i32
    %c0_i32_1 = arith.constant 0 : i32
    return %c0_i32, %c0_i32_0 : i32, i32
  }
  func.func @transform_3(%arg0: i32) -> (i32, i32) {
    %c0_i32 = arith.constant 0 : i32
    %c0_i32_0 = arith.constant 0 : i32
    %c0_i32_1 = arith.constant 0 : i32
    return %c0_i32, %c0_i32_0 : i32, i32
  }
  func.func @transform_4(%arg0: i32) -> (i32, i32) {
    %c0_i32 = arith.constant 0 : i32
    %c0_i32_0 = arith.constant 0 : i32
    %c0_i32_1 = arith.constant 0 : i32
    return %c0_i32, %c0_i32_0 : i32, i32
  }
  func.func @transform_5(%arg0: i32) -> (i32, i32) {
    %c0_i32 = arith.constant 0 : i32
    %c0_i32_0 = arith.constant 0 : i32
    %c0_i32_1 = arith.constant 0 : i32
    return %c0_i32, %c0_i32_0 : i32, i32
  }
  func.func @transform_6(%arg0: i32) -> (i32, i32) {
    %c0_i32 = arith.constant 0 : i32
    %c0_i32_0 = arith.constant 0 : i32
    %c0_i32_1 = arith.constant 0 : i32
    return %c0_i32, %c0_i32_0 : i32, i32
  }
  func.func @transform_7(%arg0: i32) -> (i32, i32) {
    %c0_i32 = arith.constant 0 : i32
    %c0_i32_0 = arith.constant 0 : i32
    %c0_i32_1 = arith.constant 0 : i32
    return %c0_i32, %c0_i32_0 : i32, i32
  }
  func.func @transform_8(%arg0: i32) -> (i32, i32) {
    %c0_i32 = arith.constant 0 : i32
    %c0_i32_0 = arith.constant 0 : i32
    %c0_i32_1 = arith.constant 0 : i32
    return %c0_i32, %c0_i32_0 : i32, i32
  }
  func.func @transform_9(%arg0: i32) -> (i32, i32, i32) {
    %c0_i32 = arith.constant 0 : i32
    %c0_i32_0 = arith.constant 0 : i32
    %c0_i32_1 = arith.constant 0 : i32
    %c0_i32_2 = arith.constant 0 : i32
    return %c0_i32, %c0_i32_0, %c0_i32_1 : i32, i32, i32
  }
  func.func @transform_10(%arg0: i32) -> (i32, i32) {
    %c0_i32 = arith.constant 0 : i32
    %c0_i32_0 = arith.constant 0 : i32
    return %arg0, %c0_i32 : i32, i32
  }
}

module attributes {stable_mosaic.version = 11 : i64} {
  func.func @_norm_mlp_residual_kernel(%arg0: i32, %arg1: memref<32x128xf32, #tpu.memory_space<vmem>>, %arg2: memref<32x128xf32, #tpu.memory_space<vmem>>, %arg3: memref<128x4xf32, #tpu.memory_space<vmem>>, %arg4: memref<4x128xf32, #tpu.memory_space<vmem>>, %arg5: memref<1x128xf32, #tpu.memory_space<vmem>>, %arg6: memref<1x128xf32, #tpu.memory_space<vmem>>, %arg7: memref<128x256xbf16, #tpu.memory_space<vmem>>, %arg8: memref<1x256xf32, #tpu.memory_space<vmem>>, %arg9: memref<256x128xbf16, #tpu.memory_space<vmem>>, %arg10: memref<1x128xf32, #tpu.memory_space<vmem>>, %arg11: memref<32x128xf32, #tpu.memory_space<vmem>>) attributes {dimension_semantics = [#tpu.dimension_semantics<parallel>], iteration_bounds = array<i64: 4>, scalar_prefetch = 0 : i64, scratch_operands = 0 : i64, tpu.core_type = #tpu.core_type<tc>, window_params = [{transform_indices = @transform_0, window_bounds = array<i64: 32, 128>}, {transform_indices = @transform_1, window_bounds = array<i64: 32, 128>}, {pipeline_mode = #tpu.pipeline_mode<synchronous>, transform_indices = @transform_2, window_bounds = array<i64: 128, 4>}, {pipeline_mode = #tpu.pipeline_mode<synchronous>, transform_indices = @transform_3, window_bounds = array<i64: 4, 128>}, {pipeline_mode = #tpu.pipeline_mode<synchronous>, transform_indices = @transform_4, window_bounds = array<i64: 1, 128>}, {pipeline_mode = #tpu.pipeline_mode<synchronous>, transform_indices = @transform_5, window_bounds = array<i64: 1, 128>}, {pipeline_mode = #tpu.pipeline_mode<synchronous>, transform_indices = @transform_6, window_bounds = array<i64: 128, 256>}, {pipeline_mode = #tpu.pipeline_mode<synchronous>, transform_indices = @transform_7, window_bounds = array<i64: 1, 256>}, {pipeline_mode = #tpu.pipeline_mode<synchronous>, transform_indices = @transform_8, window_bounds = array<i64: 256, 128>}, {pipeline_mode = #tpu.pipeline_mode<synchronous>, transform_indices = @transform_9, window_bounds = array<i64: 1, 128>}, {transform_indices = @transform_10, window_bounds = array<i64: 32, 128>}]} {
    %c0 = arith.constant 0 : index
    %c0_0 = arith.constant 0 : index
    %0 = vector.load %arg1[%c0, %c0_0] : memref<32x128xf32, #tpu.memory_space<vmem>>, vector<32x128xf32>
    %c0_1 = arith.constant 0 : index
    %c0_2 = arith.constant 0 : index
    %1 = vector.load %arg2[%c0_1, %c0_2] : memref<32x128xf32, #tpu.memory_space<vmem>>, vector<32x128xf32>
    %2 = arith.addf %0, %1 : vector<32x128xf32>
    %c0_3 = arith.constant 0 : index
    %c0_4 = arith.constant 0 : index
    %3 = vector.load %arg3[%c0_3, %c0_4] : memref<128x4xf32, #tpu.memory_space<vmem>>, vector<128x4xf32>
    %c0_5 = arith.constant 0 : index
    %c0_6 = arith.constant 0 : index
    %4 = vector.load %arg4[%c0_5, %c0_6] : memref<4x128xf32, #tpu.memory_space<vmem>>, vector<4x128xf32>
    %cst = arith.constant dense<0.000000e+00> : vector<32x4xf32>
    %5 = tpu.matmul %2, %3, %cst {dimension_numbers = #tpu.dot_dimension_numbers<[1], [0], [0], [1], [0, 0, 1, 1], [], []>} : vector<32x128xf32>, vector<128x4xf32>, vector<32x4xf32> -> vector<32x4xf32>
    %cst_7 = arith.constant 3.125000e-02 : f32
    %6 = vector.broadcast %cst_7 : f32 to vector<32x4xf32>
    %7 = arith.mulf %5, %6 : vector<32x4xf32>
    %cst_8 = arith.constant dense<0.000000e+00> : vector<32x128xf32>
    %8 = tpu.matmul %7, %4, %cst_8 {dimension_numbers = #tpu.dot_dimension_numbers<[1], [0], [0], [1], [0, 0, 1, 1], [], []>} : vector<32x4xf32>, vector<4x128xf32>, vector<32x128xf32> -> vector<32x128xf32>
    %9 = arith.subf %2, %8 : vector<32x128xf32>
    %10 = arith.mulf %9, %9 : vector<32x128xf32>
    %cst_9 = arith.constant dense<0.000000e+00> : vector<32x4xf32>
    %11 = tpu.matmul %10, %3, %cst_9 {dimension_numbers = #tpu.dot_dimension_numbers<[1], [0], [0], [1], [0, 0, 1, 1], [], []>} : vector<32x128xf32>, vector<128x4xf32>, vector<32x4xf32> -> vector<32x4xf32>
    %cst_10 = arith.constant 3.125000e-02 : f32
    %12 = vector.broadcast %cst_10 : f32 to vector<32x4xf32>
    %13 = arith.mulf %11, %12 : vector<32x4xf32>
    %cst_11 = arith.constant 9.99999974E-6 : f32
    %14 = vector.broadcast %cst_11 : f32 to vector<32x4xf32>
    %15 = arith.addf %13, %14 : vector<32x4xf32>
    %16 = math.rsqrt %15 : vector<32x4xf32>
    %cst_12 = arith.constant dense<0.000000e+00> : vector<32x128xf32>
    %17 = tpu.matmul %16, %4, %cst_12 {dimension_numbers = #tpu.dot_dimension_numbers<[1], [0], [0], [1], [0, 0, 1, 1], [], []>} : vector<32x4xf32>, vector<4x128xf32>, vector<32x128xf32> -> vector<32x128xf32>
    %18 = arith.mulf %9, %17 : vector<32x128xf32>
    %c0_13 = arith.constant 0 : index
    %c0_14 = arith.constant 0 : index
    %19 = vector.load %arg5[%c0_13, %c0_14] : memref<1x128xf32, #tpu.memory_space<vmem>>, vector<1x128xf32>
    %20 = vector.broadcast %19 : vector<1x128xf32> to vector<32x128xf32>
    %21 = arith.mulf %18, %20 : vector<32x128xf32>
    %c0_15 = arith.constant 0 : index
    %c0_16 = arith.constant 0 : index
    %22 = vector.load %arg6[%c0_15, %c0_16] : memref<1x128xf32, #tpu.memory_space<vmem>>, vector<1x128xf32>
    %23 = vector.broadcast %22 : vector<1x128xf32> to vector<32x128xf32>
    %24 = arith.addf %21, %23 : vector<32x128xf32>
    %25 = arith.truncf %24 : vector<32x128xf32> to vector<32x128xbf16>
    %c0_17 = arith.constant 0 : index
    %c0_18 = arith.constant 0 : index
    %26 = vector.load %arg7[%c0_17, %c0_18] : memref<128x256xbf16, #tpu.memory_space<vmem>>, vector<128x256xbf16>
    %cst_19 = arith.constant dense<0.000000e+00> : vector<32x256xf32>
    %27 = tpu.matmul %25, %26, %cst_19 {dimension_numbers = #tpu.dot_dimension_numbers<[1], [0], [0], [1], [0, 0, 1, 1], [], []>} : vector<32x128xbf16>, vector<128x256xbf16>, vector<32x256xf32> -> vector<32x256xf32>
    %c0_20 = arith.constant 0 : index
    %c0_21 = arith.constant 0 : index
    %28 = vector.load %arg8[%c0_20, %c0_21] : memref<1x256xf32, #tpu.memory_space<vmem>>, vector<1x256xf32>
    %29 = vector.broadcast %28 : vector<1x256xf32> to vector<32x256xf32>
    %30 = arith.addf %27, %29 : vector<32x256xf32>
    %cst_22 = arith.constant 5.000000e-01 : f32
    %31 = vector.broadcast %cst_22 : f32 to vector<32x256xf32>
    %32 = arith.mulf %31, %30 : vector<32x256xf32>
    %cst_23 = arith.constant 4.471500e-02 : f32
    %33 = vector.broadcast %cst_23 : f32 to vector<32x256xf32>
    %34 = arith.mulf %33, %30 : vector<32x256xf32>
    %35 = arith.mulf %34, %30 : vector<32x256xf32>
    %36 = arith.mulf %35, %30 : vector<32x256xf32>
    %37 = arith.addf %30, %36 : vector<32x256xf32>
    %cst_24 = arith.constant 0.797884583 : f32
    %38 = vector.broadcast %cst_24 : f32 to vector<32x256xf32>
    %39 = arith.mulf %38, %37 : vector<32x256xf32>
    %40 = math.tanh %39 : vector<32x256xf32>
    %cst_25 = arith.constant 1.000000e+00 : f32
    %41 = vector.broadcast %cst_25 : f32 to vector<32x256xf32>
    %42 = arith.addf %41, %40 : vector<32x256xf32>
    %43 = arith.mulf %32, %42 : vector<32x256xf32>
    %44 = arith.truncf %43 : vector<32x256xf32> to vector<32x256xbf16>
    %c0_26 = arith.constant 0 : index
    %c0_27 = arith.constant 0 : index
    %45 = vector.load %arg9[%c0_26, %c0_27] : memref<256x128xbf16, #tpu.memory_space<vmem>>, vector<256x128xbf16>
    %cst_28 = arith.constant dense<0.000000e+00> : vector<32x128xf32>
    %46 = tpu.matmul %44, %45, %cst_28 {dimension_numbers = #tpu.dot_dimension_numbers<[1], [0], [0], [1], [0, 0, 1, 1], [], []>} : vector<32x256xbf16>, vector<256x128xbf16>, vector<32x128xf32> -> vector<32x128xf32>
    %c0_29 = arith.constant 0 : index
    %c0_30 = arith.constant 0 : index
    %47 = vector.load %arg10[%c0_29, %c0_30] : memref<1x128xf32, #tpu.memory_space<vmem>>, vector<1x128xf32>
    %48 = vector.broadcast %47 : vector<1x128xf32> to vector<32x128xf32>
    %49 = arith.addf %46, %48 : vector<32x128xf32>
    %50 = arith.addf %0, %49 : vector<32x128xf32>
    %c0_31 = arith.constant 0 : index
    %c0_32 = arith.constant 0 : index
    %51 = vector.load %arg11[%c0_31, %c0_32] : memref<32x128xf32, #tpu.memory_space<vmem>>, vector<32x128xf32>
    tpu.vector_store %arg11[%c0_31, %c0_32], %50 {strides = array<i32>} : memref<32x128xf32, #tpu.memory_space<vmem>>, vector<32x128xf32>,
    return
  }
  func.func @transform_0(%arg0: i32) -> (i32, i32) {
    %c0_i32 = arith.constant 0 : i32
    %c0_i32_0 = arith.constant 0 : i32
    return %arg0, %c0_i32 : i32, i32
  }
  func.func @transform_1(%arg0: i32) -> (i32, i32) {
    %c0_i32 = arith.constant 0 : i32
    %c0_i32_0 = arith.constant 0 : i32
    return %arg0, %c0_i32 : i32, i32
  }
  func.func @transform_2(%arg0: i32) -> (i32, i32) {
    %c0_i32 = arith.constant 0 : i32
    %c0_i32_0 = arith.constant 0 : i32
    %c0_i32_1 = arith.constant 0 : i32
    return %c0_i32, %c0_i32_0 : i32, i32
  }
  func.func @transform_3(%arg0: i32) -> (i32, i32) {
    %c0_i32 = arith.constant 0 : i32
    %c0_i32_0 = arith.constant 0 : i32
    %c0_i32_1 = arith.constant 0 : i32
    return %c0_i32, %c0_i32_0 : i32, i32
  }
  func.func @transform_4(%arg0: i32) -> (i32, i32) {
    %c0_i32 = arith.constant 0 : i32
    %c0_i32_0 = arith.constant 0 : i32
    %c0_i32_1 = arith.constant 0 : i32
    return %c0_i32, %c0_i32_0 : i32, i32
  }
  func.func @transform_5(%arg0: i32) -> (i32, i32) {
    %c0_i32 = arith.constant 0 : i32
    %c0_i32_0 = arith.constant 0 : i32
    %c0_i32_1 = arith.constant 0 : i32
    return %c0_i32, %c0_i32_0 : i32, i32
  }
  func.func @transform_6(%arg0: i32) -> (i32, i32) {
    %c0_i32 = arith.constant 0 : i32
    %c0_i32_0 = arith.constant 0 : i32
    %c0_i32_1 = arith.constant 0 : i32
    return %c0_i32, %c0_i32_0 : i32, i32
  }
  func.func @transform_7(%arg0: i32) -> (i32, i32) {
    %c0_i32 = arith.constant 0 : i32
    %c0_i32_0 = arith.constant 0 : i32
    %c0_i32_1 = arith.constant 0 : i32
    return %c0_i32, %c0_i32_0 : i32, i32
  }
  func.func @transform_8(%arg0: i32) -> (i32, i32) {
    %c0_i32 = arith.constant 0 : i32
    %c0_i32_0 = arith.constant 0 : i32
    %c0_i32_1 = arith.constant 0 : i32
    return %c0_i32, %c0_i32_0 : i32, i32
  }
  func.func @transform_9(%arg0: i32) -> (i32, i32) {
    %c0_i32 = arith.constant 0 : i32
    %c0_i32_0 = arith.constant 0 : i32
    %c0_i32_1 = arith.constant 0 : i32
    return %c0_i32, %c0_i32_0 : i32, i32
  }
  func.func @transform_10(%arg0: i32) -> (i32, i32) {
    %c0_i32 = arith.constant 0 : i32
    %c0_i32_0 = arith.constant 0 : i32
    return %arg0, %c0_i32 : i32, i32
  }
}

</mosaic_0001>

<llo_original>
// kernel: swin_block_forward.3
$region0: #{swin_block_forward.3}
  #allocation0 [shape = 'u32[]', space=smem, size = 0x4, offset = 0x4, fixed_abs, tag = 'smem constant byte address 0x4 - core index']
  #allocation1 [shape = 'u32[144,128]{1,0:T(1,128)}', space=vmem, size = 0x12000, scoped, tag = 'internal scratch']
  %s0 = inlined_call_operand.vmem [shape: f32[128,128], index: 0, kind: input, shape index: {}]
  %s1 = inlined_call_operand.vmem [shape: f32[128,128], index: 1, kind: input, shape index: {}]
  %s2 = inlined_call_operand.vmem [shape: f32[128,4], index: 2, kind: input, shape index: {}]
  %s3 = inlined_call_operand.vmem [shape: f32[4,128], index: 3, kind: input, shape index: {}]
  %s4 = inlined_call_operand.vmem [shape: f32[1,128], index: 4, kind: input, shape index: {}]
  %s5 = inlined_call_operand.vmem [shape: f32[1,128], index: 5, kind: input, shape index: {}]
  %s6 = inlined_call_operand.vmem [shape: bf16[128,256], index: 6, kind: input, shape index: {}]
  %s7 = inlined_call_operand.vmem [shape: f32[1,256], index: 7, kind: input, shape index: {}]
  %s8 = inlined_call_operand.vmem [shape: bf16[256,128], index: 8, kind: input, shape index: {}]
  %s9 = inlined_call_operand.vmem [shape: f32[1,128], index: 9, kind: input, shape index: {}]
  %s10 = inlined_call_operand.vmem [shape: f32[128,128], index: 10, kind: output, shape index: {}]
  %s11 = sld [smem:[#allocation0]]
  $region73: #{swin_block_forward.3} parent=0
    _
  %s13 = ssub.s32 1, %s11
  %s14 = scalar_select 0, %s13, %s11
  loop: start=0, step=1, limit=6
  $region2: #{swin_block_forward.3} parent=0 // loop_pre_header
    _
  $region3: #{swin_block_forward.3} parent=0 // loop_header
    %s16 = sphi 0, %s20
    %p17 = scmp.ge.s32.totalorder %s16, 6
    %s26 = sphi 0, %s28
    %s29 = sphi 0, %s26
    %s30 = sphi 0, %s29
    %s46 = sphi 0, %s30
    %s52 = sphi 0, %s54
    %s55 = sphi 0, %s52
    %s56 = sphi 0, %s55
    %s72 = sphi 0, %s56
    %s76 = sphi 0, %s76
    %s78 = sphi 0, %s76
    %s79 = sphi 0, %s78
    %s93 = sphi 0, %s79
    %s97 = sphi 0, %s97
    %s99 = sphi 0, %s97
    %s100 = sphi 0, %s99
    %s114 = sphi 0, %s100
    %s118 = sphi 0, %s118
    %s120 = sphi 0, %s118
    %s121 = sphi 0, %s120
    %s135 = sphi 0, %s121
    %s139 = sphi 0, %s139
    %s141 = sphi 0, %s139
    %s142 = sphi 0, %s141
    %s156 = sphi 0, %s142
    %s160 = sphi 0, %s160
    %s162 = sphi 0, %s160
    %s163 = sphi 0, %s162
    %s177 = sphi 0, %s163
    %s181 = sphi 0, %s181
    %s183 = sphi 0, %s181
    %s184 = sphi 0, %s183
    %s198 = sphi 0, %s184
    %s202 = sphi 0, %s202
    %s204 = sphi 0, %s202
    %s205 = sphi 0, %s204
    %s219 = sphi 0, %s205
    %s223 = sphi 0, %s223
    %s225 = sphi 0, %s223
    %s226 = sphi 0, %s225
    %s240 = sphi 0, %s226
    %s246 = sphi 0, %s248
    %s249 = sphi 0, %s246
    %s250 = sphi 0, %s249
    %s266 = sphi 0, %s250
  $region4: #{swin_block_forward.3} parent=0 // loop_header_branch
    %19 = sbr.rel (%p17) target = $region8
  $region5: #{swin_block_forward.3} parent=0 // loop_body
    %s21 = ssub.s32 %s16, 1
    %s22 = ssub.s32 %s16, 2
    %s23 = sadd.s32 %s16, 1
    %s24 = ssub.s32 %s16, %s23
    %p25 = scmp.eq.s32.totalorder %s24, 0
    %s27 = sadd.s32 %s26, 1
    %s28 = scalar_select %p25, %s26, %s27
    %p31 = pneg %p25
    %p32 = scmp.eq.s32.totalorder %s16, 3
    %p33 = por %p31, %p32
    %p34 = scmp.ne.s32.totalorder %s26, %s29
    %p35 = scmp.eq.s32.totalorder %s16, 0
    %p36 = por %p34, %p35
    %p37 = scmp.ne.s32.totalorder %s26, %s29
    %p38 = scmp.eq.s32.totalorder %s21, 3
    %p39 = por %p37, %p38
    %p40 = scmp.ne.s32.totalorder %s29, %s30
    %p41 = scmp.eq.s32.totalorder %s21, 0
    %p42 = por %p40, %p41
    %p43 = scmp.ne.s32.totalorder %s29, %s30
    %p44 = scmp.eq.s32.totalorder %s22, 3
    %p45 = por %p43, %p44
    %p47 = scmp.ne.s32.totalorder %s30, %s46
    %p48 = scmp.eq.s32.totalorder %s22, 0
    %p49 = por %p47, %p48
    %s50 = ssub.s32 %s16, %s23
    %p51 = scmp.eq.s32.totalorder %s50, 0
    %s53 = sadd.s32 %s52, 1
    %s54 = scalar_select %p51, %s52, %s53
    %p57 = pneg %p51
    %p58 = scmp.eq.s32.totalorder %s16, 3
    %p59 = por %p57, %p58
    %p60 = scmp.ne.s32.totalorder %s52, %s55
    %p61 = scmp.eq.s32.totalorder %s16, 0
    %p62 = por %p60, %p61
    %p63 = scmp.ne.s32.totalorder %s52, %s55
    %p64 = scmp.eq.s32.totalorder %s21, 3
    %p65 = por %p63, %p64
    %p66 = scmp.ne.s32.totalorder %s55, %s56
    %p67 = scmp.eq.s32.totalorder %s21, 0
    %p68 = por %p66, %p67
    %p69 = scmp.ne.s32.totalorder %s55, %s56
    %p70 = scmp.eq.s32.totalorder %s22, 3
    %p71 = por %p69, %p70
    %p73 = scmp.ne.s32.totalorder %s56, %s72
    %p74 = scmp.eq.s32.totalorder %s22, 0
    %p75 = por %p73, %p74
    %s77 = sadd.s32 %s76, 1
    %p80 = scmp.eq.s32.totalorder %s16, 3
    %p81 = scmp.ne.s32.totalorder %s76, %s78
    %p82 = scmp.eq.s32.totalorder %s16, 0
    %p83 = por %p81, %p82
    %p84 = scmp.ne.s32.totalorder %s76, %s78
    %p85 = scmp.eq.s32.totalorder %s21, 3
    %p86 = por %p84, %p85
    %p87 = scmp.ne.s32.totalorder %s78, %s79
    %p88 = scmp.eq.s32.totalorder %s21, 0
    %p89 = por %p87, %p88
    %p90 = scmp.ne.s32.totalorder %s78, %s79
    %p91 = scmp.eq.s32.totalorder %s22, 3
    %p92 = por %p90, %p91
    %p94 = scmp.ne.s32.totalorder %s79, %s93
    %p95 = scmp.eq.s32.totalorder %s22, 0
    %p96 = por %p94, %p95
    %s98 = sadd.s32 %s97, 1
    %p101 = scmp.eq.s32.totalorder %s16, 3
    %p102 = scmp.ne.s32.totalorder %s97, %s99
    %p103 = scmp.eq.s32.totalorder %s16, 0
    %p104 = por %p102, %p103
    %p105 = scmp.ne.s32.totalorder %s97, %s99
    %p106 = scmp.eq.s32.totalorder %s21, 3
    %p107 = por %p105, %p106
    %p108 = scmp.ne.s32.totalorder %s99, %s100
    %p109 = scmp.eq.s32.totalorder %s21, 0
    %p110 = por %p108, %p109
    %p111 = scmp.ne.s32.totalorder %s99, %s100
    %p112 = scmp.eq.s32.totalorder %s22, 3
    %p113 = por %p111, %p112
    %p115 = scmp.ne.s32.totalorder %s100, %s114
    %p116 = scmp.eq.s32.totalorder %s22, 0
    %p117 = por %p115, %p116
    %s119 = sadd.s32 %s118, 1
    %p122 = scmp.eq.s32.totalorder %s16, 3
    %p123 = scmp.ne.s32.totalorder %s118, %s120
    %p124 = scmp.eq.s32.totalorder %s16, 0
    %p125 = por %p123, %p124
    %p126 = scmp.ne.s32.totalorder %s118, %s120
    %p127 = scmp.eq.s32.totalorder %s21, 3
    %p128 = por %p126, %p127
    %p129 = scmp.ne.s32.totalorder %s120, %s121
    %p130 = scmp.eq.s32.totalorder %s21, 0
    %p131 = por %p129, %p130
    %p132 = scmp.ne.s32.totalorder %s120, %s121
    %p133 = scmp.eq.s32.totalorder %s22, 3
    %p134 = por %p132, %p133
    %p136 = scmp.ne.s32.totalorder %s121, %s135
    %p137 = scmp.eq.s32.totalorder %s22, 0
    %p138 = por %p136, %p137
    %s140 = sadd.s32 %s139, 1
    %p143 = scmp.eq.s32.totalorder %s16, 3
    %p144 = scmp.ne.s32.totalorder %s139, %s141
    %p145 = scmp.eq.s32.totalorder %s16, 0
    %p146 = por %p144, %p145
    %p147 = scmp.ne.s32.totalorder %s139, %s141
    %p148 = scmp.eq.s32.totalorder %s21, 3
    %p149 = por %p147, %p148
    %p150 = scmp.ne.s32.totalorder %s141, %s142
    %p151 = scmp.eq.s32.totalorder %s21, 0
    %p152 = por %p150, %p151
    %p153 = scmp.ne.s32.totalorder %s141, %s142
    %p154 = scmp.eq.s32.totalorder %s22, 3
    %p155 = por %p153, %p154
    %p157 = scmp.ne.s32.totalorder %s142, %s156
    %p158 = scmp.eq.s32.totalorder %s22, 0
    %p159 = por %p157, %p158
    %s161 = sadd.s32 %s160, 1
    %p164 = scmp.eq.s32.totalorder %s16, 3
    %p165 = scmp.ne.s32.totalorder %s160, %s162
    %p166 = scmp.eq.s32.totalorder %s16, 0
    %p167 = por %p165, %p166
    %p168 = scmp.ne.s32.totalorder %s160, %s162
    %p169 = scmp.eq.s32.totalorder %s21, 3
    %p170 = por %p168, %p169
    %p171 = scmp.ne.s32.totalorder %s162, %s163
    %p172 = scmp.eq.s32.totalorder %s21, 0
    %p173 = por %p171, %p172
    %p174 = scmp.ne.s32.totalorder %s162, %s163
    %p175 = scmp.eq.s32.totalorder %s22, 3
    %p176 = por %p174, %p175
    %p178 = scmp.ne.s32.totalorder %s163, %s177
    %p179 = scmp.eq.s32.totalorder %s22, 0
    %p180 = por %p178, %p179
    %s182 = sadd.s32 %s181, 1
    %p185 = scmp.eq.s32.totalorder %s16, 3
    %p186 = scmp.ne.s32.totalorder %s181, %s183
    %p187 = scmp.eq.s32.totalorder %s16, 0
    %p188 = por %p186, %p187
    %p189 = scmp.ne.s32.totalorder %s181, %s183
    %p190 = scmp.eq.s32.totalorder %s21, 3
    %p191 = por %p189, %p190
    %p192 = scmp.ne.s32.totalorder %s183, %s184
    %p193 = scmp.eq.s32.totalorder %s21, 0
    %p194 = por %p192, %p193
    %p195 = scmp.ne.s32.totalorder %s183, %s184
    %p196 = scmp.eq.s32.totalorder %s22, 3
    %p197 = por %p195, %p196
    %p199 = scmp.ne.s32.totalorder %s184, %s198
    %p200 = scmp.eq.s32.totalorder %s22, 0
    %p201 = por %p199, %p200
    %s203 = sadd.s32 %s202, 1
    %p206 = scmp.eq.s32.totalorder %s16, 3
    %p207 = scmp.ne.s32.totalorder %s202, %s204
    %p208 = scmp.eq.s32.totalorder %s16, 0
    %p209 = por %p207, %p208
    %p210 = scmp.ne.s32.totalorder %s202, %s204
    %p211 = scmp.eq.s32.totalorder %s21, 3
    %p212 = por %p210, %p211
    %p213 = scmp.ne.s32.totalorder %s204, %s205
    %p214 = scmp.eq.s32.totalorder %s21, 0
    %p215 = por %p213, %p214
    %p216 = scmp.ne.s32.totalorder %s204, %s205
    %p217 = scmp.eq.s32.totalorder %s22, 3
    %p218 = por %p216, %p217
    %p220 = scmp.ne.s32.totalorder %s205, %s219
    %p221 = scmp.eq.s32.totalorder %s22, 0
    %p222 = por %p220, %p221
    %s224 = sadd.s32 %s223, 1
    %p227 = scmp.eq.s32.totalorder %s16, 3
    %p228 = scmp.ne.s32.totalorder %s223, %s225
    %p229 = scmp.eq.s32.totalorder %s16, 0
    %p230 = por %p228, %p229
    %p231 = scmp.ne.s32.totalorder %s223, %s225
    %p232 = scmp.eq.s32.totalorder %s21, 3
    %p233 = por %p231, %p232
    %p234 = scmp.ne.s32.totalorder %s225, %s226
    %p235 = scmp.eq.s32.totalorder %s21, 0
    %p236 = por %p234, %p235
    %p237 = scmp.ne.s32.totalorder %s225, %s226
    %p238 = scmp.eq.s32.totalorder %s22, 3
    %p239 = por %p237, %p238
    %p241 = scmp.ne.s32.totalorder %s226, %s240
    %p242 = scmp.eq.s32.totalorder %s22, 0
    %p243 = por %p241, %p242
    %s244 = ssub.s32 %s16, %s23
    %p245 = scmp.eq.s32.totalorder %s244, 0
    %s247 = sadd.s32 %s246, 1
    %s248 = scalar_select %p245, %s246, %s247
    %p251 = pneg %p245
    %p252 = scmp.eq.s32.totalorder %s16, 3
    %p253 = por %p251, %p252
    %p254 = scmp.ne.s32.totalorder %s246, %s249
    %p255 = scmp.eq.s32.totalorder %s16, 0
    %p256 = por %p254, %p255
    %p257 = scmp.ne.s32.totalorder %s246, %s249
    %p258 = scmp.eq.s32.totalorder %s21, 3
    %p259 = por %p257, %p258
    %p260 = scmp.ne.s32.totalorder %s249, %s250
    %p261 = scmp.eq.s32.totalorder %s21, 0
    %p262 = por %p260, %p261
    %p263 = scmp.ne.s32.totalorder %s249, %s250
    %p264 = scmp.eq.s32.totalorder %s22, 3
    %p265 = por %p263, %p264
    %p267 = scmp.ne.s32.totalorder %s250, %s266
    %p268 = scmp.eq.s32.totalorder %s22, 0
    %p269 = por %p267, %p268
    %p270 = scmp.le.s32.totalorder 1, %s16
    %p271 = scmp.lt.s32.totalorder %s16, 5
    %p272 = pnand %p270, %p271
    %p273 = pneg %p272
    // Predicated region
    $region9: #{swin_block_forward.3} parent=5 // pred_check
      _
    $region10: #{swin_block_forward.3} parent=5 // pred_check_branch
      %275 = sbr.rel (%p272) target = $region12
    $region11: #{swin_block_forward.3} parent=5 // pred_region
      %s276 = ssub.s32 %s16, 1
      // Predicated region
      $region13: #{swin_block_forward.3} parent=11 // pred_check
        %p277 = pneg %p89
      $region14: #{swin_block_forward.3} parent=11 // pred_check_branch
        %279 = sbr.rel (%p277) target = $region16
      $region15: #{swin_block_forward.3} parent=11 // pred_region
        _
      $region16: #{swin_block_forward.3} parent=11 // pred_fallthru
        _
      // Predicated region
      $region17: #{swin_block_forward.3} parent=11 // pred_check
        %p280 = pneg %p110
      $region18: #{swin_block_forward.3} parent=11 // pred_check_branch
        %282 = sbr.rel (%p280) target = $region20
      $region19: #{swin_block_forward.3} parent=11 // pred_region
        _
      $region20: #{swin_block_forward.3} parent=11 // pred_fallthru
        _
      // Predicated region
      $region21: #{swin_block_forward.3} parent=11 // pred_check
        %p283 = pneg %p131
      $region22: #{swin_block_forward.3} parent=11 // pred_check_branch
        %285 = sbr.rel (%p283) target = $region24
      $region23: #{swin_block_forward.3} parent=11 // pred_region
        _
      $region24: #{swin_block_forward.3} parent=11 // pred_fallthru
        _
      // Predicated region
      $region25: #{swin_block_forward.3} parent=11 // pred_check
        %p286 = pneg %p152
      $region26: #{swin_block_forward.3} parent=11 // pred_check_branch
        %288 = sbr.rel (%p286) target = $region28
      $region27: #{swin_block_forward.3} parent=11 // pred_region
        _
      $region28: #{swin_block_forward.3} parent=11 // pred_fallthru
        _
      // Predicated region
      $region29: #{swin_block_forward.3} parent=11 // pred_check
        %p289 = pneg %p173
      $region30: #{swin_block_forward.3} parent=11 // pred_check_branch
        %291 = sbr.rel (%p289) target = $region32
      $region31: #{swin_block_forward.3} parent=11 // pred_region
        _
      $region32: #{swin_block_forward.3} parent=11 // pred_fallthru
        _
      // Predicated region
      $region33: #{swin_block_forward.3} parent=11 // pred_check
        %p292 = pneg %p194
      $region34: #{swin_block_forward.3} parent=11 // pred_check_branch
        %294 = sbr.rel (%p292) target = $region36
      $region35: #{swin_block_forward.3} parent=11 // pred_region
        _
      $region36: #{swin_block_forward.3} parent=11 // pred_fallthru
        _
      // Predicated region
      $region37: #{swin_block_forward.3} parent=11 // pred_check
        %p295 = pneg %p215
      $region38: #{swin_block_forward.3} parent=11 // pred_check_branch
        %297 = sbr.rel (%p295) target = $region40
      $region39: #{swin_block_forward.3} parent=11 // pred_region
        _
      $region40: #{swin_block_forward.3} parent=11 // pred_fallthru
        _
      // Predicated region
      $region41: #{swin_block_forward.3} parent=11 // pred_check
        %p298 = pneg %p236
      $region42: #{swin_block_forward.3} parent=11 // pred_check_branch
        %300 = sbr.rel (%p298) target = $region44
      $region43: #{swin_block_forward.3} parent=11 // pred_region
        _
      $region44: #{swin_block_forward.3} parent=11 // pred_fallthru
        _
    $region12: #{swin_block_forward.3} parent=5 // pred_fallthru
      _
    %p301 = scmp.lt.s32.totalorder %s16, 4
    // Predicated region
    $region45: #{swin_block_forward.3} parent=5 // pred_check
      %p302 = pneg %p301
    $region46: #{swin_block_forward.3} parent=5 // pred_check_branch
      %304 = sbr.rel (%p302) target = $region48
    $region47: #{swin_block_forward.3} parent=5 // pred_region
      // Predicated region
      $region49: #{swin_block_forward.3} parent=47 // pred_check
        %p305 = pneg %p36
      $region50: #{swin_block_forward.3} parent=47 // pred_check_branch
        %307 = sbr.rel (%p305) target = $region52
      $region51: #{swin_block_forward.3} parent=47 // pred_region
        %s308 = smul.u32 4, %s16
        %p309 = scmp.lt.s32.totalorder %s308, 15
        %s310 = scalar_select %p309, %s308, 15
        %s311 = smul.addr %s310, 8
        %s312 = scalar_lea.vmem %s0, %s311
        %s313 = smul.u32 4, %s16
      $region52: #{swin_block_forward.3} parent=47 // pred_fallthru
        _
      // Predicated region
      $region53: #{swin_block_forward.3} parent=47 // pred_check
        %p314 = pneg %p62
      $region54: #{swin_block_forward.3} parent=47 // pred_check_branch
        %316 = sbr.rel (%p314) target = $region56
      $region55: #{swin_block_forward.3} parent=47 // pred_region
        %s317 = smul.u32 4, %s16
        %p318 = scmp.lt.s32.totalorder %s317, 15
        %s319 = scalar_select %p318, %s317, 15
        %s320 = smul.addr %s319, 8
        %s321 = scalar_lea.vmem %s1, %s320
        %s322 = smul.u32 4, %s16
      $region56: #{swin_block_forward.3} parent=47 // pred_fallthru
        _
    $region48: #{swin_block_forward.3} parent=5 // pred_fallthru
      _
    %p323 = scmp.le.s32.totalorder 1, %s16
    %p324 = scmp.lt.s32.totalorder %s16, 5
    %p325 = pnand %p323, %p324
    %p326 = pneg %p325
    // Predicated region
    $region57: #{swin_block_forward.3} parent=5 // pred_check
      _
    $region58: #{swin_block_forward.3} parent=5 // pred_check_branch
      %328 = sbr.rel (%p325) target = $region60
    $region59: #{swin_block_forward.3} parent=5 // pred_region
      %s329 = ssub.s32 %s16, 1
      %s330 = smul.u32 4, %s21
      %p331 = scmp.lt.s32.totalorder %s330, 15
      %s332 = scalar_select %p331, %s330, 15
      %s333 = smul.addr %s332, 8
      %s334 = scalar_lea.vmem %s0, %s333
      %p335 = pneg %p42
      %p336 = pneg %p39
      %s337 = smul.u32 4, %s21
      %p338 = scmp.lt.s32.totalorder %s337, 15
      %s339 = scalar_select %p338, %s337, 15
      %s340 = smul.addr %s339, 8
      %s341 = scalar_lea.vmem %s1, %s340
      %p342 = pneg %p68
      %p343 = pneg %p65
      %p344 = pneg %p89
      %p345 = pneg %p86
      %p346 = pneg %p110
      %p347 = pneg %p107
      %p348 = pneg %p131
      %p349 = pneg %p128
      %p350 = pneg %p152
      %p351 = pneg %p149
      %p352 = pneg %p173
      %p353 = pneg %p170
      %p354 = pneg %p194
      %p355 = pneg %p191
      %p356 = pneg %p215
      %p357 = pneg %p212
      %p358 = pneg %p236
      %p359 = pneg %p233
      %p360 = pneg %p262
      %p361 = pneg %p259
      %s362 = smul.u32 4, %s21
      %p363 = scmp.lt.s32.totalorder %s362, 15
      %s364 = scalar_select %p363, %s362, 15
      %s365 = smul.addr %s364, 8
      %s366 = scalar_lea.vmem %s10, %s365
      %s367 = smul.u32 4, %s21
      %p368 = scmp.lt.s32.totalorder %s367, 15
      %s369 = scalar_select %p368, %s367, 15
      %s370 = smul.addr %s369, 8
      %s371 = scalar_lea.vmem %s0, %s370
      %s372 = smul.u32 4, %s21
      %s373 = smul.u32 4, %s21
      %p374 = scmp.lt.s32.totalorder %s373, 15
      %s375 = scalar_select %p374, %s373, 15
      %s376 = smul.addr %s375, 8
      %s377 = scalar_lea.vmem %s1, %s376
      %s378 = smul.u32 4, %s21
      %s379 = smul.u32 4, %s21
      %p380 = scmp.lt.s32.totalorder %s379, 15
      %s381 = scalar_select %p380, %s379, 15
      %s382 = smul.addr %s381, 8
      %s383 = scalar_lea.vmem %s10, %s382
      %s384 = smul.u32 4, %s21
      %v386 = vld [vmem:[%s371] sm:$0xff]
      %v387 = vld [vmem:[%s371 + $0x8] sm:$0xff]
      %v388 = vld [vmem:[%s371 + $0x10] sm:$0xff]
      %v389 = vld [vmem:[%s371 + $0x18] sm:$0xff]
      %v390 = vld [vmem:[%s377] sm:$0xff]
      %v391 = vld [vmem:[%s377 + $0x8] sm:$0xff]
      %v392 = vld [vmem:[%s377 + $0x10] sm:$0xff]
      %v393 = vld [vmem:[%s377 + $0x18] sm:$0xff]
      %v394 = vadd.f32 %v386, %v390
      %v395 = vadd.f32 %v387, %v391
      %v396 = vadd.f32 %v388, %v392
      %v397 = vadd.f32 %v389, %v393
      %v398 = vld [vmem:[%s2] sm:$0xff]
      %v399 = vld [vmem:[%s2 + $0x8] sm:$0xff]
      %v400 = vld [vmem:[%s2 + $0x10] sm:$0xff]
      %v401 = vld [vmem:[%s2 + $0x18] sm:$0xff]
      %v402 = vld [vmem:[%s2 + $0x20] sm:$0xff]
      %v403 = vld [vmem:[%s2 + $0x28] sm:$0xff]
      %v404 = vld [vmem:[%s2 + $0x30] sm:$0xff]
      %v405 = vld [vmem:[%s2 + $0x38] sm:$0xff]
      %v406 = vld [vmem:[%s2 + $0x40] sm:$0xff]
      %v407 = vld [vmem:[%s2 + $0x48] sm:$0xff]
      %v408 = vld [vmem:[%s2 + $0x50] sm:$0xff]
      %v409 = vld [vmem:[%s2 + $0x58] sm:$0xff]
      %v410 = vld [vmem:[%s2 + $0x60] sm:$0xff]
      %v411 = vld [vmem:[%s2 + $0x68] sm:$0xff]
      %v412 = vld [vmem:[%s2 + $0x70] sm:$0xff]
      %v413 = vld [vmem:[%s2 + $0x78] sm:$0xff]
      %v414 = vld [vmem:[%s3] sm:$0xf]
      %415 = vmatprep.subr.mxu0 0.0
      %416 = vmatpush1.msra.mxu0 %v413
      %417 = vmatprep.subr.mxu0 0.0
      %418 = vmatpush1.msra.mxu0 %v412
      %419 = vmatprep.subr.mxu0 0.0
      %420 = vmatpush1.msra.mxu0 %v411
      %421 = vmatprep.subr.mxu0 0.0
      %422 = vmatpush1.msra.mxu0 %v410
      %423 = vmatprep.subr.mxu0 0.0
      %424 = vmatpush1.msra.mxu0 %v409
      %425 = vmatprep.subr.mxu0 0.0
      %426 = vmatpush1.msra.mxu0 %v408
      %427 = vmatprep.subr.mxu0 0.0
      %428 = vmatpush1.msra.mxu0 %v407
      %429 = vmatprep.subr.mxu0 0.0
      %430 = vmatpush1.msra.mxu0 %v406
      %431 = vmatprep.subr.mxu0 0.0
      %432 = vmatpush1.msra.mxu0 %v405
      %433 = vmatprep.subr.mxu0 0.0
      %434 = vmatpush1.msra.mxu0 %v404
      %435 = vmatprep.subr.mxu0 0.0
      %436 = vmatpush1.msra.mxu0 %v403
      %437 = vmatprep.subr.mxu0 0.0
      %438 = vmatpush1.msra.mxu0 %v402
      %439 = vmatprep.subr.mxu0 0.0
      %440 = vmatpush1.msra.mxu0 %v401
      %441 = vmatprep.subr.mxu0 0.0
      %442 = vmatpush1.msra.mxu0 %v400
      %443 = vmatprep.subr.mxu0 0.0
      %444 = vmatpush1.msra.mxu0 %v399
      %445 = vmatprep.subr.mxu0 0.0
      %446 = vmatpush1.msra.mxu0 %v398
      %447 = vmatprep.subr.mxu0 0.0
      %448 = vmatpush2.msra.mxu0 0.0
      %449 = vmatprep.subr.mxu0 0.0
      %450 = vmatpush2.msra.mxu0 0.0
      %451 = vmatprep.subr.mxu0 0.0
      %452 = vmatpush2.msra.mxu0 0.0
      %453 = vmatprep.subr.mxu0 0.0
      %454 = vmatpush2.msra.mxu0 0.0
      %455 = vmatprep.subr.mxu0 0.0
      %456 = vmatpush2.msra.mxu0 0.0
      %457 = vmatprep.subr.mxu0 0.0
      %458 = vmatpush2.msra.mxu0 0.0
      %459 = vmatprep.subr.mxu0 0.0
      %460 = vmatpush2.msra.mxu0 0.0
      %461 = vmatprep.subr.mxu0 0.0
      %462 = vmatpush2.msra.mxu0 0.0
      %463 = vmatprep.subr.mxu0 0.0
      %464 = vmatpush2.msra.mxu0 0.0
      %465 = vmatprep.subr.mxu0 0.0
      %466 = vmatpush2.msra.mxu0 0.0
      %467 = vmatprep.subr.mxu0 0.0
      %468 = vmatpush2.msra.mxu0 0.0
      %469 = vmatprep.subr.mxu0 0.0
      %470 = vmatpush2.msra.mxu0 0.0
      %471 = vmatprep.subr.mxu0 0.0
      %472 = vmatpush2.msra.mxu0 0.0
      %473 = vmatprep.subr.mxu0 0.0
      %474 = vmatpush2.msra.mxu0 0.0
      %475 = vmatprep.subr.mxu0 0.0
      %476 = vmatpush2.msra.mxu0 0.0
      %477 = vmatprep.subr.mxu0 0.0
      %478 = vmatpush2.msra.mxu0 0.0
      %479 = vmatprep.mubr.f32.mxu0 0.0
      %480 = vmatmul.mubr.f32.gmra.mxu0 %v394
      %v481 = vpop.f32.mrf.mxu0
      %v482 = vadd.f32 0.0, %v481
      %v483 = vpop.f32.mrf.mxu0
      %484 = vmatprep.mubr.f32.mxu0 0.0
      %485 = vmatmul.mubr.f32.gmra.mxu0 %v395
      %v486 = vpop.f32.mrf.mxu0
      %v487 = vadd.f32 0.0, %v486
      %v488 = vpop.f32.mrf.mxu0
      %489 = vmatprep.mubr.f32.mxu0 0.0
      %490 = vmatmul.mubr.f32.gmra.mxu0 %v396
      %v491 = vpop.f32.mrf.mxu0
      %v492 = vadd.f32 0.0, %v491
      %v493 = vpop.f32.mrf.mxu0
      %494 = vmatprep.mubr.f32.mxu0 0.0
      %495 = vmatmul.mubr.f32.gmra.mxu0 %v397
      %v496 = vpop.f32.mrf.mxu0
      %v497 = vadd.f32 0.0, %v496
      %v498 = vpop.f32.mrf.mxu0
      %499 = vdwg.mxu0
      %v500 = vmul.f32 %v482, 0.03125
      %v501 = vmul.f32 %v487, 0.03125
      %v502 = vmul.f32 %v492, 0.03125
      %v503 = vmul.f32 %v497, 0.03125
      %vm504 = vcmask 31744
      %v506 = vsel %vm504, %v500, 0
      %v509 = vsel %vm504, %v501, 0
      %v512 = vsel %vm504, %v502, 0
      %v515 = vsel %vm504, %v503, 0
      %vm517 = vcmask 1043456
      %v519 = vsel %vm517, %v414, 0
      %521 = vmatprep.subr.mxu0 0.0
      %522 = vmatpush1.msra.mxu0 0.0
      %523 = vmatprep.subr.mxu0 0.0
      %524 = vmatpush1.msra.mxu0 0.0
      %525 = vmatprep.subr.mxu0 0.0
      %526 = vmatpush1.msra.mxu0 0.0
      %527 = vmatprep.subr.mxu0 0.0
      %528 = vmatpush1.msra.mxu0 0.0
      %529 = vmatprep.subr.mxu0 0.0
      %530 = vmatpush1.msra.mxu0 0.0
      %531 = vmatprep.subr.mxu0 0.0
      %532 = vmatpush1.msra.mxu0 0.0
      %533 = vmatprep.subr.mxu0 0.0
      %534 = vmatpush1.msra.mxu0 0.0
      %535 = vmatprep.subr.mxu0 0.0
      %536 = vmatpush1.msra.mxu0 0.0
      %537 = vmatprep.subr.mxu0 0.0
      %538 = vmatpush1.msra.mxu0 0.0
      %539 = vmatprep.subr.mxu0 0.0
      %540 = vmatpush1.msra.mxu0 0.0
      %541 = vmatprep.subr.mxu0 0.0
      %542 = vmatpush1.msra.mxu0 0.0
      %543 = vmatprep.subr.mxu0 0.0
      %544 = vmatpush1.msra.mxu0 0.0
      %545 = vmatprep.subr.mxu0 0.0
      %546 = vmatpush1.msra.mxu0 0.0
      %547 = vmatprep.subr.mxu0 0.0
      %548 = vmatpush1.msra.mxu0 0.0
      %549 = vmatprep.subr.mxu0 0.0
      %550 = vmatpush1.msra.mxu0 0.0
      %551 = vmatprep.subr.mxu0 0.0
      %552 = vmatpush1.msra.mxu0 %v519
      %553 = vmatprep.subr.mxu0 0.0
      %554 = vmatpush2.msra.mxu0 0.0
      %555 = vmatprep.subr.mxu0 0.0
      %556 = vmatpush2.msra.mxu0 0.0
      %557 = vmatprep.subr.mxu0 0.0
      %558 = vmatpush2.msra.mxu0 0.0
      %559 = vmatprep.subr.mxu0 0.0
      %560 = vmatpush2.msra.mxu0 0.0
      %561 = vmatprep.subr.mxu0 0.0
      %562 = vmatpush2.msra.mxu0 0.0
      %563 = vmatprep.subr.mxu0 0.0
      %564 = vmatpush2.msra.mxu0 0.0
      %565 = vmatprep.subr.mxu0 0.0
      %566 = vmatpush2.msra.mxu0 0.0
      %567 = vmatprep.subr.mxu0 0.0
      %568 = vmatpush2.msra.mxu0 0.0
      %569 = vmatprep.subr.mxu0 0.0
      %570 = vmatpush2.msra.mxu0 0.0
      %571 = vmatprep.subr.mxu0 0.0
      %572 = vmatpush2.msra.mxu0 0.0
      %573 = vmatprep.subr.mxu0 0.0
      %574 = vmatpush2.msra.mxu0 0.0
      %575 = vmatprep.subr.mxu0 0.0
      %576 = vmatpush2.msra.mxu0 0.0
      %577 = vmatprep.subr.mxu0 0.0
      %578 = vmatpush2.msra.mxu0 0.0
      %579 = vmatprep.subr.mxu0 0.0
      %580 = vmatpush2.msra.mxu0 0.0
      %581 = vmatprep.subr.mxu0 0.0
      %582 = vmatpush2.msra.mxu0 0.0
      %583 = vmatprep.subr.mxu0 0.0
      %584 = vmatpush2.msra.mxu0 0.0
      %585 = vmatprep.mubr.f32.mxu0 0.0
      %586 = vmatmul.mubr.f32.gmra.mxu0 %v506
      %v587 = vpop.f32.mrf.mxu0
      %v588 = vadd.f32 0.0, %v587
      %v589 = vpop.f32.mrf.mxu0
      %590 = vmatprep.mubr.f32.mxu0 0.0
      %591 = vmatmul.mubr.f32.gmra.mxu0 %v509
      %v592 = vpop.f32.mrf.mxu0
      %v593 = vadd.f32 0.0, %v592
      %v594 = vpop.f32.mrf.mxu0
      %595 = vmatprep.mubr.f32.mxu0 0.0
      %596 = vmatmul.mubr.f32.gmra.mxu0 %v512
      %v597 = vpop.f32.mrf.mxu0
      %v598 = vadd.f32 0.0, %v597
      %v599 = vpop.f32.mrf.mxu0
      %600 = vmatprep.mubr.f32.mxu0 0.0
      %601 = vmatmul.mubr.f32.gmra.mxu0 %v515
      %v602 = vpop.f32.mrf.mxu0
      %v603 = vadd.f32 0.0, %v602
      %v604 = vpop.f32.mrf.mxu0
      %605 = vdwg.mxu0
      %v606 = vsub.f32 %v394, %v588
      %v607 = vsub.f32 %v395, %v593
      %v608 = vsub.f32 %v396, %v598
      %v609 = vsub.f32 %v397, %v603
      %v610 = vmul.f32 %v606, %v606
      %v611 = vmul.f32 %v607, %v607
      %v612 = vmul.f32 %v608, %v608
      %v613 = vmul.f32 %v609, %v609
      %614 = vmatprep.subr.mxu0 0.0
      %615 = vmatpush1.msra.mxu0 %v413
      %616 = vmatprep.subr.mxu0 0.0
      %617 = vmatpush1.msra.mxu0 %v412
      %618 = vmatprep.subr.mxu0 0.0
      %619 = vmatpush1.msra.mxu0 %v411
      %620 = vmatprep.subr.mxu0 0.0
      %621 = vmatpush1.msra.mxu0 %v410
      %622 = vmatprep.subr.mxu0 0.0
      %623 = vmatpush1.msra.mxu0 %v409
      %624 = vmatprep.subr.mxu0 0.0
      %625 = vmatpush1.msra.mxu0 %v408
      %626 = vmatprep.subr.mxu0 0.0
      %627 = vmatpush1.msra.mxu0 %v407
      %628 = vmatprep.subr.mxu0 0.0
      %629 = vmatpush1.msra.mxu0 %v406
      %630 = vmatprep.subr.mxu0 0.0
      %631 = vmatpush1.msra.mxu0 %v405
      %632 = vmatprep.subr.mxu0 0.0
      %633 = vmatpush1.msra.mxu0 %v404
      %634 = vmatprep.subr.mxu0 0.0
      %635 = vmatpush1.msra.mxu0 %v403
      %636 = vmatprep.subr.mxu0 0.0
      %637 = vmatpush1.msra.mxu0 %v402
      %638 = vmatprep.subr.mxu0 0.0
      %639 = vmatpush1.msra.mxu0 %v401
      %640 = vmatprep.subr.mxu0 0.0
      %641 = vmatpush1.msra.mxu0 %v400
      %642 = vmatprep.subr.mxu0 0.0
      %643 = vmatpush1.msra.mxu0 %v399
      %644 = vmatprep.subr.mxu0 0.0
      %645 = vmatpush1.msra.mxu0 %v398
      %646 = vmatprep.subr.mxu0 0.0
      %647 = vmatpush2.msra.mxu0 0.0
      %648 = vmatprep.subr.mxu0 0.0
      %649 = vmatpush2.msra.mxu0 0.0
      %650 = vmatprep.subr.mxu0 0.0
      %651 = vmatpush2.msra.mxu0 0.0
      %652 = vmatprep.subr.mxu0 0.0
      %653 = vmatpush2.msra.mxu0 0.0
      %654 = vmatprep.subr.mxu0 0.0
      %655 = vmatpush2.msra.mxu0 0.0
      %656 = vmatprep.subr.mxu0 0.0
      %657 = vmatpush2.msra.mxu0 0.0
      %658 = vmatprep.subr.mxu0 0.0
      %659 = vmatpush2.msra.mxu0 0.0
      %660 = vmatprep.subr.mxu0 0.0
      %661 = vmatpush2.msra.mxu0 0.0
      %662 = vmatprep.subr.mxu0 0.0
      %663 = vmatpush2.msra.mxu0 0.0
      %664 = vmatprep.subr.mxu0 0.0
      %665 = vmatpush2.msra.mxu0 0.0
      %666 = vmatprep.subr.mxu0 0.0
      %667 = vmatpush2.msra.mxu0 0.0
      %668 = vmatprep.subr.mxu0 0.0
      %669 = vmatpush2.msra.mxu0 0.0
      %670 = vmatprep.subr.mxu0 0.0
      %671 = vmatpush2.msra.mxu0 0.0
      %672 = vmatprep.subr.mxu0 0.0
      %673 = vmatpush2.msra.mxu0 0.0
      %674 = vmatprep.subr.mxu0 0.0
      %675 = vmatpush2.msra.mxu0 0.0
      %676 = vmatprep.subr.mxu0 0.0
      %677 = vmatpush2.msra.mxu0 0.0
      %678 = vmatprep.mubr.f32.mxu0 0.0
      %679 = vmatmul.mubr.f32.gmra.mxu0 %v610
      %v680 = vpop.f32.mrf.mxu0
      %v681 = vadd.f32 0.0, %v680
      %v682 = vpop.f32.mrf.mxu0
      %683 = vmatprep.mubr.f32.mxu0 0.0
      %684 = vmatmul.mubr.f32.gmra.mxu0 %v611
      %v685 = vpop.f32.mrf.mxu0
      %v686 = vadd.f32 0.0, %v685
      %v687 = vpop.f32.mrf.mxu0
      %688 = vmatprep.mubr.f32.mxu0 0.0
      %689 = vmatmul.mubr.f32.gmra.mxu0 %v612
      %v690 = vpop.f32.mrf.mxu0
      %v691 = vadd.f32 0.0, %v690
      %v692 = vpop.f32.mrf.mxu0
      %693 = vmatprep.mubr.f32.mxu0 0.0
      %694 = vmatmul.mubr.f32.gmra.mxu0 %v613
      %v695 = vpop.f32.mrf.mxu0
      %v696 = vadd.f32 0.0, %v695
      %v697 = vpop.f32.mrf.mxu0
      %698 = vdwg.mxu0
      %v699 = vmul.f32 %v681, 0.03125
      %v700 = vmul.f32 %v686, 0.03125
      %v701 = vmul.f32 %v691, 0.03125
      %v702 = vmul.f32 %v696, 0.03125
      %v703 = vadd.f32 %v699, 1e-05
      %v704 = vadd.f32 %v700, 1e-05
      %v705 = vadd.f32 %v701, 1e-05
      %v706 = vadd.f32 %v702, 1e-05
      %v707 = vrsqrt.pop %v703
      %v708 = vrsqrt.pop %v704
      %v709 = vrsqrt.pop %v705
      %v710 = vrsqrt.pop %v706
      %v712 = vsel %vm504, %v707, 0
      %v715 = vsel %vm504, %v708, 0
      %v718 = vsel %vm504, %v709, 0
      %v721 = vsel %vm504, %v710, 0
      %723 = vmatprep.subr.mxu0 0.0
      %724 = vmatpush1.msra.mxu0 0.0
      %725 = vmatprep.subr.mxu0 0.0
      %726 = vmatpush1.msra.mxu0 0.0
      %727 = vmatprep.subr.mxu0 0.0
      %728 = vmatpush1.msra.mxu0 0.0
      %729 = vmatprep.subr.mxu0 0.0
      %730 = vmatpush1.msra.mxu0 0.0
      %731 = vmatprep.subr.mxu0 0.0
      %732 = vmatpush1.msra.mxu0 0.0
      %733 = vmatprep.subr.mxu0 0.0
      %734 = vmatpush1.msra.mxu0 0.0
      %735 = vmatprep.subr.mxu0 0.0
      %736 = vmatpush1.msra.mxu0 0.0
      %737 = vmatprep.subr.mxu0 0.0
      %738 = vmatpush1.msra.mxu0 0.0
      %739 = vmatprep.subr.mxu0 0.0
      %740 = vmatpush1.msra.mxu0 0.0
      %741 = vmatprep.subr.mxu0 0.0
      %742 = vmatpush1.msra.mxu0 0.0
      %743 = vmatprep.subr.mxu0 0.0
      %744 = vmatpush1.msra.mxu0 0.0
      %745 = vmatprep.subr.mxu0 0.0
      %746 = vmatpush1.msra.mxu0 0.0
      %747 = vmatprep.subr.mxu0 0.0
      %748 = vmatpush1.msra.mxu0 0.0
      %749 = vmatprep.subr.mxu0 0.0
      %750 = vmatpush1.msra.mxu0 0.0
      %751 = vmatprep.subr.mxu0 0.0
      %752 = vmatpush1.msra.mxu0 0.0
      %753 = vmatprep.subr.mxu0 0.0
      %754 = vmatpush1.msra.mxu0 %v519
      %755 = vmatprep.subr.mxu0 0.0
      %756 = vmatpush2.msra.mxu0 0.0
      %757 = vmatprep.subr.mxu0 0.0
      %758 = vmatpush2.msra.mxu0 0.0
      %759 = vmatprep.subr.mxu0 0.0
      %760 = vmatpush2.msra.mxu0 0.0
      %761 = vmatprep.subr.mxu0 0.0
      %762 = vmatpush2.msra.mxu0 0.0
      %763 = vmatprep.subr.mxu0 0.0
      %764 = vmatpush2.msra.mxu0 0.0
      %765 = vmatprep.subr.mxu0 0.0
      %766 = vmatpush2.msra.mxu0 0.0
      %767 = vmatprep.subr.mxu0 0.0
      %768 = vmatpush2.msra.mxu0 0.0
      %769 = vmatprep.subr.mxu0 0.0
      %770 = vmatpush2.msra.mxu0 0.0
      %771 = vmatprep.subr.mxu0 0.0
      %772 = vmatpush2.msra.mxu0 0.0
      %773 = vmatprep.subr.mxu0 0.0
      %774 = vmatpush2.msra.mxu0 0.0
      %775 = vmatprep.subr.mxu0 0.0
      %776 = vmatpush2.msra.mxu0 0.0
      %777 = vmatprep.subr.mxu0 0.0
      %778 = vmatpush2.msra.mxu0 0.0
      %779 = vmatprep.subr.mxu0 0.0
      %780 = vmatpush2.msra.mxu0 0.0
      %781 = vmatprep.subr.mxu0 0.0
      %782 = vmatpush2.msra.mxu0 0.0
      %783 = vmatprep.subr.mxu0 0.0
      %784 = vmatpush2.msra.mxu0 0.0
      %785 = vmatprep.subr.mxu0 0.0
      %786 = vmatpush2.msra.mxu0 0.0
      %787 = vmatprep.mubr.f32.mxu0 0.0
      %788 = vmatmul.mubr.f32.gmra.mxu0 %v712
      %v789 = vpop.f32.mrf.mxu0
      %v790 = vadd.f32 0.0, %v789
      %v791 = vpop.f32.mrf.mxu0
      %792 = vmatprep.mubr.f32.mxu0 0.0
      %793 = vmatmul.mubr.f32.gmra.mxu0 %v715
      %v794 = vpop.f32.mrf.mxu0
      %v795 = vadd.f32 0.0, %v794
      %v796 = vpop.f32.mrf.mxu0
      %797 = vmatprep.mubr.f32.mxu0 0.0
      %798 = vmatmul.mubr.f32.gmra.mxu0 %v718
      %v799 = vpop.f32.mrf.mxu0
      %v800 = vadd.f32 0.0, %v799
      %v801 = vpop.f32.mrf.mxu0
      %802 = vmatprep.mubr.f32.mxu0 0.0
      %803 = vmatmul.mubr.f32.gmra.mxu0 %v721
      %v804 = vpop.f32.mrf.mxu0
      %v805 = vadd.f32 0.0, %v804
      %v806 = vpop.f32.mrf.mxu0
      %807 = vdwg.mxu0
      %v808 = vmul.f32 %v606, %v790
      %v809 = vmul.f32 %v607, %v795
      %v810 = vmul.f32 %v608, %v800
      %v811 = vmul.f32 %v609, %v805
      %v812 = vld [vmem:[%s4] sm:$0x1]
      %v814 = vlaneseq
      %v815 = vshrl.u32 %v814, 7
      %v816 = vsub.s32 0, %v815
      %v817 = vrot.slane %v812, %v816
      %v819 = vmul.f32 %v808, %v817
      %v820 = vmul.f32 %v809, %v817
      %v821 = vmul.f32 %v810, %v817
      %v822 = vmul.f32 %v811, %v817
      %v823 = vld [vmem:[%s5] sm:$0x1]
      %v825 = vlaneseq
      %v826 = vshrl.u32 %v825, 7
      %v827 = vsub.s32 0, %v826
      %v828 = vrot.slane %v823, %v827
      %v830 = vadd.f32 %v819, %v828
      %v831 = vadd.f32 %v820, %v828
      %v832 = vadd.f32 %v821, %v828
      %v833 = vadd.f32 %v822, %v828
      %v834 = vpack.c.bf16 %v831, %v830
      %v835 = vpack.c.bf16 %v833, %v832
      %v836 = vld [vmem:[%s6] sm:$0xff]
      %v837 = vld [vmem:[%s6 + $0x8] sm:$0xff]
      %v838 = vld [vmem:[%s6 + $0x10] sm:$0xff]
      %v839 = vld [vmem:[%s6 + $0x18] sm:$0xff]
      %v840 = vld [vmem:[%s6 + $0x20] sm:$0xff]
      %v841 = vld [vmem:[%s6 + $0x28] sm:$0xff]
      %v842 = vld [vmem:[%s6 + $0x30] sm:$0xff]
      %v843 = vld [vmem:[%s6 + $0x38] sm:$0xff]
      %v844 = vld [vmem:[%s6 + $0x40] sm:$0xff]
      %v845 = vld [vmem:[%s6 + $0x48] sm:$0xff]
      %v846 = vld [vmem:[%s6 + $0x50] sm:$0xff]
      %v847 = vld [vmem:[%s6 + $0x58] sm:$0xff]
      %v848 = vld [vmem:[%s6 + $0x60] sm:$0xff]
      %v849 = vld [vmem:[%s6 + $0x68] sm:$0xff]
      %v850 = vld [vmem:[%s6 + $0x70] sm:$0xff]
      %v851 = vld [vmem:[%s6 + $0x78] sm:$0xff]
      %v852 = vld [vmem:[%s7] sm:$0x3]
      %v854 = vlaneseq
      %v855 = vshrl.u32 %v854, 7
      %v856 = vsub.s32 0, %v855
      %v857 = vrot.slane %v852, %v856
      %v858 = vlaneseq
      %v859 = vshrl.u32 %v858, 7
      %v860 = vsub.s32 1, %v859
      %v861 = vrot.slane %v852, %v860
      %v880 = vunpack.c.l.b16 %v836
      %v881 = vunpack.c.h.b16 %v836
      %v882 = vunpack.c.l.b16 %v837
      %v883 = vunpack.c.h.b16 %v837
      %v884 = vunpack.c.l.b16 %v838
      %v885 = vunpack.c.h.b16 %v838
      %v886 = vunpack.c.l.b16 %v839
      %v887 = vunpack.c.h.b16 %v839
      %v888 = vunpack.c.l.b16 %v840
      %v889 = vunpack.c.h.b16 %v840
      %v890 = vunpack.c.l.b16 %v841
      %v891 = vunpack.c.h.b16 %v841
      %v892 = vunpack.c.l.b16 %v842
      %v893 = vunpack.c.h.b16 %v842
      %v894 = vunpack.c.l.b16 %v843
      %v895 = vunpack.c.h.b16 %v843
      %v896 = vunpack.c.l.b16 %v844
      %v897 = vunpack.c.h.b16 %v844
      %v898 = vunpack.c.l.b16 %v845
      %v899 = vunpack.c.h.b16 %v845
      %v900 = vunpack.c.l.b16 %v846
      %v901 = vunpack.c.h.b16 %v846
      %v902 = vunpack.c.l.b16 %v847
      %v903 = vunpack.c.h.b16 %v847
      %v904 = vunpack.c.l.b16 %v848
      %v905 = vunpack.c.h.b16 %v848
      %v906 = vunpack.c.l.b16 %v849
      %v907 = vunpack.c.h.b16 %v849
      %v908 = vunpack.c.l.b16 %v850
      %v909 = vunpack.c.h.b16 %v850
      %v910 = vunpack.c.l.b16 %v851
      %v911 = vunpack.c.h.b16 %v851
      %v912 = vpack.c.b16 %v882, %v880
      %v913 = vpack.c.b16 %v883, %v881
      %v914 = vpack.c.b16 %v886, %v884
      %v915 = vpack.c.b16 %v887, %v885
      %v916 = vpack.c.b16 %v890, %v888
      %v917 = vpack.c.b16 %v891, %v889
      %v918 = vpack.c.b16 %v894, %v892
      %v919 = vpack.c.b16 %v895, %v893
      %v920 = vpack.c.b16 %v898, %v896
      %v921 = vpack.c.b16 %v899, %v897
      %v922 = vpack.c.b16 %v902, %v900
      %v923 = vpack.c.b16 %v903, %v901
      %v924 = vpack.c.b16 %v906, %v904
      %v925 = vpack.c.b16 %v907, %v905
      %v926 = vpack.c.b16 %v910, %v908
      %v927 = vpack.c.b16 %v911, %v909
      %944 = vmatprep.subr.bf16.mxu0 %v927
      %945 = vmatpush1.bf16.msra.mxu0 %v926
      %946 = vmatprep.subr.bf16.mxu0 %v925
      %947 = vmatpush1.bf16.msra.mxu0 %v924
      %948 = vmatprep.subr.bf16.mxu0 %v923
      %949 = vmatpush1.bf16.msra.mxu0 %v922
      %950 = vmatprep.subr.bf16.mxu0 %v921
      %951 = vmatpush1.bf16.msra.mxu0 %v920
      %952 = vmatprep.subr.bf16.mxu0 %v919
      %953 = vmatpush1.bf16.msra.mxu0 %v918
      %954 = vmatprep.subr.bf16.mxu0 %v917
      %955 = vmatpush1.bf16.msra.mxu0 %v916
      %956 = vmatprep.subr.bf16.mxu0 %v915
      %957 = vmatpush1.bf16.msra.mxu0 %v914
      %958 = vmatprep.subr.bf16.mxu0 %v913
      %959 = vmatpush1.bf16.msra.mxu0 %v912
      %960 = vmatprep.subr.bf16.mxu0 0
      %961 = vmatpush2.bf16.msra.mxu0 0
      %962 = vmatprep.subr.bf16.mxu0 0
      %963 = vmatpush2.bf16.msra.mxu0 0
      %964 = vmatprep.subr.bf16.mxu0 0
      %965 = vmatpush2.bf16.msra.mxu0 0
      %966 = vmatprep.subr.bf16.mxu0 0
      %967 = vmatpush2.bf16.msra.mxu0 0
      %968 = vmatprep.subr.bf16.mxu0 0
      %969 = vmatpush2.bf16.msra.mxu0 0
      %970 = vmatprep.subr.bf16.mxu0 0
      %971 = vmatpush2.bf16.msra.mxu0 0
      %972 = vmatprep.subr.bf16.mxu0 0
      %973 = vmatpush2.bf16.msra.mxu0 0
      %974 = vmatprep.subr.bf16.mxu0 0
      %975 = vmatpush2.bf16.msra.mxu0 0
      %976 = vmatprep.mubr.bf16.mxu0 0
      %977 = vmatmul.mubr.bf16.gmra.mxu0 %v834
      %v978 = vpop.f32.mrf.mxu0
      %v979 = vadd.f32 %v857, %v978
      %v980 = vpop.f32.mrf.mxu0
      %v981 = vadd.f32 %v861, %v980
      %v982 = vpop.f32.mrf.mxu0
      %v983 = vadd.f32 %v857, %v982
      %v984 = vpop.f32.mrf.mxu0
      %v985 = vadd.f32 %v861, %v984
      %986 = vmatprep.mubr.bf16.mxu0 0
      %987 = vmatmul.mubr.bf16.gmra.mxu0 %v835
      %v988 = vpop.f32.mrf.mxu0
      %v989 = vadd.f32 %v857, %v988
      %v990 = vpop.f32.mrf.mxu0
      %v991 = vadd.f32 %v861, %v990
      %v992 = vpop.f32.mrf.mxu0
      %v993 = vadd.f32 %v857, %v992
      %v994 = vpop.f32.mrf.mxu0
      %v995 = vadd.f32 %v861, %v994
      %996 = vdwg.mxu0
      %v997 = vmul.f32 %v979, 0.5
      %v998 = vmul.f32 %v981, 0.5
      %v999 = vmul.f32 %v983, 0.5
      %v1000 = vmul.f32 %v985, 0.5
      %v1001 = vmul.f32 %v989, 0.5
      %v1002 = vmul.f32 %v991, 0.5
      %v1003 = vmul.f32 %v993, 0.5
      %v1004 = vmul.f32 %v995, 0.5
      %v1005 = vmul.f32 %v979, 0.044715
      %v1006 = vmul.f32 %v981, 0.044715
      %v1007 = vmul.f32 %v983, 0.044715
      %v1008 = vmul.f32 %v985, 0.044715
      %v1009 = vmul.f32 %v989, 0.044715
      %v1010 = vmul.f32 %v991, 0.044715
      %v1011 = vmul.f32 %v993, 0.044715
      %v1012 = vmul.f32 %v995, 0.044715
      %v1013 = vmul.f32 %v1005, %v979
      %v1014 = vmul.f32 %v1006, %v981
      %v1015 = vmul.f32 %v1007, %v983
      %v1016 = vmul.f32 %v1008, %v985
      %v1017 = vmul.f32 %v1009, %v989
      %v1018 = vmul.f32 %v1010, %v991
      %v1019 = vmul.f32 %v1011, %v993
      %v1020 = vmul.f32 %v1012, %v995
      %v1021 = vmul.f32 %v1013, %v979
      %v1022 = vmul.f32 %v1014, %v981
      %v1023 = vmul.f32 %v1015, %v983
      %v1024 = vmul.f32 %v1016, %v985
      %v1025 = vmul.f32 %v1017, %v989
      %v1026 = vmul.f32 %v1018, %v991
      %v1027 = vmul.f32 %v1019, %v993
      %v1028 = vmul.f32 %v1020, %v995
      %v1029 = vadd.f32 %v979, %v1021
      %v1030 = vadd.f32 %v981, %v1022
      %v1031 = vadd.f32 %v983, %v1023
      %v1032 = vadd.f32 %v985, %v1024
      %v1033 = vadd.f32 %v989, %v1025
      %v1034 = vadd.f32 %v991, %v1026
      %v1035 = vadd.f32 %v993, %v1027
      %v1036 = vadd.f32 %v995, %v1028
      %v1037 = vmul.f32 %v1029, 0.7978846
      %v1038 = vmul.f32 %v1030, 0.7978846
      %v1039 = vmul.f32 %v1031, 0.7978846
      %v1040 = vmul.f32 %v1032, 0.7978846
      %v1041 = vmul.f32 %v1033, 0.7978846
      %v1042 = vmul.f32 %v1034, 0.7978846
      %v1043 = vmul.f32 %v1035, 0.7978846
      %v1044 = vmul.f32 %v1036, 0.7978846
      %v1045 = vtanh.pop %v1037
      %v1046 = vtanh.pop %v1038
      %v1047 = vtanh.pop %v1039
      %v1048 = vtanh.pop %v1040
      %v1049 = vtanh.pop %v1041
      %v1050 = vtanh.pop %v1042
      %v1051 = vtanh.pop %v1043
      %v1052 = vtanh.pop %v1044
      %v1053 = vadd.f32 %v1045, 1.0
      %v1054 = vadd.f32 %v1046, 1.0
      %v1055 = vadd.f32 %v1047, 1.0
      %v1056 = vadd.f32 %v1048, 1.0
      %v1057 = vadd.f32 %v1049, 1.0
      %v1058 = vadd.f32 %v1050, 1.0
      %v1059 = vadd.f32 %v1051, 1.0
      %v1060 = vadd.f32 %v1052, 1.0
      %v1061 = vmul.f32 %v997, %v1053
      %v1062 = vmul.f32 %v998, %v1054
      %v1063 = vmul.f32 %v999, %v1055
      %v1064 = vmul.f32 %v1000, %v1056
      %v1065 = vmul.f32 %v1001, %v1057
      %v1066 = vmul.f32 %v1002, %v1058
      %v1067 = vmul.f32 %v1003, %v1059
      %v1068 = vmul.f32 %v1004, %v1060
      %v1069 = vpack.c.bf16 %v1063, %v1061
      %v1070 = vpack.c.bf16 %v1064, %v1062
      %v1071 = vpack.c.bf16 %v1067, %v1065
      %v1072 = vpack.c.bf16 %v1068, %v1066
      %v1073 = vld [vmem:[%s8] sm:$0xf]
      %v1074 = vld [vmem:[%s8 + $0x4] sm:$0xf]
      %v1075 = vld [vmem:[%s8 + $0x8] sm:$0xf]
      %v1076 = vld [vmem:[%s8 + $0xc] sm:$0xf]
      %v1077 = vld [vmem:[%s8 + $0x10] sm:$0xf]
      %v1078 = vld [vmem:[%s8 + $0x14] sm:$0xf]
      %v1079 = vld [vmem:[%s8 + $0x18] sm:$0xf]
      %v1080 = vld [vmem:[%s8 + $0x1c] sm:$0xf]
      %v1081 = vld [vmem:[%s8 + $0x20] sm:$0xf]
      %v1082 = vld [vmem:[%s8 + $0x24] sm:$0xf]
      %v1083 = vld [vmem:[%s8 + $0x28] sm:$0xf]
      %v1084 = vld [vmem:[%s8 + $0x2c] sm:$0xf]
      %v1085 = vld [vmem:[%s8 + $0x30] sm:$0xf]
      %v1086 = vld [vmem:[%s8 + $0x34] sm:$0xf]
      %v1087 = vld [vmem:[%s8 + $0x38] sm:$0xf]
      %v1088 = vld [vmem:[%s8 + $0x3c] sm:$0xf]
      %v1089 = vld [vmem:[%s8 + $0x40] sm:$0xf]
      %v1090 = vld [vmem:[%s8 + $0x44] sm:$0xf]
      %v1091 = vld [vmem:[%s8 + $0x48] sm:$0xf]
      %v1092 = vld [vmem:[%s8 + $0x4c] sm:$0xf]
      %v1093 = vld [vmem:[%s8 + $0x50] sm:$0xf]
      %v1094 = vld [vmem:[%s8 + $0x54] sm:$0xf]
      %v1095 = vld [vmem:[%s8 + $0x58] sm:$0xf]
      %v1096 = vld [vmem:[%s8 + $0x5c] sm:$0xf]
      %v1097 = vld [vmem:[%s8 + $0x60] sm:$0xf]
      %v1098 = vld [vmem:[%s8 + $0x64] sm:$0xf]
      %v1099 = vld [vmem:[%s8 + $0x68] sm:$0xf]
      %v1100 = vld [vmem:[%s8 + $0x6c] sm:$0xf]
      %v1101 = vld [vmem:[%s8 + $0x70] sm:$0xf]
      %v1102 = vld [vmem:[%s8 + $0x74] sm:$0xf]
      %v1103 = vld [vmem:[%s8 + $0x78] sm:$0xf]
      %v1104 = vld [vmem:[%s8 + $0x7c] sm:$0xf]
      %v1105 = vld [vmem:[%s9] sm:$0x1]
      %v1107 = vlaneseq
      %v1108 = vshrl.u32 %v1107, 7
      %v1109 = vsub.s32 0, %v1108
      %v1110 = vrot.slane %v1105, %v1109
      %v1144 = vunpack.c.l.b16 %v1073
      %v1145 = vunpack.c.l.b16 %v1074
      %v1146 = vunpack.c.l.b16 %v1075
      %v1147 = vunpack.c.l.b16 %v1076
      %v1148 = vunpack.c.l.b16 %v1077
      %v1149 = vunpack.c.l.b16 %v1078
      %v1150 = vunpack.c.l.b16 %v1079
      %v1151 = vunpack.c.l.b16 %v1080
      %v1152 = vunpack.c.l.b16 %v1081
      %v1153 = vunpack.c.l.b16 %v1082
      %v1154 = vunpack.c.l.b16 %v1083
      %v1155 = vunpack.c.l.b16 %v1084
      %v1156 = vunpack.c.l.b16 %v1085
      %v1157 = vunpack.c.l.b16 %v1086
      %v1158 = vunpack.c.l.b16 %v1087
      %v1159 = vunpack.c.l.b16 %v1088
      %v1160 = vunpack.c.l.b16 %v1089
      %v1161 = vunpack.c.l.b16 %v1090
      %v1162 = vunpack.c.l.b16 %v1091
      %v1163 = vunpack.c.l.b16 %v1092
      %v1164 = vunpack.c.l.b16 %v1093
      %v1165 = vunpack.c.l.b16 %v1094
      %v1166 = vunpack.c.l.b16 %v1095
      %v1167 = vunpack.c.l.b16 %v1096
      %v1168 = vunpack.c.l.b16 %v1097
      %v1169 = vunpack.c.l.b16 %v1098
      %v1170 = vunpack.c.l.b16 %v1099
      %v1171 = vunpack.c.l.b16 %v1100
      %v1172 = vunpack.c.l.b16 %v1101
      %v1173 = vunpack.c.l.b16 %v1102
      %v1174 = vunpack.c.l.b16 %v1103
      %v1175 = vunpack.c.l.b16 %v1104
      %v1176 = vpack.c.b16 %v1145, %v1144
      %v1177 = vpack.c.b16 %v1147, %v1146
      %v1178 = vpack.c.b16 %v1149, %v1148
      %v1179 = vpack.c.b16 %v1151, %v1150
      %v1180 = vpack.c.b16 %v1153, %v1152
      %v1181 = vpack.c.b16 %v1155, %v1154
      %v1182 = vpack.c.b16 %v1157, %v1156
      %v1183 = vpack.c.b16 %v1159, %v1158
      %v1184 = vpack.c.b16 %v1161, %v1160
      %v1185 = vpack.c.b16 %v1163, %v1162
      %v1186 = vpack.c.b16 %v1165, %v1164
      %v1187 = vpack.c.b16 %v1167, %v1166
      %v1188 = vpack.c.b16 %v1169, %v1168
      %v1189 = vpack.c.b16 %v1171, %v1170
      %v1190 = vpack.c.b16 %v1173, %v1172
      %v1191 = vpack.c.b16 %v1175, %v1174
      %1208 = vmatprep.subr.bf16.mxu0 0
      %1209 = vmatpush1.bf16.msra.mxu0 %v1183
      %1210 = vmatprep.subr.bf16.mxu0 0
      %1211 = vmatpush1.bf16.msra.mxu0 %v1182
      %1212 = vmatprep.subr.bf16.mxu0 0
      %1213 = vmatpush1.bf16.msra.mxu0 %v1181
      %1214 = vmatprep.subr.bf16.mxu0 0
      %1215 = vmatpush1.bf16.msra.mxu0 %v1180
      %1216 = vmatprep.subr.bf16.mxu0 0
      %1217 = vmatpush1.bf16.msra.mxu0 %v1179
      %1218 = vmatprep.subr.bf16.mxu0 0
      %1219 = vmatpush1.bf16.msra.mxu0 %v1178
      %1220 = vmatprep.subr.bf16.mxu0 0
      %1221 = vmatpush1.bf16.msra.mxu0 %v1177
      %1222 = vmatprep.subr.bf16.mxu0 0
      %1223 = vmatpush1.bf16.msra.mxu0 %v1176
      %1224 = vmatprep.subr.bf16.mxu0 0
      %1225 = vmatpush2.bf16.msra.mxu0 %v1191
      %1226 = vmatprep.subr.bf16.mxu0 0
      %1227 = vmatpush2.bf16.msra.mxu0 %v1190
      %1228 = vmatprep.subr.bf16.mxu0 0
      %1229 = vmatpush2.bf16.msra.mxu0 %v1189
      %1230 = vmatprep.subr.bf16.mxu0 0
      %1231 = vmatpush2.bf16.msra.mxu0 %v1188
      %1232 = vmatprep.subr.bf16.mxu0 0
      %1233 = vmatpush2.bf16.msra.mxu0 %v1187
      %1234 = vmatprep.subr.bf16.mxu0 0
      %1235 = vmatpush2.bf16.msra.mxu0 %v1186
      %1236 = vmatprep.subr.bf16.mxu0 0
      %1237 = vmatpush2.bf16.msra.mxu0 %v1185
      %1238 = vmatprep.subr.bf16.mxu0 0
      %1239 = vmatpush2.bf16.msra.mxu0 %v1184
      %1240 = vmatprep.mubr.bf16.mxu0 %v1070
      %1241 = vmatmul.mubr.bf16.gmra.mxu0 %v1069
      %v1242 = vpop.f32.mrf.mxu0
      %v1243 = vadd.f32 %v1110, %v1242
      %v1244 = vpop.f32.mrf.mxu0
      %v1245 = vpop.f32.mrf.mxu0
      %v1246 = vadd.f32 %v1110, %v1245
      %v1247 = vpop.f32.mrf.mxu0
      %1248 = vmatprep.mubr.bf16.mxu0 %v1072
      %1249 = vmatmul.mubr.bf16.gmra.mxu0 %v1071
      %v1250 = vpop.f32.mrf.mxu0
      %v1251 = vadd.f32 %v1110, %v1250
      %v1252 = vpop.f32.mrf.mxu0
      %v1253 = vpop.f32.mrf.mxu0
      %v1254 = vadd.f32 %v1110, %v1253
      %v1255 = vpop.f32.mrf.mxu0
      %1256 = vdwg.mxu0
      %v1257 = vadd.f32 %v386, %v1243
      %v1258 = vadd.f32 %v387, %v1246
      %v1259 = vadd.f32 %v388, %v1251
      %v1260 = vadd.f32 %v389, %v1254
      %1261 = vst [vmem:[%s383] sm:$0xff] %v1257
      %1262 = vst [vmem:[%s383 + $0x8] sm:$0xff] %v1258
      %1263 = vst [vmem:[%s383 + $0x10] sm:$0xff] %v1259
      %1264 = vst [vmem:[%s383 + $0x18] sm:$0xff] %v1260
      %s1265 = smul.u32 4, %s21
      %p1266 = scmp.lt.s32.totalorder %s1265, 15
      %s1267 = scalar_select %p1266, %s1265, 15
      %s1268 = smul.addr %s1267, 8
      %s1269 = scalar_lea.vmem %s10, %s1268
      // Predicated region
      $region61: #{swin_block_forward.3} parent=59 // pred_check
        %p1270 = pneg %p259
      $region62: #{swin_block_forward.3} parent=59 // pred_check_branch
        %1272 = sbr.rel (%p1270) target = $region64
      $region63: #{swin_block_forward.3} parent=59 // pred_region
        %s1273 = smul.u32 4, %s21
      $region64: #{swin_block_forward.3} parent=59 // pred_fallthru
        _
    $region60: #{swin_block_forward.3} parent=5 // pred_fallthru
      _
    %p1274 = scmp.le.s32.totalorder 2, %s16
    // Predicated region
    $region65: #{swin_block_forward.3} parent=5 // pred_check
      %p1275 = pneg %p1274
    $region66: #{swin_block_forward.3} parent=5 // pred_check_branch
      %1277 = sbr.rel (%p1275) target = $region68
    $region67: #{swin_block_forward.3} parent=5 // pred_region
      %s1278 = ssub.s32 %s16, 2
      // Predicated region
      $region69: #{swin_block_forward.3} parent=67 // pred_check
        %p1279 = pneg %p265
      $region70: #{swin_block_forward.3} parent=67 // pred_check_branch
        %1281 = sbr.rel (%p1279) target = $region72
      $region71: #{swin_block_forward.3} parent=67 // pred_region
        %s1282 = smul.u32 4, %s22
        %p1283 = scmp.lt.s32.totalorder %s1282, 15
        %s1284 = scalar_select %p1283, %s1282, 15
        %s1285 = smul.addr %s1284, 8
        %s1286 = scalar_lea.vmem %s10, %s1285
      $region72: #{swin_block_forward.3} parent=67 // pred_fallthru
        _
    $region68: #{swin_block_forward.3} parent=5 // pred_fallthru
      _
  $region6: #{swin_block_forward.3} parent=0 // loop_footer
    %s20 = sadd.s32 1, %s16
  $region7: #{swin_block_forward.3} parent=0 // loop_footer_branch
    %15 = sbr.rel target = $region3
  $region8: #{swin_block_forward.3} parent=0 // loop_exit
    _

// kernel: swin_block_forward.2
$region0: #{swin_block_forward.2}
  #allocation0 [shape = 'u32[]', space=smem, size = 0x4, offset = 0x4, fixed_abs, tag = 'smem constant byte address 0x4 - core index']
  #allocation1 [shape = 'u32[144,128]{1,0:T(1,128)}', space=vmem, size = 0x12000, scoped, tag = 'internal scratch']
  %s0 = inlined_call_operand.vmem [shape: f32[16,32,32], index: 0, kind: input, shape index: {}]
  %s1 = inlined_call_operand.vmem [shape: f32[4,32,32], index: 1, kind: input, shape index: {}]
  %s2 = inlined_call_operand.vmem [shape: f32[1,32], index: 2, kind: input, shape index: {}]
  %s3 = inlined_call_operand.vmem [shape: f32[1,32], index: 3, kind: input, shape index: {}]
  %s4 = inlined_call_operand.vmem [shape: bf16[32,64], index: 4, kind: input, shape index: {}]
  %s5 = inlined_call_operand.vmem [shape: f32[1,64], index: 5, kind: input, shape index: {}]
  %s6 = inlined_call_operand.vmem [shape: bf16[32,128], index: 6, kind: input, shape index: {}]
  %s7 = inlined_call_operand.vmem [shape: f32[1,128], index: 7, kind: input, shape index: {}]
  %s8 = inlined_call_operand.vmem [shape: f32[1,32], index: 8, kind: input, shape index: {}]
  %s9 = inlined_call_operand.vmem [shape: f32[8,32,32], index: 9, kind: input, shape index: {}]
  %s10 = inlined_call_operand.vmem [shape: f32[16,1024], index: 10, kind: output, shape index: {}]
  %s11 = sld [smem:[#allocation0]]
  $region73: #{swin_block_forward.2} parent=0
    _
  %s13 = ssub.s32 1, %s11
  %s14 = scalar_select 0, %s13, %s11
  loop: start=0, step=1, limit=4
  $region2: #{swin_block_forward.2} parent=0 // loop_pre_header
    _
  $region3: #{swin_block_forward.2} parent=0 // loop_header
    %s16 = sphi 0, %s20
    %p17 = scmp.ge.s32.totalorder %s16, 4
    %s26 = sphi 0, %s28
    %s29 = sphi 0, %s26
    %s30 = sphi 0, %s29
    %s46 = sphi 0, %s30
    %s50 = sphi 0, %s50
    %s52 = sphi 0, %s50
    %s53 = sphi 0, %s52
    %s67 = sphi 0, %s53
    %s71 = sphi 0, %s71
    %s73 = sphi 0, %s71
    %s74 = sphi 0, %s73
    %s88 = sphi 0, %s74
    %s92 = sphi 0, %s92
    %s94 = sphi 0, %s92
    %s95 = sphi 0, %s94
    %s109 = sphi 0, %s95
    %s113 = sphi 0, %s113
    %s115 = sphi 0, %s113
    %s116 = sphi 0, %s115
    %s130 = sphi 0, %s116
    %s134 = sphi 0, %s134
    %s136 = sphi 0, %s134
    %s137 = sphi 0, %s136
    %s151 = sphi 0, %s137
    %s155 = sphi 0, %s155
    %s157 = sphi 0, %s155
    %s158 = sphi 0, %s157
    %s172 = sphi 0, %s158
    %s176 = sphi 0, %s176
    %s178 = sphi 0, %s176
    %s179 = sphi 0, %s178
    %s193 = sphi 0, %s179
    %s197 = sphi 0, %s197
    %s199 = sphi 0, %s197
    %s200 = sphi 0, %s199
    %s214 = sphi 0, %s200
    %s218 = sphi 0, %s218
    %s220 = sphi 0, %s218
    %s221 = sphi 0, %s220
    %s235 = sphi 0, %s221
    %s241 = sphi 0, %s243
    %s244 = sphi 0, %s241
    %s245 = sphi 0, %s244
    %s261 = sphi 0, %s245
  $region4: #{swin_block_forward.2} parent=0 // loop_header_branch
    %19 = sbr.rel (%p17) target = $region8
  $region5: #{swin_block_forward.2} parent=0 // loop_body
    %s21 = ssub.s32 %s16, 1
    %s22 = ssub.s32 %s16, 2
    %s23 = sadd.s32 %s16, 1
    %s24 = ssub.s32 %s16, %s23
    %p25 = scmp.eq.s32.totalorder %s24, 0
    %s27 = sadd.s32 %s26, 1
    %s28 = scalar_select %p25, %s26, %s27
    %p31 = pneg %p25
    %p32 = scmp.eq.s32.totalorder %s16, 1
    %p33 = por %p31, %p32
    %p34 = scmp.ne.s32.totalorder %s26, %s29
    %p35 = scmp.eq.s32.totalorder %s16, 0
    %p36 = por %p34, %p35
    %p37 = scmp.ne.s32.totalorder %s26, %s29
    %p38 = scmp.eq.s32.totalorder %s21, 1
    %p39 = por %p37, %p38
    %p40 = scmp.ne.s32.totalorder %s29, %s30
    %p41 = scmp.eq.s32.totalorder %s21, 0
    %p42 = por %p40, %p41
    %p43 = scmp.ne.s32.totalorder %s29, %s30
    %p44 = scmp.eq.s32.totalorder %s22, 1
    %p45 = por %p43, %p44
    %p47 = scmp.ne.s32.totalorder %s30, %s46
    %p48 = scmp.eq.s32.totalorder %s22, 0
    %p49 = por %p47, %p48
    %s51 = sadd.s32 %s50, 1
    %p54 = scmp.eq.s32.totalorder %s16, 1
    %p55 = scmp.ne.s32.totalorder %s50, %s52
    %p56 = scmp.eq.s32.totalorder %s16, 0
    %p57 = por %p55, %p56
    %p58 = scmp.ne.s32.totalorder %s50, %s52
    %p59 = scmp.eq.s32.totalorder %s21, 1
    %p60 = por %p58, %p59
    %p61 = scmp.ne.s32.totalorder %s52, %s53
    %p62 = scmp.eq.s32.totalorder %s21, 0
    %p63 = por %p61, %p62
    %p64 = scmp.ne.s32.totalorder %s52, %s53
    %p65 = scmp.eq.s32.totalorder %s22, 1
    %p66 = por %p64, %p65
    %p68 = scmp.ne.s32.totalorder %s53, %s67
    %p69 = scmp.eq.s32.totalorder %s22, 0
    %p70 = por %p68, %p69
    %s72 = sadd.s32 %s71, 1
    %p75 = scmp.eq.s32.totalorder %s16, 1
    %p76 = scmp.ne.s32.totalorder %s71, %s73
    %p77 = scmp.eq.s32.totalorder %s16, 0
    %p78 = por %p76, %p77
    %p79 = scmp.ne.s32.totalorder %s71, %s73
    %p80 = scmp.eq.s32.totalorder %s21, 1
    %p81 = por %p79, %p80
    %p82 = scmp.ne.s32.totalorder %s73, %s74
    %p83 = scmp.eq.s32.totalorder %s21, 0
    %p84 = por %p82, %p83
    %p85 = scmp.ne.s32.totalorder %s73, %s74
    %p86 = scmp.eq.s32.totalorder %s22, 1
    %p87 = por %p85, %p86
    %p89 = scmp.ne.s32.totalorder %s74, %s88
    %p90 = scmp.eq.s32.totalorder %s22, 0
    %p91 = por %p89, %p90
    %s93 = sadd.s32 %s92, 1
    %p96 = scmp.eq.s32.totalorder %s16, 1
    %p97 = scmp.ne.s32.totalorder %s92, %s94
    %p98 = scmp.eq.s32.totalorder %s16, 0
    %p99 = por %p97, %p98
    %p100 = scmp.ne.s32.totalorder %s92, %s94
    %p101 = scmp.eq.s32.totalorder %s21, 1
    %p102 = por %p100, %p101
    %p103 = scmp.ne.s32.totalorder %s94, %s95
    %p104 = scmp.eq.s32.totalorder %s21, 0
    %p105 = por %p103, %p104
    %p106 = scmp.ne.s32.totalorder %s94, %s95
    %p107 = scmp.eq.s32.totalorder %s22, 1
    %p108 = por %p106, %p107
    %p110 = scmp.ne.s32.totalorder %s95, %s109
    %p111 = scmp.eq.s32.totalorder %s22, 0
    %p112 = por %p110, %p111
    %s114 = sadd.s32 %s113, 1
    %p117 = scmp.eq.s32.totalorder %s16, 1
    %p118 = scmp.ne.s32.totalorder %s113, %s115
    %p119 = scmp.eq.s32.totalorder %s16, 0
    %p120 = por %p118, %p119
    %p121 = scmp.ne.s32.totalorder %s113, %s115
    %p122 = scmp.eq.s32.totalorder %s21, 1
    %p123 = por %p121, %p122
    %p124 = scmp.ne.s32.totalorder %s115, %s116
    %p125 = scmp.eq.s32.totalorder %s21, 0
    %p126 = por %p124, %p125
    %p127 = scmp.ne.s32.totalorder %s115, %s116
    %p128 = scmp.eq.s32.totalorder %s22, 1
    %p129 = por %p127, %p128
    %p131 = scmp.ne.s32.totalorder %s116, %s130
    %p132 = scmp.eq.s32.totalorder %s22, 0
    %p133 = por %p131, %p132
    %s135 = sadd.s32 %s134, 1
    %p138 = scmp.eq.s32.totalorder %s16, 1
    %p139 = scmp.ne.s32.totalorder %s134, %s136
    %p140 = scmp.eq.s32.totalorder %s16, 0
    %p141 = por %p139, %p140
    %p142 = scmp.ne.s32.totalorder %s134, %s136
    %p143 = scmp.eq.s32.totalorder %s21, 1
    %p144 = por %p142, %p143
    %p145 = scmp.ne.s32.totalorder %s136, %s137
    %p146 = scmp.eq.s32.totalorder %s21, 0
    %p147 = por %p145, %p146
    %p148 = scmp.ne.s32.totalorder %s136, %s137
    %p149 = scmp.eq.s32.totalorder %s22, 1
    %p150 = por %p148, %p149
    %p152 = scmp.ne.s32.totalorder %s137, %s151
    %p153 = scmp.eq.s32.totalorder %s22, 0
    %p154 = por %p152, %p153
    %s156 = sadd.s32 %s155, 1
    %p159 = scmp.eq.s32.totalorder %s16, 1
    %p160 = scmp.ne.s32.totalorder %s155, %s157
    %p161 = scmp.eq.s32.totalorder %s16, 0
    %p162 = por %p160, %p161
    %p163 = scmp.ne.s32.totalorder %s155, %s157
    %p164 = scmp.eq.s32.totalorder %s21, 1
    %p165 = por %p163, %p164
    %p166 = scmp.ne.s32.totalorder %s157, %s158
    %p167 = scmp.eq.s32.totalorder %s21, 0
    %p168 = por %p166, %p167
    %p169 = scmp.ne.s32.totalorder %s157, %s158
    %p170 = scmp.eq.s32.totalorder %s22, 1
    %p171 = por %p169, %p170
    %p173 = scmp.ne.s32.totalorder %s158, %s172
    %p174 = scmp.eq.s32.totalorder %s22, 0
    %p175 = por %p173, %p174
    %s177 = sadd.s32 %s176, 1
    %p180 = scmp.eq.s32.totalorder %s16, 1
    %p181 = scmp.ne.s32.totalorder %s176, %s178
    %p182 = scmp.eq.s32.totalorder %s16, 0
    %p183 = por %p181, %p182
    %p184 = scmp.ne.s32.totalorder %s176, %s178
    %p185 = scmp.eq.s32.totalorder %s21, 1
    %p186 = por %p184, %p185
    %p187 = scmp.ne.s32.totalorder %s178, %s179
    %p188 = scmp.eq.s32.totalorder %s21, 0
    %p189 = por %p187, %p188
    %p190 = scmp.ne.s32.totalorder %s178, %s179
    %p191 = scmp.eq.s32.totalorder %s22, 1
    %p192 = por %p190, %p191
    %p194 = scmp.ne.s32.totalorder %s179, %s193
    %p195 = scmp.eq.s32.totalorder %s22, 0
    %p196 = por %p194, %p195
    %s198 = sadd.s32 %s197, 1
    %p201 = scmp.eq.s32.totalorder %s16, 1
    %p202 = scmp.ne.s32.totalorder %s197, %s199
    %p203 = scmp.eq.s32.totalorder %s16, 0
    %p204 = por %p202, %p203
    %p205 = scmp.ne.s32.totalorder %s197, %s199
    %p206 = scmp.eq.s32.totalorder %s21, 1
    %p207 = por %p205, %p206
    %p208 = scmp.ne.s32.totalorder %s199, %s200
    %p209 = scmp.eq.s32.totalorder %s21, 0
    %p210 = por %p208, %p209
    %p211 = scmp.ne.s32.totalorder %s199, %s200
    %p212 = scmp.eq.s32.totalorder %s22, 1
    %p213 = por %p211, %p212
    %p215 = scmp.ne.s32.totalorder %s200, %s214
    %p216 = scmp.eq.s32.totalorder %s22, 0
    %p217 = por %p215, %p216
    %s219 = sadd.s32 %s218, 1
    %p222 = scmp.eq.s32.totalorder %s16, 1
    %p223 = scmp.ne.s32.totalorder %s218, %s220
    %p224 = scmp.eq.s32.totalorder %s16, 0
    %p225 = por %p223, %p224
    %p226 = scmp.ne.s32.totalorder %s218, %s220
    %p227 = scmp.eq.s32.totalorder %s21, 1
    %p228 = por %p226, %p227
    %p229 = scmp.ne.s32.totalorder %s220, %s221
    %p230 = scmp.eq.s32.totalorder %s21, 0
    %p231 = por %p229, %p230
    %p232 = scmp.ne.s32.totalorder %s220, %s221
    %p233 = scmp.eq.s32.totalorder %s22, 1
    %p234 = por %p232, %p233
    %p236 = scmp.ne.s32.totalorder %s221, %s235
    %p237 = scmp.eq.s32.totalorder %s22, 0
    %p238 = por %p236, %p237
    %s239 = ssub.s32 %s16, %s23
    %p240 = scmp.eq.s32.totalorder %s239, 0
    %s242 = sadd.s32 %s241, 1
    %s243 = scalar_select %p240, %s241, %s242
    %p246 = pneg %p240
    %p247 = scmp.eq.s32.totalorder %s16, 1
    %p248 = por %p246, %p247
    %p249 = scmp.ne.s32.totalorder %s241, %s244
    %p250 = scmp.eq.s32.totalorder %s16, 0
    %p251 = por %p249, %p250
    %p252 = scmp.ne.s32.totalorder %s241, %s244
    %p253 = scmp.eq.s32.totalorder %s21, 1
    %p254 = por %p252, %p253
    %p255 = scmp.ne.s32.totalorder %s244, %s245
    %p256 = scmp.eq.s32.totalorder %s21, 0
    %p257 = por %p255, %p256
    %p258 = scmp.ne.s32.totalorder %s244, %s245
    %p259 = scmp.eq.s32.totalorder %s22, 1
    %p260 = por %p258, %p259
    %p262 = scmp.ne.s32.totalorder %s245, %s261
    %p263 = scmp.eq.s32.totalorder %s22, 0
    %p264 = por %p262, %p263
    %p265 = scmp.le.s32.totalorder 1, %s16
    %p266 = scmp.lt.s32.totalorder %s16, 3
    %p267 = pnand %p265, %p266
    %p268 = pneg %p267
    // Predicated region
    $region9: #{swin_block_forward.2} parent=5 // pred_check
      _
    $region10: #{swin_block_forward.2} parent=5 // pred_check_branch
      %270 = sbr.rel (%p267) target = $region12
    $region11: #{swin_block_forward.2} parent=5 // pred_region
      %s271 = ssub.s32 %s16, 1
      // Predicated region
      $region13: #{swin_block_forward.2} parent=11 // pred_check
        %p272 = pneg %p63
      $region14: #{swin_block_forward.2} parent=11 // pred_check_branch
        %274 = sbr.rel (%p272) target = $region16
      $region15: #{swin_block_forward.2} parent=11 // pred_region
        _
      $region16: #{swin_block_forward.2} parent=11 // pred_fallthru
        _
      // Predicated region
      $region17: #{swin_block_forward.2} parent=11 // pred_check
        %p275 = pneg %p84
      $region18: #{swin_block_forward.2} parent=11 // pred_check_branch
        %277 = sbr.rel (%p275) target = $region20
      $region19: #{swin_block_forward.2} parent=11 // pred_region
        _
      $region20: #{swin_block_forward.2} parent=11 // pred_fallthru
        _
      // Predicated region
      $region21: #{swin_block_forward.2} parent=11 // pred_check
        %p278 = pneg %p105
      $region22: #{swin_block_forward.2} parent=11 // pred_check_branch
        %280 = sbr.rel (%p278) target = $region24
      $region23: #{swin_block_forward.2} parent=11 // pred_region
        _
      $region24: #{swin_block_forward.2} parent=11 // pred_fallthru
        _
      // Predicated region
      $region25: #{swin_block_forward.2} parent=11 // pred_check
        %p281 = pneg %p126
      $region26: #{swin_block_forward.2} parent=11 // pred_check_branch
        %283 = sbr.rel (%p281) target = $region28
      $region27: #{swin_block_forward.2} parent=11 // pred_region
        _
      $region28: #{swin_block_forward.2} parent=11 // pred_fallthru
        _
      // Predicated region
      $region29: #{swin_block_forward.2} parent=11 // pred_check
        %p284 = pneg %p147
      $region30: #{swin_block_forward.2} parent=11 // pred_check_branch
        %286 = sbr.rel (%p284) target = $region32
      $region31: #{swin_block_forward.2} parent=11 // pred_region
        _
      $region32: #{swin_block_forward.2} parent=11 // pred_fallthru
        _
      // Predicated region
      $region33: #{swin_block_forward.2} parent=11 // pred_check
        %p287 = pneg %p168
      $region34: #{swin_block_forward.2} parent=11 // pred_check_branch
        %289 = sbr.rel (%p287) target = $region36
      $region35: #{swin_block_forward.2} parent=11 // pred_region
        _
      $region36: #{swin_block_forward.2} parent=11 // pred_fallthru
        _
      // Predicated region
      $region37: #{swin_block_forward.2} parent=11 // pred_check
        %p290 = pneg %p189
      $region38: #{swin_block_forward.2} parent=11 // pred_check_branch
        %292 = sbr.rel (%p290) target = $region40
      $region39: #{swin_block_forward.2} parent=11 // pred_region
        _
      $region40: #{swin_block_forward.2} parent=11 // pred_fallthru
        _
      // Predicated region
      $region41: #{swin_block_forward.2} parent=11 // pred_check
        %p293 = pneg %p210
      $region42: #{swin_block_forward.2} parent=11 // pred_check_branch
        %295 = sbr.rel (%p293) target = $region44
      $region43: #{swin_block_forward.2} parent=11 // pred_region
        _
      $region44: #{swin_block_forward.2} parent=11 // pred_fallthru
        _
      // Predicated region
      $region45: #{swin_block_forward.2} parent=11 // pred_check
        %p296 = pneg %p231
      $region46: #{swin_block_forward.2} parent=11 // pred_check_branch
        %298 = sbr.rel (%p296) target = $region48
      $region47: #{swin_block_forward.2} parent=11 // pred_region
        _
      $region48: #{swin_block_forward.2} parent=11 // pred_fallthru
        _
    $region12: #{swin_block_forward.2} parent=5 // pred_fallthru
      _
    %p299 = scmp.lt.s32.totalorder %s16, 2
    // Predicated region
    $region49: #{swin_block_forward.2} parent=5 // pred_check
      %p300 = pneg %p299
    $region50: #{swin_block_forward.2} parent=5 // pred_check_branch
      %302 = sbr.rel (%p300) target = $region52
    $region51: #{swin_block_forward.2} parent=5 // pred_region
      // Predicated region
      $region53: #{swin_block_forward.2} parent=51 // pred_check
        %p303 = pneg %p36
      $region54: #{swin_block_forward.2} parent=51 // pred_check_branch
        %305 = sbr.rel (%p303) target = $region56
      $region55: #{swin_block_forward.2} parent=51 // pred_region
        %s306 = smul.u32 8, %s16
        %p307 = scmp.lt.s32.totalorder %s306, 15
        %s308 = scalar_select %p307, %s306, 15
        %s309 = smul.addr %s308, 4
        %s310 = smul.addr %s309, 8
        %s311 = scalar_lea.vmem %s0, %s310
        %s312 = smul.u32 8, %s16
      $region56: #{swin_block_forward.2} parent=51 // pred_fallthru
        _
    $region52: #{swin_block_forward.2} parent=5 // pred_fallthru
      _
    %p313 = scmp.le.s32.totalorder 1, %s16
    %p314 = scmp.lt.s32.totalorder %s16, 3
    %p315 = pnand %p313, %p314
    %p316 = pneg %p315
    // Predicated region
    $region57: #{swin_block_forward.2} parent=5 // pred_check
      _
    $region58: #{swin_block_forward.2} parent=5 // pred_check_branch
      %318 = sbr.rel (%p315) target = $region60
    $region59: #{swin_block_forward.2} parent=5 // pred_region
      %s319 = ssub.s32 %s16, 1
      %s320 = smul.u32 8, %s21
      %p321 = scmp.lt.s32.totalorder %s320, 15
      %s322 = scalar_select %p321, %s320, 15
      %s323 = smul.addr %s322, 4
      %s324 = smul.addr %s323, 8
      %s325 = scalar_lea.vmem %s0, %s324
      %p326 = pneg %p42
      %p327 = pneg %p39
      %p328 = pneg %p63
      %p329 = pneg %p60
      %p330 = pneg %p84
      %p331 = pneg %p81
      %p332 = pneg %p105
      %p333 = pneg %p102
      %p334 = pneg %p126
      %p335 = pneg %p123
      %p336 = pneg %p147
      %p337 = pneg %p144
      %p338 = pneg %p168
      %p339 = pneg %p165
      %p340 = pneg %p189
      %p341 = pneg %p186
      %p342 = pneg %p210
      %p343 = pneg %p207
      %p344 = pneg %p231
      %p345 = pneg %p228
      %p346 = pneg %p257
      %p347 = pneg %p254
      %p348 = scmp.lt.s32.totalorder %s21, 1
      %s349 = scalar_select %p348, %s21, 1
      %s350 = smul.addr %s349, 8
      %s351 = smul.addr %s350, 8
      %s352 = scalar_lea.vmem %s10, %s351
      %s353 = smul.u32 8, %s21
      %p354 = scmp.lt.s32.totalorder %s353, 15
      %s355 = scalar_select %p354, %s353, 15
      %s356 = smul.addr %s355, 4
      %s357 = smul.addr %s356, 8
      %s358 = scalar_lea.vmem %s0, %s357
      %s359 = smul.u32 8, %s21
      %p360 = scmp.lt.s32.totalorder %s21, 1
      %s361 = scalar_select %p360, %s21, 1
      %s362 = smul.addr %s361, 8
      %s363 = smul.addr %s362, 8
      %s364 = scalar_lea.vmem %s10, %s363
      %v366 = vld [vmem:[%s358] sm:$0xff]
      %v367 = vld [vmem:[%s358 + $0x8] sm:$0xff]
      %v368 = vld [vmem:[%s358 + $0x10] sm:$0xff]
      %v369 = vld [vmem:[%s358 + $0x18] sm:$0xff]
      %v370 = vld [vmem:[%s358 + $0x20] sm:$0xff]
      %v371 = vld [vmem:[%s358 + $0x28] sm:$0xff]
      %v372 = vld [vmem:[%s358 + $0x30] sm:$0xff]
      %v373 = vld [vmem:[%s358 + $0x38] sm:$0xff]
      %v374 = vld [vmem:[%s358 + $0x40] sm:$0xff]
      %v375 = vld [vmem:[%s358 + $0x48] sm:$0xff]
      %v376 = vld [vmem:[%s358 + $0x50] sm:$0xff]
      %v377 = vld [vmem:[%s358 + $0x58] sm:$0xff]
      %v378 = vld [vmem:[%s358 + $0x60] sm:$0xff]
      %v379 = vld [vmem:[%s358 + $0x68] sm:$0xff]
      %v380 = vld [vmem:[%s358 + $0x70] sm:$0xff]
      %v381 = vld [vmem:[%s358 + $0x78] sm:$0xff]
      %v382 = vld [vmem:[%s358 + $0x80] sm:$0xff]
      %v383 = vld [vmem:[%s358 + $0x88] sm:$0xff]
      %v384 = vld [vmem:[%s358 + $0x90] sm:$0xff]
      %v385 = vld [vmem:[%s358 + $0x98] sm:$0xff]
      %v386 = vld [vmem:[%s358 + $0xa0] sm:$0xff]
      %v387 = vld [vmem:[%s358 + $0xa8] sm:$0xff]
      %v388 = vld [vmem:[%s358 + $0xb0] sm:$0xff]
      %v389 = vld [vmem:[%s358 + $0xb8] sm:$0xff]
      %v390 = vld [vmem:[%s358 + $0xc0] sm:$0xff]
      %v391 = vld [vmem:[%s358 + $0xc8] sm:$0xff]
      %v392 = vld [vmem:[%s358 + $0xd0] sm:$0xff]
      %v393 = vld [vmem:[%s358 + $0xd8] sm:$0xff]
      %v394 = vld [vmem:[%s358 + $0xe0] sm:$0xff]
      %v395 = vld [vmem:[%s358 + $0xe8] sm:$0xff]
      %v396 = vld [vmem:[%s358 + $0xf0] sm:$0xff]
      %v397 = vld [vmem:[%s358 + $0xf8] sm:$0xff]
      %vm398 = vcmask 261120
      %v399 = vsel %vm398, %v366, 0.0
      %400 = vadd.xlane.f32.xlu0 %v399
      %v401 = vpop.xlane.xlu0 %400
      %v402 = vsel %vm398, %v367, 0.0
      %403 = vadd.xlane.f32.xlu0 %v402
      %v404 = vpop.xlane.xlu0 %403
      %v405 = vsel %vm398, %v368, 0.0
      %406 = vadd.xlane.f32.xlu0 %v405
      %v407 = vpop.xlane.xlu0 %406
      %v408 = vsel %vm398, %v369, 0.0
      %409 = vadd.xlane.f32.xlu0 %v408
      %v410 = vpop.xlane.xlu0 %409
      %v411 = vsel %vm398, %v370, 0.0
      %412 = vadd.xlane.f32.xlu0 %v411
      %v413 = vpop.xlane.xlu0 %412
      %v414 = vsel %vm398, %v371, 0.0
      %415 = vadd.xlane.f32.xlu0 %v414
      %v416 = vpop.xlane.xlu0 %415
      %v417 = vsel %vm398, %v372, 0.0
      %418 = vadd.xlane.f32.xlu0 %v417
      %v419 = vpop.xlane.xlu0 %418
      %v420 = vsel %vm398, %v373, 0.0
      %421 = vadd.xlane.f32.xlu0 %v420
      %v422 = vpop.xlane.xlu0 %421
      %v423 = vsel %vm398, %v374, 0.0
      %424 = vadd.xlane.f32.xlu0 %v423
      %v425 = vpop.xlane.xlu0 %424
      %v426 = vsel %vm398, %v375, 0.0
      %427 = vadd.xlane.f32.xlu0 %v426
      %v428 = vpop.xlane.xlu0 %427
      %v429 = vsel %vm398, %v376, 0.0
      %430 = vadd.xlane.f32.xlu0 %v429
      %v431 = vpop.xlane.xlu0 %430
      %v432 = vsel %vm398, %v377, 0.0
      %433 = vadd.xlane.f32.xlu0 %v432
      %v434 = vpop.xlane.xlu0 %433
      %v435 = vsel %vm398, %v378, 0.0
      %436 = vadd.xlane.f32.xlu0 %v435
      %v437 = vpop.xlane.xlu0 %436
      %v438 = vsel %vm398, %v379, 0.0
      %439 = vadd.xlane.f32.xlu0 %v438
      %v440 = vpop.xlane.xlu0 %439
      %v441 = vsel %vm398, %v380, 0.0
      %442 = vadd.xlane.f32.xlu0 %v441
      %v443 = vpop.xlane.xlu0 %442
      %v444 = vsel %vm398, %v381, 0.0
      %445 = vadd.xlane.f32.xlu0 %v444
      %v446 = vpop.xlane.xlu0 %445
      %v447 = vsel %vm398, %v382, 0.0
      %448 = vadd.xlane.f32.xlu0 %v447
      %v449 = vpop.xlane.xlu0 %448
      %v450 = vsel %vm398, %v383, 0.0
      %451 = vadd.xlane.f32.xlu0 %v450
      %v452 = vpop.xlane.xlu0 %451
      %v453 = vsel %vm398, %v384, 0.0
      %454 = vadd.xlane.f32.xlu0 %v453
      %v455 = vpop.xlane.xlu0 %454
      %v456 = vsel %vm398, %v385, 0.0
      %457 = vadd.xlane.f32.xlu0 %v456
      %v458 = vpop.xlane.xlu0 %457
      %v459 = vsel %vm398, %v386, 0.0
      %460 = vadd.xlane.f32.xlu0 %v459
      %v461 = vpop.xlane.xlu0 %460
      %v462 = vsel %vm398, %v387, 0.0
      %463 = vadd.xlane.f32.xlu0 %v462
      %v464 = vpop.xlane.xlu0 %463
      %v465 = vsel %vm398, %v388, 0.0
      %466 = vadd.xlane.f32.xlu0 %v465
      %v467 = vpop.xlane.xlu0 %466
      %v468 = vsel %vm398, %v389, 0.0
      %469 = vadd.xlane.f32.xlu0 %v468
      %v470 = vpop.xlane.xlu0 %469
      %v471 = vsel %vm398, %v390, 0.0
      %472 = vadd.xlane.f32.xlu0 %v471
      %v473 = vpop.xlane.xlu0 %472
      %v474 = vsel %vm398, %v391, 0.0
      %475 = vadd.xlane.f32.xlu0 %v474
      %v476 = vpop.xlane.xlu0 %475
      %v477 = vsel %vm398, %v392, 0.0
      %478 = vadd.xlane.f32.xlu0 %v477
      %v479 = vpop.xlane.xlu0 %478
      %v480 = vsel %vm398, %v393, 0.0
      %481 = vadd.xlane.f32.xlu0 %v480
      %v482 = vpop.xlane.xlu0 %481
      %v483 = vsel %vm398, %v394, 0.0
      %484 = vadd.xlane.f32.xlu0 %v483
      %v485 = vpop.xlane.xlu0 %484
      %v486 = vsel %vm398, %v395, 0.0
      %487 = vadd.xlane.f32.xlu0 %v486
      %v488 = vpop.xlane.xlu0 %487
      %v489 = vsel %vm398, %v396, 0.0
      %490 = vadd.xlane.f32.xlu0 %v489
      %v491 = vpop.xlane.xlu0 %490
      %v492 = vsel %vm398, %v397, 0.0
      %493 = vadd.xlane.f32.xlu0 %v492
      %v494 = vpop.xlane.xlu0 %493
      %v495 = vrcp.pop 32.0
      %v496 = vmul.f32 %v401, %v495
      %v497 = vmul.f32 %v404, %v495
      %v498 = vmul.f32 %v407, %v495
      %v499 = vmul.f32 %v410, %v495
      %v500 = vmul.f32 %v413, %v495
      %v501 = vmul.f32 %v416, %v495
      %v502 = vmul.f32 %v419, %v495
      %v503 = vmul.f32 %v422, %v495
      %v504 = vmul.f32 %v425, %v495
      %v505 = vmul.f32 %v428, %v495
      %v506 = vmul.f32 %v431, %v495
      %v507 = vmul.f32 %v434, %v495
      %v508 = vmul.f32 %v437, %v495
      %v509 = vmul.f32 %v440, %v495
      %v510 = vmul.f32 %v443, %v495
      %v511 = vmul.f32 %v446, %v495
      %v512 = vmul.f32 %v449, %v495
      %v513 = vmul.f32 %v452, %v495
      %v514 = vmul.f32 %v455, %v495
      %v515 = vmul.f32 %v458, %v495
      %v516 = vmul.f32 %v461, %v495
      %v517 = vmul.f32 %v464, %v495
      %v518 = vmul.f32 %v467, %v495
      %v519 = vmul.f32 %v470, %v495
      %v520 = vmul.f32 %v473, %v495
      %v521 = vmul.f32 %v476, %v495
      %v522 = vmul.f32 %v479, %v495
      %v523 = vmul.f32 %v482, %v495
      %v524 = vmul.f32 %v485, %v495
      %v525 = vmul.f32 %v488, %v495
      %v526 = vmul.f32 %v491, %v495
      %v527 = vmul.f32 %v494, %v495
      %v528 = vsub.f32 %v366, %v496
      %v529 = vsub.f32 %v367, %v497
      %v530 = vsub.f32 %v368, %v498
      %v531 = vsub.f32 %v369, %v499
      %v532 = vsub.f32 %v370, %v500
      %v533 = vsub.f32 %v371, %v501
      %v534 = vsub.f32 %v372, %v502
      %v535 = vsub.f32 %v373, %v503
      %v536 = vsub.f32 %v374, %v504
      %v537 = vsub.f32 %v375, %v505
      %v538 = vsub.f32 %v376, %v506
      %v539 = vsub.f32 %v377, %v507
      %v540 = vsub.f32 %v378, %v508
      %v541 = vsub.f32 %v379, %v509
      %v542 = vsub.f32 %v380, %v510
      %v543 = vsub.f32 %v381, %v511
      %v544 = vsub.f32 %v382, %v512
      %v545 = vsub.f32 %v383, %v513
      %v546 = vsub.f32 %v384, %v514
      %v547 = vsub.f32 %v385, %v515
      %v548 = vsub.f32 %v386, %v516
      %v549 = vsub.f32 %v387, %v517
      %v550 = vsub.f32 %v388, %v518
      %v551 = vsub.f32 %v389, %v519
      %v552 = vsub.f32 %v390, %v520
      %v553 = vsub.f32 %v391, %v521
      %v554 = vsub.f32 %v392, %v522
      %v555 = vsub.f32 %v393, %v523
      %v556 = vsub.f32 %v394, %v524
      %v557 = vsub.f32 %v395, %v525
      %v558 = vsub.f32 %v396, %v526
      %v559 = vsub.f32 %v397, %v527
      %v560 = vmul.f32 %v528, %v528
      %v561 = vmul.f32 %v529, %v529
      %v562 = vmul.f32 %v530, %v530
      %v563 = vmul.f32 %v531, %v531
      %v564 = vmul.f32 %v532, %v532
      %v565 = vmul.f32 %v533, %v533
      %v566 = vmul.f32 %v534, %v534
      %v567 = vmul.f32 %v535, %v535
      %v568 = vmul.f32 %v536, %v536
      %v569 = vmul.f32 %v537, %v537
      %v570 = vmul.f32 %v538, %v538
      %v571 = vmul.f32 %v539, %v539
      %v572 = vmul.f32 %v540, %v540
      %v573 = vmul.f32 %v541, %v541
      %v574 = vmul.f32 %v542, %v542
      %v575 = vmul.f32 %v543, %v543
      %v576 = vmul.f32 %v544, %v544
      %v577 = vmul.f32 %v545, %v545
      %v578 = vmul.f32 %v546, %v546
      %v579 = vmul.f32 %v547, %v547
      %v580 = vmul.f32 %v548, %v548
      %v581 = vmul.f32 %v549, %v549
      %v582 = vmul.f32 %v550, %v550
      %v583 = vmul.f32 %v551, %v551
      %v584 = vmul.f32 %v552, %v552
      %v585 = vmul.f32 %v553, %v553
      %v586 = vmul.f32 %v554, %v554
      %v587 = vmul.f32 %v555, %v555
      %v588 = vmul.f32 %v556, %v556
      %v589 = vmul.f32 %v557, %v557
      %v590 = vmul.f32 %v558, %v558
      %v591 = vmul.f32 %v559, %v559
      %v592 = vsel %vm398, %v560, 0.0
      %593 = vadd.xlane.f32.xlu0 %v592
      %v594 = vpop.xlane.xlu0 %593
      %v595 = vsel %vm398, %v561, 0.0
      %596 = vadd.xlane.f32.xlu0 %v595
      %v597 = vpop.xlane.xlu0 %596
      %v598 = vsel %vm398, %v562, 0.0
      %599 = vadd.xlane.f32.xlu0 %v598
      %v600 = vpop.xlane.xlu0 %599
      %v601 = vsel %vm398, %v563, 0.0
      %602 = vadd.xlane.f32.xlu0 %v601
      %v603 = vpop.xlane.xlu0 %602
      %v604 = vsel %vm398, %v564, 0.0
      %605 = vadd.xlane.f32.xlu0 %v604
      %v606 = vpop.xlane.xlu0 %605
      %v607 = vsel %vm398, %v565, 0.0
      %608 = vadd.xlane.f32.xlu0 %v607
      %v609 = vpop.xlane.xlu0 %608
      %v610 = vsel %vm398, %v566, 0.0
      %611 = vadd.xlane.f32.xlu0 %v610
      %v612 = vpop.xlane.xlu0 %611
      %v613 = vsel %vm398, %v567, 0.0
      %614 = vadd.xlane.f32.xlu0 %v613
      %v615 = vpop.xlane.xlu0 %614
      %v616 = vsel %vm398, %v568, 0.0
      %617 = vadd.xlane.f32.xlu0 %v616
      %v618 = vpop.xlane.xlu0 %617
      %v619 = vsel %vm398, %v569, 0.0
      %620 = vadd.xlane.f32.xlu0 %v619
      %v621 = vpop.xlane.xlu0 %620
      %v622 = vsel %vm398, %v570, 0.0
      %623 = vadd.xlane.f32.xlu0 %v622
      %v624 = vpop.xlane.xlu0 %623
      %v625 = vsel %vm398, %v571, 0.0
      %626 = vadd.xlane.f32.xlu0 %v625
      %v627 = vpop.xlane.xlu0 %626
      %v628 = vsel %vm398, %v572, 0.0
      %629 = vadd.xlane.f32.xlu0 %v628
      %v630 = vpop.xlane.xlu0 %629
      %v631 = vsel %vm398, %v573, 0.0
      %632 = vadd.xlane.f32.xlu0 %v631
      %v633 = vpop.xlane.xlu0 %632
      %v634 = vsel %vm398, %v574, 0.0
      %635 = vadd.xlane.f32.xlu0 %v634
      %v636 = vpop.xlane.xlu0 %635
      %v637 = vsel %vm398, %v575, 0.0
      %638 = vadd.xlane.f32.xlu0 %v637
      %v639 = vpop.xlane.xlu0 %638
      %v640 = vsel %vm398, %v576, 0.0
      %641 = vadd.xlane.f32.xlu0 %v640
      %v642 = vpop.xlane.xlu0 %641
      %v643 = vsel %vm398, %v577, 0.0
      %644 = vadd.xlane.f32.xlu0 %v643
      %v645 = vpop.xlane.xlu0 %644
      %v646 = vsel %vm398, %v578, 0.0
      %647 = vadd.xlane.f32.xlu0 %v646
      %v648 = vpop.xlane.xlu0 %647
      %v649 = vsel %vm398, %v579, 0.0
      %650 = vadd.xlane.f32.xlu0 %v649
      %v651 = vpop.xlane.xlu0 %650
      %v652 = vsel %vm398, %v580, 0.0
      %653 = vadd.xlane.f32.xlu0 %v652
      %v654 = vpop.xlane.xlu0 %653
      %v655 = vsel %vm398, %v581, 0.0
      %656 = vadd.xlane.f32.xlu0 %v655
      %v657 = vpop.xlane.xlu0 %656
      %v658 = vsel %vm398, %v582, 0.0
      %659 = vadd.xlane.f32.xlu0 %v658
      %v660 = vpop.xlane.xlu0 %659
      %v661 = vsel %vm398, %v583, 0.0
      %662 = vadd.xlane.f32.xlu0 %v661
      %v663 = vpop.xlane.xlu0 %662
      %v664 = vsel %vm398, %v584, 0.0
      %665 = vadd.xlane.f32.xlu0 %v664
      %v666 = vpop.xlane.xlu0 %665
      %v667 = vsel %vm398, %v585, 0.0
      %668 = vadd.xlane.f32.xlu0 %v667
      %v669 = vpop.xlane.xlu0 %668
      %v670 = vsel %vm398, %v586, 0.0
      %671 = vadd.xlane.f32.xlu0 %v670
      %v672 = vpop.xlane.xlu0 %671
      %v673 = vsel %vm398, %v587, 0.0
      %674 = vadd.xlane.f32.xlu0 %v673
      %v675 = vpop.xlane.xlu0 %674
      %v676 = vsel %vm398, %v588, 0.0
      %677 = vadd.xlane.f32.xlu0 %v676
      %v678 = vpop.xlane.xlu0 %677
      %v679 = vsel %vm398, %v589, 0.0
      %680 = vadd.xlane.f32.xlu0 %v679
      %v681 = vpop.xlane.xlu0 %680
      %v682 = vsel %vm398, %v590, 0.0
      %683 = vadd.xlane.f32.xlu0 %v682
      %v684 = vpop.xlane.xlu0 %683
      %v685 = vsel %vm398, %v591, 0.0
      %686 = vadd.xlane.f32.xlu0 %v685
      %v687 = vpop.xlane.xlu0 %686
      %v688 = vmul.f32 %v594, %v495
      %v689 = vmul.f32 %v597, %v495
      %v690 = vmul.f32 %v600, %v495
      %v691 = vmul.f32 %v603, %v495
      %v692 = vmul.f32 %v606, %v495
      %v693 = vmul.f32 %v609, %v495
      %v694 = vmul.f32 %v612, %v495
      %v695 = vmul.f32 %v615, %v495
      %v696 = vmul.f32 %v618, %v495
      %v697 = vmul.f32 %v621, %v495
      %v698 = vmul.f32 %v624, %v495
      %v699 = vmul.f32 %v627, %v495
      %v700 = vmul.f32 %v630, %v495
      %v701 = vmul.f32 %v633, %v495
      %v702 = vmul.f32 %v636, %v495
      %v703 = vmul.f32 %v639, %v495
      %v704 = vmul.f32 %v642, %v495
      %v705 = vmul.f32 %v645, %v495
      %v706 = vmul.f32 %v648, %v495
      %v707 = vmul.f32 %v651, %v495
      %v708 = vmul.f32 %v654, %v495
      %v709 = vmul.f32 %v657, %v495
      %v710 = vmul.f32 %v660, %v495
      %v711 = vmul.f32 %v663, %v495
      %v712 = vmul.f32 %v666, %v495
      %v713 = vmul.f32 %v669, %v495
      %v714 = vmul.f32 %v672, %v495
      %v715 = vmul.f32 %v675, %v495
      %v716 = vmul.f32 %v678, %v495
      %v717 = vmul.f32 %v681, %v495
      %v718 = vmul.f32 %v684, %v495
      %v719 = vmul.f32 %v687, %v495
      %v720 = vadd.f32 %v688, 1e-05
      %v721 = vadd.f32 %v689, 1e-05
      %v722 = vadd.f32 %v690, 1e-05
      %v723 = vadd.f32 %v691, 1e-05
      %v724 = vadd.f32 %v692, 1e-05
      %v725 = vadd.f32 %v693, 1e-05
      %v726 = vadd.f32 %v694, 1e-05
      %v727 = vadd.f32 %v695, 1e-05
      %v728 = vadd.f32 %v696, 1e-05
      %v729 = vadd.f32 %v697, 1e-05
      %v730 = vadd.f32 %v698, 1e-05
      %v731 = vadd.f32 %v699, 1e-05
      %v732 = vadd.f32 %v700, 1e-05
      %v733 = vadd.f32 %v701, 1e-05
      %v734 = vadd.f32 %v702, 1e-05
      %v735 = vadd.f32 %v703, 1e-05
      %v736 = vadd.f32 %v704, 1e-05
      %v737 = vadd.f32 %v705, 1e-05
      %v738 = vadd.f32 %v706, 1e-05
      %v739 = vadd.f32 %v707, 1e-05
      %v740 = vadd.f32 %v708, 1e-05
      %v741 = vadd.f32 %v709, 1e-05
      %v742 = vadd.f32 %v710, 1e-05
      %v743 = vadd.f32 %v711, 1e-05
      %v744 = vadd.f32 %v712, 1e-05
      %v745 = vadd.f32 %v713, 1e-05
      %v746 = vadd.f32 %v714, 1e-05
      %v747 = vadd.f32 %v715, 1e-05
      %v748 = vadd.f32 %v716, 1e-05
      %v749 = vadd.f32 %v717, 1e-05
      %v750 = vadd.f32 %v718, 1e-05
      %v751 = vadd.f32 %v719, 1e-05
      %v752 = vrsqrt.pop %v720
      %v753 = vrsqrt.pop %v721
      %v754 = vrsqrt.pop %v722
      %v755 = vrsqrt.pop %v723
      %v756 = vrsqrt.pop %v724
      %v757 = vrsqrt.pop %v725
      %v758 = vrsqrt.pop %v726
      %v759 = vrsqrt.pop %v727
      %v760 = vrsqrt.pop %v728
      %v761 = vrsqrt.pop %v729
      %v762 = vrsqrt.pop %v730
      %v763 = vrsqrt.pop %v731
      %v764 = vrsqrt.pop %v732
      %v765 = vrsqrt.pop %v733
      %v766 = vrsqrt.pop %v734
      %v767 = vrsqrt.pop %v735
      %v768 = vrsqrt.pop %v736
      %v769 = vrsqrt.pop %v737
      %v770 = vrsqrt.pop %v738
      %v771 = vrsqrt.pop %v739
      %v772 = vrsqrt.pop %v740
      %v773 = vrsqrt.pop %v741
      %v774 = vrsqrt.pop %v742
      %v775 = vrsqrt.pop %v743
      %v776 = vrsqrt.pop %v744
      %v777 = vrsqrt.pop %v745
      %v778 = vrsqrt.pop %v746
      %v779 = vrsqrt.pop %v747
      %v780 = vrsqrt.pop %v748
      %v781 = vrsqrt.pop %v749
      %v782 = vrsqrt.pop %v750
      %v783 = vrsqrt.pop %v751
      %v784 = vmul.f32 %v528, %v752
      %v785 = vmul.f32 %v529, %v753
      %v786 = vmul.f32 %v530, %v754
      %v787 = vmul.f32 %v531, %v755
      %v788 = vmul.f32 %v532, %v756
      %v789 = vmul.f32 %v533, %v757
      %v790 = vmul.f32 %v534, %v758
      %v791 = vmul.f32 %v535, %v759
      %v792 = vmul.f32 %v536, %v760
      %v793 = vmul.f32 %v537, %v761
      %v794 = vmul.f32 %v538, %v762
      %v795 = vmul.f32 %v539, %v763
      %v796 = vmul.f32 %v540, %v764
      %v797 = vmul.f32 %v541, %v765
      %v798 = vmul.f32 %v542, %v766
      %v799 = vmul.f32 %v543, %v767
      %v800 = vmul.f32 %v544, %v768
      %v801 = vmul.f32 %v545, %v769
      %v802 = vmul.f32 %v546, %v770
      %v803 = vmul.f32 %v547, %v771
      %v804 = vmul.f32 %v548, %v772
      %v805 = vmul.f32 %v549, %v773
      %v806 = vmul.f32 %v550, %v774
      %v807 = vmul.f32 %v551, %v775
      %v808 = vmul.f32 %v552, %v776
      %v809 = vmul.f32 %v553, %v777
      %v810 = vmul.f32 %v554, %v778
      %v811 = vmul.f32 %v555, %v779
      %v812 = vmul.f32 %v556, %v780
      %v813 = vmul.f32 %v557, %v781
      %v814 = vmul.f32 %v558, %v782
      %v815 = vmul.f32 %v559, %v783
      %v816 = vld [vmem:[%s2] sm:$0x1]
      %v818 = vlaneseq
      %v819 = vshrl.u32 %v818, 7
      %v820 = vsub.s32 0, %v819
      %v821 = vrot.slane %v816, %v820
      %v823 = vmul.f32 %v784, %v821
      %v824 = vmul.f32 %v785, %v821
      %v825 = vmul.f32 %v786, %v821
      %v826 = vmul.f32 %v787, %v821
      %v827 = vmul.f32 %v788, %v821
      %v828 = vmul.f32 %v789, %v821
      %v829 = vmul.f32 %v790, %v821
      %v830 = vmul.f32 %v791, %v821
      %v831 = vmul.f32 %v792, %v821
      %v832 = vmul.f32 %v793, %v821
      %v833 = vmul.f32 %v794, %v821
      %v834 = vmul.f32 %v795, %v821
      %v835 = vmul.f32 %v796, %v821
      %v836 = vmul.f32 %v797, %v821
      %v837 = vmul.f32 %v798, %v821
      %v838 = vmul.f32 %v799, %v821
      %v839 = vmul.f32 %v800, %v821
      %v840 = vmul.f32 %v801, %v821
      %v841 = vmul.f32 %v802, %v821
      %v842 = vmul.f32 %v803, %v821
      %v843 = vmul.f32 %v804, %v821
      %v844 = vmul.f32 %v805, %v821
      %v845 = vmul.f32 %v806, %v821
      %v846 = vmul.f32 %v807, %v821
      %v847 = vmul.f32 %v808, %v821
      %v848 = vmul.f32 %v809, %v821
      %v849 = vmul.f32 %v810, %v821
      %v850 = vmul.f32 %v811, %v821
      %v851 = vmul.f32 %v812, %v821
      %v852 = vmul.f32 %v813, %v821
      %v853 = vmul.f32 %v814, %v821
      %v854 = vmul.f32 %v815, %v821
      %v855 = vld [vmem:[%s3] sm:$0x1]
      %v857 = vlaneseq
      %v858 = vshrl.u32 %v857, 7
      %v859 = vsub.s32 0, %v858
      %v860 = vrot.slane %v855, %v859
      %v862 = vadd.f32 %v823, %v860
      %v863 = vadd.f32 %v824, %v860
      %v864 = vadd.f32 %v825, %v860
      %v865 = vadd.f32 %v826, %v860
      %v866 = vadd.f32 %v827, %v860
      %v867 = vadd.f32 %v828, %v860
      %v868 = vadd.f32 %v829, %v860
      %v869 = vadd.f32 %v830, %v860
      %v870 = vadd.f32 %v831, %v860
      %v871 = vadd.f32 %v832, %v860
      %v872 = vadd.f32 %v833, %v860
      %v873 = vadd.f32 %v834, %v860
      %v874 = vadd.f32 %v835, %v860
      %v875 = vadd.f32 %v836, %v860
      %v876 = vadd.f32 %v837, %v860
      %v877 = vadd.f32 %v838, %v860
      %v878 = vadd.f32 %v839, %v860
      %v879 = vadd.f32 %v840, %v860
      %v880 = vadd.f32 %v841, %v860
      %v881 = vadd.f32 %v842, %v860
      %v882 = vadd.f32 %v843, %v860
      %v883 = vadd.f32 %v844, %v860
      %v884 = vadd.f32 %v845, %v860
      %v885 = vadd.f32 %v846, %v860
      %v886 = vadd.f32 %v847, %v860
      %v887 = vadd.f32 %v848, %v860
      %v888 = vadd.f32 %v849, %v860
      %v889 = vadd.f32 %v850, %v860
      %v890 = vadd.f32 %v851, %v860
      %v891 = vadd.f32 %v852, %v860
      %v892 = vadd.f32 %v853, %v860
      %v893 = vadd.f32 %v854, %v860
      %v894 = vpack.c.bf16 %v863, %v862
      %v895 = vpack.c.bf16 %v865, %v864
      %v896 = vpack.c.bf16 %v867, %v866
      %v897 = vpack.c.bf16 %v869, %v868
      %v898 = vpack.c.bf16 %v871, %v870
      %v899 = vpack.c.bf16 %v873, %v872
      %v900 = vpack.c.bf16 %v875, %v874
      %v901 = vpack.c.bf16 %v877, %v876
      %v902 = vpack.c.bf16 %v879, %v878
      %v903 = vpack.c.bf16 %v881, %v880
      %v904 = vpack.c.bf16 %v883, %v882
      %v905 = vpack.c.bf16 %v885, %v884
      %v906 = vpack.c.bf16 %v887, %v886
      %v907 = vpack.c.bf16 %v889, %v888
      %v908 = vpack.c.bf16 %v891, %v890
      %v909 = vpack.c.bf16 %v893, %v892
      %v910 = vld [vmem:[%s4] sm:$0xf]
      %v911 = vld [vmem:[%s4 + $0x4] sm:$0xf]
      %v912 = vld [vmem:[%s4 + $0x8] sm:$0xf]
      %v913 = vld [vmem:[%s4 + $0xc] sm:$0xf]
      %v914 = vld [vmem:[%s5] sm:$0x1]
      %v916 = vlaneseq
      %v917 = vshrl.u32 %v916, 7
      %v918 = vsub.s32 0, %v917
      %v919 = vrot.slane %v914, %v918
      %v925 = vunpack.c.l.b16 %v910
      %v926 = vunpack.c.l.b16 %v911
      %v927 = vunpack.c.l.b16 %v912
      %v928 = vunpack.c.l.b16 %v913
      %v929 = vpack.c.b16 %v926, %v925
      %v930 = vpack.c.b16 %v928, %v927
      %v934 = vsel %vm398, %v894, 0
      %v937 = vsel %vm398, %v895, 0
      %v940 = vsel %vm398, %v896, 0
      %v943 = vsel %vm398, %v897, 0
      %v946 = vsel %vm398, %v898, 0
      %v949 = vsel %vm398, %v899, 0
      %v952 = vsel %vm398, %v900, 0
      %v955 = vsel %vm398, %v901, 0
      %v958 = vsel %vm398, %v902, 0
      %v961 = vsel %vm398, %v903, 0
      %v964 = vsel %vm398, %v904, 0
      %v967 = vsel %vm398, %v905, 0
      %v970 = vsel %vm398, %v906, 0
      %v973 = vsel %vm398, %v907, 0
      %v976 = vsel %vm398, %v908, 0
      %v979 = vsel %vm398, %v909, 0
      %981 = vmatprep.subr.bf16.mxu0 0
      %982 = vmatpush1.bf16.msra.mxu0 0
      %983 = vmatprep.subr.bf16.mxu0 0
      %984 = vmatpush1.bf16.msra.mxu0 0
      %985 = vmatprep.subr.bf16.mxu0 0
      %986 = vmatpush1.bf16.msra.mxu0 0
      %987 = vmatprep.subr.bf16.mxu0 0
      %988 = vmatpush1.bf16.msra.mxu0 0
      %989 = vmatprep.subr.bf16.mxu0 0
      %990 = vmatpush1.bf16.msra.mxu0 0
      %991 = vmatprep.subr.bf16.mxu0 0
      %992 = vmatpush1.bf16.msra.mxu0 0
      %993 = vmatprep.subr.bf16.mxu0 0
      %994 = vmatpush1.bf16.msra.mxu0 %v930
      %995 = vmatprep.subr.bf16.mxu0 0
      %996 = vmatpush1.bf16.msra.mxu0 %v929
      %997 = vmatprep.subr.bf16.mxu0 0
      %998 = vmatpush2.bf16.msra.mxu0 0
      %999 = vmatprep.subr.bf16.mxu0 0
      %1000 = vmatpush2.bf16.msra.mxu0 0
      %1001 = vmatprep.subr.bf16.mxu0 0
      %1002 = vmatpush2.bf16.msra.mxu0 0
      %1003 = vmatprep.subr.bf16.mxu0 0
      %1004 = vmatpush2.bf16.msra.mxu0 0
      %1005 = vmatprep.subr.bf16.mxu0 0
      %1006 = vmatpush2.bf16.msra.mxu0 0
      %1007 = vmatprep.subr.bf16.mxu0 0
      %1008 = vmatpush2.bf16.msra.mxu0 0
      %1009 = vmatprep.subr.bf16.mxu0 0
      %1010 = vmatpush2.bf16.msra.mxu0 0
      %1011 = vmatprep.subr.bf16.mxu0 0
      %1012 = vmatpush2.bf16.msra.mxu0 0
      %1013 = vmatprep.mubr.bf16.mxu0 0
      %1014 = vmatmul.mubr.bf16.gmra.mxu0 %v934
      %v1015 = vpop.f32.mrf.mxu0
      %v1016 = vadd.f32 %v919, %v1015
      %v1017 = vpop.f32.mrf.mxu0
      %v1018 = vpop.f32.mrf.mxu0
      %v1019 = vadd.f32 %v919, %v1018
      %v1020 = vpop.f32.mrf.mxu0
      %1021 = vmatprep.mubr.bf16.mxu0 0
      %1022 = vmatmul.mubr.bf16.gmra.mxu0 %v937
      %v1023 = vpop.f32.mrf.mxu0
      %v1024 = vadd.f32 %v919, %v1023
      %v1025 = vpop.f32.mrf.mxu0
      %v1026 = vpop.f32.mrf.mxu0
      %v1027 = vadd.f32 %v919, %v1026
      %v1028 = vpop.f32.mrf.mxu0
      %1029 = vmatprep.mubr.bf16.mxu0 0
      %1030 = vmatmul.mubr.bf16.gmra.mxu0 %v940
      %v1031 = vpop.f32.mrf.mxu0
      %v1032 = vadd.f32 %v919, %v1031
      %v1033 = vpop.f32.mrf.mxu0
      %v1034 = vpop.f32.mrf.mxu0
      %v1035 = vadd.f32 %v919, %v1034
      %v1036 = vpop.f32.mrf.mxu0
      %1037 = vmatprep.mubr.bf16.mxu0 0
      %1038 = vmatmul.mubr.bf16.gmra.mxu0 %v943
      %v1039 = vpop.f32.mrf.mxu0
      %v1040 = vadd.f32 %v919, %v1039
      %v1041 = vpop.f32.mrf.mxu0
      %v1042 = vpop.f32.mrf.mxu0
      %v1043 = vadd.f32 %v919, %v1042
      %v1044 = vpop.f32.mrf.mxu0
      %1045 = vmatprep.mubr.bf16.mxu0 0
      %1046 = vmatmul.mubr.bf16.gmra.mxu0 %v946
      %v1047 = vpop.f32.mrf.mxu0
      %v1048 = vadd.f32 %v919, %v1047
      %v1049 = vpop.f32.mrf.mxu0
      %v1050 = vpop.f32.mrf.mxu0
      %v1051 = vadd.f32 %v919, %v1050
      %v1052 = vpop.f32.mrf.mxu0
      %1053 = vmatprep.mubr.bf16.mxu0 0
      %1054 = vmatmul.mubr.bf16.gmra.mxu0 %v949
      %v1055 = vpop.f32.mrf.mxu0
      %v1056 = vadd.f32 %v919, %v1055
      %v1057 = vpop.f32.mrf.mxu0
      %v1058 = vpop.f32.mrf.mxu0
      %v1059 = vadd.f32 %v919, %v1058
      %v1060 = vpop.f32.mrf.mxu0
      %1061 = vmatprep.mubr.bf16.mxu0 0
      %1062 = vmatmul.mubr.bf16.gmra.mxu0 %v952
      %v1063 = vpop.f32.mrf.mxu0
      %v1064 = vadd.f32 %v919, %v1063
      %v1065 = vpop.f32.mrf.mxu0
      %v1066 = vpop.f32.mrf.mxu0
      %v1067 = vadd.f32 %v919, %v1066
      %v1068 = vpop.f32.mrf.mxu0
      %1069 = vmatprep.mubr.bf16.mxu0 0
      %1070 = vmatmul.mubr.bf16.gmra.mxu0 %v955
      %v1071 = vpop.f32.mrf.mxu0
      %v1072 = vadd.f32 %v919, %v1071
      %v1073 = vpop.f32.mrf.mxu0
      %v1074 = vpop.f32.mrf.mxu0
      %v1075 = vadd.f32 %v919, %v1074
      %v1076 = vpop.f32.mrf.mxu0
      %1077 = vmatprep.mubr.bf16.mxu0 0
      %1078 = vmatmul.mubr.bf16.gmra.mxu0 %v958
      %v1079 = vpop.f32.mrf.mxu0
      %v1080 = vadd.f32 %v919, %v1079
      %v1081 = vpop.f32.mrf.mxu0
      %v1082 = vpop.f32.mrf.mxu0
      %v1083 = vadd.f32 %v919, %v1082
      %v1084 = vpop.f32.mrf.mxu0
      %1085 = vmatprep.mubr.bf16.mxu0 0
      %1086 = vmatmul.mubr.bf16.gmra.mxu0 %v961
      %v1087 = vpop.f32.mrf.mxu0
      %v1088 = vadd.f32 %v919, %v1087
      %v1089 = vpop.f32.mrf.mxu0
      %v1090 = vpop.f32.mrf.mxu0
      %v1091 = vadd.f32 %v919, %v1090
      %v1092 = vpop.f32.mrf.mxu0
      %1093 = vmatprep.mubr.bf16.mxu0 0
      %1094 = vmatmul.mubr.bf16.gmra.mxu0 %v964
      %v1095 = vpop.f32.mrf.mxu0
      %v1096 = vadd.f32 %v919, %v1095
      %v1097 = vpop.f32.mrf.mxu0
      %v1098 = vpop.f32.mrf.mxu0
      %v1099 = vadd.f32 %v919, %v1098
      %v1100 = vpop.f32.mrf.mxu0
      %1101 = vmatprep.mubr.bf16.mxu0 0
      %1102 = vmatmul.mubr.bf16.gmra.mxu0 %v967
      %v1103 = vpop.f32.mrf.mxu0
      %v1104 = vadd.f32 %v919, %v1103
      %v1105 = vpop.f32.mrf.mxu0
      %v1106 = vpop.f32.mrf.mxu0
      %v1107 = vadd.f32 %v919, %v1106
      %v1108 = vpop.f32.mrf.mxu0
      %1109 = vmatprep.mubr.bf16.mxu0 0
      %1110 = vmatmul.mubr.bf16.gmra.mxu0 %v970
      %v1111 = vpop.f32.mrf.mxu0
      %v1112 = vadd.f32 %v919, %v1111
      %v1113 = vpop.f32.mrf.mxu0
      %v1114 = vpop.f32.mrf.mxu0
      %v1115 = vadd.f32 %v919, %v1114
      %v1116 = vpop.f32.mrf.mxu0
      %1117 = vmatprep.mubr.bf16.mxu0 0
      %1118 = vmatmul.mubr.bf16.gmra.mxu0 %v973
      %v1119 = vpop.f32.mrf.mxu0
      %v1120 = vadd.f32 %v919, %v1119
      %v1121 = vpop.f32.mrf.mxu0
      %v1122 = vpop.f32.mrf.mxu0
      %v1123 = vadd.f32 %v919, %v1122
      %v1124 = vpop.f32.mrf.mxu0
      %1125 = vmatprep.mubr.bf16.mxu0 0
      %1126 = vmatmul.mubr.bf16.gmra.mxu0 %v976
      %v1127 = vpop.f32.mrf.mxu0
      %v1128 = vadd.f32 %v919, %v1127
      %v1129 = vpop.f32.mrf.mxu0
      %v1130 = vpop.f32.mrf.mxu0
      %v1131 = vadd.f32 %v919, %v1130
      %v1132 = vpop.f32.mrf.mxu0
      %1133 = vmatprep.mubr.bf16.mxu0 0
      %1134 = vmatmul.mubr.bf16.gmra.mxu0 %v979
      %v1135 = vpop.f32.mrf.mxu0
      %v1136 = vadd.f32 %v919, %v1135
      %v1137 = vpop.f32.mrf.mxu0
      %v1138 = vpop.f32.mrf.mxu0
      %v1139 = vadd.f32 %v919, %v1138
      %v1140 = vpop.f32.mrf.mxu0
      %1141 = vdwg.mxu0
      %v1142 = vld [vmem:[%s6] sm:$0xf]
      %v1143 = vld [vmem:[%s6 + $0x4] sm:$0xf]
      %v1144 = vld [vmem:[%s6 + $0x8] sm:$0xf]
      %v1145 = vld [vmem:[%s6 + $0xc] sm:$0xf]
      %v1146 = vld [vmem:[%s7] sm:$0x1]
      %v1148 = vlaneseq
      %v1149 = vshrl.u32 %v1148, 7
      %v1150 = vsub.s32 0, %v1149
      %v1151 = vrot.slane %v1146, %v1150
      %v1157 = vunpack.c.l.b16 %v1142
      %v1158 = vunpack.c.l.b16 %v1143
      %v1159 = vunpack.c.l.b16 %v1144
      %v1160 = vunpack.c.l.b16 %v1145
      %v1161 = vpack.c.b16 %v1158, %v1157
      %v1162 = vpack.c.b16 %v1160, %v1159
      %1165 = vmatprep.subr.bf16.mxu0 0
      %1166 = vmatpush1.bf16.msra.mxu0 0
      %1167 = vmatprep.subr.bf16.mxu0 0
      %1168 = vmatpush1.bf16.msra.mxu0 0
      %1169 = vmatprep.subr.bf16.mxu0 0
      %1170 = vmatpush1.bf16.msra.mxu0 0
      %1171 = vmatprep.subr.bf16.mxu0 0
      %1172 = vmatpush1.bf16.msra.mxu0 0
      %1173 = vmatprep.subr.bf16.mxu0 0
      %1174 = vmatpush1.bf16.msra.mxu0 0
      %1175 = vmatprep.subr.bf16.mxu0 0
      %1176 = vmatpush1.bf16.msra.mxu0 0
      %1177 = vmatprep.subr.bf16.mxu0 0
      %1178 = vmatpush1.bf16.msra.mxu0 %v1162
      %1179 = vmatprep.subr.bf16.mxu0 0
      %1180 = vmatpush1.bf16.msra.mxu0 %v1161
      %1181 = vmatprep.subr.bf16.mxu0 0
      %1182 = vmatpush2.bf16.msra.mxu0 0
      %1183 = vmatprep.subr.bf16.mxu0 0
      %1184 = vmatpush2.bf16.msra.mxu0 0
      %1185 = vmatprep.subr.bf16.mxu0 0
      %1186 = vmatpush2.bf16.msra.mxu0 0
      %1187 = vmatprep.subr.bf16.mxu0 0
      %1188 = vmatpush2.bf16.msra.mxu0 0
      %1189 = vmatprep.subr.bf16.mxu0 0
      %1190 = vmatpush2.bf16.msra.mxu0 0
      %1191 = vmatprep.subr.bf16.mxu0 0
      %1192 = vmatpush2.bf16.msra.mxu0 0
      %1193 = vmatprep.subr.bf16.mxu0 0
      %1194 = vmatpush2.bf16.msra.mxu0 0
      %1195 = vmatprep.subr.bf16.mxu0 0
      %1196 = vmatpush2.bf16.msra.mxu0 0
      %1197 = vmatprep.mubr.bf16.mxu0 0
      %1198 = vmatmul.mubr.bf16.gmra.mxu0 %v934
      %v1199 = vpop.f32.mrf.mxu0
      %v1200 = vadd.f32 %v1151, %v1199
      %v1201 = vpop.f32.mrf.mxu0
      %v1202 = vpop.f32.mrf.mxu0
      %v1203 = vadd.f32 %v1151, %v1202
      %v1204 = vpop.f32.mrf.mxu0
      %1205 = vmatprep.mubr.bf16.mxu0 0
      %1206 = vmatmul.mubr.bf16.gmra.mxu0 %v937
      %v1207 = vpop.f32.mrf.mxu0
      %v1208 = vadd.f32 %v1151, %v1207
      %v1209 = vpop.f32.mrf.mxu0
      %v1210 = vpop.f32.mrf.mxu0
      %v1211 = vadd.f32 %v1151, %v1210
      %v1212 = vpop.f32.mrf.mxu0
      %1213 = vmatprep.mubr.bf16.mxu0 0
      %1214 = vmatmul.mubr.bf16.gmra.mxu0 %v940
      %v1215 = vpop.f32.mrf.mxu0
      %v1216 = vadd.f32 %v1151, %v1215
      %v1217 = vpop.f32.mrf.mxu0
      %v1218 = vpop.f32.mrf.mxu0
      %v1219 = vadd.f32 %v1151, %v1218
      %v1220 = vpop.f32.mrf.mxu0
      %1221 = vmatprep.mubr.bf16.mxu0 0
      %1222 = vmatmul.mubr.bf16.gmra.mxu0 %v943
      %v1223 = vpop.f32.mrf.mxu0
      %v1224 = vadd.f32 %v1151, %v1223
      %v1225 = vpop.f32.mrf.mxu0
      %v1226 = vpop.f32.mrf.mxu0
      %v1227 = vadd.f32 %v1151, %v1226
      %v1228 = vpop.f32.mrf.mxu0
      %1229 = vmatprep.mubr.bf16.mxu0 0
      %1230 = vmatmul.mubr.bf16.gmra.mxu0 %v946
      %v1231 = vpop.f32.mrf.mxu0
      %v1232 = vadd.f32 %v1151, %v1231
      %v1233 = vpop.f32.mrf.mxu0
      %v1234 = vpop.f32.mrf.mxu0
      %v1235 = vadd.f32 %v1151, %v1234
      %v1236 = vpop.f32.mrf.mxu0
      %1237 = vmatprep.mubr.bf16.mxu0 0
      %1238 = vmatmul.mubr.bf16.gmra.mxu0 %v949
      %v1239 = vpop.f32.mrf.mxu0
      %v1240 = vadd.f32 %v1151, %v1239
      %v1241 = vpop.f32.mrf.mxu0
      %v1242 = vpop.f32.mrf.mxu0
      %v1243 = vadd.f32 %v1151, %v1242
      %v1244 = vpop.f32.mrf.mxu0
      %1245 = vmatprep.mubr.bf16.mxu0 0
      %1246 = vmatmul.mubr.bf16.gmra.mxu0 %v952
      %v1247 = vpop.f32.mrf.mxu0
      %v1248 = vadd.f32 %v1151, %v1247
      %v1249 = vpop.f32.mrf.mxu0
      %v1250 = vpop.f32.mrf.mxu0
      %v1251 = vadd.f32 %v1151, %v1250
      %v1252 = vpop.f32.mrf.mxu0
      %1253 = vmatprep.mubr.bf16.mxu0 0
      %1254 = vmatmul.mubr.bf16.gmra.mxu0 %v955
      %v1255 = vpop.f32.mrf.mxu0
      %v1256 = vadd.f32 %v1151, %v1255
      %v1257 = vpop.f32.mrf.mxu0
      %v1258 = vpop.f32.mrf.mxu0
      %v1259 = vadd.f32 %v1151, %v1258
      %v1260 = vpop.f32.mrf.mxu0
      %1261 = vmatprep.mubr.bf16.mxu0 0
      %1262 = vmatmul.mubr.bf16.gmra.mxu0 %v958
      %v1263 = vpop.f32.mrf.mxu0
      %v1264 = vadd.f32 %v1151, %v1263
      %v1265 = vpop.f32.mrf.mxu0
      %v1266 = vpop.f32.mrf.mxu0
      %v1267 = vadd.f32 %v1151, %v1266
      %v1268 = vpop.f32.mrf.mxu0
      %1269 = vmatprep.mubr.bf16.mxu0 0
      %1270 = vmatmul.mubr.bf16.gmra.mxu0 %v961
      %v1271 = vpop.f32.mrf.mxu0
      %v1272 = vadd.f32 %v1151, %v1271
      %v1273 = vpop.f32.mrf.mxu0
      %v1274 = vpop.f32.mrf.mxu0
      %v1275 = vadd.f32 %v1151, %v1274
      %v1276 = vpop.f32.mrf.mxu0
      %1277 = vmatprep.mubr.bf16.mxu0 0
      %1278 = vmatmul.mubr.bf16.gmra.mxu0 %v964
      %v1279 = vpop.f32.mrf.mxu0
      %v1280 = vadd.f32 %v1151, %v1279
      %v1281 = vpop.f32.mrf.mxu0
      %v1282 = vpop.f32.mrf.mxu0
      %v1283 = vadd.f32 %v1151, %v1282
      %v1284 = vpop.f32.mrf.mxu0
      %1285 = vmatprep.mubr.bf16.mxu0 0
      %1286 = vmatmul.mubr.bf16.gmra.mxu0 %v967
      %v1287 = vpop.f32.mrf.mxu0
      %v1288 = vadd.f32 %v1151, %v1287
      %v1289 = vpop.f32.mrf.mxu0
      %v1290 = vpop.f32.mrf.mxu0
      %v1291 = vadd.f32 %v1151, %v1290
      %v1292 = vpop.f32.mrf.mxu0
      %1293 = vmatprep.mubr.bf16.mxu0 0
      %1294 = vmatmul.mubr.bf16.gmra.mxu0 %v970
      %v1295 = vpop.f32.mrf.mxu0
      %v1296 = vadd.f32 %v1151, %v1295
      %v1297 = vpop.f32.mrf.mxu0
      %v1298 = vpop.f32.mrf.mxu0
      %v1299 = vadd.f32 %v1151, %v1298
      %v1300 = vpop.f32.mrf.mxu0
      %1301 = vmatprep.mubr.bf16.mxu0 0
      %1302 = vmatmul.mubr.bf16.gmra.mxu0 %v973
      %v1303 = vpop.f32.mrf.mxu0
      %v1304 = vadd.f32 %v1151, %v1303
      %v1305 = vpop.f32.mrf.mxu0
      %v1306 = vpop.f32.mrf.mxu0
      %v1307 = vadd.f32 %v1151, %v1306
      %v1308 = vpop.f32.mrf.mxu0
      %1309 = vmatprep.mubr.bf16.mxu0 0
      %1310 = vmatmul.mubr.bf16.gmra.mxu0 %v976
      %v1311 = vpop.f32.mrf.mxu0
      %v1312 = vadd.f32 %v1151, %v1311
      %v1313 = vpop.f32.mrf.mxu0
      %v1314 = vpop.f32.mrf.mxu0
      %v1315 = vadd.f32 %v1151, %v1314
      %v1316 = vpop.f32.mrf.mxu0
      %1317 = vmatprep.mubr.bf16.mxu0 0
      %1318 = vmatmul.mubr.bf16.gmra.mxu0 %v979
      %v1319 = vpop.f32.mrf.mxu0
      %v1320 = vadd.f32 %v1151, %v1319
      %v1321 = vpop.f32.mrf.mxu0
      %v1322 = vpop.f32.mrf.mxu0
      %v1323 = vadd.f32 %v1151, %v1322
      %v1324 = vpop.f32.mrf.mxu0
      %1325 = vdwg.mxu0
      %v1326 = vmul.f32 %v1016, 0.35355338
      %v1327 = vmul.f32 %v1019, 0.35355338
      %v1328 = vmul.f32 %v1024, 0.35355338
      %v1329 = vmul.f32 %v1027, 0.35355338
      %v1330 = vmul.f32 %v1032, 0.35355338
      %v1331 = vmul.f32 %v1035, 0.35355338
      %v1332 = vmul.f32 %v1040, 0.35355338
      %v1333 = vmul.f32 %v1043, 0.35355338
      %v1334 = vmul.f32 %v1048, 0.35355338
      %v1335 = vmul.f32 %v1051, 0.35355338
      %v1336 = vmul.f32 %v1056, 0.35355338
      %v1337 = vmul.f32 %v1059, 0.35355338
      %v1338 = vmul.f32 %v1064, 0.35355338
      %v1339 = vmul.f32 %v1067, 0.35355338
      %v1340 = vmul.f32 %v1072, 0.35355338
      %v1341 = vmul.f32 %v1075, 0.35355338
      %v1342 = vmul.f32 %v1080, 0.35355338
      %v1343 = vmul.f32 %v1083, 0.35355338
      %v1344 = vmul.f32 %v1088, 0.35355338
      %v1345 = vmul.f32 %v1091, 0.35355338
      %v1346 = vmul.f32 %v1096, 0.35355338
      %v1347 = vmul.f32 %v1099, 0.35355338
      %v1348 = vmul.f32 %v1104, 0.35355338
      %v1349 = vmul.f32 %v1107, 0.35355338
      %v1350 = vmul.f32 %v1112, 0.35355338
      %v1351 = vmul.f32 %v1115, 0.35355338
      %v1352 = vmul.f32 %v1120, 0.35355338
      %v1353 = vmul.f32 %v1123, 0.35355338
      %v1354 = vmul.f32 %v1128, 0.35355338
      %v1355 = vmul.f32 %v1131, 0.35355338
      %v1356 = vmul.f32 %v1136, 0.35355338
      %v1357 = vmul.f32 %v1139, 0.35355338
      %v1358 = vpack.c.bf16 %v1327, %v1326
      %v1359 = vpack.c.bf16 %v1329, %v1328
      %v1360 = vpack.c.bf16 %v1331, %v1330
      %v1361 = vpack.c.bf16 %v1333, %v1332
      %v1362 = vpack.c.bf16 %v1335, %v1334
      %v1363 = vpack.c.bf16 %v1337, %v1336
      %v1364 = vpack.c.bf16 %v1339, %v1338
      %v1365 = vpack.c.bf16 %v1341, %v1340
      %v1366 = vpack.c.bf16 %v1343, %v1342
      %v1367 = vpack.c.bf16 %v1345, %v1344
      %v1368 = vpack.c.bf16 %v1347, %v1346
      %v1369 = vpack.c.bf16 %v1349, %v1348
      %v1370 = vpack.c.bf16 %v1351, %v1350
      %v1371 = vpack.c.bf16 %v1353, %v1352
      %v1372 = vpack.c.bf16 %v1355, %v1354
      %v1373 = vpack.c.bf16 %v1357, %v1356
      %v1374 = vpack.c.bf16 %v1019, %v1016
      %v1375 = vpack.c.bf16 %v1027, %v1024
      %v1376 = vpack.c.bf16 %v1035, %v1032
      %v1377 = vpack.c.bf16 %v1043, %v1040
      %v1378 = vpack.c.bf16 %v1051, %v1048
      %v1379 = vpack.c.bf16 %v1059, %v1056
      %v1380 = vpack.c.bf16 %v1067, %v1064
      %v1381 = vpack.c.bf16 %v1075, %v1072
      %v1382 = vpack.c.bf16 %v1083, %v1080
      %v1383 = vpack.c.bf16 %v1091, %v1088
      %v1384 = vpack.c.bf16 %v1099, %v1096
      %v1385 = vpack.c.bf16 %v1107, %v1104
      %v1386 = vpack.c.bf16 %v1115, %v1112
      %v1387 = vpack.c.bf16 %v1123, %v1120
      %v1388 = vpack.c.bf16 %v1131, %v1128
      %v1389 = vpack.c.bf16 %v1139, %v1136
      %v1390 = vpack.c.bf16 %v1203, %v1200
      %v1391 = vpack.c.bf16 %v1211, %v1208
      %v1392 = vpack.c.bf16 %v1219, %v1216
      %v1393 = vpack.c.bf16 %v1227, %v1224
      %v1394 = vpack.c.bf16 %v1235, %v1232
      %v1395 = vpack.c.bf16 %v1243, %v1240
      %v1396 = vpack.c.bf16 %v1251, %v1248
      %v1397 = vpack.c.bf16 %v1259, %v1256
      %v1398 = vpack.c.bf16 %v1267, %v1264
      %v1399 = vpack.c.bf16 %v1275, %v1272
      %v1400 = vpack.c.bf16 %v1283, %v1280
      %v1401 = vpack.c.bf16 %v1291, %v1288
      %v1402 = vpack.c.bf16 %v1299, %v1296
      %v1403 = vpack.c.bf16 %v1307, %v1304
      %v1404 = vpack.c.bf16 %v1315, %v1312
      %v1405 = vpack.c.bf16 %v1323, %v1320
      %v1406 = vld [vmem:[%s1] sm:$0xff]
      %v1407 = vld [vmem:[%s1 + $0x8] sm:$0xff]
      %v1408 = vld [vmem:[%s1 + $0x10] sm:$0xff]
      %v1409 = vld [vmem:[%s1 + $0x18] sm:$0xff]
      %1412 = vrot.lane.b32.xlu0 %v1374, 96
      %v1413 = vpop.permute.xlu0 %1412
      %1414 = vrot.lane.b32.xlu0 %v1375, 96
      %v1415 = vpop.permute.xlu0 %1414
      %vm1416 = vcmask 64512
      %v1418 = vsel %vm1416, %v1358, 0
      %v1421 = vsel %vm1416, %v1359, 0
      %v1424 = vsel %vm1416, %v1413, 0
      %v1427 = vsel %vm1416, %v1415, 0
      %1429 = vmatprep.subr.bf16.mxu0 0
      %1430 = vmatpush1.bf16.xpose.msra.mxu0 0
      %1431 = vmatprep.subr.bf16.mxu0 0
      %1432 = vmatpush1.bf16.xpose.msra.mxu0 0
      %1433 = vmatprep.subr.bf16.mxu0 0
      %1434 = vmatpush1.bf16.xpose.msra.mxu0 0
      %1435 = vmatprep.subr.bf16.mxu0 0
      %1436 = vmatpush1.bf16.xpose.msra.mxu0 0
      %1437 = vmatprep.subr.bf16.mxu0 0
      %1438 = vmatpush1.bf16.xpose.msra.mxu0 0
      %1439 = vmatprep.subr.bf16.mxu0 0
      %1440 = vmatpush1.bf16.xpose.msra.mxu0 0
      %1441 = vmatprep.subr.bf16.mxu0 0
      %1442 = vmatpush1.bf16.xpose.msra.mxu0 %v1427
      %1443 = vmatprep.subr.bf16.mxu0 0
      %1444 = vmatpush1.bf16.xpose.msra.mxu0 %v1424
      %1445 = vmatprep.subr.bf16.mxu0 0
      %1446 = vmatpush2.bf16.xpose.msra.mxu0 0
      %1447 = vmatprep.subr.bf16.mxu0 0
      %1448 = vmatpush2.bf16.xpose.msra.mxu0 0
      %1449 = vmatprep.subr.bf16.mxu0 0
      %1450 = vmatpush2.bf16.xpose.msra.mxu0 0
      %1451 = vmatprep.subr.bf16.mxu0 0
      %1452 = vmatpush2.bf16.xpose.msra.mxu0 0
      %1453 = vmatprep.subr.bf16.mxu0 0
      %1454 = vmatpush2.bf16.xpose.msra.mxu0 0
      %1455 = vmatprep.subr.bf16.mxu0 0
      %1456 = vmatpush2.bf16.xpose.msra.mxu0 0
      %1457 = vmatprep.subr.bf16.mxu0 0
      %1458 = vmatpush2.bf16.xpose.msra.mxu0 0
      %1459 = vmatprep.subr.bf16.mxu0 0
      %1460 = vmatpush2.bf16.xpose.msra.mxu0 0
      %1461 = vmatprep.mubr.bf16.mxu0 0
      %1462 = vmatmul.mubr.bf16.gmra.mxu0 %v1418
      %v1463 = vpop.f32.mrf.mxu0
      %v1464 = vadd.f32 %v1406, %v1463
      %v1465 = vpop.f32.mrf.mxu0
      %v1466 = vpop.f32.mrf.mxu0
      %v1467 = vadd.f32 %v1407, %v1466
      %v1468 = vpop.f32.mrf.mxu0
      %1469 = vmatprep.mubr.bf16.mxu0 0
      %1470 = vmatmul.mubr.bf16.gmra.mxu0 %v1421
      %v1471 = vpop.f32.mrf.mxu0
      %v1472 = vadd.f32 %v1408, %v1471
      %v1473 = vpop.f32.mrf.mxu0
      %v1474 = vpop.f32.mrf.mxu0
      %v1475 = vadd.f32 %v1409, %v1474
      %v1476 = vpop.f32.mrf.mxu0
      %1477 = vdwg.mxu0
      %1480 = vrot.lane.b32.xlu0 %v1376, 96
      %v1481 = vpop.permute.xlu0 %1480
      %1482 = vrot.lane.b32.xlu0 %v1377, 96
      %v1483 = vpop.permute.xlu0 %1482
      %v1485 = vsel %vm1416, %v1360, 0
      %v1488 = vsel %vm1416, %v1361, 0
      %v1491 = vsel %vm1416, %v1481, 0
      %v1494 = vsel %vm1416, %v1483, 0
      %1496 = vmatprep.subr.bf16.mxu0 0
      %1497 = vmatpush1.bf16.xpose.msra.mxu0 0
      %1498 = vmatprep.subr.bf16.mxu0 0
      %1499 = vmatpush1.bf16.xpose.msra.mxu0 0
      %1500 = vmatprep.subr.bf16.mxu0 0
      %1501 = vmatpush1.bf16.xpose.msra.mxu0 0
      %1502 = vmatprep.subr.bf16.mxu0 0
      %1503 = vmatpush1.bf16.xpose.msra.mxu0 0
      %1504 = vmatprep.subr.bf16.mxu0 0
      %1505 = vmatpush1.bf16.xpose.msra.mxu0 0
      %1506 = vmatprep.subr.bf16.mxu0 0
      %1507 = vmatpush1.bf16.xpose.msra.mxu0 0
      %1508 = vmatprep.subr.bf16.mxu0 0
      %1509 = vmatpush1.bf16.xpose.msra.mxu0 %v1494
      %1510 = vmatprep.subr.bf16.mxu0 0
      %1511 = vmatpush1.bf16.xpose.msra.mxu0 %v1491
      %1512 = vmatprep.subr.bf16.mxu0 0
      %1513 = vmatpush2.bf16.xpose.msra.mxu0 0
      %1514 = vmatprep.subr.bf16.mxu0 0
      %1515 = vmatpush2.bf16.xpose.msra.mxu0 0
      %1516 = vmatprep.subr.bf16.mxu0 0
      %1517 = vmatpush2.bf16.xpose.msra.mxu0 0
      %1518 = vmatprep.subr.bf16.mxu0 0
      %1519 = vmatpush2.bf16.xpose.msra.mxu0 0
      %1520 = vmatprep.subr.bf16.mxu0 0
      %1521 = vmatpush2.bf16.xpose.msra.mxu0 0
      %1522 = vmatprep.subr.bf16.mxu0 0
      %1523 = vmatpush2.bf16.xpose.msra.mxu0 0
      %1524 = vmatprep.subr.bf16.mxu0 0
      %1525 = vmatpush2.bf16.xpose.msra.mxu0 0
      %1526 = vmatprep.subr.bf16.mxu0 0
      %1527 = vmatpush2.bf16.xpose.msra.mxu0 0
      %1528 = vmatprep.mubr.bf16.mxu0 0
      %1529 = vmatmul.mubr.bf16.gmra.mxu0 %v1485
      %v1530 = vpop.f32.mrf.mxu0
      %v1531 = vadd.f32 %v1406, %v1530
      %v1532 = vpop.f32.mrf.mxu0
      %v1533 = vpop.f32.mrf.mxu0
      %v1534 = vadd.f32 %v1407, %v1533
      %v1535 = vpop.f32.mrf.mxu0
      %1536 = vmatprep.mubr.bf16.mxu0 0
      %1537 = vmatmul.mubr.bf16.gmra.mxu0 %v1488
      %v1538 = vpop.f32.mrf.mxu0
      %v1539 = vadd.f32 %v1408, %v1538
      %v1540 = vpop.f32.mrf.mxu0
      %v1541 = vpop.f32.mrf.mxu0
      %v1542 = vadd.f32 %v1409, %v1541
      %v1543 = vpop.f32.mrf.mxu0
      %1544 = vdwg.mxu0
      %1547 = vrot.lane.b32.xlu0 %v1378, 96
      %v1548 = vpop.permute.xlu0 %1547
      %1549 = vrot.lane.b32.xlu0 %v1379, 96
      %v1550 = vpop.permute.xlu0 %1549
      %v1552 = vsel %vm1416, %v1362, 0
      %v1555 = vsel %vm1416, %v1363, 0
      %v1558 = vsel %vm1416, %v1548, 0
      %v1561 = vsel %vm1416, %v1550, 0
      %1563 = vmatprep.subr.bf16.mxu0 0
      %1564 = vmatpush1.bf16.xpose.msra.mxu0 0
      %1565 = vmatprep.subr.bf16.mxu0 0
      %1566 = vmatpush1.bf16.xpose.msra.mxu0 0
      %1567 = vmatprep.subr.bf16.mxu0 0
      %1568 = vmatpush1.bf16.xpose.msra.mxu0 0
      %1569 = vmatprep.subr.bf16.mxu0 0
      %1570 = vmatpush1.bf16.xpose.msra.mxu0 0
      %1571 = vmatprep.subr.bf16.mxu0 0
      %1572 = vmatpush1.bf16.xpose.msra.mxu0 0
      %1573 = vmatprep.subr.bf16.mxu0 0
      %1574 = vmatpush1.bf16.xpose.msra.mxu0 0
      %1575 = vmatprep.subr.bf16.mxu0 0
      %1576 = vmatpush1.bf16.xpose.msra.mxu0 %v1561
      %1577 = vmatprep.subr.bf16.mxu0 0
      %1578 = vmatpush1.bf16.xpose.msra.mxu0 %v1558
      %1579 = vmatprep.subr.bf16.mxu0 0
      %1580 = vmatpush2.bf16.xpose.msra.mxu0 0
      %1581 = vmatprep.subr.bf16.mxu0 0
      %1582 = vmatpush2.bf16.xpose.msra.mxu0 0
      %1583 = vmatprep.subr.bf16.mxu0 0
      %1584 = vmatpush2.bf16.xpose.msra.mxu0 0
      %1585 = vmatprep.subr.bf16.mxu0 0
      %1586 = vmatpush2.bf16.xpose.msra.mxu0 0
      %1587 = vmatprep.subr.bf16.mxu0 0
      %1588 = vmatpush2.bf16.xpose.msra.mxu0 0
      %1589 = vmatprep.subr.bf16.mxu0 0
      %1590 = vmatpush2.bf16.xpose.msra.mxu0 0
      %1591 = vmatprep.subr.bf16.mxu0 0
      %1592 = vmatpush2.bf16.xpose.msra.mxu0 0
      %1593 = vmatprep.subr.bf16.mxu0 0
      %1594 = vmatpush2.bf16.xpose.msra.mxu0 0
      %1595 = vmatprep.mubr.bf16.mxu0 0
      %1596 = vmatmul.mubr.bf16.gmra.mxu0 %v1552
      %v1597 = vpop.f32.mrf.mxu0
      %v1598 = vadd.f32 %v1406, %v1597
      %v1599 = vpop.f32.mrf.mxu0
      %v1600 = vpop.f32.mrf.mxu0
      %v1601 = vadd.f32 %v1407, %v1600
      %v1602 = vpop.f32.mrf.mxu0
      %1603 = vmatprep.mubr.bf16.mxu0 0
      %1604 = vmatmul.mubr.bf16.gmra.mxu0 %v1555
      %v1605 = vpop.f32.mrf.mxu0
      %v1606 = vadd.f32 %v1408, %v1605
      %v1607 = vpop.f32.mrf.mxu0
      %v1608 = vpop.f32.mrf.mxu0
      %v1609 = vadd.f32 %v1409, %v1608
      %v1610 = vpop.f32.mrf.mxu0
      %1611 = vdwg.mxu0
      %1614 = vrot.lane.b32.xlu0 %v1380, 96
      %v1615 = vpop.permute.xlu0 %1614
      %1616 = vrot.lane.b32.xlu0 %v1381, 96
      %v1617 = vpop.permute.xlu0 %1616
      %v1619 = vsel %vm1416, %v1364, 0
      %v1622 = vsel %vm1416, %v1365, 0
      %v1625 = vsel %vm1416, %v1615, 0
      %v1628 = vsel %vm1416, %v1617, 0
      %1630 = vmatprep.subr.bf16.mxu0 0
      %1631 = vmatpush1.bf16.xpose.msra.mxu0 0
      %1632 = vmatprep.subr.bf16.mxu0 0
      %1633 = vmatpush1.bf16.xpose.msra.mxu0 0
      %1634 = vmatprep.subr.bf16.mxu0 0
      %1635 = vmatpush1.bf16.xpose.msra.mxu0 0
      %1636 = vmatprep.subr.bf16.mxu0 0
      %1637 = vmatpush1.bf16.xpose.msra.mxu0 0
      %1638 = vmatprep.subr.bf16.mxu0 0
      %1639 = vmatpush1.bf16.xpose.msra.mxu0 0
      %1640 = vmatprep.subr.bf16.mxu0 0
      %1641 = vmatpush1.bf16.xpose.msra.mxu0 0
      %1642 = vmatprep.subr.bf16.mxu0 0
      %1643 = vmatpush1.bf16.xpose.msra.mxu0 %v1628
      %1644 = vmatprep.subr.bf16.mxu0 0
      %1645 = vmatpush1.bf16.xpose.msra.mxu0 %v1625
      %1646 = vmatprep.subr.bf16.mxu0 0
      %1647 = vmatpush2.bf16.xpose.msra.mxu0 0
      %1648 = vmatprep.subr.bf16.mxu0 0
      %1649 = vmatpush2.bf16.xpose.msra.mxu0 0
      %1650 = vmatprep.subr.bf16.mxu0 0
      %1651 = vmatpush2.bf16.xpose.msra.mxu0 0
      %1652 = vmatprep.subr.bf16.mxu0 0
      %1653 = vmatpush2.bf16.xpose.msra.mxu0 0
      %1654 = vmatprep.subr.bf16.mxu0 0
      %1655 = vmatpush2.bf16.xpose.msra.mxu0 0
      %1656 = vmatprep.subr.bf16.mxu0 0
      %1657 = vmatpush2.bf16.xpose.msra.mxu0 0
      %1658 = vmatprep.subr.bf16.mxu0 0
      %1659 = vmatpush2.bf16.xpose.msra.mxu0 0
      %1660 = vmatprep.subr.bf16.mxu0 0
      %1661 = vmatpush2.bf16.xpose.msra.mxu0 0
      %1662 = vmatprep.mubr.bf16.mxu0 0
      %1663 = vmatmul.mubr.bf16.gmra.mxu0 %v1619
      %v1664 = vpop.f32.mrf.mxu0
      %v1665 = vadd.f32 %v1406, %v1664
      %v1666 = vpop.f32.mrf.mxu0
      %v1667 = vpop.f32.mrf.mxu0
      %v1668 = vadd.f32 %v1407, %v1667
      %v1669 = vpop.f32.mrf.mxu0
      %1670 = vmatprep.mubr.bf16.mxu0 0
      %1671 = vmatmul.mubr.bf16.gmra.mxu0 %v1622
      %v1672 = vpop.f32.mrf.mxu0
      %v1673 = vadd.f32 %v1408, %v1672
      %v1674 = vpop.f32.mrf.mxu0
      %v1675 = vpop.f32.mrf.mxu0
      %v1676 = vadd.f32 %v1409, %v1675
      %v1677 = vpop.f32.mrf.mxu0
      %1678 = vdwg.mxu0
      %1681 = vrot.lane.b32.xlu0 %v1382, 96
      %v1682 = vpop.permute.xlu0 %1681
      %1683 = vrot.lane.b32.xlu0 %v1383, 96
      %v1684 = vpop.permute.xlu0 %1683
      %v1686 = vsel %vm1416, %v1366, 0
      %v1689 = vsel %vm1416, %v1367, 0
      %v1692 = vsel %vm1416, %v1682, 0
      %v1695 = vsel %vm1416, %v1684, 0
      %1697 = vmatprep.subr.bf16.mxu0 0
      %1698 = vmatpush1.bf16.xpose.msra.mxu0 0
      %1699 = vmatprep.subr.bf16.mxu0 0
      %1700 = vmatpush1.bf16.xpose.msra.mxu0 0
      %1701 = vmatprep.subr.bf16.mxu0 0
      %1702 = vmatpush1.bf16.xpose.msra.mxu0 0
      %1703 = vmatprep.subr.bf16.mxu0 0
      %1704 = vmatpush1.bf16.xpose.msra.mxu0 0
      %1705 = vmatprep.subr.bf16.mxu0 0
      %1706 = vmatpush1.bf16.xpose.msra.mxu0 0
      %1707 = vmatprep.subr.bf16.mxu0 0
      %1708 = vmatpush1.bf16.xpose.msra.mxu0 0
      %1709 = vmatprep.subr.bf16.mxu0 0
      %1710 = vmatpush1.bf16.xpose.msra.mxu0 %v1695
      %1711 = vmatprep.subr.bf16.mxu0 0
      %1712 = vmatpush1.bf16.xpose.msra.mxu0 %v1692
      %1713 = vmatprep.subr.bf16.mxu0 0
      %1714 = vmatpush2.bf16.xpose.msra.mxu0 0
      %1715 = vmatprep.subr.bf16.mxu0 0
      %1716 = vmatpush2.bf16.xpose.msra.mxu0 0
      %1717 = vmatprep.subr.bf16.mxu0 0
      %1718 = vmatpush2.bf16.xpose.msra.mxu0 0
      %1719 = vmatprep.subr.bf16.mxu0 0
      %1720 = vmatpush2.bf16.xpose.msra.mxu0 0
      %1721 = vmatprep.subr.bf16.mxu0 0
      %1722 = vmatpush2.bf16.xpose.msra.mxu0 0
      %1723 = vmatprep.subr.bf16.mxu0 0
      %1724 = vmatpush2.bf16.xpose.msra.mxu0 0
      %1725 = vmatprep.subr.bf16.mxu0 0
      %1726 = vmatpush2.bf16.xpose.msra.mxu0 0
      %1727 = vmatprep.subr.bf16.mxu0 0
      %1728 = vmatpush2.bf16.xpose.msra.mxu0 0
      %1729 = vmatprep.mubr.bf16.mxu0 0
      %1730 = vmatmul.mubr.bf16.gmra.mxu0 %v1686
      %v1731 = vpop.f32.mrf.mxu0
      %v1732 = vadd.f32 %v1406, %v1731
      %v1733 = vpop.f32.mrf.mxu0
      %v1734 = vpop.f32.mrf.mxu0
      %v1735 = vadd.f32 %v1407, %v1734
      %v1736 = vpop.f32.mrf.mxu0
      %1737 = vmatprep.mubr.bf16.mxu0 0
      %1738 = vmatmul.mubr.bf16.gmra.mxu0 %v1689
      %v1739 = vpop.f32.mrf.mxu0
      %v1740 = vadd.f32 %v1408, %v1739
      %v1741 = vpop.f32.mrf.mxu0
      %v1742 = vpop.f32.mrf.mxu0
      %v1743 = vadd.f32 %v1409, %v1742
      %v1744 = vpop.f32.mrf.mxu0
      %1745 = vdwg.mxu0
      %1748 = vrot.lane.b32.xlu0 %v1384, 96
      %v1749 = vpop.permute.xlu0 %1748
      %1750 = vrot.lane.b32.xlu0 %v1385, 96
      %v1751 = vpop.permute.xlu0 %1750
      %v1753 = vsel %vm1416, %v1368, 0
      %v1756 = vsel %vm1416, %v1369, 0
      %v1759 = vsel %vm1416, %v1749, 0
      %v1762 = vsel %vm1416, %v1751, 0
      %1764 = vmatprep.subr.bf16.mxu0 0
      %1765 = vmatpush1.bf16.xpose.msra.mxu0 0
      %1766 = vmatprep.subr.bf16.mxu0 0
      %1767 = vmatpush1.bf16.xpose.msra.mxu0 0
      %1768 = vmatprep.subr.bf16.mxu0 0
      %1769 = vmatpush1.bf16.xpose.msra.mxu0 0
      %1770 = vmatprep.subr.bf16.mxu0 0
      %1771 = vmatpush1.bf16.xpose.msra.mxu0 0
      %1772 = vmatprep.subr.bf16.mxu0 0
      %1773 = vmatpush1.bf16.xpose.msra.mxu0 0
      %1774 = vmatprep.subr.bf16.mxu0 0
      %1775 = vmatpush1.bf16.xpose.msra.mxu0 0
      %1776 = vmatprep.subr.bf16.mxu0 0
      %1777 = vmatpush1.bf16.xpose.msra.mxu0 %v1762
      %1778 = vmatprep.subr.bf16.mxu0 0
      %1779 = vmatpush1.bf16.xpose.msra.mxu0 %v1759
      %1780 = vmatprep.subr.bf16.mxu0 0
      %1781 = vmatpush2.bf16.xpose.msra.mxu0 0
      %1782 = vmatprep.subr.bf16.mxu0 0
      %1783 = vmatpush2.bf16.xpose.msra.mxu0 0
      %1784 = vmatprep.subr.bf16.mxu0 0
      %1785 = vmatpush2.bf16.xpose.msra.mxu0 0
      %1786 = vmatprep.subr.bf16.mxu0 0
      %1787 = vmatpush2.bf16.xpose.msra.mxu0 0
      %1788 = vmatprep.subr.bf16.mxu0 0
      %1789 = vmatpush2.bf16.xpose.msra.mxu0 0
      %1790 = vmatprep.subr.bf16.mxu0 0
      %1791 = vmatpush2.bf16.xpose.msra.mxu0 0
      %1792 = vmatprep.subr.bf16.mxu0 0
      %1793 = vmatpush2.bf16.xpose.msra.mxu0 0
      %1794 = vmatprep.subr.bf16.mxu0 0
      %1795 = vmatpush2.bf16.xpose.msra.mxu0 0
      %1796 = vmatprep.mubr.bf16.mxu0 0
      %1797 = vmatmul.mubr.bf16.gmra.mxu0 %v1753
      %v1798 = vpop.f32.mrf.mxu0
      %v1799 = vadd.f32 %v1406, %v1798
      %v1800 = vpop.f32.mrf.mxu0
      %v1801 = vpop.f32.mrf.mxu0
      %v1802 = vadd.f32 %v1407, %v1801
      %v1803 = vpop.f32.mrf.mxu0
      %1804 = vmatprep.mubr.bf16.mxu0 0
      %1805 = vmatmul.mubr.bf16.gmra.mxu0 %v1756
      %v1806 = vpop.f32.mrf.mxu0
      %v1807 = vadd.f32 %v1408, %v1806
      %v1808 = vpop.f32.mrf.mxu0
      %v1809 = vpop.f32.mrf.mxu0
      %v1810 = vadd.f32 %v1409, %v1809
      %v1811 = vpop.f32.mrf.mxu0
      %1812 = vdwg.mxu0
      %1815 = vrot.lane.b32.xlu0 %v1386, 96
      %v1816 = vpop.permute.xlu0 %1815
      %1817 = vrot.lane.b32.xlu0 %v1387, 96
      %v1818 = vpop.permute.xlu0 %1817
      %v1820 = vsel %vm1416, %v1370, 0
      %v1823 = vsel %vm1416, %v1371, 0
      %v1826 = vsel %vm1416, %v1816, 0
      %v1829 = vsel %vm1416, %v1818, 0
      %1831 = vmatprep.subr.bf16.mxu0 0
      %1832 = vmatpush1.bf16.xpose.msra.mxu0 0
      %1833 = vmatprep.subr.bf16.mxu0 0
      %1834 = vmatpush1.bf16.xpose.msra.mxu0 0
      %1835 = vmatprep.subr.bf16.mxu0 0
      %1836 = vmatpush1.bf16.xpose.msra.mxu0 0
      %1837 = vmatprep.subr.bf16.mxu0 0
      %1838 = vmatpush1.bf16.xpose.msra.mxu0 0
      %1839 = vmatprep.subr.bf16.mxu0 0
      %1840 = vmatpush1.bf16.xpose.msra.mxu0 0
      %1841 = vmatprep.subr.bf16.mxu0 0
      %1842 = vmatpush1.bf16.xpose.msra.mxu0 0
      %1843 = vmatprep.subr.bf16.mxu0 0
      %1844 = vmatpush1.bf16.xpose.msra.mxu0 %v1829
      %1845 = vmatprep.subr.bf16.mxu0 0
      %1846 = vmatpush1.bf16.xpose.msra.mxu0 %v1826
      %1847 = vmatprep.subr.bf16.mxu0 0
      %1848 = vmatpush2.bf16.xpose.msra.mxu0 0
      %1849 = vmatprep.subr.bf16.mxu0 0
      %1850 = vmatpush2.bf16.xpose.msra.mxu0 0
      %1851 = vmatprep.subr.bf16.mxu0 0
      %1852 = vmatpush2.bf16.xpose.msra.mxu0 0
      %1853 = vmatprep.subr.bf16.mxu0 0
      %1854 = vmatpush2.bf16.xpose.msra.mxu0 0
      %1855 = vmatprep.subr.bf16.mxu0 0
      %1856 = vmatpush2.bf16.xpose.msra.mxu0 0
      %1857 = vmatprep.subr.bf16.mxu0 0
      %1858 = vmatpush2.bf16.xpose.msra.mxu0 0
      %1859 = vmatprep.subr.bf16.mxu0 0
      %1860 = vmatpush2.bf16.xpose.msra.mxu0 0
      %1861 = vmatprep.subr.bf16.mxu0 0
      %1862 = vmatpush2.bf16.xpose.msra.mxu0 0
      %1863 = vmatprep.mubr.bf16.mxu0 0
      %1864 = vmatmul.mubr.bf16.gmra.mxu0 %v1820
      %v1865 = vpop.f32.mrf.mxu0
      %v1866 = vadd.f32 %v1406, %v1865
      %v1867 = vpop.f32.mrf.mxu0
      %v1868 = vpop.f32.mrf.mxu0
      %v1869 = vadd.f32 %v1407, %v1868
      %v1870 = vpop.f32.mrf.mxu0
      %1871 = vmatprep.mubr.bf16.mxu0 0
      %1872 = vmatmul.mubr.bf16.gmra.mxu0 %v1823
      %v1873 = vpop.f32.mrf.mxu0
      %v1874 = vadd.f32 %v1408, %v1873
      %v1875 = vpop.f32.mrf.mxu0
      %v1876 = vpop.f32.mrf.mxu0
      %v1877 = vadd.f32 %v1409, %v1876
      %v1878 = vpop.f32.mrf.mxu0
      %1879 = vdwg.mxu0
      %1882 = vrot.lane.b32.xlu0 %v1388, 96
      %v1883 = vpop.permute.xlu0 %1882
      %1884 = vrot.lane.b32.xlu0 %v1389, 96
      %v1885 = vpop.permute.xlu0 %1884
      %v1887 = vsel %vm1416, %v1372, 0
      %v1890 = vsel %vm1416, %v1373, 0
      %v1893 = vsel %vm1416, %v1883, 0
      %v1896 = vsel %vm1416, %v1885, 0
      %1898 = vmatprep.subr.bf16.mxu0 0
      %1899 = vmatpush1.bf16.xpose.msra.mxu0 0
      %1900 = vmatprep.subr.bf16.mxu0 0
      %1901 = vmatpush1.bf16.xpose.msra.mxu0 0
      %1902 = vmatprep.subr.bf16.mxu0 0
      %1903 = vmatpush1.bf16.xpose.msra.mxu0 0
      %1904 = vmatprep.subr.bf16.mxu0 0
      %1905 = vmatpush1.bf16.xpose.msra.mxu0 0
      %1906 = vmatprep.subr.bf16.mxu0 0
      %1907 = vmatpush1.bf16.xpose.msra.mxu0 0
      %1908 = vmatprep.subr.bf16.mxu0 0
      %1909 = vmatpush1.bf16.xpose.msra.mxu0 0
      %1910 = vmatprep.subr.bf16.mxu0 0
      %1911 = vmatpush1.bf16.xpose.msra.mxu0 %v1896
      %1912 = vmatprep.subr.bf16.mxu0 0
      %1913 = vmatpush1.bf16.xpose.msra.mxu0 %v1893
      %1914 = vmatprep.subr.bf16.mxu0 0
      %1915 = vmatpush2.bf16.xpose.msra.mxu0 0
      %1916 = vmatprep.subr.bf16.mxu0 0
      %1917 = vmatpush2.bf16.xpose.msra.mxu0 0
      %1918 = vmatprep.subr.bf16.mxu0 0
      %1919 = vmatpush2.bf16.xpose.msra.mxu0 0
      %1920 = vmatprep.subr.bf16.mxu0 0
      %1921 = vmatpush2.bf16.xpose.msra.mxu0 0
      %1922 = vmatprep.subr.bf16.mxu0 0
      %1923 = vmatpush2.bf16.xpose.msra.mxu0 0
      %1924 = vmatprep.subr.bf16.mxu0 0
      %1925 = vmatpush2.bf16.xpose.msra.mxu0 0
      %1926 = vmatprep.subr.bf16.mxu0 0
      %1927 = vmatpush2.bf16.xpose.msra.mxu0 0
      %1928 = vmatprep.subr.bf16.mxu0 0
      %1929 = vmatpush2.bf16.xpose.msra.mxu0 0
      %1930 = vmatprep.mubr.bf16.mxu0 0
      %1931 = vmatmul.mubr.bf16.gmra.mxu0 %v1887
      %v1932 = vpop.f32.mrf.mxu0
      %v1933 = vadd.f32 %v1406, %v1932
      %v1934 = vpop.f32.mrf.mxu0
      %v1935 = vpop.f32.mrf.mxu0
      %v1936 = vadd.f32 %v1407, %v1935
      %v1937 = vpop.f32.mrf.mxu0
      %1938 = vmatprep.mubr.bf16.mxu0 0
      %1939 = vmatmul.mubr.bf16.gmra.mxu0 %v1890
      %v1940 = vpop.f32.mrf.mxu0
      %v1941 = vadd.f32 %v1408, %v1940
      %v1942 = vpop.f32.mrf.mxu0
      %v1943 = vpop.f32.mrf.mxu0
      %v1944 = vadd.f32 %v1409, %v1943
      %v1945 = vpop.f32.mrf.mxu0
      %1946 = vdwg.mxu0
      %v1947 = vld [vmem:[%s9] sm:$0xff]
      %v1948 = vld [vmem:[%s9 + $0x8] sm:$0xff]
      %v1949 = vld [vmem:[%s9 + $0x10] sm:$0xff]
      %v1950 = vld [vmem:[%s9 + $0x18] sm:$0xff]
      %v1951 = vld [vmem:[%s9 + $0x20] sm:$0xff]
      %v1952 = vld [vmem:[%s9 + $0x28] sm:$0xff]
      %v1953 = vld [vmem:[%s9 + $0x30] sm:$0xff]
      %v1954 = vld [vmem:[%s9 + $0x38] sm:$0xff]
      %v1955 = vld [vmem:[%s9 + $0x40] sm:$0xff]
      %v1956 = vld [vmem:[%s9 + $0x48] sm:$0xff]
      %v1957 = vld [vmem:[%s9 + $0x50] sm:$0xff]
      %v1958 = vld [vmem:[%s9 + $0x58] sm:$0xff]
      %v1959 = vld [vmem:[%s9 + $0x60] sm:$0xff]
      %v1960 = vld [vmem:[%s9 + $0x68] sm:$0xff]
      %v1961 = vld [vmem:[%s9 + $0x70] sm:$0xff]
      %v1962 = vld [vmem:[%s9 + $0x78] sm:$0xff]
      %v1963 = vld [vmem:[%s9 + $0x80] sm:$0xff]
      %v1964 = vld [vmem:[%s9 + $0x88] sm:$0xff]
      %v1965 = vld [vmem:[%s9 + $0x90] sm:$0xff]
      %v1966 = vld [vmem:[%s9 + $0x98] sm:$0xff]
      %v1967 = vld [vmem:[%s9 + $0xa0] sm:$0xff]
      %v1968 = vld [vmem:[%s9 + $0xa8] sm:$0xff]
      %v1969 = vld [vmem:[%s9 + $0xb0] sm:$0xff]
      %v1970 = vld [vmem:[%s9 + $0xb8] sm:$0xff]
      %v1971 = vld [vmem:[%s9 + $0xc0] sm:$0xff]
      %v1972 = vld [vmem:[%s9 + $0xc8] sm:$0xff]
      %v1973 = vld [vmem:[%s9 + $0xd0] sm:$0xff]
      %v1974 = vld [vmem:[%s9 + $0xd8] sm:$0xff]
      %v1975 = vld [vmem:[%s9 + $0xe0] sm:$0xff]
      %v1976 = vld [vmem:[%s9 + $0xe8] sm:$0xff]
      %v1977 = vld [vmem:[%s9 + $0xf0] sm:$0xff]
      %v1978 = vld [vmem:[%s9 + $0xf8] sm:$0xff]
      %v1979 = vadd.f32 %v1464, %v1947
      %v1980 = vadd.f32 %v1467, %v1948
      %v1981 = vadd.f32 %v1472, %v1949
      %v1982 = vadd.f32 %v1475, %v1950
      %v1983 = vadd.f32 %v1531, %v1951
      %v1984 = vadd.f32 %v1534, %v1952
      %v1985 = vadd.f32 %v1539, %v1953
      %v1986 = vadd.f32 %v1542, %v1954
      %v1987 = vadd.f32 %v1598, %v1955
      %v1988 = vadd.f32 %v1601, %v1956
      %v1989 = vadd.f32 %v1606, %v1957
      %v1990 = vadd.f32 %v1609, %v1958
      %v1991 = vadd.f32 %v1665, %v1959
      %v1992 = vadd.f32 %v1668, %v1960
      %v1993 = vadd.f32 %v1673, %v1961
      %v1994 = vadd.f32 %v1676, %v1962
      %v1995 = vadd.f32 %v1732, %v1963
      %v1996 = vadd.f32 %v1735, %v1964
      %v1997 = vadd.f32 %v1740, %v1965
      %v1998 = vadd.f32 %v1743, %v1966
      %v1999 = vadd.f32 %v1799, %v1967
      %v2000 = vadd.f32 %v1802, %v1968
      %v2001 = vadd.f32 %v1807, %v1969
      %v2002 = vadd.f32 %v1810, %v1970
      %v2003 = vadd.f32 %v1866, %v1971
      %v2004 = vadd.f32 %v1869, %v1972
      %v2005 = vadd.f32 %v1874, %v1973
      %v2006 = vadd.f32 %v1877, %v1974
      %v2007 = vadd.f32 %v1933, %v1975
      %v2008 = vadd.f32 %v1936, %v1976
      %v2009 = vadd.f32 %v1941, %v1977
      %v2010 = vadd.f32 %v1944, %v1978
      %v2011 = vsel %vm398, %v1979, -inf
      %2012 = vmax.xlane.f32.xlu0 %v2011
      %v2013 = vpop.xlane.xlu0 %2012
      %v2014 = vsel %vm398, %v1980, -inf
      %2015 = vmax.xlane.f32.xlu0 %v2014
      %v2016 = vpop.xlane.xlu0 %2015
      %v2017 = vsel %vm398, %v1981, -inf
      %2018 = vmax.xlane.f32.xlu0 %v2017
      %v2019 = vpop.xlane.xlu0 %2018
      %v2020 = vsel %vm398, %v1982, -inf
      %2021 = vmax.xlane.f32.xlu0 %v2020
      %v2022 = vpop.xlane.xlu0 %2021
      %v2023 = vsel %vm398, %v1983, -inf
      %2024 = vmax.xlane.f32.xlu0 %v2023
      %v2025 = vpop.xlane.xlu0 %2024
      %v2026 = vsel %vm398, %v1984, -inf
      %2027 = vmax.xlane.f32.xlu0 %v2026
      %v2028 = vpop.xlane.xlu0 %2027
      %v2029 = vsel %vm398, %v1985, -inf
      %2030 = vmax.xlane.f32.xlu0 %v2029
      %v2031 = vpop.xlane.xlu0 %2030
      %v2032 = vsel %vm398, %v1986, -inf
      %2033 = vmax.xlane.f32.xlu0 %v2032
      %v2034 = vpop.xlane.xlu0 %2033
      %v2035 = vsel %vm398, %v1987, -inf
      %2036 = vmax.xlane.f32.xlu0 %v2035
      %v2037 = vpop.xlane.xlu0 %2036
      %v2038 = vsel %vm398, %v1988, -inf
      %2039 = vmax.xlane.f32.xlu0 %v2038
      %v2040 = vpop.xlane.xlu0 %2039
      %v2041 = vsel %vm398, %v1989, -inf
      %2042 = vmax.xlane.f32.xlu0 %v2041
      %v2043 = vpop.xlane.xlu0 %2042
      %v2044 = vsel %vm398, %v1990, -inf
      %2045 = vmax.xlane.f32.xlu0 %v2044
      %v2046 = vpop.xlane.xlu0 %2045
      %v2047 = vsel %vm398, %v1991, -inf
      %2048 = vmax.xlane.f32.xlu0 %v2047
      %v2049 = vpop.xlane.xlu0 %2048
      %v2050 = vsel %vm398, %v1992, -inf
      %2051 = vmax.xlane.f32.xlu0 %v2050
      %v2052 = vpop.xlane.xlu0 %2051
      %v2053 = vsel %vm398, %v1993, -inf
      %2054 = vmax.xlane.f32.xlu0 %v2053
      %v2055 = vpop.xlane.xlu0 %2054
      %v2056 = vsel %vm398, %v1994, -inf
      %2057 = vmax.xlane.f32.xlu0 %v2056
      %v2058 = vpop.xlane.xlu0 %2057
      %v2059 = vsel %vm398, %v1995, -inf
      %2060 = vmax.xlane.f32.xlu0 %v2059
      %v2061 = vpop.xlane.xlu0 %2060
      %v2062 = vsel %vm398, %v1996, -inf
      %2063 = vmax.xlane.f32.xlu0 %v2062
      %v2064 = vpop.xlane.xlu0 %2063
      %v2065 = vsel %vm398, %v1997, -inf
      %2066 = vmax.xlane.f32.xlu0 %v2065
      %v2067 = vpop.xlane.xlu0 %2066
      %v2068 = vsel %vm398, %v1998, -inf
      %2069 = vmax.xlane.f32.xlu0 %v2068
      %v2070 = vpop.xlane.xlu0 %2069
      %v2071 = vsel %vm398, %v1999, -inf
      %2072 = vmax.xlane.f32.xlu0 %v2071
      %v2073 = vpop.xlane.xlu0 %2072
      %v2074 = vsel %vm398, %v2000, -inf
      %2075 = vmax.xlane.f32.xlu0 %v2074
      %v2076 = vpop.xlane.xlu0 %2075
      %v2077 = vsel %vm398, %v2001, -inf
      %2078 = vmax.xlane.f32.xlu0 %v2077
      %v2079 = vpop.xlane.xlu0 %2078
      %v2080 = vsel %vm398, %v2002, -inf
      %2081 = vmax.xlane.f32.xlu0 %v2080
      %v2082 = vpop.xlane.xlu0 %2081
      %v2083 = vsel %vm398, %v2003, -inf
      %2084 = vmax.xlane.f32.xlu0 %v2083
      %v2085 = vpop.xlane.xlu0 %2084
      %v2086 = vsel %vm398, %v2004, -inf
      %2087 = vmax.xlane.f32.xlu0 %v2086
      %v2088 = vpop.xlane.xlu0 %2087
      %v2089 = vsel %vm398, %v2005, -inf
      %2090 = vmax.xlane.f32.xlu0 %v2089
      %v2091 = vpop.xlane.xlu0 %2090
      %v2092 = vsel %vm398, %v2006, -inf
      %2093 = vmax.xlane.f32.xlu0 %v2092
      %v2094 = vpop.xlane.xlu0 %2093
      %v2095 = vsel %vm398, %v2007, -inf
      %2096 = vmax.xlane.f32.xlu0 %v2095
      %v2097 = vpop.xlane.xlu0 %2096
      %v2098 = vsel %vm398, %v2008, -inf
      %2099 = vmax.xlane.f32.xlu0 %v2098
      %v2100 = vpop.xlane.xlu0 %2099
      %v2101 = vsel %vm398, %v2009, -inf
      %2102 = vmax.xlane.f32.xlu0 %v2101
      %v2103 = vpop.xlane.xlu0 %2102
      %v2104 = vsel %vm398, %v2010, -inf
      %2105 = vmax.xlane.f32.xlu0 %v2104
      %v2106 = vpop.xlane.xlu0 %2105
      %v2107 = vsub.f32 %v1979, %v2013
      %v2108 = vsub.f32 %v1980, %v2016
      %v2109 = vsub.f32 %v1981, %v2019
      %v2110 = vsub.f32 %v1982, %v2022
      %v2111 = vsub.f32 %v1983, %v2025
      %v2112 = vsub.f32 %v1984, %v2028
      %v2113 = vsub.f32 %v1985, %v2031
      %v2114 = vsub.f32 %v1986, %v2034
      %v2115 = vsub.f32 %v1987, %v2037
      %v2116 = vsub.f32 %v1988, %v2040
      %v2117 = vsub.f32 %v1989, %v2043
      %v2118 = vsub.f32 %v1990, %v2046
      %v2119 = vsub.f32 %v1991, %v2049
      %v2120 = vsub.f32 %v1992, %v2052
      %v2121 = vsub.f32 %v1993, %v2055
      %v2122 = vsub.f32 %v1994, %v2058
      %v2123 = vsub.f32 %v1995, %v2061
      %v2124 = vsub.f32 %v1996, %v2064
      %v2125 = vsub.f32 %v1997, %v2067
      %v2126 = vsub.f32 %v1998, %v2070
      %v2127 = vsub.f32 %v1999, %v2073
      %v2128 = vsub.f32 %v2000, %v2076
      %v2129 = vsub.f32 %v2001, %v2079
      %v2130 = vsub.f32 %v2002, %v2082
      %v2131 = vsub.f32 %v2003, %v2085
      %v2132 = vsub.f32 %v2004, %v2088
      %v2133 = vsub.f32 %v2005, %v2091
      %v2134 = vsub.f32 %v2006, %v2094
      %v2135 = vsub.f32 %v2007, %v2097
      %v2136 = vsub.f32 %v2008, %v2100
      %v2137 = vsub.f32 %v2009, %v2103
      %v2138 = vsub.f32 %v2010, %v2106
      %v2139 = vmul.f32 %v2107, 1.442695
      %v2140 = vpow.pop %v2139
      %v2141 = vmul.f32 %v2108, 1.442695
      %v2142 = vpow.pop %v2141
      %v2143 = vmul.f32 %v2109, 1.442695
      %v2144 = vpow.pop %v2143
      %v2145 = vmul.f32 %v2110, 1.442695
      %v2146 = vpow.pop %v2145
      %v2147 = vmul.f32 %v2111, 1.442695
      %v2148 = vpow.pop %v2147
      %v2149 = vmul.f32 %v2112, 1.442695
      %v2150 = vpow.pop %v2149
      %v2151 = vmul.f32 %v2113, 1.442695
      %v2152 = vpow.pop %v2151
      %v2153 = vmul.f32 %v2114, 1.442695
      %v2154 = vpow.pop %v2153
      %v2155 = vmul.f32 %v2115, 1.442695
      %v2156 = vpow.pop %v2155
      %v2157 = vmul.f32 %v2116, 1.442695
      %v2158 = vpow.pop %v2157
      %v2159 = vmul.f32 %v2117, 1.442695
      %v2160 = vpow.pop %v2159
      %v2161 = vmul.f32 %v2118, 1.442695
      %v2162 = vpow.pop %v2161
      %v2163 = vmul.f32 %v2119, 1.442695
      %v2164 = vpow.pop %v2163
      %v2165 = vmul.f32 %v2120, 1.442695
      %v2166 = vpow.pop %v2165
      %v2167 = vmul.f32 %v2121, 1.442695
      %v2168 = vpow.pop %v2167
      %v2169 = vmul.f32 %v2122, 1.442695
      %v2170 = vpow.pop %v2169
      %v2171 = vmul.f32 %v2123, 1.442695
      %v2172 = vpow.pop %v2171
      %v2173 = vmul.f32 %v2124, 1.442695
      %v2174 = vpow.pop %v2173
      %v2175 = vmul.f32 %v2125, 1.442695
      %v2176 = vpow.pop %v2175
      %v2177 = vmul.f32 %v2126, 1.442695
      %v2178 = vpow.pop %v2177
      %v2179 = vmul.f32 %v2127, 1.442695
      %v2180 = vpow.pop %v2179
      %v2181 = vmul.f32 %v2128, 1.442695
      %v2182 = vpow.pop %v2181
      %v2183 = vmul.f32 %v2129, 1.442695
      %v2184 = vpow.pop %v2183
      %v2185 = vmul.f32 %v2130, 1.442695
      %v2186 = vpow.pop %v2185
      %v2187 = vmul.f32 %v2131, 1.442695
      %v2188 = vpow.pop %v2187
      %v2189 = vmul.f32 %v2132, 1.442695
      %v2190 = vpow.pop %v2189
      %v2191 = vmul.f32 %v2133, 1.442695
      %v2192 = vpow.pop %v2191
      %v2193 = vmul.f32 %v2134, 1.442695
      %v2194 = vpow.pop %v2193
      %v2195 = vmul.f32 %v2135, 1.442695
      %v2196 = vpow.pop %v2195
      %v2197 = vmul.f32 %v2136, 1.442695
      %v2198 = vpow.pop %v2197
      %v2199 = vmul.f32 %v2137, 1.442695
      %v2200 = vpow.pop %v2199
      %v2201 = vmul.f32 %v2138, 1.442695
      %v2202 = vpow.pop %v2201
      %v2203 = vsel %vm398, %v2140, 0.0
      %2204 = vadd.xlane.f32.xlu0 %v2203
      %v2205 = vpop.xlane.xlu0 %2204
      %v2206 = vsel %vm398, %v2142, 0.0
      %2207 = vadd.xlane.f32.xlu0 %v2206
      %v2208 = vpop.xlane.xlu0 %2207
      %v2209 = vsel %vm398, %v2144, 0.0
      %2210 = vadd.xlane.f32.xlu0 %v2209
      %v2211 = vpop.xlane.xlu0 %2210
      %v2212 = vsel %vm398, %v2146, 0.0
      %2213 = vadd.xlane.f32.xlu0 %v2212
      %v2214 = vpop.xlane.xlu0 %2213
      %v2215 = vsel %vm398, %v2148, 0.0
      %2216 = vadd.xlane.f32.xlu0 %v2215
      %v2217 = vpop.xlane.xlu0 %2216
      %v2218 = vsel %vm398, %v2150, 0.0
      %2219 = vadd.xlane.f32.xlu0 %v2218
      %v2220 = vpop.xlane.xlu0 %2219
      %v2221 = vsel %vm398, %v2152, 0.0
      %2222 = vadd.xlane.f32.xlu0 %v2221
      %v2223 = vpop.xlane.xlu0 %2222
      %v2224 = vsel %vm398, %v2154, 0.0
      %2225 = vadd.xlane.f32.xlu0 %v2224
      %v2226 = vpop.xlane.xlu0 %2225
      %v2227 = vsel %vm398, %v2156, 0.0
      %2228 = vadd.xlane.f32.xlu0 %v2227
      %v2229 = vpop.xlane.xlu0 %2228
      %v2230 = vsel %vm398, %v2158, 0.0
      %2231 = vadd.xlane.f32.xlu0 %v2230
      %v2232 = vpop.xlane.xlu0 %2231
      %v2233 = vsel %vm398, %v2160, 0.0
      %2234 = vadd.xlane.f32.xlu0 %v2233
      %v2235 = vpop.xlane.xlu0 %2234
      %v2236 = vsel %vm398, %v2162, 0.0
      %2237 = vadd.xlane.f32.xlu0 %v2236
      %v2238 = vpop.xlane.xlu0 %2237
      %v2239 = vsel %vm398, %v2164, 0.0
      %2240 = vadd.xlane.f32.xlu0 %v2239
      %v2241 = vpop.xlane.xlu0 %2240
      %v2242 = vsel %vm398, %v2166, 0.0
      %2243 = vadd.xlane.f32.xlu0 %v2242
      %v2244 = vpop.xlane.xlu0 %2243
      %v2245 = vsel %vm398, %v2168, 0.0
      %2246 = vadd.xlane.f32.xlu0 %v2245
      %v2247 = vpop.xlane.xlu0 %2246
      %v2248 = vsel %vm398, %v2170, 0.0
      %2249 = vadd.xlane.f32.xlu0 %v2248
      %v2250 = vpop.xlane.xlu0 %2249
      %v2251 = vsel %vm398, %v2172, 0.0
      %2252 = vadd.xlane.f32.xlu0 %v2251
      %v2253 = vpop.xlane.xlu0 %2252
      %v2254 = vsel %vm398, %v2174, 0.0
      %2255 = vadd.xlane.f32.xlu0 %v2254
      %v2256 = vpop.xlane.xlu0 %2255
      %v2257 = vsel %vm398, %v2176, 0.0
      %2258 = vadd.xlane.f32.xlu0 %v2257
      %v2259 = vpop.xlane.xlu0 %2258
      %v2260 = vsel %vm398, %v2178, 0.0
      %2261 = vadd.xlane.f32.xlu0 %v2260
      %v2262 = vpop.xlane.xlu0 %2261
      %v2263 = vsel %vm398, %v2180, 0.0
      %2264 = vadd.xlane.f32.xlu0 %v2263
      %v2265 = vpop.xlane.xlu0 %2264
      %v2266 = vsel %vm398, %v2182, 0.0
      %2267 = vadd.xlane.f32.xlu0 %v2266
      %v2268 = vpop.xlane.xlu0 %2267
      %v2269 = vsel %vm398, %v2184, 0.0
      %2270 = vadd.xlane.f32.xlu0 %v2269
      %v2271 = vpop.xlane.xlu0 %2270
      %v2272 = vsel %vm398, %v2186, 0.0
      %2273 = vadd.xlane.f32.xlu0 %v2272
      %v2274 = vpop.xlane.xlu0 %2273
      %v2275 = vsel %vm398, %v2188, 0.0
      %2276 = vadd.xlane.f32.xlu0 %v2275
      %v2277 = vpop.xlane.xlu0 %2276
      %v2278 = vsel %vm398, %v2190, 0.0
      %2279 = vadd.xlane.f32.xlu0 %v2278
      %v2280 = vpop.xlane.xlu0 %2279
      %v2281 = vsel %vm398, %v2192, 0.0
      %2282 = vadd.xlane.f32.xlu0 %v2281
      %v2283 = vpop.xlane.xlu0 %2282
      %v2284 = vsel %vm398, %v2194, 0.0
      %2285 = vadd.xlane.f32.xlu0 %v2284
      %v2286 = vpop.xlane.xlu0 %2285
      %v2287 = vsel %vm398, %v2196, 0.0
      %2288 = vadd.xlane.f32.xlu0 %v2287
      %v2289 = vpop.xlane.xlu0 %2288
      %v2290 = vsel %vm398, %v2198, 0.0
      %2291 = vadd.xlane.f32.xlu0 %v2290
      %v2292 = vpop.xlane.xlu0 %2291
      %v2293 = vsel %vm398, %v2200, 0.0
      %2294 = vadd.xlane.f32.xlu0 %v2293
      %v2295 = vpop.xlane.xlu0 %2294
      %v2296 = vsel %vm398, %v2202, 0.0
      %2297 = vadd.xlane.f32.xlu0 %v2296
      %v2298 = vpop.xlane.xlu0 %2297
      %v2299 = vrcp.pop %v2205
      %v2300 = vrcp.pop %v2208
      %v2301 = vrcp.pop %v2211
      %v2302 = vrcp.pop %v2214
      %v2303 = vrcp.pop %v2217
      %v2304 = vrcp.pop %v2220
      %v2305 = vrcp.pop %v2223
      %v2306 = vrcp.pop %v2226
      %v2307 = vrcp.pop %v2229
      %v2308 = vrcp.pop %v2232
      %v2309 = vrcp.pop %v2235
      %v2310 = vrcp.pop %v2238
      %v2311 = vrcp.pop %v2241
      %v2312 = vrcp.pop %v2244
      %v2313 = vrcp.pop %v2247
      %v2314 = vrcp.pop %v2250
      %v2315 = vrcp.pop %v2253
      %v2316 = vrcp.pop %v2256
      %v2317 = vrcp.pop %v2259
      %v2318 = vrcp.pop %v2262
      %v2319 = vrcp.pop %v2265
      %v2320 = vrcp.pop %v2268
      %v2321 = vrcp.pop %v2271
      %v2322 = vrcp.pop %v2274
      %v2323 = vrcp.pop %v2277
      %v2324 = vrcp.pop %v2280
      %v2325 = vrcp.pop %v2283
      %v2326 = vrcp.pop %v2286
      %v2327 = vrcp.pop %v2289
      %v2328 = vrcp.pop %v2292
      %v2329 = vrcp.pop %v2295
      %v2330 = vrcp.pop %v2298
      %v2331 = vmul.f32 %v2140, %v2299
      %v2332 = vmul.f32 %v2142, %v2300
      %v2333 = vmul.f32 %v2144, %v2301
      %v2334 = vmul.f32 %v2146, %v2302
      %v2335 = vmul.f32 %v2148, %v2303
      %v2336 = vmul.f32 %v2150, %v2304
      %v2337 = vmul.f32 %v2152, %v2305
      %v2338 = vmul.f32 %v2154, %v2306
      %v2339 = vmul.f32 %v2156, %v2307
      %v2340 = vmul.f32 %v2158, %v2308
      %v2341 = vmul.f32 %v2160, %v2309
      %v2342 = vmul.f32 %v2162, %v2310
      %v2343 = vmul.f32 %v2164, %v2311
      %v2344 = vmul.f32 %v2166, %v2312
      %v2345 = vmul.f32 %v2168, %v2313
      %v2346 = vmul.f32 %v2170, %v2314
      %v2347 = vmul.f32 %v2172, %v2315
      %v2348 = vmul.f32 %v2174, %v2316
      %v2349 = vmul.f32 %v2176, %v2317
      %v2350 = vmul.f32 %v2178, %v2318
      %v2351 = vmul.f32 %v2180, %v2319
      %v2352 = vmul.f32 %v2182, %v2320
      %v2353 = vmul.f32 %v2184, %v2321
      %v2354 = vmul.f32 %v2186, %v2322
      %v2355 = vmul.f32 %v2188, %v2323
      %v2356 = vmul.f32 %v2190, %v2324
      %v2357 = vmul.f32 %v2192, %v2325
      %v2358 = vmul.f32 %v2194, %v2326
      %v2359 = vmul.f32 %v2196, %v2327
      %v2360 = vmul.f32 %v2198, %v2328
      %v2361 = vmul.f32 %v2200, %v2329
      %v2362 = vmul.f32 %v2202, %v2330
      %v2363 = vpack.c.bf16 %v2332, %v2331
      %v2364 = vpack.c.bf16 %v2334, %v2333
      %v2365 = vpack.c.bf16 %v2336, %v2335
      %v2366 = vpack.c.bf16 %v2338, %v2337
      %v2367 = vpack.c.bf16 %v2340, %v2339
      %v2368 = vpack.c.bf16 %v2342, %v2341
      %v2369 = vpack.c.bf16 %v2344, %v2343
      %v2370 = vpack.c.bf16 %v2346, %v2345
      %v2371 = vpack.c.bf16 %v2348, %v2347
      %v2372 = vpack.c.bf16 %v2350, %v2349
      %v2373 = vpack.c.bf16 %v2352, %v2351
      %v2374 = vpack.c.bf16 %v2354, %v2353
      %v2375 = vpack.c.bf16 %v2356, %v2355
      %v2376 = vpack.c.bf16 %v2358, %v2357
      %v2377 = vpack.c.bf16 %v2360, %v2359
      %v2378 = vpack.c.bf16 %v2362, %v2361
      %s2379 = scalar_lea.vmem %s1, 32
      %v2380 = vld [vmem:[%s2379] sm:$0xff]
      %v2381 = vld [vmem:[%s2379 + $0x8] sm:$0xff]
      %v2382 = vld [vmem:[%s2379 + $0x10] sm:$0xff]
      %v2383 = vld [vmem:[%s2379 + $0x18] sm:$0xff]
      %2386 = vrot.lane.b32.xlu0 %v1358, 120
      %v2387 = vpop.permute.xlu0 %2386
      %2388 = vrot.lane.b32.xlu0 %v1359, 120
      %v2389 = vpop.permute.xlu0 %2388
      %2390 = vrot.lane.b32.xlu0 %v1374, 88
      %v2391 = vpop.permute.xlu0 %2390
      %2392 = vrot.lane.b32.xlu0 %v1375, 88
      %v2393 = vpop.permute.xlu0 %2392
      %v2395 = vsel %vm1416, %v2387, 0
      %v2398 = vsel %vm1416, %v2389, 0
      %v2401 = vsel %vm1416, %v2391, 0
      %v2404 = vsel %vm1416, %v2393, 0
      %2406 = vmatprep.subr.bf16.mxu0 0
      %2407 = vmatpush1.bf16.xpose.msra.mxu0 0
      %2408 = vmatprep.subr.bf16.mxu0 0
      %2409 = vmatpush1.bf16.xpose.msra.mxu0 0
      %2410 = vmatprep.subr.bf16.mxu0 0
      %2411 = vmatpush1.bf16.xpose.msra.mxu0 0
      %2412 = vmatprep.subr.bf16.mxu0 0
      %2413 = vmatpush1.bf16.xpose.msra.mxu0 0
      %2414 = vmatprep.subr.bf16.mxu0 0
      %2415 = vmatpush1.bf16.xpose.msra.mxu0 0
      %2416 = vmatprep.subr.bf16.mxu0 0
      %2417 = vmatpush1.bf16.xpose.msra.mxu0 0
      %2418 = vmatprep.subr.bf16.mxu0 0
      %2419 = vmatpush1.bf16.xpose.msra.mxu0 %v2404
      %2420 = vmatprep.subr.bf16.mxu0 0
      %2421 = vmatpush1.bf16.xpose.msra.mxu0 %v2401
      %2422 = vmatprep.subr.bf16.mxu0 0
      %2423 = vmatpush2.bf16.xpose.msra.mxu0 0
      %2424 = vmatprep.subr.bf16.mxu0 0
      %2425 = vmatpush2.bf16.xpose.msra.mxu0 0
      %2426 = vmatprep.subr.bf16.mxu0 0
      %2427 = vmatpush2.bf16.xpose.msra.mxu0 0
      %2428 = vmatprep.subr.bf16.mxu0 0
      %2429 = vmatpush2.bf16.xpose.msra.mxu0 0
      %2430 = vmatprep.subr.bf16.mxu0 0
      %2431 = vmatpush2.bf16.xpose.msra.mxu0 0
      %2432 = vmatprep.subr.bf16.mxu0 0
      %2433 = vmatpush2.bf16.xpose.msra.mxu0 0
      %2434 = vmatprep.subr.bf16.mxu0 0
      %2435 = vmatpush2.bf16.xpose.msra.mxu0 0
      %2436 = vmatprep.subr.bf16.mxu0 0
      %2437 = vmatpush2.bf16.xpose.msra.mxu0 0
      %2438 = vmatprep.mubr.bf16.mxu0 0
      %2439 = vmatmul.mubr.bf16.gmra.mxu0 %v2395
      %v2440 = vpop.f32.mrf.mxu0
      %v2441 = vadd.f32 %v2380, %v2440
      %v2442 = vpop.f32.mrf.mxu0
      %v2443 = vpop.f32.mrf.mxu0
      %v2444 = vadd.f32 %v2381, %v2443
      %v2445 = vpop.f32.mrf.mxu0
      %2446 = vmatprep.mubr.bf16.mxu0 0
      %2447 = vmatmul.mubr.bf16.gmra.mxu0 %v2398
      %v2448 = vpop.f32.mrf.mxu0
      %v2449 = vadd.f32 %v2382, %v2448
      %v2450 = vpop.f32.mrf.mxu0
      %v2451 = vpop.f32.mrf.mxu0
      %v2452 = vadd.f32 %v2383, %v2451
      %v2453 = vpop.f32.mrf.mxu0
      %2454 = vdwg.mxu0
      %2457 = vrot.lane.b32.xlu0 %v1360, 120
      %v2458 = vpop.permute.xlu0 %2457
      %2459 = vrot.lane.b32.xlu0 %v1361, 120
      %v2460 = vpop.permute.xlu0 %2459
      %2461 = vrot.lane.b32.xlu0 %v1376, 88
      %v2462 = vpop.permute.xlu0 %2461
      %2463 = vrot.lane.b32.xlu0 %v1377, 88
      %v2464 = vpop.permute.xlu0 %2463
      %v2466 = vsel %vm1416, %v2458, 0
      %v2469 = vsel %vm1416, %v2460, 0
      %v2472 = vsel %vm1416, %v2462, 0
      %v2475 = vsel %vm1416, %v2464, 0
      %2477 = vmatprep.subr.bf16.mxu0 0
      %2478 = vmatpush1.bf16.xpose.msra.mxu0 0
      %2479 = vmatprep.subr.bf16.mxu0 0
      %2480 = vmatpush1.bf16.xpose.msra.mxu0 0
      %2481 = vmatprep.subr.bf16.mxu0 0
      %2482 = vmatpush1.bf16.xpose.msra.mxu0 0
      %2483 = vmatprep.subr.bf16.mxu0 0
      %2484 = vmatpush1.bf16.xpose.msra.mxu0 0
      %2485 = vmatprep.subr.bf16.mxu0 0
      %2486 = vmatpush1.bf16.xpose.msra.mxu0 0
      %2487 = vmatprep.subr.bf16.mxu0 0
      %2488 = vmatpush1.bf16.xpose.msra.mxu0 0
      %2489 = vmatprep.subr.bf16.mxu0 0
      %2490 = vmatpush1.bf16.xpose.msra.mxu0 %v2475
      %2491 = vmatprep.subr.bf16.mxu0 0
      %2492 = vmatpush1.bf16.xpose.msra.mxu0 %v2472
      %2493 = vmatprep.subr.bf16.mxu0 0
      %2494 = vmatpush2.bf16.xpose.msra.mxu0 0
      %2495 = vmatprep.subr.bf16.mxu0 0
      %2496 = vmatpush2.bf16.xpose.msra.mxu0 0
      %2497 = vmatprep.subr.bf16.mxu0 0
      %2498 = vmatpush2.bf16.xpose.msra.mxu0 0
      %2499 = vmatprep.subr.bf16.mxu0 0
      %2500 = vmatpush2.bf16.xpose.msra.mxu0 0
      %2501 = vmatprep.subr.bf16.mxu0 0
      %2502 = vmatpush2.bf16.xpose.msra.mxu0 0
      %2503 = vmatprep.subr.bf16.mxu0 0
      %2504 = vmatpush2.bf16.xpose.msra.mxu0 0
      %2505 = vmatprep.subr.bf16.mxu0 0
      %2506 = vmatpush2.bf16.xpose.msra.mxu0 0
      %2507 = vmatprep.subr.bf16.mxu0 0
      %2508 = vmatpush2.bf16.xpose.msra.mxu0 0
      %2509 = vmatprep.mubr.bf16.mxu0 0
      %2510 = vmatmul.mubr.bf16.gmra.mxu0 %v2466
      %v2511 = vpop.f32.mrf.mxu0
      %v2512 = vadd.f32 %v2380, %v2511
      %v2513 = vpop.f32.mrf.mxu0
      %v2514 = vpop.f32.mrf.mxu0
      %v2515 = vadd.f32 %v2381, %v2514
      %v2516 = vpop.f32.mrf.mxu0
      %2517 = vmatprep.mubr.bf16.mxu0 0
      %2518 = vmatmul.mubr.bf16.gmra.mxu0 %v2469
      %v2519 = vpop.f32.mrf.mxu0
      %v2520 = vadd.f32 %v2382, %v2519
      %v2521 = vpop.f32.mrf.mxu0
      %v2522 = vpop.f32.mrf.mxu0
      %v2523 = vadd.f32 %v2383, %v2522
      %v2524 = vpop.f32.mrf.mxu0
      %2525 = vdwg.mxu0
      %2528 = vrot.lane.b32.xlu0 %v1362, 120
      %v2529 = vpop.permute.xlu0 %2528
      %2530 = vrot.lane.b32.xlu0 %v1363, 120
      %v2531 = vpop.permute.xlu0 %2530
      %2532 = vrot.lane.b32.xlu0 %v1378, 88
      %v2533 = vpop.permute.xlu0 %2532
      %2534 = vrot.lane.b32.xlu0 %v1379, 88
      %v2535 = vpop.permute.xlu0 %2534
      %v2537 = vsel %vm1416, %v2529, 0
      %v2540 = vsel %vm1416, %v2531, 0
      %v2543 = vsel %vm1416, %v2533, 0
      %v2546 = vsel %vm1416, %v2535, 0
      %2548 = vmatprep.subr.bf16.mxu0 0
      %2549 = vmatpush1.bf16.xpose.msra.mxu0 0
      %2550 = vmatprep.subr.bf16.mxu0 0
      %2551 = vmatpush1.bf16.xpose.msra.mxu0 0
      %2552 = vmatprep.subr.bf16.mxu0 0
      %2553 = vmatpush1.bf16.xpose.msra.mxu0 0
      %2554 = vmatprep.subr.bf16.mxu0 0
      %2555 = vmatpush1.bf16.xpose.msra.mxu0 0
      %2556 = vmatprep.subr.bf16.mxu0 0
      %2557 = vmatpush1.bf16.xpose.msra.mxu0 0
      %2558 = vmatprep.subr.bf16.mxu0 0
      %2559 = vmatpush1.bf16.xpose.msra.mxu0 0
      %2560 = vmatprep.subr.bf16.mxu0 0
      %2561 = vmatpush1.bf16.xpose.msra.mxu0 %v2546
      %2562 = vmatprep.subr.bf16.mxu0 0
      %2563 = vmatpush1.bf16.xpose.msra.mxu0 %v2543
      %2564 = vmatprep.subr.bf16.mxu0 0
      %2565 = vmatpush2.bf16.xpose.msra.mxu0 0
      %2566 = vmatprep.subr.bf16.mxu0 0
      %2567 = vmatpush2.bf16.xpose.msra.mxu0 0
      %2568 = vmatprep.subr.bf16.mxu0 0
      %2569 = vmatpush2.bf16.xpose.msra.mxu0 0
      %2570 = vmatprep.subr.bf16.mxu0 0
      %2571 = vmatpush2.bf16.xpose.msra.mxu0 0
      %2572 = vmatprep.subr.bf16.mxu0 0
      %2573 = vmatpush2.bf16.xpose.msra.mxu0 0
      %2574 = vmatprep.subr.bf16.mxu0 0
      %2575 = vmatpush2.bf16.xpose.msra.mxu0 0
      %2576 = vmatprep.subr.bf16.mxu0 0
      %2577 = vmatpush2.bf16.xpose.msra.mxu0 0
      %2578 = vmatprep.subr.bf16.mxu0 0
      %2579 = vmatpush2.bf16.xpose.msra.mxu0 0
      %2580 = vmatprep.mubr.bf16.mxu0 0
      %2581 = vmatmul.mubr.bf16.gmra.mxu0 %v2537
      %v2582 = vpop.f32.mrf.mxu0
      %v2583 = vadd.f32 %v2380, %v2582
      %v2584 = vpop.f32.mrf.mxu0
      %v2585 = vpop.f32.mrf.mxu0
      %v2586 = vadd.f32 %v2381, %v2585
      %v2587 = vpop.f32.mrf.mxu0
      %2588 = vmatprep.mubr.bf16.mxu0 0
      %2589 = vmatmul.mubr.bf16.gmra.mxu0 %v2540
      %v2590 = vpop.f32.mrf.mxu0
      %v2591 = vadd.f32 %v2382, %v2590
      %v2592 = vpop.f32.mrf.mxu0
      %v2593 = vpop.f32.mrf.mxu0
      %v2594 = vadd.f32 %v2383, %v2593
      %v2595 = vpop.f32.mrf.mxu0
      %2596 = vdwg.mxu0
      %2599 = vrot.lane.b32.xlu0 %v1364, 120
      %v2600 = vpop.permute.xlu0 %2599
      %2601 = vrot.lane.b32.xlu0 %v1365, 120
      %v2602 = vpop.permute.xlu0 %2601
      %2603 = vrot.lane.b32.xlu0 %v1380, 88
      %v2604 = vpop.permute.xlu0 %2603
      %2605 = vrot.lane.b32.xlu0 %v1381, 88
      %v2606 = vpop.permute.xlu0 %2605
      %v2608 = vsel %vm1416, %v2600, 0
      %v2611 = vsel %vm1416, %v2602, 0
      %v2614 = vsel %vm1416, %v2604, 0
      %v2617 = vsel %vm1416, %v2606, 0
      %2619 = vmatprep.subr.bf16.mxu0 0
      %2620 = vmatpush1.bf16.xpose.msra.mxu0 0
      %2621 = vmatprep.subr.bf16.mxu0 0
      %2622 = vmatpush1.bf16.xpose.msra.mxu0 0
      %2623 = vmatprep.subr.bf16.mxu0 0
      %2624 = vmatpush1.bf16.xpose.msra.mxu0 0
      %2625 = vmatprep.subr.bf16.mxu0 0
      %2626 = vmatpush1.bf16.xpose.msra.mxu0 0
      %2627 = vmatprep.subr.bf16.mxu0 0
      %2628 = vmatpush1.bf16.xpose.msra.mxu0 0
      %2629 = vmatprep.subr.bf16.mxu0 0
      %2630 = vmatpush1.bf16.xpose.msra.mxu0 0
      %2631 = vmatprep.subr.bf16.mxu0 0
      %2632 = vmatpush1.bf16.xpose.msra.mxu0 %v2617
      %2633 = vmatprep.subr.bf16.mxu0 0
      %2634 = vmatpush1.bf16.xpose.msra.mxu0 %v2614
      %2635 = vmatprep.subr.bf16.mxu0 0
      %2636 = vmatpush2.bf16.xpose.msra.mxu0 0
      %2637 = vmatprep.subr.bf16.mxu0 0
      %2638 = vmatpush2.bf16.xpose.msra.mxu0 0
      %2639 = vmatprep.subr.bf16.mxu0 0
      %2640 = vmatpush2.bf16.xpose.msra.mxu0 0
      %2641 = vmatprep.subr.bf16.mxu0 0
      %2642 = vmatpush2.bf16.xpose.msra.mxu0 0
      %2643 = vmatprep.subr.bf16.mxu0 0
      %2644 = vmatpush2.bf16.xpose.msra.mxu0 0
      %2645 = vmatprep.subr.bf16.mxu0 0
      %2646 = vmatpush2.bf16.xpose.msra.mxu0 0
      %2647 = vmatprep.subr.bf16.mxu0 0
      %2648 = vmatpush2.bf16.xpose.msra.mxu0 0
      %2649 = vmatprep.subr.bf16.mxu0 0
      %2650 = vmatpush2.bf16.xpose.msra.mxu0 0
      %2651 = vmatprep.mubr.bf16.mxu0 0
      %2652 = vmatmul.mubr.bf16.gmra.mxu0 %v2608
      %v2653 = vpop.f32.mrf.mxu0
      %v2654 = vadd.f32 %v2380, %v2653
      %v2655 = vpop.f32.mrf.mxu0
      %v2656 = vpop.f32.mrf.mxu0
      %v2657 = vadd.f32 %v2381, %v2656
      %v2658 = vpop.f32.mrf.mxu0
      %2659 = vmatprep.mubr.bf16.mxu0 0
      %2660 = vmatmul.mubr.bf16.gmra.mxu0 %v2611
      %v2661 = vpop.f32.mrf.mxu0
      %v2662 = vadd.f32 %v2382, %v2661
      %v2663 = vpop.f32.mrf.mxu0
      %v2664 = vpop.f32.mrf.mxu0
      %v2665 = vadd.f32 %v2383, %v2664
      %v2666 = vpop.f32.mrf.mxu0
      %2667 = vdwg.mxu0
      %2670 = vrot.lane.b32.xlu0 %v1366, 120
      %v2671 = vpop.permute.xlu0 %2670
      %2672 = vrot.lane.b32.xlu0 %v1367, 120
      %v2673 = vpop.permute.xlu0 %2672
      %2674 = vrot.lane.b32.xlu0 %v1382, 88
      %v2675 = vpop.permute.xlu0 %2674
      %2676 = vrot.lane.b32.xlu0 %v1383, 88
      %v2677 = vpop.permute.xlu0 %2676
      %v2679 = vsel %vm1416, %v2671, 0
      %v2682 = vsel %vm1416, %v2673, 0
      %v2685 = vsel %vm1416, %v2675, 0
      %v2688 = vsel %vm1416, %v2677, 0
      %2690 = vmatprep.subr.bf16.mxu0 0
      %2691 = vmatpush1.bf16.xpose.msra.mxu0 0
      %2692 = vmatprep.subr.bf16.mxu0 0
      %2693 = vmatpush1.bf16.xpose.msra.mxu0 0
      %2694 = vmatprep.subr.bf16.mxu0 0
      %2695 = vmatpush1.bf16.xpose.msra.mxu0 0
      %2696 = vmatprep.subr.bf16.mxu0 0
      %2697 = vmatpush1.bf16.xpose.msra.mxu0 0
      %2698 = vmatprep.subr.bf16.mxu0 0
      %2699 = vmatpush1.bf16.xpose.msra.mxu0 0
      %2700 = vmatprep.subr.bf16.mxu0 0
      %2701 = vmatpush1.bf16.xpose.msra.mxu0 0
      %2702 = vmatprep.subr.bf16.mxu0 0
      %2703 = vmatpush1.bf16.xpose.msra.mxu0 %v2688
      %2704 = vmatprep.subr.bf16.mxu0 0
      %2705 = vmatpush1.bf16.xpose.msra.mxu0 %v2685
      %2706 = vmatprep.subr.bf16.mxu0 0
      %2707 = vmatpush2.bf16.xpose.msra.mxu0 0
      %2708 = vmatprep.subr.bf16.mxu0 0
      %2709 = vmatpush2.bf16.xpose.msra.mxu0 0
      %2710 = vmatprep.subr.bf16.mxu0 0
      %2711 = vmatpush2.bf16.xpose.msra.mxu0 0
      %2712 = vmatprep.subr.bf16.mxu0 0
      %2713 = vmatpush2.bf16.xpose.msra.mxu0 0
      %2714 = vmatprep.subr.bf16.mxu0 0
      %2715 = vmatpush2.bf16.xpose.msra.mxu0 0
      %2716 = vmatprep.subr.bf16.mxu0 0
      %2717 = vmatpush2.bf16.xpose.msra.mxu0 0
      %2718 = vmatprep.subr.bf16.mxu0 0
      %2719 = vmatpush2.bf16.xpose.msra.mxu0 0
      %2720 = vmatprep.subr.bf16.mxu0 0
      %2721 = vmatpush2.bf16.xpose.msra.mxu0 0
      %2722 = vmatprep.mubr.bf16.mxu0 0
      %2723 = vmatmul.mubr.bf16.gmra.mxu0 %v2679
      %v2724 = vpop.f32.mrf.mxu0
      %v2725 = vadd.f32 %v2380, %v2724
      %v2726 = vpop.f32.mrf.mxu0
      %v2727 = vpop.f32.mrf.mxu0
      %v2728 = vadd.f32 %v2381, %v2727
      %v2729 = vpop.f32.mrf.mxu0
      %2730 = vmatprep.mubr.bf16.mxu0 0
      %2731 = vmatmul.mubr.bf16.gmra.mxu0 %v2682
      %v2732 = vpop.f32.mrf.mxu0
      %v2733 = vadd.f32 %v2382, %v2732
      %v2734 = vpop.f32.mrf.mxu0
      %v2735 = vpop.f32.mrf.mxu0
      %v2736 = vadd.f32 %v2383, %v2735
      %v2737 = vpop.f32.mrf.mxu0
      %2738 = vdwg.mxu0
      %2741 = vrot.lane.b32.xlu0 %v1368, 120
      %v2742 = vpop.permute.xlu0 %2741
      %2743 = vrot.lane.b32.xlu0 %v1369, 120
      %v2744 = vpop.permute.xlu0 %2743
      %2745 = vrot.lane.b32.xlu0 %v1384, 88
      %v2746 = vpop.permute.xlu0 %2745
      %2747 = vrot.lane.b32.xlu0 %v1385, 88
      %v2748 = vpop.permute.xlu0 %2747
      %v2750 = vsel %vm1416, %v2742, 0
      %v2753 = vsel %vm1416, %v2744, 0
      %v2756 = vsel %vm1416, %v2746, 0
      %v2759 = vsel %vm1416, %v2748, 0
      %2761 = vmatprep.subr.bf16.mxu0 0
      %2762 = vmatpush1.bf16.xpose.msra.mxu0 0
      %2763 = vmatprep.subr.bf16.mxu0 0
      %2764 = vmatpush1.bf16.xpose.msra.mxu0 0
      %2765 = vmatprep.subr.bf16.mxu0 0
      %2766 = vmatpush1.bf16.xpose.msra.mxu0 0
      %2767 = vmatprep.subr.bf16.mxu0 0
      %2768 = vmatpush1.bf16.xpose.msra.mxu0 0
      %2769 = vmatprep.subr.bf16.mxu0 0
      %2770 = vmatpush1.bf16.xpose.msra.mxu0 0
      %2771 = vmatprep.subr.bf16.mxu0 0
      %2772 = vmatpush1.bf16.xpose.msra.mxu0 0
      %2773 = vmatprep.subr.bf16.mxu0 0
      %2774 = vmatpush1.bf16.xpose.msra.mxu0 %v2759
      %2775 = vmatprep.subr.bf16.mxu0 0
      %2776 = vmatpush1.bf16.xpose.msra.mxu0 %v2756
      %2777 = vmatprep.subr.bf16.mxu0 0
      %2778 = vmatpush2.bf16.xpose.msra.mxu0 0
      %2779 = vmatprep.subr.bf16.mxu0 0
      %2780 = vmatpush2.bf16.xpose.msra.mxu0 0
      %2781 = vmatprep.subr.bf16.mxu0 0
      %2782 = vmatpush2.bf16.xpose.msra.mxu0 0
      %2783 = vmatprep.subr.bf16.mxu0 0
      %2784 = vmatpush2.bf16.xpose.msra.mxu0 0
      %2785 = vmatprep.subr.bf16.mxu0 0
      %2786 = vmatpush2.bf16.xpose.msra.mxu0 0
      %2787 = vmatprep.subr.bf16.mxu0 0
      %2788 = vmatpush2.bf16.xpose.msra.mxu0 0
      %2789 = vmatprep.subr.bf16.mxu0 0
      %2790 = vmatpush2.bf16.xpose.msra.mxu0 0
      %2791 = vmatprep.subr.bf16.mxu0 0
      %2792 = vmatpush2.bf16.xpose.msra.mxu0 0
      %2793 = vmatprep.mubr.bf16.mxu0 0
      %2794 = vmatmul.mubr.bf16.gmra.mxu0 %v2750
      %v2795 = vpop.f32.mrf.mxu0
      %v2796 = vadd.f32 %v2380, %v2795
      %v2797 = vpop.f32.mrf.mxu0
      %v2798 = vpop.f32.mrf.mxu0
      %v2799 = vadd.f32 %v2381, %v2798
      %v2800 = vpop.f32.mrf.mxu0
      %2801 = vmatprep.mubr.bf16.mxu0 0
      %2802 = vmatmul.mubr.bf16.gmra.mxu0 %v2753
      %v2803 = vpop.f32.mrf.mxu0
      %v2804 = vadd.f32 %v2382, %v2803
      %v2805 = vpop.f32.mrf.mxu0
      %v2806 = vpop.f32.mrf.mxu0
      %v2807 = vadd.f32 %v2383, %v2806
      %v2808 = vpop.f32.mrf.mxu0
      %2809 = vdwg.mxu0
      %2812 = vrot.lane.b32.xlu0 %v1370, 120
      %v2813 = vpop.permute.xlu0 %2812
      %2814 = vrot.lane.b32.xlu0 %v1371, 120
      %v2815 = vpop.permute.xlu0 %2814
      %2816 = vrot.lane.b32.xlu0 %v1386, 88
      %v2817 = vpop.permute.xlu0 %2816
      %2818 = vrot.lane.b32.xlu0 %v1387, 88
      %v2819 = vpop.permute.xlu0 %2818
      %v2821 = vsel %vm1416, %v2813, 0
      %v2824 = vsel %vm1416, %v2815, 0
      %v2827 = vsel %vm1416, %v2817, 0
      %v2830 = vsel %vm1416, %v2819, 0
      %2832 = vmatprep.subr.bf16.mxu0 0
      %2833 = vmatpush1.bf16.xpose.msra.mxu0 0
      %2834 = vmatprep.subr.bf16.mxu0 0
      %2835 = vmatpush1.bf16.xpose.msra.mxu0 0
      %2836 = vmatprep.subr.bf16.mxu0 0
      %2837 = vmatpush1.bf16.xpose.msra.mxu0 0
      %2838 = vmatprep.subr.bf16.mxu0 0
      %2839 = vmatpush1.bf16.xpose.msra.mxu0 0
      %2840 = vmatprep.subr.bf16.mxu0 0
      %2841 = vmatpush1.bf16.xpose.msra.mxu0 0
      %2842 = vmatprep.subr.bf16.mxu0 0
      %2843 = vmatpush1.bf16.xpose.msra.mxu0 0
      %2844 = vmatprep.subr.bf16.mxu0 0
      %2845 = vmatpush1.bf16.xpose.msra.mxu0 %v2830
      %2846 = vmatprep.subr.bf16.mxu0 0
      %2847 = vmatpush1.bf16.xpose.msra.mxu0 %v2827
      %2848 = vmatprep.subr.bf16.mxu0 0
      %2849 = vmatpush2.bf16.xpose.msra.mxu0 0
      %2850 = vmatprep.subr.bf16.mxu0 0
      %2851 = vmatpush2.bf16.xpose.msra.mxu0 0
      %2852 = vmatprep.subr.bf16.mxu0 0
      %2853 = vmatpush2.bf16.xpose.msra.mxu0 0
      %2854 = vmatprep.subr.bf16.mxu0 0
      %2855 = vmatpush2.bf16.xpose.msra.mxu0 0
      %2856 = vmatprep.subr.bf16.mxu0 0
      %2857 = vmatpush2.bf16.xpose.msra.mxu0 0
      %2858 = vmatprep.subr.bf16.mxu0 0
      %2859 = vmatpush2.bf16.xpose.msra.mxu0 0
      %2860 = vmatprep.subr.bf16.mxu0 0
      %2861 = vmatpush2.bf16.xpose.msra.mxu0 0
      %2862 = vmatprep.subr.bf16.mxu0 0
      %2863 = vmatpush2.bf16.xpose.msra.mxu0 0
      %2864 = vmatprep.mubr.bf16.mxu0 0
      %2865 = vmatmul.mubr.bf16.gmra.mxu0 %v2821
      %v2866 = vpop.f32.mrf.mxu0
      %v2867 = vadd.f32 %v2380, %v2866
      %v2868 = vpop.f32.mrf.mxu0
      %v2869 = vpop.f32.mrf.mxu0
      %v2870 = vadd.f32 %v2381, %v2869
      %v2871 = vpop.f32.mrf.mxu0
      %2872 = vmatprep.mubr.bf16.mxu0 0
      %2873 = vmatmul.mubr.bf16.gmra.mxu0 %v2824
      %v2874 = vpop.f32.mrf.mxu0
      %v2875 = vadd.f32 %v2382, %v2874
      %v2876 = vpop.f32.mrf.mxu0
      %v2877 = vpop.f32.mrf.mxu0
      %v2878 = vadd.f32 %v2383, %v2877
      %v2879 = vpop.f32.mrf.mxu0
      %2880 = vdwg.mxu0
      %2883 = vrot.lane.b32.xlu0 %v1372, 120
      %v2884 = vpop.permute.xlu0 %2883
      %2885 = vrot.lane.b32.xlu0 %v1373, 120
      %v2886 = vpop.permute.xlu0 %2885
      %2887 = vrot.lane.b32.xlu0 %v1388, 88
      %v2888 = vpop.permute.xlu0 %2887
      %2889 = vrot.lane.b32.xlu0 %v1389, 88
      %v2890 = vpop.permute.xlu0 %2889
      %v2892 = vsel %vm1416, %v2884, 0
      %v2895 = vsel %vm1416, %v2886, 0
      %v2898 = vsel %vm1416, %v2888, 0
      %v2901 = vsel %vm1416, %v2890, 0
      %2903 = vmatprep.subr.bf16.mxu0 0
      %2904 = vmatpush1.bf16.xpose.msra.mxu0 0
      %2905 = vmatprep.subr.bf16.mxu0 0
      %2906 = vmatpush1.bf16.xpose.msra.mxu0 0
      %2907 = vmatprep.subr.bf16.mxu0 0
      %2908 = vmatpush1.bf16.xpose.msra.mxu0 0
      %2909 = vmatprep.subr.bf16.mxu0 0
      %2910 = vmatpush1.bf16.xpose.msra.mxu0 0
      %2911 = vmatprep.subr.bf16.mxu0 0
      %2912 = vmatpush1.bf16.xpose.msra.mxu0 0
      %2913 = vmatprep.subr.bf16.mxu0 0
      %2914 = vmatpush1.bf16.xpose.msra.mxu0 0
      %2915 = vmatprep.subr.bf16.mxu0 0
      %2916 = vmatpush1.bf16.xpose.msra.mxu0 %v2901
      %2917 = vmatprep.subr.bf16.mxu0 0
      %2918 = vmatpush1.bf16.xpose.msra.mxu0 %v2898
      %2919 = vmatprep.subr.bf16.mxu0 0
      %2920 = vmatpush2.bf16.xpose.msra.mxu0 0
      %2921 = vmatprep.subr.bf16.mxu0 0
      %2922 = vmatpush2.bf16.xpose.msra.mxu0 0
      %2923 = vmatprep.subr.bf16.mxu0 0
      %2924 = vmatpush2.bf16.xpose.msra.mxu0 0
      %2925 = vmatprep.subr.bf16.mxu0 0
      %2926 = vmatpush2.bf16.xpose.msra.mxu0 0
      %2927 = vmatprep.subr.bf16.mxu0 0
      %2928 = vmatpush2.bf16.xpose.msra.mxu0 0
      %2929 = vmatprep.subr.bf16.mxu0 0
      %2930 = vmatpush2.bf16.xpose.msra.mxu0 0
      %2931 = vmatprep.subr.bf16.mxu0 0
      %2932 = vmatpush2.bf16.xpose.msra.mxu0 0
      %2933 = vmatprep.subr.bf16.mxu0 0
      %2934 = vmatpush2.bf16.xpose.msra.mxu0 0
      %2935 = vmatprep.mubr.bf16.mxu0 0
      %2936 = vmatmul.mubr.bf16.gmra.mxu0 %v2892
      %v2937 = vpop.f32.mrf.mxu0
      %v2938 = vadd.f32 %v2380, %v2937
      %v2939 = vpop.f32.mrf.mxu0
      %v2940 = vpop.f32.mrf.mxu0
      %v2941 = vadd.f32 %v2381, %v2940
      %v2942 = vpop.f32.mrf.mxu0
      %2943 = vmatprep.mubr.bf16.mxu0 0
      %2944 = vmatmul.mubr.bf16.gmra.mxu0 %v2895
      %v2945 = vpop.f32.mrf.mxu0
      %v2946 = vadd.f32 %v2382, %v2945
      %v2947 = vpop.f32.mrf.mxu0
      %v2948 = vpop.f32.mrf.mxu0
      %v2949 = vadd.f32 %v2383, %v2948
      %v2950 = vpop.f32.mrf.mxu0
      %2951 = vdwg.mxu0
      %v2952 = vadd.f32 %v2441, %v1947
      %v2953 = vadd.f32 %v2444, %v1948
      %v2954 = vadd.f32 %v2449, %v1949
      %v2955 = vadd.f32 %v2452, %v1950
      %v2956 = vadd.f32 %v2512, %v1951
      %v2957 = vadd.f32 %v2515, %v1952
      %v2958 = vadd.f32 %v2520, %v1953
      %v2959 = vadd.f32 %v2523, %v1954
      %v2960 = vadd.f32 %v2583, %v1955
      %v2961 = vadd.f32 %v2586, %v1956
      %v2962 = vadd.f32 %v2591, %v1957
      %v2963 = vadd.f32 %v2594, %v1958
      %v2964 = vadd.f32 %v2654, %v1959
      %v2965 = vadd.f32 %v2657, %v1960
      %v2966 = vadd.f32 %v2662, %v1961
      %v2967 = vadd.f32 %v2665, %v1962
      %v2968 = vadd.f32 %v2725, %v1963
      %v2969 = vadd.f32 %v2728, %v1964
      %v2970 = vadd.f32 %v2733, %v1965
      %v2971 = vadd.f32 %v2736, %v1966
      %v2972 = vadd.f32 %v2796, %v1967
      %v2973 = vadd.f32 %v2799, %v1968
      %v2974 = vadd.f32 %v2804, %v1969
      %v2975 = vadd.f32 %v2807, %v1970
      %v2976 = vadd.f32 %v2867, %v1971
      %v2977 = vadd.f32 %v2870, %v1972
      %v2978 = vadd.f32 %v2875, %v1973
      %v2979 = vadd.f32 %v2878, %v1974
      %v2980 = vadd.f32 %v2938, %v1975
      %v2981 = vadd.f32 %v2941, %v1976
      %v2982 = vadd.f32 %v2946, %v1977
      %v2983 = vadd.f32 %v2949, %v1978
      %v2984 = vsel %vm398, %v2952, -inf
      %2985 = vmax.xlane.f32.xlu0 %v2984
      %v2986 = vpop.xlane.xlu0 %2985
      %v2987 = vsel %vm398, %v2953, -inf
      %2988 = vmax.xlane.f32.xlu0 %v2987
      %v2989 = vpop.xlane.xlu0 %2988
      %v2990 = vsel %vm398, %v2954, -inf
      %2991 = vmax.xlane.f32.xlu0 %v2990
      %v2992 = vpop.xlane.xlu0 %2991
      %v2993 = vsel %vm398, %v2955, -inf
      %2994 = vmax.xlane.f32.xlu0 %v2993
      %v2995 = vpop.xlane.xlu0 %2994
      %v2996 = vsel %vm398, %v2956, -inf
      %2997 = vmax.xlane.f32.xlu0 %v2996
      %v2998 = vpop.xlane.xlu0 %2997
      %v2999 = vsel %vm398, %v2957, -inf
      %3000 = vmax.xlane.f32.xlu0 %v2999
      %v3001 = vpop.xlane.xlu0 %3000
      %v3002 = vsel %vm398, %v2958, -inf
      %3003 = vmax.xlane.f32.xlu0 %v3002
      %v3004 = vpop.xlane.xlu0 %3003
      %v3005 = vsel %vm398, %v2959, -inf
      %3006 = vmax.xlane.f32.xlu0 %v3005
      %v3007 = vpop.xlane.xlu0 %3006
      %v3008 = vsel %vm398, %v2960, -inf
      %3009 = vmax.xlane.f32.xlu0 %v3008
      %v3010 = vpop.xlane.xlu0 %3009
      %v3011 = vsel %vm398, %v2961, -inf
      %3012 = vmax.xlane.f32.xlu0 %v3011
      %v3013 = vpop.xlane.xlu0 %3012
      %v3014 = vsel %vm398, %v2962, -inf
      %3015 = vmax.xlane.f32.xlu0 %v3014
      %v3016 = vpop.xlane.xlu0 %3015
      %v3017 = vsel %vm398, %v2963, -inf
      %3018 = vmax.xlane.f32.xlu0 %v3017
      %v3019 = vpop.xlane.xlu0 %3018
      %v3020 = vsel %vm398, %v2964, -inf
      %3021 = vmax.xlane.f32.xlu0 %v3020
      %v3022 = vpop.xlane.xlu0 %3021
      %v3023 = vsel %vm398, %v2965, -inf
      %3024 = vmax.xlane.f32.xlu0 %v3023
      %v3025 = vpop.xlane.xlu0 %3024
      %v3026 = vsel %vm398, %v2966, -inf
      %3027 = vmax.xlane.f32.xlu0 %v3026
      %v3028 = vpop.xlane.xlu0 %3027
      %v3029 = vsel %vm398, %v2967, -inf
      %3030 = vmax.xlane.f32.xlu0 %v3029
      %v3031 = vpop.xlane.xlu0 %3030
      %v3032 = vsel %vm398, %v2968, -inf
      %3033 = vmax.xlane.f32.xlu0 %v3032
      %v3034 = vpop.xlane.xlu0 %3033
      %v3035 = vsel %vm398, %v2969, -inf
      %3036 = vmax.xlane.f32.xlu0 %v3035
      %v3037 = vpop.xlane.xlu0 %3036
      %v3038 = vsel %vm398, %v2970, -inf
      %3039 = vmax.xlane.f32.xlu0 %v3038
      %v3040 = vpop.xlane.xlu0 %3039
      %v3041 = vsel %vm398, %v2971, -inf
      %3042 = vmax.xlane.f32.xlu0 %v3041
      %v3043 = vpop.xlane.xlu0 %3042
      %v3044 = vsel %vm398, %v2972, -inf
      %3045 = vmax.xlane.f32.xlu0 %v3044
      %v3046 = vpop.xlane.xlu0 %3045
      %v3047 = vsel %vm398, %v2973, -inf
      %3048 = vmax.xlane.f32.xlu0 %v3047
      %v3049 = vpop.xlane.xlu0 %3048
      %v3050 = vsel %vm398, %v2974, -inf
      %3051 = vmax.xlane.f32.xlu0 %v3050
      %v3052 = vpop.xlane.xlu0 %3051
      %v3053 = vsel %vm398, %v2975, -inf
      %3054 = vmax.xlane.f32.xlu0 %v3053
      %v3055 = vpop.xlane.xlu0 %3054
      %v3056 = vsel %vm398, %v2976, -inf
      %3057 = vmax.xlane.f32.xlu0 %v3056
      %v3058 = vpop.xlane.xlu0 %3057
      %v3059 = vsel %vm398, %v2977, -inf
      %3060 = vmax.xlane.f32.xlu0 %v3059
      %v3061 = vpop.xlane.xlu0 %3060
      %v3062 = vsel %vm398, %v2978, -inf
      %3063 = vmax.xlane.f32.xlu0 %v3062
      %v3064 = vpop.xlane.xlu0 %3063
      %v3065 = vsel %vm398, %v2979, -inf
      %3066 = vmax.xlane.f32.xlu0 %v3065
      %v3067 = vpop.xlane.xlu0 %3066
      %v3068 = vsel %vm398, %v2980, -inf
      %3069 = vmax.xlane.f32.xlu0 %v3068
      %v3070 = vpop.xlane.xlu0 %3069
      %v3071 = vsel %vm398, %v2981, -inf
      %3072 = vmax.xlane.f32.xlu0 %v3071
      %v3073 = vpop.xlane.xlu0 %3072
      %v3074 = vsel %vm398, %v2982, -inf
      %3075 = vmax.xlane.f32.xlu0 %v3074
      %v3076 = vpop.xlane.xlu0 %3075
      %v3077 = vsel %vm398, %v2983, -inf
      %3078 = vmax.xlane.f32.xlu0 %v3077
      %v3079 = vpop.xlane.xlu0 %3078
      %v3080 = vsub.f32 %v2952, %v2986
      %v3081 = vsub.f32 %v2953, %v2989
      %v3082 = vsub.f32 %v2954, %v2992
      %v3083 = vsub.f32 %v2955, %v2995
      %v3084 = vsub.f32 %v2956, %v2998
      %v3085 = vsub.f32 %v2957, %v3001
      %v3086 = vsub.f32 %v2958, %v3004
      %v3087 = vsub.f32 %v2959, %v3007
      %v3088 = vsub.f32 %v2960, %v3010
      %v3089 = vsub.f32 %v2961, %v3013
      %v3090 = vsub.f32 %v2962, %v3016
      %v3091 = vsub.f32 %v2963, %v3019
      %v3092 = vsub.f32 %v2964, %v3022
      %v3093 = vsub.f32 %v2965, %v3025
      %v3094 = vsub.f32 %v2966, %v3028
      %v3095 = vsub.f32 %v2967, %v3031
      %v3096 = vsub.f32 %v2968, %v3034
      %v3097 = vsub.f32 %v2969, %v3037
      %v3098 = vsub.f32 %v2970, %v3040
      %v3099 = vsub.f32 %v2971, %v3043
      %v3100 = vsub.f32 %v2972, %v3046
      %v3101 = vsub.f32 %v2973, %v3049
      %v3102 = vsub.f32 %v2974, %v3052
      %v3103 = vsub.f32 %v2975, %v3055
      %v3104 = vsub.f32 %v2976, %v3058
      %v3105 = vsub.f32 %v2977, %v3061
      %v3106 = vsub.f32 %v2978, %v3064
      %v3107 = vsub.f32 %v2979, %v3067
      %v3108 = vsub.f32 %v2980, %v3070
      %v3109 = vsub.f32 %v2981, %v3073
      %v3110 = vsub.f32 %v2982, %v3076
      %v3111 = vsub.f32 %v2983, %v3079
      %v3112 = vmul.f32 %v3080, 1.442695
      %v3113 = vpow.pop %v3112
      %v3114 = vmul.f32 %v3081, 1.442695
      %v3115 = vpow.pop %v3114
      %v3116 = vmul.f32 %v3082, 1.442695
      %v3117 = vpow.pop %v3116
      %v3118 = vmul.f32 %v3083, 1.442695
      %v3119 = vpow.pop %v3118
      %v3120 = vmul.f32 %v3084, 1.442695
      %v3121 = vpow.pop %v3120
      %v3122 = vmul.f32 %v3085, 1.442695
      %v3123 = vpow.pop %v3122
      %v3124 = vmul.f32 %v3086, 1.442695
      %v3125 = vpow.pop %v3124
      %v3126 = vmul.f32 %v3087, 1.442695
      %v3127 = vpow.pop %v3126
      %v3128 = vmul.f32 %v3088, 1.442695
      %v3129 = vpow.pop %v3128
      %v3130 = vmul.f32 %v3089, 1.442695
      %v3131 = vpow.pop %v3130
      %v3132 = vmul.f32 %v3090, 1.442695
      %v3133 = vpow.pop %v3132
      %v3134 = vmul.f32 %v3091, 1.442695
      %v3135 = vpow.pop %v3134
      %v3136 = vmul.f32 %v3092, 1.442695
      %v3137 = vpow.pop %v3136
      %v3138 = vmul.f32 %v3093, 1.442695
      %v3139 = vpow.pop %v3138
      %v3140 = vmul.f32 %v3094, 1.442695
      %v3141 = vpow.pop %v3140
      %v3142 = vmul.f32 %v3095, 1.442695
      %v3143 = vpow.pop %v3142
      %v3144 = vmul.f32 %v3096, 1.442695
      %v3145 = vpow.pop %v3144
      %v3146 = vmul.f32 %v3097, 1.442695
      %v3147 = vpow.pop %v3146
      %v3148 = vmul.f32 %v3098, 1.442695
      %v3149 = vpow.pop %v3148
      %v3150 = vmul.f32 %v3099, 1.442695
      %v3151 = vpow.pop %v3150
      %v3152 = vmul.f32 %v3100, 1.442695
      %v3153 = vpow.pop %v3152
      %v3154 = vmul.f32 %v3101, 1.442695
      %v3155 = vpow.pop %v3154
      %v3156 = vmul.f32 %v3102, 1.442695
      %v3157 = vpow.pop %v3156
      %v3158 = vmul.f32 %v3103, 1.442695
      %v3159 = vpow.pop %v3158
      %v3160 = vmul.f32 %v3104, 1.442695
      %v3161 = vpow.pop %v3160
      %v3162 = vmul.f32 %v3105, 1.442695
      %v3163 = vpow.pop %v3162
      %v3164 = vmul.f32 %v3106, 1.442695
      %v3165 = vpow.pop %v3164
      %v3166 = vmul.f32 %v3107, 1.442695
      %v3167 = vpow.pop %v3166
      %v3168 = vmul.f32 %v3108, 1.442695
      %v3169 = vpow.pop %v3168
      %v3170 = vmul.f32 %v3109, 1.442695
      %v3171 = vpow.pop %v3170
      %v3172 = vmul.f32 %v3110, 1.442695
      %v3173 = vpow.pop %v3172
      %v3174 = vmul.f32 %v3111, 1.442695
      %v3175 = vpow.pop %v3174
      %v3176 = vsel %vm398, %v3113, 0.0
      %3177 = vadd.xlane.f32.xlu0 %v3176
      %v3178 = vpop.xlane.xlu0 %3177
      %v3179 = vsel %vm398, %v3115, 0.0
      %3180 = vadd.xlane.f32.xlu0 %v3179
      %v3181 = vpop.xlane.xlu0 %3180
      %v3182 = vsel %vm398, %v3117, 0.0
      %3183 = vadd.xlane.f32.xlu0 %v3182
      %v3184 = vpop.xlane.xlu0 %3183
      %v3185 = vsel %vm398, %v3119, 0.0
      %3186 = vadd.xlane.f32.xlu0 %v3185
      %v3187 = vpop.xlane.xlu0 %3186
      %v3188 = vsel %vm398, %v3121, 0.0
      %3189 = vadd.xlane.f32.xlu0 %v3188
      %v3190 = vpop.xlane.xlu0 %3189
      %v3191 = vsel %vm398, %v3123, 0.0
      %3192 = vadd.xlane.f32.xlu0 %v3191
      %v3193 = vpop.xlane.xlu0 %3192
      %v3194 = vsel %vm398, %v3125, 0.0
      %3195 = vadd.xlane.f32.xlu0 %v3194
      %v3196 = vpop.xlane.xlu0 %3195
      %v3197 = vsel %vm398, %v3127, 0.0
      %3198 = vadd.xlane.f32.xlu0 %v3197
      %v3199 = vpop.xlane.xlu0 %3198
      %v3200 = vsel %vm398, %v3129, 0.0
      %3201 = vadd.xlane.f32.xlu0 %v3200
      %v3202 = vpop.xlane.xlu0 %3201
      %v3203 = vsel %vm398, %v3131, 0.0
      %3204 = vadd.xlane.f32.xlu0 %v3203
      %v3205 = vpop.xlane.xlu0 %3204
      %v3206 = vsel %vm398, %v3133, 0.0
      %3207 = vadd.xlane.f32.xlu0 %v3206
      %v3208 = vpop.xlane.xlu0 %3207
      %v3209 = vsel %vm398, %v3135, 0.0
      %3210 = vadd.xlane.f32.xlu0 %v3209
      %v3211 = vpop.xlane.xlu0 %3210
      %v3212 = vsel %vm398, %v3137, 0.0
      %3213 = vadd.xlane.f32.xlu0 %v3212
      %v3214 = vpop.xlane.xlu0 %3213
      %v3215 = vsel %vm398, %v3139, 0.0
      %3216 = vadd.xlane.f32.xlu0 %v3215
      %v3217 = vpop.xlane.xlu0 %3216
      %v3218 = vsel %vm398, %v3141, 0.0
      %3219 = vadd.xlane.f32.xlu0 %v3218
      %v3220 = vpop.xlane.xlu0 %3219
      %v3221 = vsel %vm398, %v3143, 0.0
      %3222 = vadd.xlane.f32.xlu0 %v3221
      %v3223 = vpop.xlane.xlu0 %3222
      %v3224 = vsel %vm398, %v3145, 0.0
      %3225 = vadd.xlane.f32.xlu0 %v3224
      %v3226 = vpop.xlane.xlu0 %3225
      %v3227 = vsel %vm398, %v3147, 0.0
      %3228 = vadd.xlane.f32.xlu0 %v3227
      %v3229 = vpop.xlane.xlu0 %3228
      %v3230 = vsel %vm398, %v3149, 0.0
      %3231 = vadd.xlane.f32.xlu0 %v3230
      %v3232 = vpop.xlane.xlu0 %3231
      %v3233 = vsel %vm398, %v3151, 0.0
      %3234 = vadd.xlane.f32.xlu0 %v3233
      %v3235 = vpop.xlane.xlu0 %3234
      %v3236 = vsel %vm398, %v3153, 0.0
      %3237 = vadd.xlane.f32.xlu0 %v3236
      %v3238 = vpop.xlane.xlu0 %3237
      %v3239 = vsel %vm398, %v3155, 0.0
      %3240 = vadd.xlane.f32.xlu0 %v3239
      %v3241 = vpop.xlane.xlu0 %3240
      %v3242 = vsel %vm398, %v3157, 0.0
      %3243 = vadd.xlane.f32.xlu0 %v3242
      %v3244 = vpop.xlane.xlu0 %3243
      %v3245 = vsel %vm398, %v3159, 0.0
      %3246 = vadd.xlane.f32.xlu0 %v3245
      %v3247 = vpop.xlane.xlu0 %3246
      %v3248 = vsel %vm398, %v3161, 0.0
      %3249 = vadd.xlane.f32.xlu0 %v3248
      %v3250 = vpop.xlane.xlu0 %3249
      %v3251 = vsel %vm398, %v3163, 0.0
      %3252 = vadd.xlane.f32.xlu0 %v3251
      %v3253 = vpop.xlane.xlu0 %3252
      %v3254 = vsel %vm398, %v3165, 0.0
      %3255 = vadd.xlane.f32.xlu0 %v3254
      %v3256 = vpop.xlane.xlu0 %3255
      %v3257 = vsel %vm398, %v3167, 0.0
      %3258 = vadd.xlane.f32.xlu0 %v3257
      %v3259 = vpop.xlane.xlu0 %3258
      %v3260 = vsel %vm398, %v3169, 0.0
      %3261 = vadd.xlane.f32.xlu0 %v3260
      %v3262 = vpop.xlane.xlu0 %3261
      %v3263 = vsel %vm398, %v3171, 0.0
      %3264 = vadd.xlane.f32.xlu0 %v3263
      %v3265 = vpop.xlane.xlu0 %3264
      %v3266 = vsel %vm398, %v3173, 0.0
      %3267 = vadd.xlane.f32.xlu0 %v3266
      %v3268 = vpop.xlane.xlu0 %3267
      %v3269 = vsel %vm398, %v3175, 0.0
      %3270 = vadd.xlane.f32.xlu0 %v3269
      %v3271 = vpop.xlane.xlu0 %3270
      %v3272 = vrcp.pop %v3178
      %v3273 = vrcp.pop %v3181
      %v3274 = vrcp.pop %v3184
      %v3275 = vrcp.pop %v3187
      %v3276 = vrcp.pop %v3190
      %v3277 = vrcp.pop %v3193
      %v3278 = vrcp.pop %v3196
      %v3279 = vrcp.pop %v3199
      %v3280 = vrcp.pop %v3202
      %v3281 = vrcp.pop %v3205
      %v3282 = vrcp.pop %v3208
      %v3283 = vrcp.pop %v3211
      %v3284 = vrcp.pop %v3214
      %v3285 = vrcp.pop %v3217
      %v3286 = vrcp.pop %v3220
      %v3287 = vrcp.pop %v3223
      %v3288 = vrcp.pop %v3226
      %v3289 = vrcp.pop %v3229
      %v3290 = vrcp.pop %v3232
      %v3291 = vrcp.pop %v3235
      %v3292 = vrcp.pop %v3238
      %v3293 = vrcp.pop %v3241
      %v3294 = vrcp.pop %v3244
      %v3295 = vrcp.pop %v3247
      %v3296 = vrcp.pop %v3250
      %v3297 = vrcp.pop %v3253
      %v3298 = vrcp.pop %v3256
      %v3299 = vrcp.pop %v3259
      %v3300 = vrcp.pop %v3262
      %v3301 = vrcp.pop %v3265
      %v3302 = vrcp.pop %v3268
      %v3303 = vrcp.pop %v3271
      %v3304 = vmul.f32 %v3113, %v3272
      %v3305 = vmul.f32 %v3115, %v3273
      %v3306 = vmul.f32 %v3117, %v3274
      %v3307 = vmul.f32 %v3119, %v3275
      %v3308 = vmul.f32 %v3121, %v3276
      %v3309 = vmul.f32 %v3123, %v3277
      %v3310 = vmul.f32 %v3125, %v3278
      %v3311 = vmul.f32 %v3127, %v3279
      %v3312 = vmul.f32 %v3129, %v3280
      %v3313 = vmul.f32 %v3131, %v3281
      %v3314 = vmul.f32 %v3133, %v3282
      %v3315 = vmul.f32 %v3135, %v3283
      %v3316 = vmul.f32 %v3137, %v3284
      %v3317 = vmul.f32 %v3139, %v3285
      %v3318 = vmul.f32 %v3141, %v3286
      %v3319 = vmul.f32 %v3143, %v3287
      %v3320 = vmul.f32 %v3145, %v3288
      %v3321 = vmul.f32 %v3147, %v3289
      %v3322 = vmul.f32 %v3149, %v3290
      %v3323 = vmul.f32 %v3151, %v3291
      %v3324 = vmul.f32 %v3153, %v3292
      %v3325 = vmul.f32 %v3155, %v3293
      %v3326 = vmul.f32 %v3157, %v3294
      %v3327 = vmul.f32 %v3159, %v3295
      %v3328 = vmul.f32 %v3161, %v3296
      %v3329 = vmul.f32 %v3163, %v3297
      %v3330 = vmul.f32 %v3165, %v3298
      %v3331 = vmul.f32 %v3167, %v3299
      %v3332 = vmul.f32 %v3169, %v3300
      %v3333 = vmul.f32 %v3171, %v3301
      %v3334 = vmul.f32 %v3173, %v3302
      %v3335 = vmul.f32 %v3175, %v3303
      %v3336 = vpack.c.bf16 %v3305, %v3304
      %v3337 = vpack.c.bf16 %v3307, %v3306
      %v3338 = vpack.c.bf16 %v3309, %v3308
      %v3339 = vpack.c.bf16 %v3311, %v3310
      %v3340 = vpack.c.bf16 %v3313, %v3312
      %v3341 = vpack.c.bf16 %v3315, %v3314
      %v3342 = vpack.c.bf16 %v3317, %v3316
      %v3343 = vpack.c.bf16 %v3319, %v3318
      %v3344 = vpack.c.bf16 %v3321, %v3320
      %v3345 = vpack.c.bf16 %v3323, %v3322
      %v3346 = vpack.c.bf16 %v3325, %v3324
      %v3347 = vpack.c.bf16 %v3327, %v3326
      %v3348 = vpack.c.bf16 %v3329, %v3328
      %v3349 = vpack.c.bf16 %v3331, %v3330
      %v3350 = vpack.c.bf16 %v3333, %v3332
      %v3351 = vpack.c.bf16 %v3335, %v3334
      %3354 = vrot.lane.b32.xlu0 %v1390, 96
      %v3355 = vpop.permute.xlu0 %3354
      %3356 = vrot.lane.b32.xlu0 %v1391, 96
      %v3357 = vpop.permute.xlu0 %3356
      %v3361 = vsel %vm398, %v3336, 0
      %v3364 = vsel %vm398, %v3337, 0
      %3366 = vmatprep.subr.bf16.mxu0 0
      %3367 = vmatpush1.bf16.msra.mxu0 0
      %3368 = vmatprep.subr.bf16.mxu0 0
      %3369 = vmatpush1.bf16.msra.mxu0 0
      %3370 = vmatprep.subr.bf16.mxu0 0
      %3371 = vmatpush1.bf16.msra.mxu0 0
      %3372 = vmatprep.subr.bf16.mxu0 0
      %3373 = vmatpush1.bf16.msra.mxu0 0
      %3374 = vmatprep.subr.bf16.mxu0 0
      %3375 = vmatpush1.bf16.msra.mxu0 0
      %3376 = vmatprep.subr.bf16.mxu0 0
      %3377 = vmatpush1.bf16.msra.mxu0 0
      %3378 = vmatprep.subr.bf16.mxu0 0
      %3379 = vmatpush1.bf16.msra.mxu0 %v3357
      %3380 = vmatprep.subr.bf16.mxu0 0
      %3381 = vmatpush1.bf16.msra.mxu0 %v3355
      %3382 = vmatprep.subr.bf16.mxu0 0
      %3383 = vmatpush2.bf16.msra.mxu0 0
      %3384 = vmatprep.subr.bf16.mxu0 0
      %3385 = vmatpush2.bf16.msra.mxu0 0
      %3386 = vmatprep.subr.bf16.mxu0 0
      %3387 = vmatpush2.bf16.msra.mxu0 0
      %3388 = vmatprep.subr.bf16.mxu0 0
      %3389 = vmatpush2.bf16.msra.mxu0 0
      %3390 = vmatprep.subr.bf16.mxu0 0
      %3391 = vmatpush2.bf16.msra.mxu0 0
      %3392 = vmatprep.subr.bf16.mxu0 0
      %3393 = vmatpush2.bf16.msra.mxu0 0
      %3394 = vmatprep.subr.bf16.mxu0 0
      %3395 = vmatpush2.bf16.msra.mxu0 0
      %3396 = vmatprep.subr.bf16.mxu0 0
      %3397 = vmatpush2.bf16.msra.mxu0 0
      %3398 = vmatprep.mubr.bf16.mxu0 0
      %3399 = vmatmul.mubr.bf16.gmra.mxu0 %v3361
      %v3400 = vpop.f32.mrf.mxu0
      %v3401 = vadd.f32 0.0, %v3400
      %v3402 = vpop.f32.mrf.mxu0
      %v3403 = vpop.f32.mrf.mxu0
      %v3404 = vadd.f32 0.0, %v3403
      %v3405 = vpop.f32.mrf.mxu0
      %3406 = vmatprep.mubr.bf16.mxu0 0
      %3407 = vmatmul.mubr.bf16.gmra.mxu0 %v3364
      %v3408 = vpop.f32.mrf.mxu0
      %v3409 = vadd.f32 0.0, %v3408
      %v3410 = vpop.f32.mrf.mxu0
      %v3411 = vpop.f32.mrf.mxu0
      %v3412 = vadd.f32 0.0, %v3411
      %v3413 = vpop.f32.mrf.mxu0
      %3414 = vdwg.mxu0
      %3417 = vrot.lane.b32.xlu0 %v1392, 96
      %v3418 = vpop.permute.xlu0 %3417
      %3419 = vrot.lane.b32.xlu0 %v1393, 96
      %v3420 = vpop.permute.xlu0 %3419
      %v3424 = vsel %vm398, %v3338, 0
      %v3427 = vsel %vm398, %v3339, 0
      %3429 = vmatprep.subr.bf16.mxu0 0
      %3430 = vmatpush1.bf16.msra.mxu0 0
      %3431 = vmatprep.subr.bf16.mxu0 0
      %3432 = vmatpush1.bf16.msra.mxu0 0
      %3433 = vmatprep.subr.bf16.mxu0 0
      %3434 = vmatpush1.bf16.msra.mxu0 0
      %3435 = vmatprep.subr.bf16.mxu0 0
      %3436 = vmatpush1.bf16.msra.mxu0 0
      %3437 = vmatprep.subr.bf16.mxu0 0
      %3438 = vmatpush1.bf16.msra.mxu0 0
      %3439 = vmatprep.subr.bf16.mxu0 0
      %3440 = vmatpush1.bf16.msra.mxu0 0
      %3441 = vmatprep.subr.bf16.mxu0 0
      %3442 = vmatpush1.bf16.msra.mxu0 %v3420
      %3443 = vmatprep.subr.bf16.mxu0 0
      %3444 = vmatpush1.bf16.msra.mxu0 %v3418
      %3445 = vmatprep.subr.bf16.mxu0 0
      %3446 = vmatpush2.bf16.msra.mxu0 0
      %3447 = vmatprep.subr.bf16.mxu0 0
      %3448 = vmatpush2.bf16.msra.mxu0 0
      %3449 = vmatprep.subr.bf16.mxu0 0
      %3450 = vmatpush2.bf16.msra.mxu0 0
      %3451 = vmatprep.subr.bf16.mxu0 0
      %3452 = vmatpush2.bf16.msra.mxu0 0
      %3453 = vmatprep.subr.bf16.mxu0 0
      %3454 = vmatpush2.bf16.msra.mxu0 0
      %3455 = vmatprep.subr.bf16.mxu0 0
      %3456 = vmatpush2.bf16.msra.mxu0 0
      %3457 = vmatprep.subr.bf16.mxu0 0
      %3458 = vmatpush2.bf16.msra.mxu0 0
      %3459 = vmatprep.subr.bf16.mxu0 0
      %3460 = vmatpush2.bf16.msra.mxu0 0
      %3461 = vmatprep.mubr.bf16.mxu0 0
      %3462 = vmatmul.mubr.bf16.gmra.mxu0 %v3424
      %v3463 = vpop.f32.mrf.mxu0
      %v3464 = vadd.f32 0.0, %v3463
      %v3465 = vpop.f32.mrf.mxu0
      %v3466 = vpop.f32.mrf.mxu0
      %v3467 = vadd.f32 0.0, %v3466
      %v3468 = vpop.f32.mrf.mxu0
      %3469 = vmatprep.mubr.bf16.mxu0 0
      %3470 = vmatmul.mubr.bf16.gmra.mxu0 %v3427
      %v3471 = vpop.f32.mrf.mxu0
      %v3472 = vadd.f32 0.0, %v3471
      %v3473 = vpop.f32.mrf.mxu0
      %v3474 = vpop.f32.mrf.mxu0
      %v3475 = vadd.f32 0.0, %v3474
      %v3476 = vpop.f32.mrf.mxu0
      %3477 = vdwg.mxu0
      %3480 = vrot.lane.b32.xlu0 %v1394, 96
      %v3481 = vpop.permute.xlu0 %3480
      %3482 = vrot.lane.b32.xlu0 %v1395, 96
      %v3483 = vpop.permute.xlu0 %3482
      %v3487 = vsel %vm398, %v3340, 0
      %v3490 = vsel %vm398, %v3341, 0
      %3492 = vmatprep.subr.bf16.mxu0 0
      %3493 = vmatpush1.bf16.msra.mxu0 0
      %3494 = vmatprep.subr.bf16.mxu0 0
      %3495 = vmatpush1.bf16.msra.mxu0 0
      %3496 = vmatprep.subr.bf16.mxu0 0
      %3497 = vmatpush1.bf16.msra.mxu0 0
      %3498 = vmatprep.subr.bf16.mxu0 0
      %3499 = vmatpush1.bf16.msra.mxu0 0
      %3500 = vmatprep.subr.bf16.mxu0 0
      %3501 = vmatpush1.bf16.msra.mxu0 0
      %3502 = vmatprep.subr.bf16.mxu0 0
      %3503 = vmatpush1.bf16.msra.mxu0 0
      %3504 = vmatprep.subr.bf16.mxu0 0
      %3505 = vmatpush1.bf16.msra.mxu0 %v3483
      %3506 = vmatprep.subr.bf16.mxu0 0
      %3507 = vmatpush1.bf16.msra.mxu0 %v3481
      %3508 = vmatprep.subr.bf16.mxu0 0
      %3509 = vmatpush2.bf16.msra.mxu0 0
      %3510 = vmatprep.subr.bf16.mxu0 0
      %3511 = vmatpush2.bf16.msra.mxu0 0
      %3512 = vmatprep.subr.bf16.mxu0 0
      %3513 = vmatpush2.bf16.msra.mxu0 0
      %3514 = vmatprep.subr.bf16.mxu0 0
      %3515 = vmatpush2.bf16.msra.mxu0 0
      %3516 = vmatprep.subr.bf16.mxu0 0
      %3517 = vmatpush2.bf16.msra.mxu0 0
      %3518 = vmatprep.subr.bf16.mxu0 0
      %3519 = vmatpush2.bf16.msra.mxu0 0
      %3520 = vmatprep.subr.bf16.mxu0 0
      %3521 = vmatpush2.bf16.msra.mxu0 0
      %3522 = vmatprep.subr.bf16.mxu0 0
      %3523 = vmatpush2.bf16.msra.mxu0 0
      %3524 = vmatprep.mubr.bf16.mxu0 0
      %3525 = vmatmul.mubr.bf16.gmra.mxu0 %v3487
      %v3526 = vpop.f32.mrf.mxu0
      %v3527 = vadd.f32 0.0, %v3526
      %v3528 = vpop.f32.mrf.mxu0
      %v3529 = vpop.f32.mrf.mxu0
      %v3530 = vadd.f32 0.0, %v3529
      %v3531 = vpop.f32.mrf.mxu0
      %3532 = vmatprep.mubr.bf16.mxu0 0
      %3533 = vmatmul.mubr.bf16.gmra.mxu0 %v3490
      %v3534 = vpop.f32.mrf.mxu0
      %v3535 = vadd.f32 0.0, %v3534
      %v3536 = vpop.f32.mrf.mxu0
      %v3537 = vpop.f32.mrf.mxu0
      %v3538 = vadd.f32 0.0, %v3537
      %v3539 = vpop.f32.mrf.mxu0
      %3540 = vdwg.mxu0
      %3543 = vrot.lane.b32.xlu0 %v1396, 96
      %v3544 = vpop.permute.xlu0 %3543
      %3545 = vrot.lane.b32.xlu0 %v1397, 96
      %v3546 = vpop.permute.xlu0 %3545
      %v3550 = vsel %vm398, %v3342, 0
      %v3553 = vsel %vm398, %v3343, 0
      %3555 = vmatprep.subr.bf16.mxu0 0
      %3556 = vmatpush1.bf16.msra.mxu0 0
      %3557 = vmatprep.subr.bf16.mxu0 0
      %3558 = vmatpush1.bf16.msra.mxu0 0
      %3559 = vmatprep.subr.bf16.mxu0 0
      %3560 = vmatpush1.bf16.msra.mxu0 0
      %3561 = vmatprep.subr.bf16.mxu0 0
      %3562 = vmatpush1.bf16.msra.mxu0 0
      %3563 = vmatprep.subr.bf16.mxu0 0
      %3564 = vmatpush1.bf16.msra.mxu0 0
      %3565 = vmatprep.subr.bf16.mxu0 0
      %3566 = vmatpush1.bf16.msra.mxu0 0
      %3567 = vmatprep.subr.bf16.mxu0 0
      %3568 = vmatpush1.bf16.msra.mxu0 %v3546
      %3569 = vmatprep.subr.bf16.mxu0 0
      %3570 = vmatpush1.bf16.msra.mxu0 %v3544
      %3571 = vmatprep.subr.bf16.mxu0 0
      %3572 = vmatpush2.bf16.msra.mxu0 0
      %3573 = vmatprep.subr.bf16.mxu0 0
      %3574 = vmatpush2.bf16.msra.mxu0 0
      %3575 = vmatprep.subr.bf16.mxu0 0
      %3576 = vmatpush2.bf16.msra.mxu0 0
      %3577 = vmatprep.subr.bf16.mxu0 0
      %3578 = vmatpush2.bf16.msra.mxu0 0
      %3579 = vmatprep.subr.bf16.mxu0 0
      %3580 = vmatpush2.bf16.msra.mxu0 0
      %3581 = vmatprep.subr.bf16.mxu0 0
      %3582 = vmatpush2.bf16.msra.mxu0 0
      %3583 = vmatprep.subr.bf16.mxu0 0
      %3584 = vmatpush2.bf16.msra.mxu0 0
      %3585 = vmatprep.subr.bf16.mxu0 0
      %3586 = vmatpush2.bf16.msra.mxu0 0
      %3587 = vmatprep.mubr.bf16.mxu0 0
      %3588 = vmatmul.mubr.bf16.gmra.mxu0 %v3550
      %v3589 = vpop.f32.mrf.mxu0
      %v3590 = vadd.f32 0.0, %v3589
      %v3591 = vpop.f32.mrf.mxu0
      %v3592 = vpop.f32.mrf.mxu0
      %v3593 = vadd.f32 0.0, %v3592
      %v3594 = vpop.f32.mrf.mxu0
      %3595 = vmatprep.mubr.bf16.mxu0 0
      %3596 = vmatmul.mubr.bf16.gmra.mxu0 %v3553
      %v3597 = vpop.f32.mrf.mxu0
      %v3598 = vadd.f32 0.0, %v3597
      %v3599 = vpop.f32.mrf.mxu0
      %v3600 = vpop.f32.mrf.mxu0
      %v3601 = vadd.f32 0.0, %v3600
      %v3602 = vpop.f32.mrf.mxu0
      %3603 = vdwg.mxu0
      %3606 = vrot.lane.b32.xlu0 %v1398, 96
      %v3607 = vpop.permute.xlu0 %3606
      %3608 = vrot.lane.b32.xlu0 %v1399, 96
      %v3609 = vpop.permute.xlu0 %3608
      %v3613 = vsel %vm398, %v3344, 0
      %v3616 = vsel %vm398, %v3345, 0
      %3618 = vmatprep.subr.bf16.mxu0 0
      %3619 = vmatpush1.bf16.msra.mxu0 0
      %3620 = vmatprep.subr.bf16.mxu0 0
      %3621 = vmatpush1.bf16.msra.mxu0 0
      %3622 = vmatprep.subr.bf16.mxu0 0
      %3623 = vmatpush1.bf16.msra.mxu0 0
      %3624 = vmatprep.subr.bf16.mxu0 0
      %3625 = vmatpush1.bf16.msra.mxu0 0
      %3626 = vmatprep.subr.bf16.mxu0 0
      %3627 = vmatpush1.bf16.msra.mxu0 0
      %3628 = vmatprep.subr.bf16.mxu0 0
      %3629 = vmatpush1.bf16.msra.mxu0 0
      %3630 = vmatprep.subr.bf16.mxu0 0
      %3631 = vmatpush1.bf16.msra.mxu0 %v3609
      %3632 = vmatprep.subr.bf16.mxu0 0
      %3633 = vmatpush1.bf16.msra.mxu0 %v3607
      %3634 = vmatprep.subr.bf16.mxu0 0
      %3635 = vmatpush2.bf16.msra.mxu0 0
      %3636 = vmatprep.subr.bf16.mxu0 0
      %3637 = vmatpush2.bf16.msra.mxu0 0
      %3638 = vmatprep.subr.bf16.mxu0 0
      %3639 = vmatpush2.bf16.msra.mxu0 0
      %3640 = vmatprep.subr.bf16.mxu0 0
      %3641 = vmatpush2.bf16.msra.mxu0 0
      %3642 = vmatprep.subr.bf16.mxu0 0
      %3643 = vmatpush2.bf16.msra.mxu0 0
      %3644 = vmatprep.subr.bf16.mxu0 0
      %3645 = vmatpush2.bf16.msra.mxu0 0
      %3646 = vmatprep.subr.bf16.mxu0 0
      %3647 = vmatpush2.bf16.msra.mxu0 0
      %3648 = vmatprep.subr.bf16.mxu0 0
      %3649 = vmatpush2.bf16.msra.mxu0 0
      %3650 = vmatprep.mubr.bf16.mxu0 0
      %3651 = vmatmul.mubr.bf16.gmra.mxu0 %v3613
      %v3652 = vpop.f32.mrf.mxu0
      %v3653 = vadd.f32 0.0, %v3652
      %v3654 = vpop.f32.mrf.mxu0
      %v3655 = vpop.f32.mrf.mxu0
      %v3656 = vadd.f32 0.0, %v3655
      %v3657 = vpop.f32.mrf.mxu0
      %3658 = vmatprep.mubr.bf16.mxu0 0
      %3659 = vmatmul.mubr.bf16.gmra.mxu0 %v3616
      %v3660 = vpop.f32.mrf.mxu0
      %v3661 = vadd.f32 0.0, %v3660
      %v3662 = vpop.f32.mrf.mxu0
      %v3663 = vpop.f32.mrf.mxu0
      %v3664 = vadd.f32 0.0, %v3663
      %v3665 = vpop.f32.mrf.mxu0
      %3666 = vdwg.mxu0
      %3669 = vrot.lane.b32.xlu0 %v1400, 96
      %v3670 = vpop.permute.xlu0 %3669
      %3671 = vrot.lane.b32.xlu0 %v1401, 96
      %v3672 = vpop.permute.xlu0 %3671
      %v3676 = vsel %vm398, %v3346, 0
      %v3679 = vsel %vm398, %v3347, 0
      %3681 = vmatprep.subr.bf16.mxu0 0
      %3682 = vmatpush1.bf16.msra.mxu0 0
      %3683 = vmatprep.subr.bf16.mxu0 0
      %3684 = vmatpush1.bf16.msra.mxu0 0
      %3685 = vmatprep.subr.bf16.mxu0 0
      %3686 = vmatpush1.bf16.msra.mxu0 0
      %3687 = vmatprep.subr.bf16.mxu0 0
      %3688 = vmatpush1.bf16.msra.mxu0 0
      %3689 = vmatprep.subr.bf16.mxu0 0
      %3690 = vmatpush1.bf16.msra.mxu0 0
      %3691 = vmatprep.subr.bf16.mxu0 0
      %3692 = vmatpush1.bf16.msra.mxu0 0
      %3693 = vmatprep.subr.bf16.mxu0 0
      %3694 = vmatpush1.bf16.msra.mxu0 %v3672
      %3695 = vmatprep.subr.bf16.mxu0 0
      %3696 = vmatpush1.bf16.msra.mxu0 %v3670
      %3697 = vmatprep.subr.bf16.mxu0 0
      %3698 = vmatpush2.bf16.msra.mxu0 0
      %3699 = vmatprep.subr.bf16.mxu0 0
      %3700 = vmatpush2.bf16.msra.mxu0 0
      %3701 = vmatprep.subr.bf16.mxu0 0
      %3702 = vmatpush2.bf16.msra.mxu0 0
      %3703 = vmatprep.subr.bf16.mxu0 0
      %3704 = vmatpush2.bf16.msra.mxu0 0
      %3705 = vmatprep.subr.bf16.mxu0 0
      %3706 = vmatpush2.bf16.msra.mxu0 0
      %3707 = vmatprep.subr.bf16.mxu0 0
      %3708 = vmatpush2.bf16.msra.mxu0 0
      %3709 = vmatprep.subr.bf16.mxu0 0
      %3710 = vmatpush2.bf16.msra.mxu0 0
      %3711 = vmatprep.subr.bf16.mxu0 0
      %3712 = vmatpush2.bf16.msra.mxu0 0
      %3713 = vmatprep.mubr.bf16.mxu0 0
      %3714 = vmatmul.mubr.bf16.gmra.mxu0 %v3676
      %v3715 = vpop.f32.mrf.mxu0
      %v3716 = vadd.f32 0.0, %v3715
      %v3717 = vpop.f32.mrf.mxu0
      %v3718 = vpop.f32.mrf.mxu0
      %v3719 = vadd.f32 0.0, %v3718
      %v3720 = vpop.f32.mrf.mxu0
      %3721 = vmatprep.mubr.bf16.mxu0 0
      %3722 = vmatmul.mubr.bf16.gmra.mxu0 %v3679
      %v3723 = vpop.f32.mrf.mxu0
      %v3724 = vadd.f32 0.0, %v3723
      %v3725 = vpop.f32.mrf.mxu0
      %v3726 = vpop.f32.mrf.mxu0
      %v3727 = vadd.f32 0.0, %v3726
      %v3728 = vpop.f32.mrf.mxu0
      %3729 = vdwg.mxu0
      %3732 = vrot.lane.b32.xlu0 %v1402, 96
      %v3733 = vpop.permute.xlu0 %3732
      %3734 = vrot.lane.b32.xlu0 %v1403, 96
      %v3735 = vpop.permute.xlu0 %3734
      %v3739 = vsel %vm398, %v3348, 0
      %v3742 = vsel %vm398, %v3349, 0
      %3744 = vmatprep.subr.bf16.mxu0 0
      %3745 = vmatpush1.bf16.msra.mxu0 0
      %3746 = vmatprep.subr.bf16.mxu0 0
      %3747 = vmatpush1.bf16.msra.mxu0 0
      %3748 = vmatprep.subr.bf16.mxu0 0
      %3749 = vmatpush1.bf16.msra.mxu0 0
      %3750 = vmatprep.subr.bf16.mxu0 0
      %3751 = vmatpush1.bf16.msra.mxu0 0
      %3752 = vmatprep.subr.bf16.mxu0 0
      %3753 = vmatpush1.bf16.msra.mxu0 0
      %3754 = vmatprep.subr.bf16.mxu0 0
      %3755 = vmatpush1.bf16.msra.mxu0 0
      %3756 = vmatprep.subr.bf16.mxu0 0
      %3757 = vmatpush1.bf16.msra.mxu0 %v3735
      %3758 = vmatprep.subr.bf16.mxu0 0
      %3759 = vmatpush1.bf16.msra.mxu0 %v3733
      %3760 = vmatprep.subr.bf16.mxu0 0
      %3761 = vmatpush2.bf16.msra.mxu0 0
      %3762 = vmatprep.subr.bf16.mxu0 0
      %3763 = vmatpush2.bf16.msra.mxu0 0
      %3764 = vmatprep.subr.bf16.mxu0 0
      %3765 = vmatpush2.bf16.msra.mxu0 0
      %3766 = vmatprep.subr.bf16.mxu0 0
      %3767 = vmatpush2.bf16.msra.mxu0 0
      %3768 = vmatprep.subr.bf16.mxu0 0
      %3769 = vmatpush2.bf16.msra.mxu0 0
      %3770 = vmatprep.subr.bf16.mxu0 0
      %3771 = vmatpush2.bf16.msra.mxu0 0
      %3772 = vmatprep.subr.bf16.mxu0 0
      %3773 = vmatpush2.bf16.msra.mxu0 0
      %3774 = vmatprep.subr.bf16.mxu0 0
      %3775 = vmatpush2.bf16.msra.mxu0 0
      %3776 = vmatprep.mubr.bf16.mxu0 0
      %3777 = vmatmul.mubr.bf16.gmra.mxu0 %v3739
      %v3778 = vpop.f32.mrf.mxu0
      %v3779 = vadd.f32 0.0, %v3778
      %v3780 = vpop.f32.mrf.mxu0
      %v3781 = vpop.f32.mrf.mxu0
      %v3782 = vadd.f32 0.0, %v3781
      %v3783 = vpop.f32.mrf.mxu0
      %3784 = vmatprep.mubr.bf16.mxu0 0
      %3785 = vmatmul.mubr.bf16.gmra.mxu0 %v3742
      %v3786 = vpop.f32.mrf.mxu0
      %v3787 = vadd.f32 0.0, %v3786
      %v3788 = vpop.f32.mrf.mxu0
      %v3789 = vpop.f32.mrf.mxu0
      %v3790 = vadd.f32 0.0, %v3789
      %v3791 = vpop.f32.mrf.mxu0
      %3792 = vdwg.mxu0
      %3795 = vrot.lane.b32.xlu0 %v1404, 96
      %v3796 = vpop.permute.xlu0 %3795
      %3797 = vrot.lane.b32.xlu0 %v1405, 96
      %v3798 = vpop.permute.xlu0 %3797
      %v3802 = vsel %vm398, %v3350, 0
      %v3805 = vsel %vm398, %v3351, 0
      %3807 = vmatprep.subr.bf16.mxu0 0
      %3808 = vmatpush1.bf16.msra.mxu0 0
      %3809 = vmatprep.subr.bf16.mxu0 0
      %3810 = vmatpush1.bf16.msra.mxu0 0
      %3811 = vmatprep.subr.bf16.mxu0 0
      %3812 = vmatpush1.bf16.msra.mxu0 0
      %3813 = vmatprep.subr.bf16.mxu0 0
      %3814 = vmatpush1.bf16.msra.mxu0 0
      %3815 = vmatprep.subr.bf16.mxu0 0
      %3816 = vmatpush1.bf16.msra.mxu0 0
      %3817 = vmatprep.subr.bf16.mxu0 0
      %3818 = vmatpush1.bf16.msra.mxu0 0
      %3819 = vmatprep.subr.bf16.mxu0 0
      %3820 = vmatpush1.bf16.msra.mxu0 %v3798
      %3821 = vmatprep.subr.bf16.mxu0 0
      %3822 = vmatpush1.bf16.msra.mxu0 %v3796
      %3823 = vmatprep.subr.bf16.mxu0 0
      %3824 = vmatpush2.bf16.msra.mxu0 0
      %3825 = vmatprep.subr.bf16.mxu0 0
      %3826 = vmatpush2.bf16.msra.mxu0 0
      %3827 = vmatprep.subr.bf16.mxu0 0
      %3828 = vmatpush2.bf16.msra.mxu0 0
      %3829 = vmatprep.subr.bf16.mxu0 0
      %3830 = vmatpush2.bf16.msra.mxu0 0
      %3831 = vmatprep.subr.bf16.mxu0 0
      %3832 = vmatpush2.bf16.msra.mxu0 0
      %3833 = vmatprep.subr.bf16.mxu0 0
      %3834 = vmatpush2.bf16.msra.mxu0 0
      %3835 = vmatprep.subr.bf16.mxu0 0
      %3836 = vmatpush2.bf16.msra.mxu0 0
      %3837 = vmatprep.subr.bf16.mxu0 0
      %3838 = vmatpush2.bf16.msra.mxu0 0
      %3839 = vmatprep.mubr.bf16.mxu0 0
      %3840 = vmatmul.mubr.bf16.gmra.mxu0 %v3802
      %v3841 = vpop.f32.mrf.mxu0
      %v3842 = vadd.f32 0.0, %v3841
      %v3843 = vpop.f32.mrf.mxu0
      %v3844 = vpop.f32.mrf.mxu0
      %v3845 = vadd.f32 0.0, %v3844
      %v3846 = vpop.f32.mrf.mxu0
      %3847 = vmatprep.mubr.bf16.mxu0 0
      %3848 = vmatmul.mubr.bf16.gmra.mxu0 %v3805
      %v3849 = vpop.f32.mrf.mxu0
      %v3850 = vadd.f32 0.0, %v3849
      %v3851 = vpop.f32.mrf.mxu0
      %v3852 = vpop.f32.mrf.mxu0
      %v3853 = vadd.f32 0.0, %v3852
      %v3854 = vpop.f32.mrf.mxu0
      %3855 = vdwg.mxu0
      %v3857 = vsel %vm398, %v2363, 0
      %v3860 = vsel %vm398, %v2364, 0
      %3862 = vmatprep.subr.bf16.mxu0 0
      %3863 = vmatpush1.bf16.msra.mxu0 0
      %3864 = vmatprep.subr.bf16.mxu0 0
      %3865 = vmatpush1.bf16.msra.mxu0 0
      %3866 = vmatprep.subr.bf16.mxu0 0
      %3867 = vmatpush1.bf16.msra.mxu0 0
      %3868 = vmatprep.subr.bf16.mxu0 0
      %3869 = vmatpush1.bf16.msra.mxu0 0
      %3870 = vmatprep.subr.bf16.mxu0 0
      %3871 = vmatpush1.bf16.msra.mxu0 0
      %3872 = vmatprep.subr.bf16.mxu0 0
      %3873 = vmatpush1.bf16.msra.mxu0 0
      %3874 = vmatprep.subr.bf16.mxu0 0
      %3875 = vmatpush1.bf16.msra.mxu0 %v1391
      %3876 = vmatprep.subr.bf16.mxu0 0
      %3877 = vmatpush1.bf16.msra.mxu0 %v1390
      %3878 = vmatprep.subr.bf16.mxu0 0
      %3879 = vmatpush2.bf16.msra.mxu0 0
      %3880 = vmatprep.subr.bf16.mxu0 0
      %3881 = vmatpush2.bf16.msra.mxu0 0
      %3882 = vmatprep.subr.bf16.mxu0 0
      %3883 = vmatpush2.bf16.msra.mxu0 0
      %3884 = vmatprep.subr.bf16.mxu0 0
      %3885 = vmatpush2.bf16.msra.mxu0 0
      %3886 = vmatprep.subr.bf16.mxu0 0
      %3887 = vmatpush2.bf16.msra.mxu0 0
      %3888 = vmatprep.subr.bf16.mxu0 0
      %3889 = vmatpush2.bf16.msra.mxu0 0
      %3890 = vmatprep.subr.bf16.mxu0 0
      %3891 = vmatpush2.bf16.msra.mxu0 0
      %3892 = vmatprep.subr.bf16.mxu0 0
      %3893 = vmatpush2.bf16.msra.mxu0 0
      %3894 = vmatprep.mubr.bf16.mxu0 0
      %3895 = vmatmul.mubr.bf16.gmra.mxu0 %v3857
      %v3896 = vpop.f32.mrf.mxu0
      %v3897 = vadd.f32 %v3401, %v3896
      %v3898 = vpop.f32.mrf.mxu0
      %v3899 = vpop.f32.mrf.mxu0
      %v3900 = vadd.f32 %v3404, %v3899
      %v3901 = vpop.f32.mrf.mxu0
      %3902 = vmatprep.mubr.bf16.mxu0 0
      %3903 = vmatmul.mubr.bf16.gmra.mxu0 %v3860
      %v3904 = vpop.f32.mrf.mxu0
      %v3905 = vadd.f32 %v3409, %v3904
      %v3906 = vpop.f32.mrf.mxu0
      %v3907 = vpop.f32.mrf.mxu0
      %v3908 = vadd.f32 %v3412, %v3907
      %v3909 = vpop.f32.mrf.mxu0
      %3910 = vdwg.mxu0
      %v3912 = vsel %vm398, %v2365, 0
      %v3915 = vsel %vm398, %v2366, 0
      %3917 = vmatprep.subr.bf16.mxu0 0
      %3918 = vmatpush1.bf16.msra.mxu0 0
      %3919 = vmatprep.subr.bf16.mxu0 0
      %3920 = vmatpush1.bf16.msra.mxu0 0
      %3921 = vmatprep.subr.bf16.mxu0 0
      %3922 = vmatpush1.bf16.msra.mxu0 0
      %3923 = vmatprep.subr.bf16.mxu0 0
      %3924 = vmatpush1.bf16.msra.mxu0 0
      %3925 = vmatprep.subr.bf16.mxu0 0
      %3926 = vmatpush1.bf16.msra.mxu0 0
      %3927 = vmatprep.subr.bf16.mxu0 0
      %3928 = vmatpush1.bf16.msra.mxu0 0
      %3929 = vmatprep.subr.bf16.mxu0 0
      %3930 = vmatpush1.bf16.msra.mxu0 %v1393
      %3931 = vmatprep.subr.bf16.mxu0 0
      %3932 = vmatpush1.bf16.msra.mxu0 %v1392
      %3933 = vmatprep.subr.bf16.mxu0 0
      %3934 = vmatpush2.bf16.msra.mxu0 0
      %3935 = vmatprep.subr.bf16.mxu0 0
      %3936 = vmatpush2.bf16.msra.mxu0 0
      %3937 = vmatprep.subr.bf16.mxu0 0
      %3938 = vmatpush2.bf16.msra.mxu0 0
      %3939 = vmatprep.subr.bf16.mxu0 0
      %3940 = vmatpush2.bf16.msra.mxu0 0
      %3941 = vmatprep.subr.bf16.mxu0 0
      %3942 = vmatpush2.bf16.msra.mxu0 0
      %3943 = vmatprep.subr.bf16.mxu0 0
      %3944 = vmatpush2.bf16.msra.mxu0 0
      %3945 = vmatprep.subr.bf16.mxu0 0
      %3946 = vmatpush2.bf16.msra.mxu0 0
      %3947 = vmatprep.subr.bf16.mxu0 0
      %3948 = vmatpush2.bf16.msra.mxu0 0
      %3949 = vmatprep.mubr.bf16.mxu0 0
      %3950 = vmatmul.mubr.bf16.gmra.mxu0 %v3912
      %v3951 = vpop.f32.mrf.mxu0
      %v3952 = vadd.f32 %v3464, %v3951
      %v3953 = vpop.f32.mrf.mxu0
      %v3954 = vpop.f32.mrf.mxu0
      %v3955 = vadd.f32 %v3467, %v3954
      %v3956 = vpop.f32.mrf.mxu0
      %3957 = vmatprep.mubr.bf16.mxu0 0
      %3958 = vmatmul.mubr.bf16.gmra.mxu0 %v3915
      %v3959 = vpop.f32.mrf.mxu0
      %v3960 = vadd.f32 %v3472, %v3959
      %v3961 = vpop.f32.mrf.mxu0
      %v3962 = vpop.f32.mrf.mxu0
      %v3963 = vadd.f32 %v3475, %v3962
      %v3964 = vpop.f32.mrf.mxu0
      %3965 = vdwg.mxu0
      %v3967 = vsel %vm398, %v2367, 0
      %v3970 = vsel %vm398, %v2368, 0
      %3972 = vmatprep.subr.bf16.mxu0 0
      %3973 = vmatpush1.bf16.msra.mxu0 0
      %3974 = vmatprep.subr.bf16.mxu0 0
      %3975 = vmatpush1.bf16.msra.mxu0 0
      %3976 = vmatprep.subr.bf16.mxu0 0
      %3977 = vmatpush1.bf16.msra.mxu0 0
      %3978 = vmatprep.subr.bf16.mxu0 0
      %3979 = vmatpush1.bf16.msra.mxu0 0
      %3980 = vmatprep.subr.bf16.mxu0 0
      %3981 = vmatpush1.bf16.msra.mxu0 0
      %3982 = vmatprep.subr.bf16.mxu0 0
      %3983 = vmatpush1.bf16.msra.mxu0 0
      %3984 = vmatprep.subr.bf16.mxu0 0
      %3985 = vmatpush1.bf16.msra.mxu0 %v1395
      %3986 = vmatprep.subr.bf16.mxu0 0
      %3987 = vmatpush1.bf16.msra.mxu0 %v1394
      %3988 = vmatprep.subr.bf16.mxu0 0
      %3989 = vmatpush2.bf16.msra.mxu0 0
      %3990 = vmatprep.subr.bf16.mxu0 0
      %3991 = vmatpush2.bf16.msra.mxu0 0
      %3992 = vmatprep.subr.bf16.mxu0 0
      %3993 = vmatpush2.bf16.msra.mxu0 0
      %3994 = vmatprep.subr.bf16.mxu0 0
      %3995 = vmatpush2.bf16.msra.mxu0 0
      %3996 = vmatprep.subr.bf16.mxu0 0
      %3997 = vmatpush2.bf16.msra.mxu0 0
      %3998 = vmatprep.subr.bf16.mxu0 0
      %3999 = vmatpush2.bf16.msra.mxu0 0
      %4000 = vmatprep.subr.bf16.mxu0 0
      %4001 = vmatpush2.bf16.msra.mxu0 0
      %4002 = vmatprep.subr.bf16.mxu0 0
      %4003 = vmatpush2.bf16.msra.mxu0 0
      %4004 = vmatprep.mubr.bf16.mxu0 0
      %4005 = vmatmul.mubr.bf16.gmra.mxu0 %v3967
      %v4006 = vpop.f32.mrf.mxu0
      %v4007 = vadd.f32 %v3527, %v4006
      %v4008 = vpop.f32.mrf.mxu0
      %v4009 = vpop.f32.mrf.mxu0
      %v4010 = vadd.f32 %v3530, %v4009
      %v4011 = vpop.f32.mrf.mxu0
      %4012 = vmatprep.mubr.bf16.mxu0 0
      %4013 = vmatmul.mubr.bf16.gmra.mxu0 %v3970
      %v4014 = vpop.f32.mrf.mxu0
      %v4015 = vadd.f32 %v3535, %v4014
      %v4016 = vpop.f32.mrf.mxu0
      %v4017 = vpop.f32.mrf.mxu0
      %v4018 = vadd.f32 %v3538, %v4017
      %v4019 = vpop.f32.mrf.mxu0
      %4020 = vdwg.mxu0
      %v4022 = vsel %vm398, %v2369, 0
      %v4025 = vsel %vm398, %v2370, 0
      %4027 = vmatprep.subr.bf16.mxu0 0
      %4028 = vmatpush1.bf16.msra.mxu0 0
      %4029 = vmatprep.subr.bf16.mxu0 0
      %4030 = vmatpush1.bf16.msra.mxu0 0
      %4031 = vmatprep.subr.bf16.mxu0 0
      %4032 = vmatpush1.bf16.msra.mxu0 0
      %4033 = vmatprep.subr.bf16.mxu0 0
      %4034 = vmatpush1.bf16.msra.mxu0 0
      %4035 = vmatprep.subr.bf16.mxu0 0
      %4036 = vmatpush1.bf16.msra.mxu0 0
      %4037 = vmatprep.subr.bf16.mxu0 0
      %4038 = vmatpush1.bf16.msra.mxu0 0
      %4039 = vmatprep.subr.bf16.mxu0 0
      %4040 = vmatpush1.bf16.msra.mxu0 %v1397
      %4041 = vmatprep.subr.bf16.mxu0 0
      %4042 = vmatpush1.bf16.msra.mxu0 %v1396
      %4043 = vmatprep.subr.bf16.mxu0 0
      %4044 = vmatpush2.bf16.msra.mxu0 0
      %4045 = vmatprep.subr.bf16.mxu0 0
      %4046 = vmatpush2.bf16.msra.mxu0 0
      %4047 = vmatprep.subr.bf16.mxu0 0
      %4048 = vmatpush2.bf16.msra.mxu0 0
      %4049 = vmatprep.subr.bf16.mxu0 0
      %4050 = vmatpush2.bf16.msra.mxu0 0
      %4051 = vmatprep.subr.bf16.mxu0 0
      %4052 = vmatpush2.bf16.msra.mxu0 0
      %4053 = vmatprep.subr.bf16.mxu0 0
      %4054 = vmatpush2.bf16.msra.mxu0 0
      %4055 = vmatprep.subr.bf16.mxu0 0
      %4056 = vmatpush2.bf16.msra.mxu0 0
      %4057 = vmatprep.subr.bf16.mxu0 0
      %4058 = vmatpush2.bf16.msra.mxu0 0
      %4059 = vmatprep.mubr.bf16.mxu0 0
      %4060 = vmatmul.mubr.bf16.gmra.mxu0 %v4022
      %v4061 = vpop.f32.mrf.mxu0
      %v4062 = vadd.f32 %v3590, %v4061
      %v4063 = vpop.f32.mrf.mxu0
      %v4064 = vpop.f32.mrf.mxu0
      %v4065 = vadd.f32 %v3593, %v4064
      %v4066 = vpop.f32.mrf.mxu0
      %4067 = vmatprep.mubr.bf16.mxu0 0
      %4068 = vmatmul.mubr.bf16.gmra.mxu0 %v4025
      %v4069 = vpop.f32.mrf.mxu0
      %v4070 = vadd.f32 %v3598, %v4069
      %v4071 = vpop.f32.mrf.mxu0
      %v4072 = vpop.f32.mrf.mxu0
      %v4073 = vadd.f32 %v3601, %v4072
      %v4074 = vpop.f32.mrf.mxu0
      %4075 = vdwg.mxu0
      %v4077 = vsel %vm398, %v2371, 0
      %v4080 = vsel %vm398, %v2372, 0
      %4082 = vmatprep.subr.bf16.mxu0 0
      %4083 = vmatpush1.bf16.msra.mxu0 0
      %4084 = vmatprep.subr.bf16.mxu0 0
      %4085 = vmatpush1.bf16.msra.mxu0 0
      %4086 = vmatprep.subr.bf16.mxu0 0
      %4087 = vmatpush1.bf16.msra.mxu0 0
      %4088 = vmatprep.subr.bf16.mxu0 0
      %4089 = vmatpush1.bf16.msra.mxu0 0
      %4090 = vmatprep.subr.bf16.mxu0 0
      %4091 = vmatpush1.bf16.msra.mxu0 0
      %4092 = vmatprep.subr.bf16.mxu0 0
      %4093 = vmatpush1.bf16.msra.mxu0 0
      %4094 = vmatprep.subr.bf16.mxu0 0
      %4095 = vmatpush1.bf16.msra.mxu0 %v1399
      %4096 = vmatprep.subr.bf16.mxu0 0
      %4097 = vmatpush1.bf16.msra.mxu0 %v1398
      %4098 = vmatprep.subr.bf16.mxu0 0
      %4099 = vmatpush2.bf16.msra.mxu0 0
      %4100 = vmatprep.subr.bf16.mxu0 0
      %4101 = vmatpush2.bf16.msra.mxu0 0
      %4102 = vmatprep.subr.bf16.mxu0 0
      %4103 = vmatpush2.bf16.msra.mxu0 0
      %4104 = vmatprep.subr.bf16.mxu0 0
      %4105 = vmatpush2.bf16.msra.mxu0 0
      %4106 = vmatprep.subr.bf16.mxu0 0
      %4107 = vmatpush2.bf16.msra.mxu0 0
      %4108 = vmatprep.subr.bf16.mxu0 0
      %4109 = vmatpush2.bf16.msra.mxu0 0
      %4110 = vmatprep.subr.bf16.mxu0 0
      %4111 = vmatpush2.bf16.msra.mxu0 0
      %4112 = vmatprep.subr.bf16.mxu0 0
      %4113 = vmatpush2.bf16.msra.mxu0 0
      %4114 = vmatprep.mubr.bf16.mxu0 0
      %4115 = vmatmul.mubr.bf16.gmra.mxu0 %v4077
      %v4116 = vpop.f32.mrf.mxu0
      %v4117 = vadd.f32 %v3653, %v4116
      %v4118 = vpop.f32.mrf.mxu0
      %v4119 = vpop.f32.mrf.mxu0
      %v4120 = vadd.f32 %v3656, %v4119
      %v4121 = vpop.f32.mrf.mxu0
      %4122 = vmatprep.mubr.bf16.mxu0 0
      %4123 = vmatmul.mubr.bf16.gmra.mxu0 %v4080
      %v4124 = vpop.f32.mrf.mxu0
      %v4125 = vadd.f32 %v3661, %v4124
      %v4126 = vpop.f32.mrf.mxu0
      %v4127 = vpop.f32.mrf.mxu0
      %v4128 = vadd.f32 %v3664, %v4127
      %v4129 = vpop.f32.mrf.mxu0
      %4130 = vdwg.mxu0
      %v4132 = vsel %vm398, %v2373, 0
      %v4135 = vsel %vm398, %v2374, 0
      %4137 = vmatprep.subr.bf16.mxu0 0
      %4138 = vmatpush1.bf16.msra.mxu0 0
      %4139 = vmatprep.subr.bf16.mxu0 0
      %4140 = vmatpush1.bf16.msra.mxu0 0
      %4141 = vmatprep.subr.bf16.mxu0 0
      %4142 = vmatpush1.bf16.msra.mxu0 0
      %4143 = vmatprep.subr.bf16.mxu0 0
      %4144 = vmatpush1.bf16.msra.mxu0 0
      %4145 = vmatprep.subr.bf16.mxu0 0
      %4146 = vmatpush1.bf16.msra.mxu0 0
      %4147 = vmatprep.subr.bf16.mxu0 0
      %4148 = vmatpush1.bf16.msra.mxu0 0
      %4149 = vmatprep.subr.bf16.mxu0 0
      %4150 = vmatpush1.bf16.msra.mxu0 %v1401
      %4151 = vmatprep.subr.bf16.mxu0 0
      %4152 = vmatpush1.bf16.msra.mxu0 %v1400
      %4153 = vmatprep.subr.bf16.mxu0 0
      %4154 = vmatpush2.bf16.msra.mxu0 0
      %4155 = vmatprep.subr.bf16.mxu0 0
      %4156 = vmatpush2.bf16.msra.mxu0 0
      %4157 = vmatprep.subr.bf16.mxu0 0
      %4158 = vmatpush2.bf16.msra.mxu0 0
      %4159 = vmatprep.subr.bf16.mxu0 0
      %4160 = vmatpush2.bf16.msra.mxu0 0
      %4161 = vmatprep.subr.bf16.mxu0 0
      %4162 = vmatpush2.bf16.msra.mxu0 0
      %4163 = vmatprep.subr.bf16.mxu0 0
      %4164 = vmatpush2.bf16.msra.mxu0 0
      %4165 = vmatprep.subr.bf16.mxu0 0
      %4166 = vmatpush2.bf16.msra.mxu0 0
      %4167 = vmatprep.subr.bf16.mxu0 0
      %4168 = vmatpush2.bf16.msra.mxu0 0
      %4169 = vmatprep.mubr.bf16.mxu0 0
      %4170 = vmatmul.mubr.bf16.gmra.mxu0 %v4132
      %v4171 = vpop.f32.mrf.mxu0
      %v4172 = vadd.f32 %v3716, %v4171
      %v4173 = vpop.f32.mrf.mxu0
      %v4174 = vpop.f32.mrf.mxu0
      %v4175 = vadd.f32 %v3719, %v4174
      %v4176 = vpop.f32.mrf.mxu0
      %4177 = vmatprep.mubr.bf16.mxu0 0
      %4178 = vmatmul.mubr.bf16.gmra.mxu0 %v4135
      %v4179 = vpop.f32.mrf.mxu0
      %v4180 = vadd.f32 %v3724, %v4179
      %v4181 = vpop.f32.mrf.mxu0
      %v4182 = vpop.f32.mrf.mxu0
      %v4183 = vadd.f32 %v3727, %v4182
      %v4184 = vpop.f32.mrf.mxu0
      %4185 = vdwg.mxu0
      %v4187 = vsel %vm398, %v2375, 0
      %v4190 = vsel %vm398, %v2376, 0
      %4192 = vmatprep.subr.bf16.mxu0 0
      %4193 = vmatpush1.bf16.msra.mxu0 0
      %4194 = vmatprep.subr.bf16.mxu0 0
      %4195 = vmatpush1.bf16.msra.mxu0 0
      %4196 = vmatprep.subr.bf16.mxu0 0
      %4197 = vmatpush1.bf16.msra.mxu0 0
      %4198 = vmatprep.subr.bf16.mxu0 0
      %4199 = vmatpush1.bf16.msra.mxu0 0
      %4200 = vmatprep.subr.bf16.mxu0 0
      %4201 = vmatpush1.bf16.msra.mxu0 0
      %4202 = vmatprep.subr.bf16.mxu0 0
      %4203 = vmatpush1.bf16.msra.mxu0 0
      %4204 = vmatprep.subr.bf16.mxu0 0
      %4205 = vmatpush1.bf16.msra.mxu0 %v1403
      %4206 = vmatprep.subr.bf16.mxu0 0
      %4207 = vmatpush1.bf16.msra.mxu0 %v1402
      %4208 = vmatprep.subr.bf16.mxu0 0
      %4209 = vmatpush2.bf16.msra.mxu0 0
      %4210 = vmatprep.subr.bf16.mxu0 0
      %4211 = vmatpush2.bf16.msra.mxu0 0
      %4212 = vmatprep.subr.bf16.mxu0 0
      %4213 = vmatpush2.bf16.msra.mxu0 0
      %4214 = vmatprep.subr.bf16.mxu0 0
      %4215 = vmatpush2.bf16.msra.mxu0 0
      %4216 = vmatprep.subr.bf16.mxu0 0
      %4217 = vmatpush2.bf16.msra.mxu0 0
      %4218 = vmatprep.subr.bf16.mxu0 0
      %4219 = vmatpush2.bf16.msra.mxu0 0
      %4220 = vmatprep.subr.bf16.mxu0 0
      %4221 = vmatpush2.bf16.msra.mxu0 0
      %4222 = vmatprep.subr.bf16.mxu0 0
      %4223 = vmatpush2.bf16.msra.mxu0 0
      %4224 = vmatprep.mubr.bf16.mxu0 0
      %4225 = vmatmul.mubr.bf16.gmra.mxu0 %v4187
      %v4226 = vpop.f32.mrf.mxu0
      %v4227 = vadd.f32 %v3779, %v4226
      %v4228 = vpop.f32.mrf.mxu0
      %v4229 = vpop.f32.mrf.mxu0
      %v4230 = vadd.f32 %v3782, %v4229
      %v4231 = vpop.f32.mrf.mxu0
      %4232 = vmatprep.mubr.bf16.mxu0 0
      %4233 = vmatmul.mubr.bf16.gmra.mxu0 %v4190
      %v4234 = vpop.f32.mrf.mxu0
      %v4235 = vadd.f32 %v3787, %v4234
      %v4236 = vpop.f32.mrf.mxu0
      %v4237 = vpop.f32.mrf.mxu0
      %v4238 = vadd.f32 %v3790, %v4237
      %v4239 = vpop.f32.mrf.mxu0
      %4240 = vdwg.mxu0
      %v4242 = vsel %vm398, %v2377, 0
      %v4245 = vsel %vm398, %v2378, 0
      %4247 = vmatprep.subr.bf16.mxu0 0
      %4248 = vmatpush1.bf16.msra.mxu0 0
      %4249 = vmatprep.subr.bf16.mxu0 0
      %4250 = vmatpush1.bf16.msra.mxu0 0
      %4251 = vmatprep.subr.bf16.mxu0 0
      %4252 = vmatpush1.bf16.msra.mxu0 0
      %4253 = vmatprep.subr.bf16.mxu0 0
      %4254 = vmatpush1.bf16.msra.mxu0 0
      %4255 = vmatprep.subr.bf16.mxu0 0
      %4256 = vmatpush1.bf16.msra.mxu0 0
      %4257 = vmatprep.subr.bf16.mxu0 0
      %4258 = vmatpush1.bf16.msra.mxu0 0
      %4259 = vmatprep.subr.bf16.mxu0 0
      %4260 = vmatpush1.bf16.msra.mxu0 %v1405
      %4261 = vmatprep.subr.bf16.mxu0 0
      %4262 = vmatpush1.bf16.msra.mxu0 %v1404
      %4263 = vmatprep.subr.bf16.mxu0 0
      %4264 = vmatpush2.bf16.msra.mxu0 0
      %4265 = vmatprep.subr.bf16.mxu0 0
      %4266 = vmatpush2.bf16.msra.mxu0 0
      %4267 = vmatprep.subr.bf16.mxu0 0
      %4268 = vmatpush2.bf16.msra.mxu0 0
      %4269 = vmatprep.subr.bf16.mxu0 0
      %4270 = vmatpush2.bf16.msra.mxu0 0
      %4271 = vmatprep.subr.bf16.mxu0 0
      %4272 = vmatpush2.bf16.msra.mxu0 0
      %4273 = vmatprep.subr.bf16.mxu0 0
      %4274 = vmatpush2.bf16.msra.mxu0 0
      %4275 = vmatprep.subr.bf16.mxu0 0
      %4276 = vmatpush2.bf16.msra.mxu0 0
      %4277 = vmatprep.subr.bf16.mxu0 0
      %4278 = vmatpush2.bf16.msra.mxu0 0
      %4279 = vmatprep.mubr.bf16.mxu0 0
      %4280 = vmatmul.mubr.bf16.gmra.mxu0 %v4242
      %v4281 = vpop.f32.mrf.mxu0
      %v4282 = vadd.f32 %v3842, %v4281
      %v4283 = vpop.f32.mrf.mxu0
      %v4284 = vpop.f32.mrf.mxu0
      %v4285 = vadd.f32 %v3845, %v4284
      %v4286 = vpop.f32.mrf.mxu0
      %4287 = vmatprep.mubr.bf16.mxu0 0
      %4288 = vmatmul.mubr.bf16.gmra.mxu0 %v4245
      %v4289 = vpop.f32.mrf.mxu0
      %v4290 = vadd.f32 %v3850, %v4289
      %v4291 = vpop.f32.mrf.mxu0
      %v4292 = vpop.f32.mrf.mxu0
      %v4293 = vadd.f32 %v3853, %v4292
      %v4294 = vpop.f32.mrf.mxu0
      %4295 = vdwg.mxu0
      %s4296 = scalar_lea.vmem %s1, 64
      %v4297 = vld [vmem:[%s4296] sm:$0xff]
      %v4298 = vld [vmem:[%s4296 + $0x8] sm:$0xff]
      %v4299 = vld [vmem:[%s4296 + $0x10] sm:$0xff]
      %v4300 = vld [vmem:[%s4296 + $0x18] sm:$0xff]
      %4301 = vrot.lane.b32.xlu0 %v1358, 112
      %v4302 = vpop.permute.xlu0 %4301
      %4303 = vrot.lane.b32.xlu0 %v1359, 112
      %v4304 = vpop.permute.xlu0 %4303
      %4305 = vrot.lane.b32.xlu0 %v1374, 80
      %v4306 = vpop.permute.xlu0 %4305
      %4307 = vrot.lane.b32.xlu0 %v1375, 80
      %v4308 = vpop.permute.xlu0 %4307
      %v4310 = vsel %vm1416, %v4302, 0
      %v4313 = vsel %vm1416, %v4304, 0
      %v4316 = vsel %vm1416, %v4306, 0
      %v4319 = vsel %vm1416, %v4308, 0
      %4321 = vmatprep.subr.bf16.mxu0 0
      %4322 = vmatpush1.bf16.xpose.msra.mxu0 0
      %4323 = vmatprep.subr.bf16.mxu0 0
      %4324 = vmatpush1.bf16.xpose.msra.mxu0 0
      %4325 = vmatprep.subr.bf16.mxu0 0
      %4326 = vmatpush1.bf16.xpose.msra.mxu0 0
      %4327 = vmatprep.subr.bf16.mxu0 0
      %4328 = vmatpush1.bf16.xpose.msra.mxu0 0
      %4329 = vmatprep.subr.bf16.mxu0 0
      %4330 = vmatpush1.bf16.xpose.msra.mxu0 0
      %4331 = vmatprep.subr.bf16.mxu0 0
      %4332 = vmatpush1.bf16.xpose.msra.mxu0 0
      %4333 = vmatprep.subr.bf16.mxu0 0
      %4334 = vmatpush1.bf16.xpose.msra.mxu0 %v4319
      %4335 = vmatprep.subr.bf16.mxu0 0
      %4336 = vmatpush1.bf16.xpose.msra.mxu0 %v4316
      %4337 = vmatprep.subr.bf16.mxu0 0
      %4338 = vmatpush2.bf16.xpose.msra.mxu0 0
      %4339 = vmatprep.subr.bf16.mxu0 0
      %4340 = vmatpush2.bf16.xpose.msra.mxu0 0
      %4341 = vmatprep.subr.bf16.mxu0 0
      %4342 = vmatpush2.bf16.xpose.msra.mxu0 0
      %4343 = vmatprep.subr.bf16.mxu0 0
      %4344 = vmatpush2.bf16.xpose.msra.mxu0 0
      %4345 = vmatprep.subr.bf16.mxu0 0
      %4346 = vmatpush2.bf16.xpose.msra.mxu0 0
      %4347 = vmatprep.subr.bf16.mxu0 0
      %4348 = vmatpush2.bf16.xpose.msra.mxu0 0
      %4349 = vmatprep.subr.bf16.mxu0 0
      %4350 = vmatpush2.bf16.xpose.msra.mxu0 0
      %4351 = vmatprep.subr.bf16.mxu0 0
      %4352 = vmatpush2.bf16.xpose.msra.mxu0 0
      %4353 = vmatprep.mubr.bf16.mxu0 0
      %4354 = vmatmul.mubr.bf16.gmra.mxu0 %v4310
      %v4355 = vpop.f32.mrf.mxu0
      %v4356 = vadd.f32 %v4297, %v4355
      %v4357 = vpop.f32.mrf.mxu0
      %v4358 = vpop.f32.mrf.mxu0
      %v4359 = vadd.f32 %v4298, %v4358
      %v4360 = vpop.f32.mrf.mxu0
      %4361 = vmatprep.mubr.bf16.mxu0 0
      %4362 = vmatmul.mubr.bf16.gmra.mxu0 %v4313
      %v4363 = vpop.f32.mrf.mxu0
      %v4364 = vadd.f32 %v4299, %v4363
      %v4365 = vpop.f32.mrf.mxu0
      %v4366 = vpop.f32.mrf.mxu0
      %v4367 = vadd.f32 %v4300, %v4366
      %v4368 = vpop.f32.mrf.mxu0
      %4369 = vdwg.mxu0
      %4370 = vrot.lane.b32.xlu0 %v1360, 112
      %v4371 = vpop.permute.xlu0 %4370
      %4372 = vrot.lane.b32.xlu0 %v1361, 112
      %v4373 = vpop.permute.xlu0 %4372
      %4374 = vrot.lane.b32.xlu0 %v1376, 80
      %v4375 = vpop.permute.xlu0 %4374
      %4376 = vrot.lane.b32.xlu0 %v1377, 80
      %v4377 = vpop.permute.xlu0 %4376
      %v4379 = vsel %vm1416, %v4371, 0
      %v4382 = vsel %vm1416, %v4373, 0
      %v4385 = vsel %vm1416, %v4375, 0
      %v4388 = vsel %vm1416, %v4377, 0
      %4390 = vmatprep.subr.bf16.mxu0 0
      %4391 = vmatpush1.bf16.xpose.msra.mxu0 0
      %4392 = vmatprep.subr.bf16.mxu0 0
      %4393 = vmatpush1.bf16.xpose.msra.mxu0 0
      %4394 = vmatprep.subr.bf16.mxu0 0
      %4395 = vmatpush1.bf16.xpose.msra.mxu0 0
      %4396 = vmatprep.subr.bf16.mxu0 0
      %4397 = vmatpush1.bf16.xpose.msra.mxu0 0
      %4398 = vmatprep.subr.bf16.mxu0 0
      %4399 = vmatpush1.bf16.xpose.msra.mxu0 0
      %4400 = vmatprep.subr.bf16.mxu0 0
      %4401 = vmatpush1.bf16.xpose.msra.mxu0 0
      %4402 = vmatprep.subr.bf16.mxu0 0
      %4403 = vmatpush1.bf16.xpose.msra.mxu0 %v4388
      %4404 = vmatprep.subr.bf16.mxu0 0
      %4405 = vmatpush1.bf16.xpose.msra.mxu0 %v4385
      %4406 = vmatprep.subr.bf16.mxu0 0
      %4407 = vmatpush2.bf16.xpose.msra.mxu0 0
      %4408 = vmatprep.subr.bf16.mxu0 0
      %4409 = vmatpush2.bf16.xpose.msra.mxu0 0
      %4410 = vmatprep.subr.bf16.mxu0 0
      %4411 = vmatpush2.bf16.xpose.msra.mxu0 0
      %4412 = vmatprep.subr.bf16.mxu0 0
      %4413 = vmatpush2.bf16.xpose.msra.mxu0 0
      %4414 = vmatprep.subr.bf16.mxu0 0
      %4415 = vmatpush2.bf16.xpose.msra.mxu0 0
      %4416 = vmatprep.subr.bf16.mxu0 0
      %4417 = vmatpush2.bf16.xpose.msra.mxu0 0
      %4418 = vmatprep.subr.bf16.mxu0 0
      %4419 = vmatpush2.bf16.xpose.msra.mxu0 0
      %4420 = vmatprep.subr.bf16.mxu0 0
      %4421 = vmatpush2.bf16.xpose.msra.mxu0 0
      %4422 = vmatprep.mubr.bf16.mxu0 0
      %4423 = vmatmul.mubr.bf16.gmra.mxu0 %v4379
      %v4424 = vpop.f32.mrf.mxu0
      %v4425 = vadd.f32 %v4297, %v4424
      %v4426 = vpop.f32.mrf.mxu0
      %v4427 = vpop.f32.mrf.mxu0
      %v4428 = vadd.f32 %v4298, %v4427
      %v4429 = vpop.f32.mrf.mxu0
      %4430 = vmatprep.mubr.bf16.mxu0 0
      %4431 = vmatmul.mubr.bf16.gmra.mxu0 %v4382
      %v4432 = vpop.f32.mrf.mxu0
      %v4433 = vadd.f32 %v4299, %v4432
      %v4434 = vpop.f32.mrf.mxu0
      %v4435 = vpop.f32.mrf.mxu0
      %v4436 = vadd.f32 %v4300, %v4435
      %v4437 = vpop.f32.mrf.mxu0
      %4438 = vdwg.mxu0
      %4439 = vrot.lane.b32.xlu0 %v1362, 112
      %v4440 = vpop.permute.xlu0 %4439
      %4441 = vrot.lane.b32.xlu0 %v1363, 112
      %v4442 = vpop.permute.xlu0 %4441
      %4443 = vrot.lane.b32.xlu0 %v1378, 80
      %v4444 = vpop.permute.xlu0 %4443
      %4445 = vrot.lane.b32.xlu0 %v1379, 80
      %v4446 = vpop.permute.xlu0 %4445
      %v4448 = vsel %vm1416, %v4440, 0
      %v4451 = vsel %vm1416, %v4442, 0
      %v4454 = vsel %vm1416, %v4444, 0
      %v4457 = vsel %vm1416, %v4446, 0
      %4459 = vmatprep.subr.bf16.mxu0 0
      %4460 = vmatpush1.bf16.xpose.msra.mxu0 0
      %4461 = vmatprep.subr.bf16.mxu0 0
      %4462 = vmatpush1.bf16.xpose.msra.mxu0 0
      %4463 = vmatprep.subr.bf16.mxu0 0
      %4464 = vmatpush1.bf16.xpose.msra.mxu0 0
      %4465 = vmatprep.subr.bf16.mxu0 0
      %4466 = vmatpush1.bf16.xpose.msra.mxu0 0
      %4467 = vmatprep.subr.bf16.mxu0 0
      %4468 = vmatpush1.bf16.xpose.msra.mxu0 0
      %4469 = vmatprep.subr.bf16.mxu0 0
      %4470 = vmatpush1.bf16.xpose.msra.mxu0 0
      %4471 = vmatprep.subr.bf16.mxu0 0
      %4472 = vmatpush1.bf16.xpose.msra.mxu0 %v4457
      %4473 = vmatprep.subr.bf16.mxu0 0
      %4474 = vmatpush1.bf16.xpose.msra.mxu0 %v4454
      %4475 = vmatprep.subr.bf16.mxu0 0
      %4476 = vmatpush2.bf16.xpose.msra.mxu0 0
      %4477 = vmatprep.subr.bf16.mxu0 0
      %4478 = vmatpush2.bf16.xpose.msra.mxu0 0
      %4479 = vmatprep.subr.bf16.mxu0 0
      %4480 = vmatpush2.bf16.xpose.msra.mxu0 0
      %4481 = vmatprep.subr.bf16.mxu0 0
      %4482 = vmatpush2.bf16.xpose.msra.mxu0 0
      %4483 = vmatprep.subr.bf16.mxu0 0
      %4484 = vmatpush2.bf16.xpose.msra.mxu0 0
      %4485 = vmatprep.subr.bf16.mxu0 0
      %4486 = vmatpush2.bf16.xpose.msra.mxu0 0
      %4487 = vmatprep.subr.bf16.mxu0 0
      %4488 = vmatpush2.bf16.xpose.msra.mxu0 0
      %4489 = vmatprep.subr.bf16.mxu0 0
      %4490 = vmatpush2.bf16.xpose.msra.mxu0 0
      %4491 = vmatprep.mubr.bf16.mxu0 0
      %4492 = vmatmul.mubr.bf16.gmra.mxu0 %v4448
      %v4493 = vpop.f32.mrf.mxu0
      %v4494 = vadd.f32 %v4297, %v4493
      %v4495 = vpop.f32.mrf.mxu0
      %v4496 = vpop.f32.mrf.mxu0
      %v4497 = vadd.f32 %v4298, %v4496
      %v4498 = vpop.f32.mrf.mxu0
      %4499 = vmatprep.mubr.bf16.mxu0 0
      %4500 = vmatmul.mubr.bf16.gmra.mxu0 %v4451
      %v4501 = vpop.f32.mrf.mxu0
      %v4502 = vadd.f32 %v4299, %v4501
      %v4503 = vpop.f32.mrf.mxu0
      %v4504 = vpop.f32.mrf.mxu0
      %v4505 = vadd.f32 %v4300, %v4504
      %v4506 = vpop.f32.mrf.mxu0
      %4507 = vdwg.mxu0
      %4508 = vrot.lane.b32.xlu0 %v1364, 112
      %v4509 = vpop.permute.xlu0 %4508
      %4510 = vrot.lane.b32.xlu0 %v1365, 112
      %v4511 = vpop.permute.xlu0 %4510
      %4512 = vrot.lane.b32.xlu0 %v1380, 80
      %v4513 = vpop.permute.xlu0 %4512
      %4514 = vrot.lane.b32.xlu0 %v1381, 80
      %v4515 = vpop.permute.xlu0 %4514
      %v4517 = vsel %vm1416, %v4509, 0
      %v4520 = vsel %vm1416, %v4511, 0
      %v4523 = vsel %vm1416, %v4513, 0
      %v4526 = vsel %vm1416, %v4515, 0
      %4528 = vmatprep.subr.bf16.mxu0 0
      %4529 = vmatpush1.bf16.xpose.msra.mxu0 0
      %4530 = vmatprep.subr.bf16.mxu0 0
      %4531 = vmatpush1.bf16.xpose.msra.mxu0 0
      %4532 = vmatprep.subr.bf16.mxu0 0
      %4533 = vmatpush1.bf16.xpose.msra.mxu0 0
      %4534 = vmatprep.subr.bf16.mxu0 0
      %4535 = vmatpush1.bf16.xpose.msra.mxu0 0
      %4536 = vmatprep.subr.bf16.mxu0 0
      %4537 = vmatpush1.bf16.xpose.msra.mxu0 0
      %4538 = vmatprep.subr.bf16.mxu0 0
      %4539 = vmatpush1.bf16.xpose.msra.mxu0 0
      %4540 = vmatprep.subr.bf16.mxu0 0
      %4541 = vmatpush1.bf16.xpose.msra.mxu0 %v4526
      %4542 = vmatprep.subr.bf16.mxu0 0
      %4543 = vmatpush1.bf16.xpose.msra.mxu0 %v4523
      %4544 = vmatprep.subr.bf16.mxu0 0
      %4545 = vmatpush2.bf16.xpose.msra.mxu0 0
      %4546 = vmatprep.subr.bf16.mxu0 0
      %4547 = vmatpush2.bf16.xpose.msra.mxu0 0
      %4548 = vmatprep.subr.bf16.mxu0 0
      %4549 = vmatpush2.bf16.xpose.msra.mxu0 0
      %4550 = vmatprep.subr.bf16.mxu0 0
      %4551 = vmatpush2.bf16.xpose.msra.mxu0 0
      %4552 = vmatprep.subr.bf16.mxu0 0
      %4553 = vmatpush2.bf16.xpose.msra.mxu0 0
      %4554 = vmatprep.subr.bf16.mxu0 0
      %4555 = vmatpush2.bf16.xpose.msra.mxu0 0
      %4556 = vmatprep.subr.bf16.mxu0 0
      %4557 = vmatpush2.bf16.xpose.msra.mxu0 0
      %4558 = vmatprep.subr.bf16.mxu0 0
      %4559 = vmatpush2.bf16.xpose.msra.mxu0 0
      %4560 = vmatprep.mubr.bf16.mxu0 0
      %4561 = vmatmul.mubr.bf16.gmra.mxu0 %v4517
      %v4562 = vpop.f32.mrf.mxu0
      %v4563 = vadd.f32 %v4297, %v4562
      %v4564 = vpop.f32.mrf.mxu0
      %v4565 = vpop.f32.mrf.mxu0
      %v4566 = vadd.f32 %v4298, %v4565
      %v4567 = vpop.f32.mrf.mxu0
      %4568 = vmatprep.mubr.bf16.mxu0 0
      %4569 = vmatmul.mubr.bf16.gmra.mxu0 %v4520
      %v4570 = vpop.f32.mrf.mxu0
      %v4571 = vadd.f32 %v4299, %v4570
      %v4572 = vpop.f32.mrf.mxu0
      %v4573 = vpop.f32.mrf.mxu0
      %v4574 = vadd.f32 %v4300, %v4573
      %v4575 = vpop.f32.mrf.mxu0
      %4576 = vdwg.mxu0
      %4577 = vrot.lane.b32.xlu0 %v1366, 112
      %v4578 = vpop.permute.xlu0 %4577
      %4579 = vrot.lane.b32.xlu0 %v1367, 112
      %v4580 = vpop.permute.xlu0 %4579
      %4581 = vrot.lane.b32.xlu0 %v1382, 80
      %v4582 = vpop.permute.xlu0 %4581
      %4583 = vrot.lane.b32.xlu0 %v1383, 80
      %v4584 = vpop.permute.xlu0 %4583
      %v4586 = vsel %vm1416, %v4578, 0
      %v4589 = vsel %vm1416, %v4580, 0
      %v4592 = vsel %vm1416, %v4582, 0
      %v4595 = vsel %vm1416, %v4584, 0
      %4597 = vmatprep.subr.bf16.mxu0 0
      %4598 = vmatpush1.bf16.xpose.msra.mxu0 0
      %4599 = vmatprep.subr.bf16.mxu0 0
      %4600 = vmatpush1.bf16.xpose.msra.mxu0 0
      %4601 = vmatprep.subr.bf16.mxu0 0
      %4602 = vmatpush1.bf16.xpose.msra.mxu0 0
      %4603 = vmatprep.subr.bf16.mxu0 0
      %4604 = vmatpush1.bf16.xpose.msra.mxu0 0
      %4605 = vmatprep.subr.bf16.mxu0 0
      %4606 = vmatpush1.bf16.xpose.msra.mxu0 0
      %4607 = vmatprep.subr.bf16.mxu0 0
      %4608 = vmatpush1.bf16.xpose.msra.mxu0 0
      %4609 = vmatprep.subr.bf16.mxu0 0
      %4610 = vmatpush1.bf16.xpose.msra.mxu0 %v4595
      %4611 = vmatprep.subr.bf16.mxu0 0
      %4612 = vmatpush1.bf16.xpose.msra.mxu0 %v4592
      %4613 = vmatprep.subr.bf16.mxu0 0
      %4614 = vmatpush2.bf16.xpose.msra.mxu0 0
      %4615 = vmatprep.subr.bf16.mxu0 0
      %4616 = vmatpush2.bf16.xpose.msra.mxu0 0
      %4617 = vmatprep.subr.bf16.mxu0 0
      %4618 = vmatpush2.bf16.xpose.msra.mxu0 0
      %4619 = vmatprep.subr.bf16.mxu0 0
      %4620 = vmatpush2.bf16.xpose.msra.mxu0 0
      %4621 = vmatprep.subr.bf16.mxu0 0
      %4622 = vmatpush2.bf16.xpose.msra.mxu0 0
      %4623 = vmatprep.subr.bf16.mxu0 0
      %4624 = vmatpush2.bf16.xpose.msra.mxu0 0
      %4625 = vmatprep.subr.bf16.mxu0 0
      %4626 = vmatpush2.bf16.xpose.msra.mxu0 0
      %4627 = vmatprep.subr.bf16.mxu0 0
      %4628 = vmatpush2.bf16.xpose.msra.mxu0 0
      %4629 = vmatprep.mubr.bf16.mxu0 0
      %4630 = vmatmul.mubr.bf16.gmra.mxu0 %v4586
      %v4631 = vpop.f32.mrf.mxu0
      %v4632 = vadd.f32 %v4297, %v4631
      %v4633 = vpop.f32.mrf.mxu0
      %v4634 = vpop.f32.mrf.mxu0
      %v4635 = vadd.f32 %v4298, %v4634
      %v4636 = vpop.f32.mrf.mxu0
      %4637 = vmatprep.mubr.bf16.mxu0 0
      %4638 = vmatmul.mubr.bf16.gmra.mxu0 %v4589
      %v4639 = vpop.f32.mrf.mxu0
      %v4640 = vadd.f32 %v4299, %v4639
      %v4641 = vpop.f32.mrf.mxu0
      %v4642 = vpop.f32.mrf.mxu0
      %v4643 = vadd.f32 %v4300, %v4642
      %v4644 = vpop.f32.mrf.mxu0
      %4645 = vdwg.mxu0
      %4646 = vrot.lane.b32.xlu0 %v1368, 112
      %v4647 = vpop.permute.xlu0 %4646
      %4648 = vrot.lane.b32.xlu0 %v1369, 112
      %v4649 = vpop.permute.xlu0 %4648
      %4650 = vrot.lane.b32.xlu0 %v1384, 80
      %v4651 = vpop.permute.xlu0 %4650
      %4652 = vrot.lane.b32.xlu0 %v1385, 80
      %v4653 = vpop.permute.xlu0 %4652
      %v4655 = vsel %vm1416, %v4647, 0
      %v4658 = vsel %vm1416, %v4649, 0
      %v4661 = vsel %vm1416, %v4651, 0
      %v4664 = vsel %vm1416, %v4653, 0
      %4666 = vmatprep.subr.bf16.mxu0 0
      %4667 = vmatpush1.bf16.xpose.msra.mxu0 0
      %4668 = vmatprep.subr.bf16.mxu0 0
      %4669 = vmatpush1.bf16.xpose.msra.mxu0 0
      %4670 = vmatprep.subr.bf16.mxu0 0
      %4671 = vmatpush1.bf16.xpose.msra.mxu0 0
      %4672 = vmatprep.subr.bf16.mxu0 0
      %4673 = vmatpush1.bf16.xpose.msra.mxu0 0
      %4674 = vmatprep.subr.bf16.mxu0 0
      %4675 = vmatpush1.bf16.xpose.msra.mxu0 0
      %4676 = vmatprep.subr.bf16.mxu0 0
      %4677 = vmatpush1.bf16.xpose.msra.mxu0 0
      %4678 = vmatprep.subr.bf16.mxu0 0
      %4679 = vmatpush1.bf16.xpose.msra.mxu0 %v4664
      %4680 = vmatprep.subr.bf16.mxu0 0
      %4681 = vmatpush1.bf16.xpose.msra.mxu0 %v4661
      %4682 = vmatprep.subr.bf16.mxu0 0
      %4683 = vmatpush2.bf16.xpose.msra.mxu0 0
      %4684 = vmatprep.subr.bf16.mxu0 0
      %4685 = vmatpush2.bf16.xpose.msra.mxu0 0
      %4686 = vmatprep.subr.bf16.mxu0 0
      %4687 = vmatpush2.bf16.xpose.msra.mxu0 0
      %4688 = vmatprep.subr.bf16.mxu0 0
      %4689 = vmatpush2.bf16.xpose.msra.mxu0 0
      %4690 = vmatprep.subr.bf16.mxu0 0
      %4691 = vmatpush2.bf16.xpose.msra.mxu0 0
      %4692 = vmatprep.subr.bf16.mxu0 0
      %4693 = vmatpush2.bf16.xpose.msra.mxu0 0
      %4694 = vmatprep.subr.bf16.mxu0 0
      %4695 = vmatpush2.bf16.xpose.msra.mxu0 0
      %4696 = vmatprep.subr.bf16.mxu0 0
      %4697 = vmatpush2.bf16.xpose.msra.mxu0 0
      %4698 = vmatprep.mubr.bf16.mxu0 0
      %4699 = vmatmul.mubr.bf16.gmra.mxu0 %v4655
      %v4700 = vpop.f32.mrf.mxu0
      %v4701 = vadd.f32 %v4297, %v4700
      %v4702 = vpop.f32.mrf.mxu0
      %v4703 = vpop.f32.mrf.mxu0
      %v4704 = vadd.f32 %v4298, %v4703
      %v4705 = vpop.f32.mrf.mxu0
      %4706 = vmatprep.mubr.bf16.mxu0 0
      %4707 = vmatmul.mubr.bf16.gmra.mxu0 %v4658
      %v4708 = vpop.f32.mrf.mxu0
      %v4709 = vadd.f32 %v4299, %v4708
      %v4710 = vpop.f32.mrf.mxu0
      %v4711 = vpop.f32.mrf.mxu0
      %v4712 = vadd.f32 %v4300, %v4711
      %v4713 = vpop.f32.mrf.mxu0
      %4714 = vdwg.mxu0
      %4715 = vrot.lane.b32.xlu0 %v1370, 112
      %v4716 = vpop.permute.xlu0 %4715
      %4717 = vrot.lane.b32.xlu0 %v1371, 112
      %v4718 = vpop.permute.xlu0 %4717
      %4719 = vrot.lane.b32.xlu0 %v1386, 80
      %v4720 = vpop.permute.xlu0 %4719
      %4721 = vrot.lane.b32.xlu0 %v1387, 80
      %v4722 = vpop.permute.xlu0 %4721
      %v4724 = vsel %vm1416, %v4716, 0
      %v4727 = vsel %vm1416, %v4718, 0
      %v4730 = vsel %vm1416, %v4720, 0
      %v4733 = vsel %vm1416, %v4722, 0
      %4735 = vmatprep.subr.bf16.mxu0 0
      %4736 = vmatpush1.bf16.xpose.msra.mxu0 0
      %4737 = vmatprep.subr.bf16.mxu0 0
      %4738 = vmatpush1.bf16.xpose.msra.mxu0 0
      %4739 = vmatprep.subr.bf16.mxu0 0
      %4740 = vmatpush1.bf16.xpose.msra.mxu0 0
      %4741 = vmatprep.subr.bf16.mxu0 0
      %4742 = vmatpush1.bf16.xpose.msra.mxu0 0
      %4743 = vmatprep.subr.bf16.mxu0 0
      %4744 = vmatpush1.bf16.xpose.msra.mxu0 0
      %4745 = vmatprep.subr.bf16.mxu0 0
      %4746 = vmatpush1.bf16.xpose.msra.mxu0 0
      %4747 = vmatprep.subr.bf16.mxu0 0
      %4748 = vmatpush1.bf16.xpose.msra.mxu0 %v4733
      %4749 = vmatprep.subr.bf16.mxu0 0
      %4750 = vmatpush1.bf16.xpose.msra.mxu0 %v4730
      %4751 = vmatprep.subr.bf16.mxu0 0
      %4752 = vmatpush2.bf16.xpose.msra.mxu0 0
      %4753 = vmatprep.subr.bf16.mxu0 0
      %4754 = vmatpush2.bf16.xpose.msra.mxu0 0
      %4755 = vmatprep.subr.bf16.mxu0 0
      %4756 = vmatpush2.bf16.xpose.msra.mxu0 0
      %4757 = vmatprep.subr.bf16.mxu0 0
      %4758 = vmatpush2.bf16.xpose.msra.mxu0 0
      %4759 = vmatprep.subr.bf16.mxu0 0
      %4760 = vmatpush2.bf16.xpose.msra.mxu0 0
      %4761 = vmatprep.subr.bf16.mxu0 0
      %4762 = vmatpush2.bf16.xpose.msra.mxu0 0
      %4763 = vmatprep.subr.bf16.mxu0 0
      %4764 = vmatpush2.bf16.xpose.msra.mxu0 0
      %4765 = vmatprep.subr.bf16.mxu0 0
      %4766 = vmatpush2.bf16.xpose.msra.mxu0 0
      %4767 = vmatprep.mubr.bf16.mxu0 0
      %4768 = vmatmul.mubr.bf16.gmra.mxu0 %v4724
      %v4769 = vpop.f32.mrf.mxu0
      %v4770 = vadd.f32 %v4297, %v4769
      %v4771 = vpop.f32.mrf.mxu0
      %v4772 = vpop.f32.mrf.mxu0
      %v4773 = vadd.f32 %v4298, %v4772
      %v4774 = vpop.f32.mrf.mxu0
      %4775 = vmatprep.mubr.bf16.mxu0 0
      %4776 = vmatmul.mubr.bf16.gmra.mxu0 %v4727
      %v4777 = vpop.f32.mrf.mxu0
      %v4778 = vadd.f32 %v4299, %v4777
      %v4779 = vpop.f32.mrf.mxu0
      %v4780 = vpop.f32.mrf.mxu0
      %v4781 = vadd.f32 %v4300, %v4780
      %v4782 = vpop.f32.mrf.mxu0
      %4783 = vdwg.mxu0
      %4784 = vrot.lane.b32.xlu0 %v1372, 112
      %v4785 = vpop.permute.xlu0 %4784
      %4786 = vrot.lane.b32.xlu0 %v1373, 112
      %v4787 = vpop.permute.xlu0 %4786
      %4788 = vrot.lane.b32.xlu0 %v1388, 80
      %v4789 = vpop.permute.xlu0 %4788
      %4790 = vrot.lane.b32.xlu0 %v1389, 80
      %v4791 = vpop.permute.xlu0 %4790
      %v4793 = vsel %vm1416, %v4785, 0
      %v4796 = vsel %vm1416, %v4787, 0
      %v4799 = vsel %vm1416, %v4789, 0
      %v4802 = vsel %vm1416, %v4791, 0
      %4804 = vmatprep.subr.bf16.mxu0 0
      %4805 = vmatpush1.bf16.xpose.msra.mxu0 0
      %4806 = vmatprep.subr.bf16.mxu0 0
      %4807 = vmatpush1.bf16.xpose.msra.mxu0 0
      %4808 = vmatprep.subr.bf16.mxu0 0
      %4809 = vmatpush1.bf16.xpose.msra.mxu0 0
      %4810 = vmatprep.subr.bf16.mxu0 0
      %4811 = vmatpush1.bf16.xpose.msra.mxu0 0
      %4812 = vmatprep.subr.bf16.mxu0 0
      %4813 = vmatpush1.bf16.xpose.msra.mxu0 0
      %4814 = vmatprep.subr.bf16.mxu0 0
      %4815 = vmatpush1.bf16.xpose.msra.mxu0 0
      %4816 = vmatprep.subr.bf16.mxu0 0
      %4817 = vmatpush1.bf16.xpose.msra.mxu0 %v4802
      %4818 = vmatprep.subr.bf16.mxu0 0
      %4819 = vmatpush1.bf16.xpose.msra.mxu0 %v4799
      %4820 = vmatprep.subr.bf16.mxu0 0
      %4821 = vmatpush2.bf16.xpose.msra.mxu0 0
      %4822 = vmatprep.subr.bf16.mxu0 0
      %4823 = vmatpush2.bf16.xpose.msra.mxu0 0
      %4824 = vmatprep.subr.bf16.mxu0 0
      %4825 = vmatpush2.bf16.xpose.msra.mxu0 0
      %4826 = vmatprep.subr.bf16.mxu0 0
      %4827 = vmatpush2.bf16.xpose.msra.mxu0 0
      %4828 = vmatprep.subr.bf16.mxu0 0
      %4829 = vmatpush2.bf16.xpose.msra.mxu0 0
      %4830 = vmatprep.subr.bf16.mxu0 0
      %4831 = vmatpush2.bf16.xpose.msra.mxu0 0
      %4832 = vmatprep.subr.bf16.mxu0 0
      %4833 = vmatpush2.bf16.xpose.msra.mxu0 0
      %4834 = vmatprep.subr.bf16.mxu0 0
      %4835 = vmatpush2.bf16.xpose.msra.mxu0 0
      %4836 = vmatprep.mubr.bf16.mxu0 0
      %4837 = vmatmul.mubr.bf16.gmra.mxu0 %v4793
      %v4838 = vpop.f32.mrf.mxu0
      %v4839 = vadd.f32 %v4297, %v4838
      %v4840 = vpop.f32.mrf.mxu0
      %v4841 = vpop.f32.mrf.mxu0
      %v4842 = vadd.f32 %v4298, %v4841
      %v4843 = vpop.f32.mrf.mxu0
      %4844 = vmatprep.mubr.bf16.mxu0 0
      %4845 = vmatmul.mubr.bf16.gmra.mxu0 %v4796
      %v4846 = vpop.f32.mrf.mxu0
      %v4847 = vadd.f32 %v4299, %v4846
      %v4848 = vpop.f32.mrf.mxu0
      %v4849 = vpop.f32.mrf.mxu0
      %v4850 = vadd.f32 %v4300, %v4849
      %v4851 = vpop.f32.mrf.mxu0
      %4852 = vdwg.mxu0
      %v4853 = vadd.f32 %v4356, %v1947
      %v4854 = vadd.f32 %v4359, %v1948
      %v4855 = vadd.f32 %v4364, %v1949
      %v4856 = vadd.f32 %v4367, %v1950
      %v4857 = vadd.f32 %v4425, %v1951
      %v4858 = vadd.f32 %v4428, %v1952
      %v4859 = vadd.f32 %v4433, %v1953
      %v4860 = vadd.f32 %v4436, %v1954
      %v4861 = vadd.f32 %v4494, %v1955
      %v4862 = vadd.f32 %v4497, %v1956
      %v4863 = vadd.f32 %v4502, %v1957
      %v4864 = vadd.f32 %v4505, %v1958
      %v4865 = vadd.f32 %v4563, %v1959
      %v4866 = vadd.f32 %v4566, %v1960
      %v4867 = vadd.f32 %v4571, %v1961
      %v4868 = vadd.f32 %v4574, %v1962
      %v4869 = vadd.f32 %v4632, %v1963
      %v4870 = vadd.f32 %v4635, %v1964
      %v4871 = vadd.f32 %v4640, %v1965
      %v4872 = vadd.f32 %v4643, %v1966
      %v4873 = vadd.f32 %v4701, %v1967
      %v4874 = vadd.f32 %v4704, %v1968
      %v4875 = vadd.f32 %v4709, %v1969
      %v4876 = vadd.f32 %v4712, %v1970
      %v4877 = vadd.f32 %v4770, %v1971
      %v4878 = vadd.f32 %v4773, %v1972
      %v4879 = vadd.f32 %v4778, %v1973
      %v4880 = vadd.f32 %v4781, %v1974
      %v4881 = vadd.f32 %v4839, %v1975
      %v4882 = vadd.f32 %v4842, %v1976
      %v4883 = vadd.f32 %v4847, %v1977
      %v4884 = vadd.f32 %v4850, %v1978
      %v4885 = vsel %vm398, %v4853, -inf
      %4886 = vmax.xlane.f32.xlu0 %v4885
      %v4887 = vpop.xlane.xlu0 %4886
      %v4888 = vsel %vm398, %v4854, -inf
      %4889 = vmax.xlane.f32.xlu0 %v4888
      %v4890 = vpop.xlane.xlu0 %4889
      %v4891 = vsel %vm398, %v4855, -inf
      %4892 = vmax.xlane.f32.xlu0 %v4891
      %v4893 = vpop.xlane.xlu0 %4892
      %v4894 = vsel %vm398, %v4856, -inf
      %4895 = vmax.xlane.f32.xlu0 %v4894
      %v4896 = vpop.xlane.xlu0 %4895
      %v4897 = vsel %vm398, %v4857, -inf
      %4898 = vmax.xlane.f32.xlu0 %v4897
      %v4899 = vpop.xlane.xlu0 %4898
      %v4900 = vsel %vm398, %v4858, -inf
      %4901 = vmax.xlane.f32.xlu0 %v4900
      %v4902 = vpop.xlane.xlu0 %4901
      %v4903 = vsel %vm398, %v4859, -inf
      %4904 = vmax.xlane.f32.xlu0 %v4903
      %v4905 = vpop.xlane.xlu0 %4904
      %v4906 = vsel %vm398, %v4860, -inf
      %4907 = vmax.xlane.f32.xlu0 %v4906
      %v4908 = vpop.xlane.xlu0 %4907
      %v4909 = vsel %vm398, %v4861, -inf
      %4910 = vmax.xlane.f32.xlu0 %v4909
      %v4911 = vpop.xlane.xlu0 %4910
      %v4912 = vsel %vm398, %v4862, -inf
      %4913 = vmax.xlane.f32.xlu0 %v4912
      %v4914 = vpop.xlane.xlu0 %4913
      %v4915 = vsel %vm398, %v4863, -inf
      %4916 = vmax.xlane.f32.xlu0 %v4915
      %v4917 = vpop.xlane.xlu0 %4916
      %v4918 = vsel %vm398, %v4864, -inf
      %4919 = vmax.xlane.f32.xlu0 %v4918
      %v4920 = vpop.xlane.xlu0 %4919
      %v4921 = vsel %vm398, %v4865, -inf
      %4922 = vmax.xlane.f32.xlu0 %v4921
      %v4923 = vpop.xlane.xlu0 %4922
      %v4924 = vsel %vm398, %v4866, -inf
      %4925 = vmax.xlane.f32.xlu0 %v4924
      %v4926 = vpop.xlane.xlu0 %4925
      %v4927 = vsel %vm398, %v4867, -inf
      %4928 = vmax.xlane.f32.xlu0 %v4927
      %v4929 = vpop.xlane.xlu0 %4928
      %v4930 = vsel %vm398, %v4868, -inf
      %4931 = vmax.xlane.f32.xlu0 %v4930
      %v4932 = vpop.xlane.xlu0 %4931
      %v4933 = vsel %vm398, %v4869, -inf
      %4934 = vmax.xlane.f32.xlu0 %v4933
      %v4935 = vpop.xlane.xlu0 %4934
      %v4936 = vsel %vm398, %v4870, -inf
      %4937 = vmax.xlane.f32.xlu0 %v4936
      %v4938 = vpop.xlane.xlu0 %4937
      %v4939 = vsel %vm398, %v4871, -inf
      %4940 = vmax.xlane.f32.xlu0 %v4939
      %v4941 = vpop.xlane.xlu0 %4940
      %v4942 = vsel %vm398, %v4872, -inf
      %4943 = vmax.xlane.f32.xlu0 %v4942
      %v4944 = vpop.xlane.xlu0 %4943
      %v4945 = vsel %vm398, %v4873, -inf
      %4946 = vmax.xlane.f32.xlu0 %v4945
      %v4947 = vpop.xlane.xlu0 %4946
      %v4948 = vsel %vm398, %v4874, -inf
      %4949 = vmax.xlane.f32.xlu0 %v4948
      %v4950 = vpop.xlane.xlu0 %4949
      %v4951 = vsel %vm398, %v4875, -inf
      %4952 = vmax.xlane.f32.xlu0 %v4951
      %v4953 = vpop.xlane.xlu0 %4952
      %v4954 = vsel %vm398, %v4876, -inf
      %4955 = vmax.xlane.f32.xlu0 %v4954
      %v4956 = vpop.xlane.xlu0 %4955
      %v4957 = vsel %vm398, %v4877, -inf
      %4958 = vmax.xlane.f32.xlu0 %v4957
      %v4959 = vpop.xlane.xlu0 %4958
      %v4960 = vsel %vm398, %v4878, -inf
      %4961 = vmax.xlane.f32.xlu0 %v4960
      %v4962 = vpop.xlane.xlu0 %4961
      %v4963 = vsel %vm398, %v4879, -inf
      %4964 = vmax.xlane.f32.xlu0 %v4963
      %v4965 = vpop.xlane.xlu0 %4964
      %v4966 = vsel %vm398, %v4880, -inf
      %4967 = vmax.xlane.f32.xlu0 %v4966
      %v4968 = vpop.xlane.xlu0 %4967
      %v4969 = vsel %vm398, %v4881, -inf
      %4970 = vmax.xlane.f32.xlu0 %v4969
      %v4971 = vpop.xlane.xlu0 %4970
      %v4972 = vsel %vm398, %v4882, -inf
      %4973 = vmax.xlane.f32.xlu0 %v4972
      %v4974 = vpop.xlane.xlu0 %4973
      %v4975 = vsel %vm398, %v4883, -inf
      %4976 = vmax.xlane.f32.xlu0 %v4975
      %v4977 = vpop.xlane.xlu0 %4976
      %v4978 = vsel %vm398, %v4884, -inf
      %4979 = vmax.xlane.f32.xlu0 %v4978
      %v4980 = vpop.xlane.xlu0 %4979
      %v4981 = vsub.f32 %v4853, %v4887
      %v4982 = vsub.f32 %v4854, %v4890
      %v4983 = vsub.f32 %v4855, %v4893
      %v4984 = vsub.f32 %v4856, %v4896
      %v4985 = vsub.f32 %v4857, %v4899
      %v4986 = vsub.f32 %v4858, %v4902
      %v4987 = vsub.f32 %v4859, %v4905
      %v4988 = vsub.f32 %v4860, %v4908
      %v4989 = vsub.f32 %v4861, %v4911
      %v4990 = vsub.f32 %v4862, %v4914
      %v4991 = vsub.f32 %v4863, %v4917
      %v4992 = vsub.f32 %v4864, %v4920
      %v4993 = vsub.f32 %v4865, %v4923
      %v4994 = vsub.f32 %v4866, %v4926
      %v4995 = vsub.f32 %v4867, %v4929
      %v4996 = vsub.f32 %v4868, %v4932
      %v4997 = vsub.f32 %v4869, %v4935
      %v4998 = vsub.f32 %v4870, %v4938
      %v4999 = vsub.f32 %v4871, %v4941
      %v5000 = vsub.f32 %v4872, %v4944
      %v5001 = vsub.f32 %v4873, %v4947
      %v5002 = vsub.f32 %v4874, %v4950
      %v5003 = vsub.f32 %v4875, %v4953
      %v5004 = vsub.f32 %v4876, %v4956
      %v5005 = vsub.f32 %v4877, %v4959
      %v5006 = vsub.f32 %v4878, %v4962
      %v5007 = vsub.f32 %v4879, %v4965
      %v5008 = vsub.f32 %v4880, %v4968
      %v5009 = vsub.f32 %v4881, %v4971
      %v5010 = vsub.f32 %v4882, %v4974
      %v5011 = vsub.f32 %v4883, %v4977
      %v5012 = vsub.f32 %v4884, %v4980
      %v5013 = vmul.f32 %v4981, 1.442695
      %v5014 = vpow.pop %v5013
      %v5015 = vmul.f32 %v4982, 1.442695
      %v5016 = vpow.pop %v5015
      %v5017 = vmul.f32 %v4983, 1.442695
      %v5018 = vpow.pop %v5017
      %v5019 = vmul.f32 %v4984, 1.442695
      %v5020 = vpow.pop %v5019
      %v5021 = vmul.f32 %v4985, 1.442695
      %v5022 = vpow.pop %v5021
      %v5023 = vmul.f32 %v4986, 1.442695
      %v5024 = vpow.pop %v5023
      %v5025 = vmul.f32 %v4987, 1.442695
      %v5026 = vpow.pop %v5025
      %v5027 = vmul.f32 %v4988, 1.442695
      %v5028 = vpow.pop %v5027
      %v5029 = vmul.f32 %v4989, 1.442695
      %v5030 = vpow.pop %v5029
      %v5031 = vmul.f32 %v4990, 1.442695
      %v5032 = vpow.pop %v5031
      %v5033 = vmul.f32 %v4991, 1.442695
      %v5034 = vpow.pop %v5033
      %v5035 = vmul.f32 %v4992, 1.442695
      %v5036 = vpow.pop %v5035
      %v5037 = vmul.f32 %v4993, 1.442695
      %v5038 = vpow.pop %v5037
      %v5039 = vmul.f32 %v4994, 1.442695
      %v5040 = vpow.pop %v5039
      %v5041 = vmul.f32 %v4995, 1.442695
      %v5042 = vpow.pop %v5041
      %v5043 = vmul.f32 %v4996, 1.442695
      %v5044 = vpow.pop %v5043
      %v5045 = vmul.f32 %v4997, 1.442695
      %v5046 = vpow.pop %v5045
      %v5047 = vmul.f32 %v4998, 1.442695
      %v5048 = vpow.pop %v5047
      %v5049 = vmul.f32 %v4999, 1.442695
      %v5050 = vpow.pop %v5049
      %v5051 = vmul.f32 %v5000, 1.442695
      %v5052 = vpow.pop %v5051
      %v5053 = vmul.f32 %v5001, 1.442695
      %v5054 = vpow.pop %v5053
      %v5055 = vmul.f32 %v5002, 1.442695
      %v5056 = vpow.pop %v5055
      %v5057 = vmul.f32 %v5003, 1.442695
      %v5058 = vpow.pop %v5057
      %v5059 = vmul.f32 %v5004, 1.442695
      %v5060 = vpow.pop %v5059
      %v5061 = vmul.f32 %v5005, 1.442695
      %v5062 = vpow.pop %v5061
      %v5063 = vmul.f32 %v5006, 1.442695
      %v5064 = vpow.pop %v5063
      %v5065 = vmul.f32 %v5007, 1.442695
      %v5066 = vpow.pop %v5065
      %v5067 = vmul.f32 %v5008, 1.442695
      %v5068 = vpow.pop %v5067
      %v5069 = vmul.f32 %v5009, 1.442695
      %v5070 = vpow.pop %v5069
      %v5071 = vmul.f32 %v5010, 1.442695
      %v5072 = vpow.pop %v5071
      %v5073 = vmul.f32 %v5011, 1.442695
      %v5074 = vpow.pop %v5073
      %v5075 = vmul.f32 %v5012, 1.442695
      %v5076 = vpow.pop %v5075
      %v5077 = vsel %vm398, %v5014, 0.0
      %5078 = vadd.xlane.f32.xlu0 %v5077
      %v5079 = vpop.xlane.xlu0 %5078
      %v5080 = vsel %vm398, %v5016, 0.0
      %5081 = vadd.xlane.f32.xlu0 %v5080
      %v5082 = vpop.xlane.xlu0 %5081
      %v5083 = vsel %vm398, %v5018, 0.0
      %5084 = vadd.xlane.f32.xlu0 %v5083
      %v5085 = vpop.xlane.xlu0 %5084
      %v5086 = vsel %vm398, %v5020, 0.0
      %5087 = vadd.xlane.f32.xlu0 %v5086
      %v5088 = vpop.xlane.xlu0 %5087
      %v5089 = vsel %vm398, %v5022, 0.0
      %5090 = vadd.xlane.f32.xlu0 %v5089
      %v5091 = vpop.xlane.xlu0 %5090
      %v5092 = vsel %vm398, %v5024, 0.0
      %5093 = vadd.xlane.f32.xlu0 %v5092
      %v5094 = vpop.xlane.xlu0 %5093
      %v5095 = vsel %vm398, %v5026, 0.0
      %5096 = vadd.xlane.f32.xlu0 %v5095
      %v5097 = vpop.xlane.xlu0 %5096
      %v5098 = vsel %vm398, %v5028, 0.0
      %5099 = vadd.xlane.f32.xlu0 %v5098
      %v5100 = vpop.xlane.xlu0 %5099
      %v5101 = vsel %vm398, %v5030, 0.0
      %5102 = vadd.xlane.f32.xlu0 %v5101
      %v5103 = vpop.xlane.xlu0 %5102
      %v5104 = vsel %vm398, %v5032, 0.0
      %5105 = vadd.xlane.f32.xlu0 %v5104
      %v5106 = vpop.xlane.xlu0 %5105
      %v5107 = vsel %vm398, %v5034, 0.0
      %5108 = vadd.xlane.f32.xlu0 %v5107
      %v5109 = vpop.xlane.xlu0 %5108
      %v5110 = vsel %vm398, %v5036, 0.0
      %5111 = vadd.xlane.f32.xlu0 %v5110
      %v5112 = vpop.xlane.xlu0 %5111
      %v5113 = vsel %vm398, %v5038, 0.0
      %5114 = vadd.xlane.f32.xlu0 %v5113
      %v5115 = vpop.xlane.xlu0 %5114
      %v5116 = vsel %vm398, %v5040, 0.0
      %5117 = vadd.xlane.f32.xlu0 %v5116
      %v5118 = vpop.xlane.xlu0 %5117
      %v5119 = vsel %vm398, %v5042, 0.0
      %5120 = vadd.xlane.f32.xlu0 %v5119
      %v5121 = vpop.xlane.xlu0 %5120
      %v5122 = vsel %vm398, %v5044, 0.0
      %5123 = vadd.xlane.f32.xlu0 %v5122
      %v5124 = vpop.xlane.xlu0 %5123
      %v5125 = vsel %vm398, %v5046, 0.0
      %5126 = vadd.xlane.f32.xlu0 %v5125
      %v5127 = vpop.xlane.xlu0 %5126
      %v5128 = vsel %vm398, %v5048, 0.0
      %5129 = vadd.xlane.f32.xlu0 %v5128
      %v5130 = vpop.xlane.xlu0 %5129
      %v5131 = vsel %vm398, %v5050, 0.0
      %5132 = vadd.xlane.f32.xlu0 %v5131
      %v5133 = vpop.xlane.xlu0 %5132
      %v5134 = vsel %vm398, %v5052, 0.0
      %5135 = vadd.xlane.f32.xlu0 %v5134
      %v5136 = vpop.xlane.xlu0 %5135
      %v5137 = vsel %vm398, %v5054, 0.0
      %5138 = vadd.xlane.f32.xlu0 %v5137
      %v5139 = vpop.xlane.xlu0 %5138
      %v5140 = vsel %vm398, %v5056, 0.0
      %5141 = vadd.xlane.f32.xlu0 %v5140
      %v5142 = vpop.xlane.xlu0 %5141
      %v5143 = vsel %vm398, %v5058, 0.0
      %5144 = vadd.xlane.f32.xlu0 %v5143
      %v5145 = vpop.xlane.xlu0 %5144
      %v5146 = vsel %vm398, %v5060, 0.0
      %5147 = vadd.xlane.f32.xlu0 %v5146
      %v5148 = vpop.xlane.xlu0 %5147
      %v5149 = vsel %vm398, %v5062, 0.0
      %5150 = vadd.xlane.f32.xlu0 %v5149
      %v5151 = vpop.xlane.xlu0 %5150
      %v5152 = vsel %vm398, %v5064, 0.0
      %5153 = vadd.xlane.f32.xlu0 %v5152
      %v5154 = vpop.xlane.xlu0 %5153
      %v5155 = vsel %vm398, %v5066, 0.0
      %5156 = vadd.xlane.f32.xlu0 %v5155
      %v5157 = vpop.xlane.xlu0 %5156
      %v5158 = vsel %vm398, %v5068, 0.0
      %5159 = vadd.xlane.f32.xlu0 %v5158
      %v5160 = vpop.xlane.xlu0 %5159
      %v5161 = vsel %vm398, %v5070, 0.0
      %5162 = vadd.xlane.f32.xlu0 %v5161
      %v5163 = vpop.xlane.xlu0 %5162
      %v5164 = vsel %vm398, %v5072, 0.0
      %5165 = vadd.xlane.f32.xlu0 %v5164
      %v5166 = vpop.xlane.xlu0 %5165
      %v5167 = vsel %vm398, %v5074, 0.0
      %5168 = vadd.xlane.f32.xlu0 %v5167
      %v5169 = vpop.xlane.xlu0 %5168
      %v5170 = vsel %vm398, %v5076, 0.0
      %5171 = vadd.xlane.f32.xlu0 %v5170
      %v5172 = vpop.xlane.xlu0 %5171
      %v5173 = vrcp.pop %v5079
      %v5174 = vrcp.pop %v5082
      %v5175 = vrcp.pop %v5085
      %v5176 = vrcp.pop %v5088
      %v5177 = vrcp.pop %v5091
      %v5178 = vrcp.pop %v5094
      %v5179 = vrcp.pop %v5097
      %v5180 = vrcp.pop %v5100
      %v5181 = vrcp.pop %v5103
      %v5182 = vrcp.pop %v5106
      %v5183 = vrcp.pop %v5109
      %v5184 = vrcp.pop %v5112
      %v5185 = vrcp.pop %v5115
      %v5186 = vrcp.pop %v5118
      %v5187 = vrcp.pop %v5121
      %v5188 = vrcp.pop %v5124
      %v5189 = vrcp.pop %v5127
      %v5190 = vrcp.pop %v5130
      %v5191 = vrcp.pop %v5133
      %v5192 = vrcp.pop %v5136
      %v5193 = vrcp.pop %v5139
      %v5194 = vrcp.pop %v5142
      %v5195 = vrcp.pop %v5145
      %v5196 = vrcp.pop %v5148
      %v5197 = vrcp.pop %v5151
      %v5198 = vrcp.pop %v5154
      %v5199 = vrcp.pop %v5157
      %v5200 = vrcp.pop %v5160
      %v5201 = vrcp.pop %v5163
      %v5202 = vrcp.pop %v5166
      %v5203 = vrcp.pop %v5169
      %v5204 = vrcp.pop %v5172
      %v5205 = vmul.f32 %v5014, %v5173
      %v5206 = vmul.f32 %v5016, %v5174
      %v5207 = vmul.f32 %v5018, %v5175
      %v5208 = vmul.f32 %v5020, %v5176
      %v5209 = vmul.f32 %v5022, %v5177
      %v5210 = vmul.f32 %v5024, %v5178
      %v5211 = vmul.f32 %v5026, %v5179
      %v5212 = vmul.f32 %v5028, %v5180
      %v5213 = vmul.f32 %v5030, %v5181
      %v5214 = vmul.f32 %v5032, %v5182
      %v5215 = vmul.f32 %v5034, %v5183
      %v5216 = vmul.f32 %v5036, %v5184
      %v5217 = vmul.f32 %v5038, %v5185
      %v5218 = vmul.f32 %v5040, %v5186
      %v5219 = vmul.f32 %v5042, %v5187
      %v5220 = vmul.f32 %v5044, %v5188
      %v5221 = vmul.f32 %v5046, %v5189
      %v5222 = vmul.f32 %v5048, %v5190
      %v5223 = vmul.f32 %v5050, %v5191
      %v5224 = vmul.f32 %v5052, %v5192
      %v5225 = vmul.f32 %v5054, %v5193
      %v5226 = vmul.f32 %v5056, %v5194
      %v5227 = vmul.f32 %v5058, %v5195
      %v5228 = vmul.f32 %v5060, %v5196
      %v5229 = vmul.f32 %v5062, %v5197
      %v5230 = vmul.f32 %v5064, %v5198
      %v5231 = vmul.f32 %v5066, %v5199
      %v5232 = vmul.f32 %v5068, %v5200
      %v5233 = vmul.f32 %v5070, %v5201
      %v5234 = vmul.f32 %v5072, %v5202
      %v5235 = vmul.f32 %v5074, %v5203
      %v5236 = vmul.f32 %v5076, %v5204
      %v5237 = vpack.c.bf16 %v5206, %v5205
      %v5238 = vpack.c.bf16 %v5208, %v5207
      %v5239 = vpack.c.bf16 %v5210, %v5209
      %v5240 = vpack.c.bf16 %v5212, %v5211
      %v5241 = vpack.c.bf16 %v5214, %v5213
      %v5242 = vpack.c.bf16 %v5216, %v5215
      %v5243 = vpack.c.bf16 %v5218, %v5217
      %v5244 = vpack.c.bf16 %v5220, %v5219
      %v5245 = vpack.c.bf16 %v5222, %v5221
      %v5246 = vpack.c.bf16 %v5224, %v5223
      %v5247 = vpack.c.bf16 %v5226, %v5225
      %v5248 = vpack.c.bf16 %v5228, %v5227
      %v5249 = vpack.c.bf16 %v5230, %v5229
      %v5250 = vpack.c.bf16 %v5232, %v5231
      %v5251 = vpack.c.bf16 %v5234, %v5233
      %v5252 = vpack.c.bf16 %v5236, %v5235
      %5253 = vrot.lane.b32.xlu0 %v1390, 64
      %v5254 = vpop.permute.xlu0 %5253
      %5255 = vrot.lane.b32.xlu0 %v1391, 64
      %v5256 = vpop.permute.xlu0 %5255
      %v5260 = vsel %vm398, %v5237, 0
      %v5263 = vsel %vm398, %v5238, 0
      %5265 = vmatprep.subr.bf16.mxu0 0
      %5266 = vmatpush1.bf16.msra.mxu0 0
      %5267 = vmatprep.subr.bf16.mxu0 0
      %5268 = vmatpush1.bf16.msra.mxu0 0
      %5269 = vmatprep.subr.bf16.mxu0 0
      %5270 = vmatpush1.bf16.msra.mxu0 0
      %5271 = vmatprep.subr.bf16.mxu0 0
      %5272 = vmatpush1.bf16.msra.mxu0 0
      %5273 = vmatprep.subr.bf16.mxu0 0
      %5274 = vmatpush1.bf16.msra.mxu0 0
      %5275 = vmatprep.subr.bf16.mxu0 0
      %5276 = vmatpush1.bf16.msra.mxu0 0
      %5277 = vmatprep.subr.bf16.mxu0 0
      %5278 = vmatpush1.bf16.msra.mxu0 %v5256
      %5279 = vmatprep.subr.bf16.mxu0 0
      %5280 = vmatpush1.bf16.msra.mxu0 %v5254
      %5281 = vmatprep.subr.bf16.mxu0 0
      %5282 = vmatpush2.bf16.msra.mxu0 0
      %5283 = vmatprep.subr.bf16.mxu0 0
      %5284 = vmatpush2.bf16.msra.mxu0 0
      %5285 = vmatprep.subr.bf16.mxu0 0
      %5286 = vmatpush2.bf16.msra.mxu0 0
      %5287 = vmatprep.subr.bf16.mxu0 0
      %5288 = vmatpush2.bf16.msra.mxu0 0
      %5289 = vmatprep.subr.bf16.mxu0 0
      %5290 = vmatpush2.bf16.msra.mxu0 0
      %5291 = vmatprep.subr.bf16.mxu0 0
      %5292 = vmatpush2.bf16.msra.mxu0 0
      %5293 = vmatprep.subr.bf16.mxu0 0
      %5294 = vmatpush2.bf16.msra.mxu0 0
      %5295 = vmatprep.subr.bf16.mxu0 0
      %5296 = vmatpush2.bf16.msra.mxu0 0
      %5297 = vmatprep.mubr.bf16.mxu0 0
      %5298 = vmatmul.mubr.bf16.gmra.mxu0 %v5260
      %v5299 = vpop.f32.mrf.mxu0
      %v5300 = vadd.f32 0.0, %v5299
      %v5301 = vpop.f32.mrf.mxu0
      %v5302 = vpop.f32.mrf.mxu0
      %v5303 = vadd.f32 0.0, %v5302
      %v5304 = vpop.f32.mrf.mxu0
      %5305 = vmatprep.mubr.bf16.mxu0 0
      %5306 = vmatmul.mubr.bf16.gmra.mxu0 %v5263
      %v5307 = vpop.f32.mrf.mxu0
      %v5308 = vadd.f32 0.0, %v5307
      %v5309 = vpop.f32.mrf.mxu0
      %v5310 = vpop.f32.mrf.mxu0
      %v5311 = vadd.f32 0.0, %v5310
      %v5312 = vpop.f32.mrf.mxu0
      %5313 = vdwg.mxu0
      %5314 = vrot.lane.b32.xlu0 %v1392, 64
      %v5315 = vpop.permute.xlu0 %5314
      %5316 = vrot.lane.b32.xlu0 %v1393, 64
      %v5317 = vpop.permute.xlu0 %5316
      %v5321 = vsel %vm398, %v5239, 0
      %v5324 = vsel %vm398, %v5240, 0
      %5326 = vmatprep.subr.bf16.mxu0 0
      %5327 = vmatpush1.bf16.msra.mxu0 0
      %5328 = vmatprep.subr.bf16.mxu0 0
      %5329 = vmatpush1.bf16.msra.mxu0 0
      %5330 = vmatprep.subr.bf16.mxu0 0
      %5331 = vmatpush1.bf16.msra.mxu0 0
      %5332 = vmatprep.subr.bf16.mxu0 0
      %5333 = vmatpush1.bf16.msra.mxu0 0
      %5334 = vmatprep.subr.bf16.mxu0 0
      %5335 = vmatpush1.bf16.msra.mxu0 0
      %5336 = vmatprep.subr.bf16.mxu0 0
      %5337 = vmatpush1.bf16.msra.mxu0 0
      %5338 = vmatprep.subr.bf16.mxu0 0
      %5339 = vmatpush1.bf16.msra.mxu0 %v5317
      %5340 = vmatprep.subr.bf16.mxu0 0
      %5341 = vmatpush1.bf16.msra.mxu0 %v5315
      %5342 = vmatprep.subr.bf16.mxu0 0
      %5343 = vmatpush2.bf16.msra.mxu0 0
      %5344 = vmatprep.subr.bf16.mxu0 0
      %5345 = vmatpush2.bf16.msra.mxu0 0
      %5346 = vmatprep.subr.bf16.mxu0 0
      %5347 = vmatpush2.bf16.msra.mxu0 0
      %5348 = vmatprep.subr.bf16.mxu0 0
      %5349 = vmatpush2.bf16.msra.mxu0 0
      %5350 = vmatprep.subr.bf16.mxu0 0
      %5351 = vmatpush2.bf16.msra.mxu0 0
      %5352 = vmatprep.subr.bf16.mxu0 0
      %5353 = vmatpush2.bf16.msra.mxu0 0
      %5354 = vmatprep.subr.bf16.mxu0 0
      %5355 = vmatpush2.bf16.msra.mxu0 0
      %5356 = vmatprep.subr.bf16.mxu0 0
      %5357 = vmatpush2.bf16.msra.mxu0 0
      %5358 = vmatprep.mubr.bf16.mxu0 0
      %5359 = vmatmul.mubr.bf16.gmra.mxu0 %v5321
      %v5360 = vpop.f32.mrf.mxu0
      %v5361 = vadd.f32 0.0, %v5360
      %v5362 = vpop.f32.mrf.mxu0
      %v5363 = vpop.f32.mrf.mxu0
      %v5364 = vadd.f32 0.0, %v5363
      %v5365 = vpop.f32.mrf.mxu0
      %5366 = vmatprep.mubr.bf16.mxu0 0
      %5367 = vmatmul.mubr.bf16.gmra.mxu0 %v5324
      %v5368 = vpop.f32.mrf.mxu0
      %v5369 = vadd.f32 0.0, %v5368
      %v5370 = vpop.f32.mrf.mxu0
      %v5371 = vpop.f32.mrf.mxu0
      %v5372 = vadd.f32 0.0, %v5371
      %v5373 = vpop.f32.mrf.mxu0
      %5374 = vdwg.mxu0
      %5375 = vrot.lane.b32.xlu0 %v1394, 64
      %v5376 = vpop.permute.xlu0 %5375
      %5377 = vrot.lane.b32.xlu0 %v1395, 64
      %v5378 = vpop.permute.xlu0 %5377
      %v5382 = vsel %vm398, %v5241, 0
      %v5385 = vsel %vm398, %v5242, 0
      %5387 = vmatprep.subr.bf16.mxu0 0
      %5388 = vmatpush1.bf16.msra.mxu0 0
      %5389 = vmatprep.subr.bf16.mxu0 0
      %5390 = vmatpush1.bf16.msra.mxu0 0
      %5391 = vmatprep.subr.bf16.mxu0 0
      %5392 = vmatpush1.bf16.msra.mxu0 0
      %5393 = vmatprep.subr.bf16.mxu0 0
      %5394 = vmatpush1.bf16.msra.mxu0 0
      %5395 = vmatprep.subr.bf16.mxu0 0
      %5396 = vmatpush1.bf16.msra.mxu0 0
      %5397 = vmatprep.subr.bf16.mxu0 0
      %5398 = vmatpush1.bf16.msra.mxu0 0
      %5399 = vmatprep.subr.bf16.mxu0 0
      %5400 = vmatpush1.bf16.msra.mxu0 %v5378
      %5401 = vmatprep.subr.bf16.mxu0 0
      %5402 = vmatpush1.bf16.msra.mxu0 %v5376
      %5403 = vmatprep.subr.bf16.mxu0 0
      %5404 = vmatpush2.bf16.msra.mxu0 0
      %5405 = vmatprep.subr.bf16.mxu0 0
      %5406 = vmatpush2.bf16.msra.mxu0 0
      %5407 = vmatprep.subr.bf16.mxu0 0
      %5408 = vmatpush2.bf16.msra.mxu0 0
      %5409 = vmatprep.subr.bf16.mxu0 0
      %5410 = vmatpush2.bf16.msra.mxu0 0
      %5411 = vmatprep.subr.bf16.mxu0 0
      %5412 = vmatpush2.bf16.msra.mxu0 0
      %5413 = vmatprep.subr.bf16.mxu0 0
      %5414 = vmatpush2.bf16.msra.mxu0 0
      %5415 = vmatprep.subr.bf16.mxu0 0
      %5416 = vmatpush2.bf16.msra.mxu0 0
      %5417 = vmatprep.subr.bf16.mxu0 0
      %5418 = vmatpush2.bf16.msra.mxu0 0
      %5419 = vmatprep.mubr.bf16.mxu0 0
      %5420 = vmatmul.mubr.bf16.gmra.mxu0 %v5382
      %v5421 = vpop.f32.mrf.mxu0
      %v5422 = vadd.f32 0.0, %v5421
      %v5423 = vpop.f32.mrf.mxu0
      %v5424 = vpop.f32.mrf.mxu0
      %v5425 = vadd.f32 0.0, %v5424
      %v5426 = vpop.f32.mrf.mxu0
      %5427 = vmatprep.mubr.bf16.mxu0 0
      %5428 = vmatmul.mubr.bf16.gmra.mxu0 %v5385
      %v5429 = vpop.f32.mrf.mxu0
      %v5430 = vadd.f32 0.0, %v5429
      %v5431 = vpop.f32.mrf.mxu0
      %v5432 = vpop.f32.mrf.mxu0
      %v5433 = vadd.f32 0.0, %v5432
      %v5434 = vpop.f32.mrf.mxu0
      %5435 = vdwg.mxu0
      %5436 = vrot.lane.b32.xlu0 %v1396, 64
      %v5437 = vpop.permute.xlu0 %5436
      %5438 = vrot.lane.b32.xlu0 %v1397, 64
      %v5439 = vpop.permute.xlu0 %5438
      %v5443 = vsel %vm398, %v5243, 0
      %v5446 = vsel %vm398, %v5244, 0
      %5448 = vmatprep.subr.bf16.mxu0 0
      %5449 = vmatpush1.bf16.msra.mxu0 0
      %5450 = vmatprep.subr.bf16.mxu0 0
      %5451 = vmatpush1.bf16.msra.mxu0 0
      %5452 = vmatprep.subr.bf16.mxu0 0
      %5453 = vmatpush1.bf16.msra.mxu0 0
      %5454 = vmatprep.subr.bf16.mxu0 0
      %5455 = vmatpush1.bf16.msra.mxu0 0
      %5456 = vmatprep.subr.bf16.mxu0 0
      %5457 = vmatpush1.bf16.msra.mxu0 0
      %5458 = vmatprep.subr.bf16.mxu0 0
      %5459 = vmatpush1.bf16.msra.mxu0 0
      %5460 = vmatprep.subr.bf16.mxu0 0
      %5461 = vmatpush1.bf16.msra.mxu0 %v5439
      %5462 = vmatprep.subr.bf16.mxu0 0
      %5463 = vmatpush1.bf16.msra.mxu0 %v5437
      %5464 = vmatprep.subr.bf16.mxu0 0
      %5465 = vmatpush2.bf16.msra.mxu0 0
      %5466 = vmatprep.subr.bf16.mxu0 0
      %5467 = vmatpush2.bf16.msra.mxu0 0
      %5468 = vmatprep.subr.bf16.mxu0 0
      %5469 = vmatpush2.bf16.msra.mxu0 0
      %5470 = vmatprep.subr.bf16.mxu0 0
      %5471 = vmatpush2.bf16.msra.mxu0 0
      %5472 = vmatprep.subr.bf16.mxu0 0
      %5473 = vmatpush2.bf16.msra.mxu0 0
      %5474 = vmatprep.subr.bf16.mxu0 0
      %5475 = vmatpush2.bf16.msra.mxu0 0
      %5476 = vmatprep.subr.bf16.mxu0 0
      %5477 = vmatpush2.bf16.msra.mxu0 0
      %5478 = vmatprep.subr.bf16.mxu0 0
      %5479 = vmatpush2.bf16.msra.mxu0 0
      %5480 = vmatprep.mubr.bf16.mxu0 0
      %5481 = vmatmul.mubr.bf16.gmra.mxu0 %v5443
      %v5482 = vpop.f32.mrf.mxu0
      %v5483 = vadd.f32 0.0, %v5482
      %v5484 = vpop.f32.mrf.mxu0
      %v5485 = vpop.f32.mrf.mxu0
      %v5486 = vadd.f32 0.0, %v5485
      %v5487 = vpop.f32.mrf.mxu0
      %5488 = vmatprep.mubr.bf16.mxu0 0
      %5489 = vmatmul.mubr.bf16.gmra.mxu0 %v5446
      %v5490 = vpop.f32.mrf.mxu0
      %v5491 = vadd.f32 0.0, %v5490
      %v5492 = vpop.f32.mrf.mxu0
      %v5493 = vpop.f32.mrf.mxu0
      %v5494 = vadd.f32 0.0, %v5493
      %v5495 = vpop.f32.mrf.mxu0
      %5496 = vdwg.mxu0
      %5497 = vrot.lane.b32.xlu0 %v1398, 64
      %v5498 = vpop.permute.xlu0 %5497
      %5499 = vrot.lane.b32.xlu0 %v1399, 64
      %v5500 = vpop.permute.xlu0 %5499
      %v5504 = vsel %vm398, %v5245, 0
      %v5507 = vsel %vm398, %v5246, 0
      %5509 = vmatprep.subr.bf16.mxu0 0
      %5510 = vmatpush1.bf16.msra.mxu0 0
      %5511 = vmatprep.subr.bf16.mxu0 0
      %5512 = vmatpush1.bf16.msra.mxu0 0
      %5513 = vmatprep.subr.bf16.mxu0 0
      %5514 = vmatpush1.bf16.msra.mxu0 0
      %5515 = vmatprep.subr.bf16.mxu0 0
      %5516 = vmatpush1.bf16.msra.mxu0 0
      %5517 = vmatprep.subr.bf16.mxu0 0
      %5518 = vmatpush1.bf16.msra.mxu0 0
      %5519 = vmatprep.subr.bf16.mxu0 0
      %5520 = vmatpush1.bf16.msra.mxu0 0
      %5521 = vmatprep.subr.bf16.mxu0 0
      %5522 = vmatpush1.bf16.msra.mxu0 %v5500
      %5523 = vmatprep.subr.bf16.mxu0 0
      %5524 = vmatpush1.bf16.msra.mxu0 %v5498
      %5525 = vmatprep.subr.bf16.mxu0 0
      %5526 = vmatpush2.bf16.msra.mxu0 0
      %5527 = vmatprep.subr.bf16.mxu0 0
      %5528 = vmatpush2.bf16.msra.mxu0 0
      %5529 = vmatprep.subr.bf16.mxu0 0
      %5530 = vmatpush2.bf16.msra.mxu0 0
      %5531 = vmatprep.subr.bf16.mxu0 0
      %5532 = vmatpush2.bf16.msra.mxu0 0
      %5533 = vmatprep.subr.bf16.mxu0 0
      %5534 = vmatpush2.bf16.msra.mxu0 0
      %5535 = vmatprep.subr.bf16.mxu0 0
      %5536 = vmatpush2.bf16.msra.mxu0 0
      %5537 = vmatprep.subr.bf16.mxu0 0
      %5538 = vmatpush2.bf16.msra.mxu0 0
      %5539 = vmatprep.subr.bf16.mxu0 0
      %5540 = vmatpush2.bf16.msra.mxu0 0
      %5541 = vmatprep.mubr.bf16.mxu0 0
      %5542 = vmatmul.mubr.bf16.gmra.mxu0 %v5504
      %v5543 = vpop.f32.mrf.mxu0
      %v5544 = vadd.f32 0.0, %v5543
      %v5545 = vpop.f32.mrf.mxu0
      %v5546 = vpop.f32.mrf.mxu0
      %v5547 = vadd.f32 0.0, %v5546
      %v5548 = vpop.f32.mrf.mxu0
      %5549 = vmatprep.mubr.bf16.mxu0 0
      %5550 = vmatmul.mubr.bf16.gmra.mxu0 %v5507
      %v5551 = vpop.f32.mrf.mxu0
      %v5552 = vadd.f32 0.0, %v5551
      %v5553 = vpop.f32.mrf.mxu0
      %v5554 = vpop.f32.mrf.mxu0
      %v5555 = vadd.f32 0.0, %v5554
      %v5556 = vpop.f32.mrf.mxu0
      %5557 = vdwg.mxu0
      %5558 = vrot.lane.b32.xlu0 %v1400, 64
      %v5559 = vpop.permute.xlu0 %5558
      %5560 = vrot.lane.b32.xlu0 %v1401, 64
      %v5561 = vpop.permute.xlu0 %5560
      %v5565 = vsel %vm398, %v5247, 0
      %v5568 = vsel %vm398, %v5248, 0
      %5570 = vmatprep.subr.bf16.mxu0 0
      %5571 = vmatpush1.bf16.msra.mxu0 0
      %5572 = vmatprep.subr.bf16.mxu0 0
      %5573 = vmatpush1.bf16.msra.mxu0 0
      %5574 = vmatprep.subr.bf16.mxu0 0
      %5575 = vmatpush1.bf16.msra.mxu0 0
      %5576 = vmatprep.subr.bf16.mxu0 0
      %5577 = vmatpush1.bf16.msra.mxu0 0
      %5578 = vmatprep.subr.bf16.mxu0 0
      %5579 = vmatpush1.bf16.msra.mxu0 0
      %5580 = vmatprep.subr.bf16.mxu0 0
      %5581 = vmatpush1.bf16.msra.mxu0 0
      %5582 = vmatprep.subr.bf16.mxu0 0
      %5583 = vmatpush1.bf16.msra.mxu0 %v5561
      %5584 = vmatprep.subr.bf16.mxu0 0
      %5585 = vmatpush1.bf16.msra.mxu0 %v5559
      %5586 = vmatprep.subr.bf16.mxu0 0
      %5587 = vmatpush2.bf16.msra.mxu0 0
      %5588 = vmatprep.subr.bf16.mxu0 0
      %5589 = vmatpush2.bf16.msra.mxu0 0
      %5590 = vmatprep.subr.bf16.mxu0 0
      %5591 = vmatpush2.bf16.msra.mxu0 0
      %5592 = vmatprep.subr.bf16.mxu0 0
      %5593 = vmatpush2.bf16.msra.mxu0 0
      %5594 = vmatprep.subr.bf16.mxu0 0
      %5595 = vmatpush2.bf16.msra.mxu0 0
      %5596 = vmatprep.subr.bf16.mxu0 0
      %5597 = vmatpush2.bf16.msra.mxu0 0
      %5598 = vmatprep.subr.bf16.mxu0 0
      %5599 = vmatpush2.bf16.msra.mxu0 0
      %5600 = vmatprep.subr.bf16.mxu0 0
      %5601 = vmatpush2.bf16.msra.mxu0 0
      %5602 = vmatprep.mubr.bf16.mxu0 0
      %5603 = vmatmul.mubr.bf16.gmra.mxu0 %v5565
      %v5604 = vpop.f32.mrf.mxu0
      %v5605 = vadd.f32 0.0, %v5604
      %v5606 = vpop.f32.mrf.mxu0
      %v5607 = vpop.f32.mrf.mxu0
      %v5608 = vadd.f32 0.0, %v5607
      %v5609 = vpop.f32.mrf.mxu0
      %5610 = vmatprep.mubr.bf16.mxu0 0
      %5611 = vmatmul.mubr.bf16.gmra.mxu0 %v5568
      %v5612 = vpop.f32.mrf.mxu0
      %v5613 = vadd.f32 0.0, %v5612
      %v5614 = vpop.f32.mrf.mxu0
      %v5615 = vpop.f32.mrf.mxu0
      %v5616 = vadd.f32 0.0, %v5615
      %v5617 = vpop.f32.mrf.mxu0
      %5618 = vdwg.mxu0
      %5619 = vrot.lane.b32.xlu0 %v1402, 64
      %v5620 = vpop.permute.xlu0 %5619
      %5621 = vrot.lane.b32.xlu0 %v1403, 64
      %v5622 = vpop.permute.xlu0 %5621
      %v5626 = vsel %vm398, %v5249, 0
      %v5629 = vsel %vm398, %v5250, 0
      %5631 = vmatprep.subr.bf16.mxu0 0
      %5632 = vmatpush1.bf16.msra.mxu0 0
      %5633 = vmatprep.subr.bf16.mxu0 0
      %5634 = vmatpush1.bf16.msra.mxu0 0
      %5635 = vmatprep.subr.bf16.mxu0 0
      %5636 = vmatpush1.bf16.msra.mxu0 0
      %5637 = vmatprep.subr.bf16.mxu0 0
      %5638 = vmatpush1.bf16.msra.mxu0 0
      %5639 = vmatprep.subr.bf16.mxu0 0
      %5640 = vmatpush1.bf16.msra.mxu0 0
      %5641 = vmatprep.subr.bf16.mxu0 0
      %5642 = vmatpush1.bf16.msra.mxu0 0
      %5643 = vmatprep.subr.bf16.mxu0 0
      %5644 = vmatpush1.bf16.msra.mxu0 %v5622
      %5645 = vmatprep.subr.bf16.mxu0 0
      %5646 = vmatpush1.bf16.msra.mxu0 %v5620
      %5647 = vmatprep.subr.bf16.mxu0 0
      %5648 = vmatpush2.bf16.msra.mxu0 0
      %5649 = vmatprep.subr.bf16.mxu0 0
      %5650 = vmatpush2.bf16.msra.mxu0 0
      %5651 = vmatprep.subr.bf16.mxu0 0
      %5652 = vmatpush2.bf16.msra.mxu0 0
      %5653 = vmatprep.subr.bf16.mxu0 0
      %5654 = vmatpush2.bf16.msra.mxu0 0
      %5655 = vmatprep.subr.bf16.mxu0 0
      %5656 = vmatpush2.bf16.msra.mxu0 0
      %5657 = vmatprep.subr.bf16.mxu0 0
      %5658 = vmatpush2.bf16.msra.mxu0 0
      %5659 = vmatprep.subr.bf16.mxu0 0
      %5660 = vmatpush2.bf16.msra.mxu0 0
      %5661 = vmatprep.subr.bf16.mxu0 0
      %5662 = vmatpush2.bf16.msra.mxu0 0
      %5663 = vmatprep.mubr.bf16.mxu0 0
      %5664 = vmatmul.mubr.bf16.gmra.mxu0 %v5626
      %v5665 = vpop.f32.mrf.mxu0
      %v5666 = vadd.f32 0.0, %v5665
      %v5667 = vpop.f32.mrf.mxu0
      %v5668 = vpop.f32.mrf.mxu0
      %v5669 = vadd.f32 0.0, %v5668
      %v5670 = vpop.f32.mrf.mxu0
      %5671 = vmatprep.mubr.bf16.mxu0 0
      %5672 = vmatmul.mubr.bf16.gmra.mxu0 %v5629
      %v5673 = vpop.f32.mrf.mxu0
      %v5674 = vadd.f32 0.0, %v5673
      %v5675 = vpop.f32.mrf.mxu0
      %v5676 = vpop.f32.mrf.mxu0
      %v5677 = vadd.f32 0.0, %v5676
      %v5678 = vpop.f32.mrf.mxu0
      %5679 = vdwg.mxu0
      %5680 = vrot.lane.b32.xlu0 %v1404, 64
      %v5681 = vpop.permute.xlu0 %5680
      %5682 = vrot.lane.b32.xlu0 %v1405, 64
      %v5683 = vpop.permute.xlu0 %5682
      %v5687 = vsel %vm398, %v5251, 0
      %v5690 = vsel %vm398, %v5252, 0
      %5692 = vmatprep.subr.bf16.mxu0 0
      %5693 = vmatpush1.bf16.msra.mxu0 0
      %5694 = vmatprep.subr.bf16.mxu0 0
      %5695 = vmatpush1.bf16.msra.mxu0 0
      %5696 = vmatprep.subr.bf16.mxu0 0
      %5697 = vmatpush1.bf16.msra.mxu0 0
      %5698 = vmatprep.subr.bf16.mxu0 0
      %5699 = vmatpush1.bf16.msra.mxu0 0
      %5700 = vmatprep.subr.bf16.mxu0 0
      %5701 = vmatpush1.bf16.msra.mxu0 0
      %5702 = vmatprep.subr.bf16.mxu0 0
      %5703 = vmatpush1.bf16.msra.mxu0 0
      %5704 = vmatprep.subr.bf16.mxu0 0
      %5705 = vmatpush1.bf16.msra.mxu0 %v5683
      %5706 = vmatprep.subr.bf16.mxu0 0
      %5707 = vmatpush1.bf16.msra.mxu0 %v5681
      %5708 = vmatprep.subr.bf16.mxu0 0
      %5709 = vmatpush2.bf16.msra.mxu0 0
      %5710 = vmatprep.subr.bf16.mxu0 0
      %5711 = vmatpush2.bf16.msra.mxu0 0
      %5712 = vmatprep.subr.bf16.mxu0 0
      %5713 = vmatpush2.bf16.msra.mxu0 0
      %5714 = vmatprep.subr.bf16.mxu0 0
      %5715 = vmatpush2.bf16.msra.mxu0 0
      %5716 = vmatprep.subr.bf16.mxu0 0
      %5717 = vmatpush2.bf16.msra.mxu0 0
      %5718 = vmatprep.subr.bf16.mxu0 0
      %5719 = vmatpush2.bf16.msra.mxu0 0
      %5720 = vmatprep.subr.bf16.mxu0 0
      %5721 = vmatpush2.bf16.msra.mxu0 0
      %5722 = vmatprep.subr.bf16.mxu0 0
      %5723 = vmatpush2.bf16.msra.mxu0 0
      %5724 = vmatprep.mubr.bf16.mxu0 0
      %5725 = vmatmul.mubr.bf16.gmra.mxu0 %v5687
      %v5726 = vpop.f32.mrf.mxu0
      %v5727 = vadd.f32 0.0, %v5726
      %v5728 = vpop.f32.mrf.mxu0
      %v5729 = vpop.f32.mrf.mxu0
      %v5730 = vadd.f32 0.0, %v5729
      %v5731 = vpop.f32.mrf.mxu0
      %5732 = vmatprep.mubr.bf16.mxu0 0
      %5733 = vmatmul.mubr.bf16.gmra.mxu0 %v5690
      %v5734 = vpop.f32.mrf.mxu0
      %v5735 = vadd.f32 0.0, %v5734
      %v5736 = vpop.f32.mrf.mxu0
      %v5737 = vpop.f32.mrf.mxu0
      %v5738 = vadd.f32 0.0, %v5737
      %v5739 = vpop.f32.mrf.mxu0
      %5740 = vdwg.mxu0
      %v5741 = vadd.f32 %v3897, %v5300
      %v5742 = vadd.f32 %v3900, %v5303
      %v5743 = vadd.f32 %v3905, %v5308
      %v5744 = vadd.f32 %v3908, %v5311
      %v5745 = vadd.f32 %v3952, %v5361
      %v5746 = vadd.f32 %v3955, %v5364
      %v5747 = vadd.f32 %v3960, %v5369
      %v5748 = vadd.f32 %v3963, %v5372
      %v5749 = vadd.f32 %v4007, %v5422
      %v5750 = vadd.f32 %v4010, %v5425
      %v5751 = vadd.f32 %v4015, %v5430
      %v5752 = vadd.f32 %v4018, %v5433
      %v5753 = vadd.f32 %v4062, %v5483
      %v5754 = vadd.f32 %v4065, %v5486
      %v5755 = vadd.f32 %v4070, %v5491
      %v5756 = vadd.f32 %v4073, %v5494
      %v5757 = vadd.f32 %v4117, %v5544
      %v5758 = vadd.f32 %v4120, %v5547
      %v5759 = vadd.f32 %v4125, %v5552
      %v5760 = vadd.f32 %v4128, %v5555
      %v5761 = vadd.f32 %v4172, %v5605
      %v5762 = vadd.f32 %v4175, %v5608
      %v5763 = vadd.f32 %v4180, %v5613
      %v5764 = vadd.f32 %v4183, %v5616
      %v5765 = vadd.f32 %v4227, %v5666
      %v5766 = vadd.f32 %v4230, %v5669
      %v5767 = vadd.f32 %v4235, %v5674
      %v5768 = vadd.f32 %v4238, %v5677
      %v5769 = vadd.f32 %v4282, %v5727
      %v5770 = vadd.f32 %v4285, %v5730
      %v5771 = vadd.f32 %v4290, %v5735
      %v5772 = vadd.f32 %v4293, %v5738
      %s5773 = scalar_lea.vmem %s1, 96
      %v5774 = vld [vmem:[%s5773] sm:$0xff]
      %v5775 = vld [vmem:[%s5773 + $0x8] sm:$0xff]
      %v5776 = vld [vmem:[%s5773 + $0x10] sm:$0xff]
      %v5777 = vld [vmem:[%s5773 + $0x18] sm:$0xff]
      %5778 = vrot.lane.b32.xlu0 %v1358, 104
      %v5779 = vpop.permute.xlu0 %5778
      %5780 = vrot.lane.b32.xlu0 %v1359, 104
      %v5781 = vpop.permute.xlu0 %5780
      %5782 = vrot.lane.b32.xlu0 %v1374, 72
      %v5783 = vpop.permute.xlu0 %5782
      %5784 = vrot.lane.b32.xlu0 %v1375, 72
      %v5785 = vpop.permute.xlu0 %5784
      %v5787 = vsel %vm1416, %v5779, 0
      %v5790 = vsel %vm1416, %v5781, 0
      %v5793 = vsel %vm1416, %v5783, 0
      %v5796 = vsel %vm1416, %v5785, 0
      %5798 = vmatprep.subr.bf16.mxu0 0
      %5799 = vmatpush1.bf16.xpose.msra.mxu0 0
      %5800 = vmatprep.subr.bf16.mxu0 0
      %5801 = vmatpush1.bf16.xpose.msra.mxu0 0
      %5802 = vmatprep.subr.bf16.mxu0 0
      %5803 = vmatpush1.bf16.xpose.msra.mxu0 0
      %5804 = vmatprep.subr.bf16.mxu0 0
      %5805 = vmatpush1.bf16.xpose.msra.mxu0 0
      %5806 = vmatprep.subr.bf16.mxu0 0
      %5807 = vmatpush1.bf16.xpose.msra.mxu0 0
      %5808 = vmatprep.subr.bf16.mxu0 0
      %5809 = vmatpush1.bf16.xpose.msra.mxu0 0
      %5810 = vmatprep.subr.bf16.mxu0 0
      %5811 = vmatpush1.bf16.xpose.msra.mxu0 %v5796
      %5812 = vmatprep.subr.bf16.mxu0 0
      %5813 = vmatpush1.bf16.xpose.msra.mxu0 %v5793
      %5814 = vmatprep.subr.bf16.mxu0 0
      %5815 = vmatpush2.bf16.xpose.msra.mxu0 0
      %5816 = vmatprep.subr.bf16.mxu0 0
      %5817 = vmatpush2.bf16.xpose.msra.mxu0 0
      %5818 = vmatprep.subr.bf16.mxu0 0
      %5819 = vmatpush2.bf16.xpose.msra.mxu0 0
      %5820 = vmatprep.subr.bf16.mxu0 0
      %5821 = vmatpush2.bf16.xpose.msra.mxu0 0
      %5822 = vmatprep.subr.bf16.mxu0 0
      %5823 = vmatpush2.bf16.xpose.msra.mxu0 0
      %5824 = vmatprep.subr.bf16.mxu0 0
      %5825 = vmatpush2.bf16.xpose.msra.mxu0 0
      %5826 = vmatprep.subr.bf16.mxu0 0
      %5827 = vmatpush2.bf16.xpose.msra.mxu0 0
      %5828 = vmatprep.subr.bf16.mxu0 0
      %5829 = vmatpush2.bf16.xpose.msra.mxu0 0
      %5830 = vmatprep.mubr.bf16.mxu0 0
      %5831 = vmatmul.mubr.bf16.gmra.mxu0 %v5787
      %v5832 = vpop.f32.mrf.mxu0
      %v5833 = vadd.f32 %v5774, %v5832
      %v5834 = vpop.f32.mrf.mxu0
      %v5835 = vpop.f32.mrf.mxu0
      %v5836 = vadd.f32 %v5775, %v5835
      %v5837 = vpop.f32.mrf.mxu0
      %5838 = vmatprep.mubr.bf16.mxu0 0
      %5839 = vmatmul.mubr.bf16.gmra.mxu0 %v5790
      %v5840 = vpop.f32.mrf.mxu0
      %v5841 = vadd.f32 %v5776, %v5840
      %v5842 = vpop.f32.mrf.mxu0
      %v5843 = vpop.f32.mrf.mxu0
      %v5844 = vadd.f32 %v5777, %v5843
      %v5845 = vpop.f32.mrf.mxu0
      %5846 = vdwg.mxu0
      %5847 = vrot.lane.b32.xlu0 %v1360, 104
      %v5848 = vpop.permute.xlu0 %5847
      %5849 = vrot.lane.b32.xlu0 %v1361, 104
      %v5850 = vpop.permute.xlu0 %5849
      %5851 = vrot.lane.b32.xlu0 %v1376, 72
      %v5852 = vpop.permute.xlu0 %5851
      %5853 = vrot.lane.b32.xlu0 %v1377, 72
      %v5854 = vpop.permute.xlu0 %5853
      %v5856 = vsel %vm1416, %v5848, 0
      %v5859 = vsel %vm1416, %v5850, 0
      %v5862 = vsel %vm1416, %v5852, 0
      %v5865 = vsel %vm1416, %v5854, 0
      %5867 = vmatprep.subr.bf16.mxu0 0
      %5868 = vmatpush1.bf16.xpose.msra.mxu0 0
      %5869 = vmatprep.subr.bf16.mxu0 0
      %5870 = vmatpush1.bf16.xpose.msra.mxu0 0
      %5871 = vmatprep.subr.bf16.mxu0 0
      %5872 = vmatpush1.bf16.xpose.msra.mxu0 0
      %5873 = vmatprep.subr.bf16.mxu0 0
      %5874 = vmatpush1.bf16.xpose.msra.mxu0 0
      %5875 = vmatprep.subr.bf16.mxu0 0
      %5876 = vmatpush1.bf16.xpose.msra.mxu0 0
      %5877 = vmatprep.subr.bf16.mxu0 0
      %5878 = vmatpush1.bf16.xpose.msra.mxu0 0
      %5879 = vmatprep.subr.bf16.mxu0 0
      %5880 = vmatpush1.bf16.xpose.msra.mxu0 %v5865
      %5881 = vmatprep.subr.bf16.mxu0 0
      %5882 = vmatpush1.bf16.xpose.msra.mxu0 %v5862
      %5883 = vmatprep.subr.bf16.mxu0 0
      %5884 = vmatpush2.bf16.xpose.msra.mxu0 0
      %5885 = vmatprep.subr.bf16.mxu0 0
      %5886 = vmatpush2.bf16.xpose.msra.mxu0 0
      %5887 = vmatprep.subr.bf16.mxu0 0
      %5888 = vmatpush2.bf16.xpose.msra.mxu0 0
      %5889 = vmatprep.subr.bf16.mxu0 0
      %5890 = vmatpush2.bf16.xpose.msra.mxu0 0
      %5891 = vmatprep.subr.bf16.mxu0 0
      %5892 = vmatpush2.bf16.xpose.msra.mxu0 0
      %5893 = vmatprep.subr.bf16.mxu0 0
      %5894 = vmatpush2.bf16.xpose.msra.mxu0 0
      %5895 = vmatprep.subr.bf16.mxu0 0
      %5896 = vmatpush2.bf16.xpose.msra.mxu0 0
      %5897 = vmatprep.subr.bf16.mxu0 0
      %5898 = vmatpush2.bf16.xpose.msra.mxu0 0
      %5899 = vmatprep.mubr.bf16.mxu0 0
      %5900 = vmatmul.mubr.bf16.gmra.mxu0 %v5856
      %v5901 = vpop.f32.mrf.mxu0
      %v5902 = vadd.f32 %v5774, %v5901
      %v5903 = vpop.f32.mrf.mxu0
      %v5904 = vpop.f32.mrf.mxu0
      %v5905 = vadd.f32 %v5775, %v5904
      %v5906 = vpop.f32.mrf.mxu0
      %5907 = vmatprep.mubr.bf16.mxu0 0
      %5908 = vmatmul.mubr.bf16.gmra.mxu0 %v5859
      %v5909 = vpop.f32.mrf.mxu0
      %v5910 = vadd.f32 %v5776, %v5909
      %v5911 = vpop.f32.mrf.mxu0
      %v5912 = vpop.f32.mrf.mxu0
      %v5913 = vadd.f32 %v5777, %v5912
      %v5914 = vpop.f32.mrf.mxu0
      %5915 = vdwg.mxu0
      %5916 = vrot.lane.b32.xlu0 %v1362, 104
      %v5917 = vpop.permute.xlu0 %5916
      %5918 = vrot.lane.b32.xlu0 %v1363, 104
      %v5919 = vpop.permute.xlu0 %5918
      %5920 = vrot.lane.b32.xlu0 %v1378, 72
      %v5921 = vpop.permute.xlu0 %5920
      %5922 = vrot.lane.b32.xlu0 %v1379, 72
      %v5923 = vpop.permute.xlu0 %5922
      %v5925 = vsel %vm1416, %v5917, 0
      %v5928 = vsel %vm1416, %v5919, 0
      %v5931 = vsel %vm1416, %v5921, 0
      %v5934 = vsel %vm1416, %v5923, 0
      %5936 = vmatprep.subr.bf16.mxu0 0
      %5937 = vmatpush1.bf16.xpose.msra.mxu0 0
      %5938 = vmatprep.subr.bf16.mxu0 0
      %5939 = vmatpush1.bf16.xpose.msra.mxu0 0
      %5940 = vmatprep.subr.bf16.mxu0 0
      %5941 = vmatpush1.bf16.xpose.msra.mxu0 0
      %5942 = vmatprep.subr.bf16.mxu0 0
      %5943 = vmatpush1.bf16.xpose.msra.mxu0 0
      %5944 = vmatprep.subr.bf16.mxu0 0
      %5945 = vmatpush1.bf16.xpose.msra.mxu0 0
      %5946 = vmatprep.subr.bf16.mxu0 0
      %5947 = vmatpush1.bf16.xpose.msra.mxu0 0
      %5948 = vmatprep.subr.bf16.mxu0 0
      %5949 = vmatpush1.bf16.xpose.msra.mxu0 %v5934
      %5950 = vmatprep.subr.bf16.mxu0 0
      %5951 = vmatpush1.bf16.xpose.msra.mxu0 %v5931
      %5952 = vmatprep.subr.bf16.mxu0 0
      %5953 = vmatpush2.bf16.xpose.msra.mxu0 0
      %5954 = vmatprep.subr.bf16.mxu0 0
      %5955 = vmatpush2.bf16.xpose.msra.mxu0 0
      %5956 = vmatprep.subr.bf16.mxu0 0
      %5957 = vmatpush2.bf16.xpose.msra.mxu0 0
      %5958 = vmatprep.subr.bf16.mxu0 0
      %5959 = vmatpush2.bf16.xpose.msra.mxu0 0
      %5960 = vmatprep.subr.bf16.mxu0 0
      %5961 = vmatpush2.bf16.xpose.msra.mxu0 0
      %5962 = vmatprep.subr.bf16.mxu0 0
      %5963 = vmatpush2.bf16.xpose.msra.mxu0 0
      %5964 = vmatprep.subr.bf16.mxu0 0
      %5965 = vmatpush2.bf16.xpose.msra.mxu0 0
      %5966 = vmatprep.subr.bf16.mxu0 0
      %5967 = vmatpush2.bf16.xpose.msra.mxu0 0
      %5968 = vmatprep.mubr.bf16.mxu0 0
      %5969 = vmatmul.mubr.bf16.gmra.mxu0 %v5925
      %v5970 = vpop.f32.mrf.mxu0
      %v5971 = vadd.f32 %v5774, %v5970
      %v5972 = vpop.f32.mrf.mxu0
      %v5973 = vpop.f32.mrf.mxu0
      %v5974 = vadd.f32 %v5775, %v5973
      %v5975 = vpop.f32.mrf.mxu0
      %5976 = vmatprep.mubr.bf16.mxu0 0
      %5977 = vmatmul.mubr.bf16.gmra.mxu0 %v5928
      %v5978 = vpop.f32.mrf.mxu0
      %v5979 = vadd.f32 %v5776, %v5978
      %v5980 = vpop.f32.mrf.mxu0
      %v5981 = vpop.f32.mrf.mxu0
      %v5982 = vadd.f32 %v5777, %v5981
      %v5983 = vpop.f32.mrf.mxu0
      %5984 = vdwg.mxu0
      %5985 = vrot.lane.b32.xlu0 %v1364, 104
      %v5986 = vpop.permute.xlu0 %5985
      %5987 = vrot.lane.b32.xlu0 %v1365, 104
      %v5988 = vpop.permute.xlu0 %5987
      %5989 = vrot.lane.b32.xlu0 %v1380, 72
      %v5990 = vpop.permute.xlu0 %5989
      %5991 = vrot.lane.b32.xlu0 %v1381, 72
      %v5992 = vpop.permute.xlu0 %5991
      %v5994 = vsel %vm1416, %v5986, 0
      %v5997 = vsel %vm1416, %v5988, 0
      %v6000 = vsel %vm1416, %v5990, 0
      %v6003 = vsel %vm1416, %v5992, 0
      %6005 = vmatprep.subr.bf16.mxu0 0
      %6006 = vmatpush1.bf16.xpose.msra.mxu0 0
      %6007 = vmatprep.subr.bf16.mxu0 0
      %6008 = vmatpush1.bf16.xpose.msra.mxu0 0
      %6009 = vmatprep.subr.bf16.mxu0 0
      %6010 = vmatpush1.bf16.xpose.msra.mxu0 0
      %6011 = vmatprep.subr.bf16.mxu0 0
      %6012 = vmatpush1.bf16.xpose.msra.mxu0 0
      %6013 = vmatprep.subr.bf16.mxu0 0
      %6014 = vmatpush1.bf16.xpose.msra.mxu0 0
      %6015 = vmatprep.subr.bf16.mxu0 0
      %6016 = vmatpush1.bf16.xpose.msra.mxu0 0
      %6017 = vmatprep.subr.bf16.mxu0 0
      %6018 = vmatpush1.bf16.xpose.msra.mxu0 %v6003
      %6019 = vmatprep.subr.bf16.mxu0 0
      %6020 = vmatpush1.bf16.xpose.msra.mxu0 %v6000
      %6021 = vmatprep.subr.bf16.mxu0 0
      %6022 = vmatpush2.bf16.xpose.msra.mxu0 0
      %6023 = vmatprep.subr.bf16.mxu0 0
      %6024 = vmatpush2.bf16.xpose.msra.mxu0 0
      %6025 = vmatprep.subr.bf16.mxu0 0
      %6026 = vmatpush2.bf16.xpose.msra.mxu0 0
      %6027 = vmatprep.subr.bf16.mxu0 0
      %6028 = vmatpush2.bf16.xpose.msra.mxu0 0
      %6029 = vmatprep.subr.bf16.mxu0 0
      %6030 = vmatpush2.bf16.xpose.msra.mxu0 0
      %6031 = vmatprep.subr.bf16.mxu0 0
      %6032 = vmatpush2.bf16.xpose.msra.mxu0 0
      %6033 = vmatprep.subr.bf16.mxu0 0
      %6034 = vmatpush2.bf16.xpose.msra.mxu0 0
      %6035 = vmatprep.subr.bf16.mxu0 0
      %6036 = vmatpush2.bf16.xpose.msra.mxu0 0
      %6037 = vmatprep.mubr.bf16.mxu0 0
      %6038 = vmatmul.mubr.bf16.gmra.mxu0 %v5994
      %v6039 = vpop.f32.mrf.mxu0
      %v6040 = vadd.f32 %v5774, %v6039
      %v6041 = vpop.f32.mrf.mxu0
      %v6042 = vpop.f32.mrf.mxu0
      %v6043 = vadd.f32 %v5775, %v6042
      %v6044 = vpop.f32.mrf.mxu0
      %6045 = vmatprep.mubr.bf16.mxu0 0
      %6046 = vmatmul.mubr.bf16.gmra.mxu0 %v5997
      %v6047 = vpop.f32.mrf.mxu0
      %v6048 = vadd.f32 %v5776, %v6047
      %v6049 = vpop.f32.mrf.mxu0
      %v6050 = vpop.f32.mrf.mxu0
      %v6051 = vadd.f32 %v5777, %v6050
      %v6052 = vpop.f32.mrf.mxu0
      %6053 = vdwg.mxu0
      %6054 = vrot.lane.b32.xlu0 %v1366, 104
      %v6055 = vpop.permute.xlu0 %6054
      %6056 = vrot.lane.b32.xlu0 %v1367, 104
      %v6057 = vpop.permute.xlu0 %6056
      %6058 = vrot.lane.b32.xlu0 %v1382, 72
      %v6059 = vpop.permute.xlu0 %6058
      %6060 = vrot.lane.b32.xlu0 %v1383, 72
      %v6061 = vpop.permute.xlu0 %6060
      %v6063 = vsel %vm1416, %v6055, 0
      %v6066 = vsel %vm1416, %v6057, 0
      %v6069 = vsel %vm1416, %v6059, 0
      %v6072 = vsel %vm1416, %v6061, 0
      %6074 = vmatprep.subr.bf16.mxu0 0
      %6075 = vmatpush1.bf16.xpose.msra.mxu0 0
      %6076 = vmatprep.subr.bf16.mxu0 0
      %6077 = vmatpush1.bf16.xpose.msra.mxu0 0
      %6078 = vmatprep.subr.bf16.mxu0 0
      %6079 = vmatpush1.bf16.xpose.msra.mxu0 0
      %6080 = vmatprep.subr.bf16.mxu0 0
      %6081 = vmatpush1.bf16.xpose.msra.mxu0 0
      %6082 = vmatprep.subr.bf16.mxu0 0
      %6083 = vmatpush1.bf16.xpose.msra.mxu0 0
      %6084 = vmatprep.subr.bf16.mxu0 0
      %6085 = vmatpush1.bf16.xpose.msra.mxu0 0
      %6086 = vmatprep.subr.bf16.mxu0 0
      %6087 = vmatpush1.bf16.xpose.msra.mxu0 %v6072
      %6088 = vmatprep.subr.bf16.mxu0 0
      %6089 = vmatpush1.bf16.xpose.msra.mxu0 %v6069
      %6090 = vmatprep.subr.bf16.mxu0 0
      %6091 = vmatpush2.bf16.xpose.msra.mxu0 0
      %6092 = vmatprep.subr.bf16.mxu0 0
      %6093 = vmatpush2.bf16.xpose.msra.mxu0 0
      %6094 = vmatprep.subr.bf16.mxu0 0
      %6095 = vmatpush2.bf16.xpose.msra.mxu0 0
      %6096 = vmatprep.subr.bf16.mxu0 0
      %6097 = vmatpush2.bf16.xpose.msra.mxu0 0
      %6098 = vmatprep.subr.bf16.mxu0 0
      %6099 = vmatpush2.bf16.xpose.msra.mxu0 0
      %6100 = vmatprep.subr.bf16.mxu0 0
      %6101 = vmatpush2.bf16.xpose.msra.mxu0 0
      %6102 = vmatprep.subr.bf16.mxu0 0
      %6103 = vmatpush2.bf16.xpose.msra.mxu0 0
      %6104 = vmatprep.subr.bf16.mxu0 0
      %6105 = vmatpush2.bf16.xpose.msra.mxu0 0
      %6106 = vmatprep.mubr.bf16.mxu0 0
      %6107 = vmatmul.mubr.bf16.gmra.mxu0 %v6063
      %v6108 = vpop.f32.mrf.mxu0
      %v6109 = vadd.f32 %v5774, %v6108
      %v6110 = vpop.f32.mrf.mxu0
      %v6111 = vpop.f32.mrf.mxu0
      %v6112 = vadd.f32 %v5775, %v6111
      %v6113 = vpop.f32.mrf.mxu0
      %6114 = vmatprep.mubr.bf16.mxu0 0
      %6115 = vmatmul.mubr.bf16.gmra.mxu0 %v6066
      %v6116 = vpop.f32.mrf.mxu0
      %v6117 = vadd.f32 %v5776, %v6116
      %v6118 = vpop.f32.mrf.mxu0
      %v6119 = vpop.f32.mrf.mxu0
      %v6120 = vadd.f32 %v5777, %v6119
      %v6121 = vpop.f32.mrf.mxu0
      %6122 = vdwg.mxu0
      %6123 = vrot.lane.b32.xlu0 %v1368, 104
      %v6124 = vpop.permute.xlu0 %6123
      %6125 = vrot.lane.b32.xlu0 %v1369, 104
      %v6126 = vpop.permute.xlu0 %6125
      %6127 = vrot.lane.b32.xlu0 %v1384, 72
      %v6128 = vpop.permute.xlu0 %6127
      %6129 = vrot.lane.b32.xlu0 %v1385, 72
      %v6130 = vpop.permute.xlu0 %6129
      %v6132 = vsel %vm1416, %v6124, 0
      %v6135 = vsel %vm1416, %v6126, 0
      %v6138 = vsel %vm1416, %v6128, 0
      %v6141 = vsel %vm1416, %v6130, 0
      %6143 = vmatprep.subr.bf16.mxu0 0
      %6144 = vmatpush1.bf16.xpose.msra.mxu0 0
      %6145 = vmatprep.subr.bf16.mxu0 0
      %6146 = vmatpush1.bf16.xpose.msra.mxu0 0
      %6147 = vmatprep.subr.bf16.mxu0 0
      %6148 = vmatpush1.bf16.xpose.msra.mxu0 0
      %6149 = vmatprep.subr.bf16.mxu0 0
      %6150 = vmatpush1.bf16.xpose.msra.mxu0 0
      %6151 = vmatprep.subr.bf16.mxu0 0
      %6152 = vmatpush1.bf16.xpose.msra.mxu0 0
      %6153 = vmatprep.subr.bf16.mxu0 0
      %6154 = vmatpush1.bf16.xpose.msra.mxu0 0
      %6155 = vmatprep.subr.bf16.mxu0 0
      %6156 = vmatpush1.bf16.xpose.msra.mxu0 %v6141
      %6157 = vmatprep.subr.bf16.mxu0 0
      %6158 = vmatpush1.bf16.xpose.msra.mxu0 %v6138
      %6159 = vmatprep.subr.bf16.mxu0 0
      %6160 = vmatpush2.bf16.xpose.msra.mxu0 0
      %6161 = vmatprep.subr.bf16.mxu0 0
      %6162 = vmatpush2.bf16.xpose.msra.mxu0 0
      %6163 = vmatprep.subr.bf16.mxu0 0
      %6164 = vmatpush2.bf16.xpose.msra.mxu0 0
      %6165 = vmatprep.subr.bf16.mxu0 0
      %6166 = vmatpush2.bf16.xpose.msra.mxu0 0
      %6167 = vmatprep.subr.bf16.mxu0 0
      %6168 = vmatpush2.bf16.xpose.msra.mxu0 0
      %6169 = vmatprep.subr.bf16.mxu0 0
      %6170 = vmatpush2.bf16.xpose.msra.mxu0 0
      %6171 = vmatprep.subr.bf16.mxu0 0
      %6172 = vmatpush2.bf16.xpose.msra.mxu0 0
      %6173 = vmatprep.subr.bf16.mxu0 0
      %6174 = vmatpush2.bf16.xpose.msra.mxu0 0
      %6175 = vmatprep.mubr.bf16.mxu0 0
      %6176 = vmatmul.mubr.bf16.gmra.mxu0 %v6132
      %v6177 = vpop.f32.mrf.mxu0
      %v6178 = vadd.f32 %v5774, %v6177
      %v6179 = vpop.f32.mrf.mxu0
      %v6180 = vpop.f32.mrf.mxu0
      %v6181 = vadd.f32 %v5775, %v6180
      %v6182 = vpop.f32.mrf.mxu0
      %6183 = vmatprep.mubr.bf16.mxu0 0
      %6184 = vmatmul.mubr.bf16.gmra.mxu0 %v6135
      %v6185 = vpop.f32.mrf.mxu0
      %v6186 = vadd.f32 %v5776, %v6185
      %v6187 = vpop.f32.mrf.mxu0
      %v6188 = vpop.f32.mrf.mxu0
      %v6189 = vadd.f32 %v5777, %v6188
      %v6190 = vpop.f32.mrf.mxu0
      %6191 = vdwg.mxu0
      %6192 = vrot.lane.b32.xlu0 %v1370, 104
      %v6193 = vpop.permute.xlu0 %6192
      %6194 = vrot.lane.b32.xlu0 %v1371, 104
      %v6195 = vpop.permute.xlu0 %6194
      %6196 = vrot.lane.b32.xlu0 %v1386, 72
      %v6197 = vpop.permute.xlu0 %6196
      %6198 = vrot.lane.b32.xlu0 %v1387, 72
      %v6199 = vpop.permute.xlu0 %6198
      %v6201 = vsel %vm1416, %v6193, 0
      %v6204 = vsel %vm1416, %v6195, 0
      %v6207 = vsel %vm1416, %v6197, 0
      %v6210 = vsel %vm1416, %v6199, 0
      %6212 = vmatprep.subr.bf16.mxu0 0
      %6213 = vmatpush1.bf16.xpose.msra.mxu0 0
      %6214 = vmatprep.subr.bf16.mxu0 0
      %6215 = vmatpush1.bf16.xpose.msra.mxu0 0
      %6216 = vmatprep.subr.bf16.mxu0 0
      %6217 = vmatpush1.bf16.xpose.msra.mxu0 0
      %6218 = vmatprep.subr.bf16.mxu0 0
      %6219 = vmatpush1.bf16.xpose.msra.mxu0 0
      %6220 = vmatprep.subr.bf16.mxu0 0
      %6221 = vmatpush1.bf16.xpose.msra.mxu0 0
      %6222 = vmatprep.subr.bf16.mxu0 0
      %6223 = vmatpush1.bf16.xpose.msra.mxu0 0
      %6224 = vmatprep.subr.bf16.mxu0 0
      %6225 = vmatpush1.bf16.xpose.msra.mxu0 %v6210
      %6226 = vmatprep.subr.bf16.mxu0 0
      %6227 = vmatpush1.bf16.xpose.msra.mxu0 %v6207
      %6228 = vmatprep.subr.bf16.mxu0 0
      %6229 = vmatpush2.bf16.xpose.msra.mxu0 0
      %6230 = vmatprep.subr.bf16.mxu0 0
      %6231 = vmatpush2.bf16.xpose.msra.mxu0 0
      %6232 = vmatprep.subr.bf16.mxu0 0
      %6233 = vmatpush2.bf16.xpose.msra.mxu0 0
      %6234 = vmatprep.subr.bf16.mxu0 0
      %6235 = vmatpush2.bf16.xpose.msra.mxu0 0
      %6236 = vmatprep.subr.bf16.mxu0 0
      %6237 = vmatpush2.bf16.xpose.msra.mxu0 0
      %6238 = vmatprep.subr.bf16.mxu0 0
      %6239 = vmatpush2.bf16.xpose.msra.mxu0 0
      %6240 = vmatprep.subr.bf16.mxu0 0
      %6241 = vmatpush2.bf16.xpose.msra.mxu0 0
      %6242 = vmatprep.subr.bf16.mxu0 0
      %6243 = vmatpush2.bf16.xpose.msra.mxu0 0
      %6244 = vmatprep.mubr.bf16.mxu0 0
      %6245 = vmatmul.mubr.bf16.gmra.mxu0 %v6201
      %v6246 = vpop.f32.mrf.mxu0
      %v6247 = vadd.f32 %v5774, %v6246
      %v6248 = vpop.f32.mrf.mxu0
      %v6249 = vpop.f32.mrf.mxu0
      %v6250 = vadd.f32 %v5775, %v6249
      %v6251 = vpop.f32.mrf.mxu0
      %6252 = vmatprep.mubr.bf16.mxu0 0
      %6253 = vmatmul.mubr.bf16.gmra.mxu0 %v6204
      %v6254 = vpop.f32.mrf.mxu0
      %v6255 = vadd.f32 %v5776, %v6254
      %v6256 = vpop.f32.mrf.mxu0
      %v6257 = vpop.f32.mrf.mxu0
      %v6258 = vadd.f32 %v5777, %v6257
      %v6259 = vpop.f32.mrf.mxu0
      %6260 = vdwg.mxu0
      %6261 = vrot.lane.b32.xlu0 %v1372, 104
      %v6262 = vpop.permute.xlu0 %6261
      %6263 = vrot.lane.b32.xlu0 %v1373, 104
      %v6264 = vpop.permute.xlu0 %6263
      %6265 = vrot.lane.b32.xlu0 %v1388, 72
      %v6266 = vpop.permute.xlu0 %6265
      %6267 = vrot.lane.b32.xlu0 %v1389, 72
      %v6268 = vpop.permute.xlu0 %6267
      %v6270 = vsel %vm1416, %v6262, 0
      %v6273 = vsel %vm1416, %v6264, 0
      %v6276 = vsel %vm1416, %v6266, 0
      %v6279 = vsel %vm1416, %v6268, 0
      %6281 = vmatprep.subr.bf16.mxu0 0
      %6282 = vmatpush1.bf16.xpose.msra.mxu0 0
      %6283 = vmatprep.subr.bf16.mxu0 0
      %6284 = vmatpush1.bf16.xpose.msra.mxu0 0
      %6285 = vmatprep.subr.bf16.mxu0 0
      %6286 = vmatpush1.bf16.xpose.msra.mxu0 0
      %6287 = vmatprep.subr.bf16.mxu0 0
      %6288 = vmatpush1.bf16.xpose.msra.mxu0 0
      %6289 = vmatprep.subr.bf16.mxu0 0
      %6290 = vmatpush1.bf16.xpose.msra.mxu0 0
      %6291 = vmatprep.subr.bf16.mxu0 0
      %6292 = vmatpush1.bf16.xpose.msra.mxu0 0
      %6293 = vmatprep.subr.bf16.mxu0 0
      %6294 = vmatpush1.bf16.xpose.msra.mxu0 %v6279
      %6295 = vmatprep.subr.bf16.mxu0 0
      %6296 = vmatpush1.bf16.xpose.msra.mxu0 %v6276
      %6297 = vmatprep.subr.bf16.mxu0 0
      %6298 = vmatpush2.bf16.xpose.msra.mxu0 0
      %6299 = vmatprep.subr.bf16.mxu0 0
      %6300 = vmatpush2.bf16.xpose.msra.mxu0 0
      %6301 = vmatprep.subr.bf16.mxu0 0
      %6302 = vmatpush2.bf16.xpose.msra.mxu0 0
      %6303 = vmatprep.subr.bf16.mxu0 0
      %6304 = vmatpush2.bf16.xpose.msra.mxu0 0
      %6305 = vmatprep.subr.bf16.mxu0 0
      %6306 = vmatpush2.bf16.xpose.msra.mxu0 0
      %6307 = vmatprep.subr.bf16.mxu0 0
      %6308 = vmatpush2.bf16.xpose.msra.mxu0 0
      %6309 = vmatprep.subr.bf16.mxu0 0
      %6310 = vmatpush2.bf16.xpose.msra.mxu0 0
      %6311 = vmatprep.subr.bf16.mxu0 0
      %6312 = vmatpush2.bf16.xpose.msra.mxu0 0
      %6313 = vmatprep.mubr.bf16.mxu0 0
      %6314 = vmatmul.mubr.bf16.gmra.mxu0 %v6270
      %v6315 = vpop.f32.mrf.mxu0
      %v6316 = vadd.f32 %v5774, %v6315
      %v6317 = vpop.f32.mrf.mxu0
      %v6318 = vpop.f32.mrf.mxu0
      %v6319 = vadd.f32 %v5775, %v6318
      %v6320 = vpop.f32.mrf.mxu0
      %6321 = vmatprep.mubr.bf16.mxu0 0
      %6322 = vmatmul.mubr.bf16.gmra.mxu0 %v6273
      %v6323 = vpop.f32.mrf.mxu0
      %v6324 = vadd.f32 %v5776, %v6323
      %v6325 = vpop.f32.mrf.mxu0
      %v6326 = vpop.f32.mrf.mxu0
      %v6327 = vadd.f32 %v5777, %v6326
      %v6328 = vpop.f32.mrf.mxu0
      %6329 = vdwg.mxu0
      %v6330 = vadd.f32 %v5833, %v1947
      %v6331 = vadd.f32 %v5836, %v1948
      %v6332 = vadd.f32 %v5841, %v1949
      %v6333 = vadd.f32 %v5844, %v1950
      %v6334 = vadd.f32 %v5902, %v1951
      %v6335 = vadd.f32 %v5905, %v1952
      %v6336 = vadd.f32 %v5910, %v1953
      %v6337 = vadd.f32 %v5913, %v1954
      %v6338 = vadd.f32 %v5971, %v1955
      %v6339 = vadd.f32 %v5974, %v1956
      %v6340 = vadd.f32 %v5979, %v1957
      %v6341 = vadd.f32 %v5982, %v1958
      %v6342 = vadd.f32 %v6040, %v1959
      %v6343 = vadd.f32 %v6043, %v1960
      %v6344 = vadd.f32 %v6048, %v1961
      %v6345 = vadd.f32 %v6051, %v1962
      %v6346 = vadd.f32 %v6109, %v1963
      %v6347 = vadd.f32 %v6112, %v1964
      %v6348 = vadd.f32 %v6117, %v1965
      %v6349 = vadd.f32 %v6120, %v1966
      %v6350 = vadd.f32 %v6178, %v1967
      %v6351 = vadd.f32 %v6181, %v1968
      %v6352 = vadd.f32 %v6186, %v1969
      %v6353 = vadd.f32 %v6189, %v1970
      %v6354 = vadd.f32 %v6247, %v1971
      %v6355 = vadd.f32 %v6250, %v1972
      %v6356 = vadd.f32 %v6255, %v1973
      %v6357 = vadd.f32 %v6258, %v1974
      %v6358 = vadd.f32 %v6316, %v1975
      %v6359 = vadd.f32 %v6319, %v1976
      %v6360 = vadd.f32 %v6324, %v1977
      %v6361 = vadd.f32 %v6327, %v1978
      %v6362 = vsel %vm398, %v6330, -inf
      %6363 = vmax.xlane.f32.xlu0 %v6362
      %v6364 = vpop.xlane.xlu0 %6363
      %v6365 = vsel %vm398, %v6331, -inf
      %6366 = vmax.xlane.f32.xlu0 %v6365
      %v6367 = vpop.xlane.xlu0 %6366
      %v6368 = vsel %vm398, %v6332, -inf
      %6369 = vmax.xlane.f32.xlu0 %v6368
      %v6370 = vpop.xlane.xlu0 %6369
      %v6371 = vsel %vm398, %v6333, -inf
      %6372 = vmax.xlane.f32.xlu0 %v6371
      %v6373 = vpop.xlane.xlu0 %6372
      %v6374 = vsel %vm398, %v6334, -inf
      %6375 = vmax.xlane.f32.xlu0 %v6374
      %v6376 = vpop.xlane.xlu0 %6375
      %v6377 = vsel %vm398, %v6335, -inf
      %6378 = vmax.xlane.f32.xlu0 %v6377
      %v6379 = vpop.xlane.xlu0 %6378
      %v6380 = vsel %vm398, %v6336, -inf
      %6381 = vmax.xlane.f32.xlu0 %v6380
      %v6382 = vpop.xlane.xlu0 %6381
      %v6383 = vsel %vm398, %v6337, -inf
      %6384 = vmax.xlane.f32.xlu0 %v6383
      %v6385 = vpop.xlane.xlu0 %6384
      %v6386 = vsel %vm398, %v6338, -inf
      %6387 = vmax.xlane.f32.xlu0 %v6386
      %v6388 = vpop.xlane.xlu0 %6387
      %v6389 = vsel %vm398, %v6339, -inf
      %6390 = vmax.xlane.f32.xlu0 %v6389
      %v6391 = vpop.xlane.xlu0 %6390
      %v6392 = vsel %vm398, %v6340, -inf
      %6393 = vmax.xlane.f32.xlu0 %v6392
      %v6394 = vpop.xlane.xlu0 %6393
      %v6395 = vsel %vm398, %v6341, -inf
      %6396 = vmax.xlane.f32.xlu0 %v6395
      %v6397 = vpop.xlane.xlu0 %6396
      %v6398 = vsel %vm398, %v6342, -inf
      %6399 = vmax.xlane.f32.xlu0 %v6398
      %v6400 = vpop.xlane.xlu0 %6399
      %v6401 = vsel %vm398, %v6343, -inf
      %6402 = vmax.xlane.f32.xlu0 %v6401
      %v6403 = vpop.xlane.xlu0 %6402
      %v6404 = vsel %vm398, %v6344, -inf
      %6405 = vmax.xlane.f32.xlu0 %v6404
      %v6406 = vpop.xlane.xlu0 %6405
      %v6407 = vsel %vm398, %v6345, -inf
      %6408 = vmax.xlane.f32.xlu0 %v6407
      %v6409 = vpop.xlane.xlu0 %6408
      %v6410 = vsel %vm398, %v6346, -inf
      %6411 = vmax.xlane.f32.xlu0 %v6410
      %v6412 = vpop.xlane.xlu0 %6411
      %v6413 = vsel %vm398, %v6347, -inf
      %6414 = vmax.xlane.f32.xlu0 %v6413
      %v6415 = vpop.xlane.xlu0 %6414
      %v6416 = vsel %vm398, %v6348, -inf
      %6417 = vmax.xlane.f32.xlu0 %v6416
      %v6418 = vpop.xlane.xlu0 %6417
      %v6419 = vsel %vm398, %v6349, -inf
      %6420 = vmax.xlane.f32.xlu0 %v6419
      %v6421 = vpop.xlane.xlu0 %6420
      %v6422 = vsel %vm398, %v6350, -inf
      %6423 = vmax.xlane.f32.xlu0 %v6422
      %v6424 = vpop.xlane.xlu0 %6423
      %v6425 = vsel %vm398, %v6351, -inf
      %6426 = vmax.xlane.f32.xlu0 %v6425
      %v6427 = vpop.xlane.xlu0 %6426
      %v6428 = vsel %vm398, %v6352, -inf
      %6429 = vmax.xlane.f32.xlu0 %v6428
      %v6430 = vpop.xlane.xlu0 %6429
      %v6431 = vsel %vm398, %v6353, -inf
      %6432 = vmax.xlane.f32.xlu0 %v6431
      %v6433 = vpop.xlane.xlu0 %6432
      %v6434 = vsel %vm398, %v6354, -inf
      %6435 = vmax.xlane.f32.xlu0 %v6434
      %v6436 = vpop.xlane.xlu0 %6435
      %v6437 = vsel %vm398, %v6355, -inf
      %6438 = vmax.xlane.f32.xlu0 %v6437
      %v6439 = vpop.xlane.xlu0 %6438
      %v6440 = vsel %vm398, %v6356, -inf
      %6441 = vmax.xlane.f32.xlu0 %v6440
      %v6442 = vpop.xlane.xlu0 %6441
      %v6443 = vsel %vm398, %v6357, -inf
      %6444 = vmax.xlane.f32.xlu0 %v6443
      %v6445 = vpop.xlane.xlu0 %6444
      %v6446 = vsel %vm398, %v6358, -inf
      %6447 = vmax.xlane.f32.xlu0 %v6446
      %v6448 = vpop.xlane.xlu0 %6447
      %v6449 = vsel %vm398, %v6359, -inf
      %6450 = vmax.xlane.f32.xlu0 %v6449
      %v6451 = vpop.xlane.xlu0 %6450
      %v6452 = vsel %vm398, %v6360, -inf
      %6453 = vmax.xlane.f32.xlu0 %v6452
      %v6454 = vpop.xlane.xlu0 %6453
      %v6455 = vsel %vm398, %v6361, -inf
      %6456 = vmax.xlane.f32.xlu0 %v6455
      %v6457 = vpop.xlane.xlu0 %6456
      %v6458 = vsub.f32 %v6330, %v6364
      %v6459 = vsub.f32 %v6331, %v6367
      %v6460 = vsub.f32 %v6332, %v6370
      %v6461 = vsub.f32 %v6333, %v6373
      %v6462 = vsub.f32 %v6334, %v6376
      %v6463 = vsub.f32 %v6335, %v6379
      %v6464 = vsub.f32 %v6336, %v6382
      %v6465 = vsub.f32 %v6337, %v6385
      %v6466 = vsub.f32 %v6338, %v6388
      %v6467 = vsub.f32 %v6339, %v6391
      %v6468 = vsub.f32 %v6340, %v6394
      %v6469 = vsub.f32 %v6341, %v6397
      %v6470 = vsub.f32 %v6342, %v6400
      %v6471 = vsub.f32 %v6343, %v6403
      %v6472 = vsub.f32 %v6344, %v6406
      %v6473 = vsub.f32 %v6345, %v6409
      %v6474 = vsub.f32 %v6346, %v6412
      %v6475 = vsub.f32 %v6347, %v6415
      %v6476 = vsub.f32 %v6348, %v6418
      %v6477 = vsub.f32 %v6349, %v6421
      %v6478 = vsub.f32 %v6350, %v6424
      %v6479 = vsub.f32 %v6351, %v6427
      %v6480 = vsub.f32 %v6352, %v6430
      %v6481 = vsub.f32 %v6353, %v6433
      %v6482 = vsub.f32 %v6354, %v6436
      %v6483 = vsub.f32 %v6355, %v6439
      %v6484 = vsub.f32 %v6356, %v6442
      %v6485 = vsub.f32 %v6357, %v6445
      %v6486 = vsub.f32 %v6358, %v6448
      %v6487 = vsub.f32 %v6359, %v6451
      %v6488 = vsub.f32 %v6360, %v6454
      %v6489 = vsub.f32 %v6361, %v6457
      %v6490 = vmul.f32 %v6458, 1.442695
      %v6491 = vpow.pop %v6490
      %v6492 = vmul.f32 %v6459, 1.442695
      %v6493 = vpow.pop %v6492
      %v6494 = vmul.f32 %v6460, 1.442695
      %v6495 = vpow.pop %v6494
      %v6496 = vmul.f32 %v6461, 1.442695
      %v6497 = vpow.pop %v6496
      %v6498 = vmul.f32 %v6462, 1.442695
      %v6499 = vpow.pop %v6498
      %v6500 = vmul.f32 %v6463, 1.442695
      %v6501 = vpow.pop %v6500
      %v6502 = vmul.f32 %v6464, 1.442695
      %v6503 = vpow.pop %v6502
      %v6504 = vmul.f32 %v6465, 1.442695
      %v6505 = vpow.pop %v6504
      %v6506 = vmul.f32 %v6466, 1.442695
      %v6507 = vpow.pop %v6506
      %v6508 = vmul.f32 %v6467, 1.442695
      %v6509 = vpow.pop %v6508
      %v6510 = vmul.f32 %v6468, 1.442695
      %v6511 = vpow.pop %v6510
      %v6512 = vmul.f32 %v6469, 1.442695
      %v6513 = vpow.pop %v6512
      %v6514 = vmul.f32 %v6470, 1.442695
      %v6515 = vpow.pop %v6514
      %v6516 = vmul.f32 %v6471, 1.442695
      %v6517 = vpow.pop %v6516
      %v6518 = vmul.f32 %v6472, 1.442695
      %v6519 = vpow.pop %v6518
      %v6520 = vmul.f32 %v6473, 1.442695
      %v6521 = vpow.pop %v6520
      %v6522 = vmul.f32 %v6474, 1.442695
      %v6523 = vpow.pop %v6522
      %v6524 = vmul.f32 %v6475, 1.442695
      %v6525 = vpow.pop %v6524
      %v6526 = vmul.f32 %v6476, 1.442695
      %v6527 = vpow.pop %v6526
      %v6528 = vmul.f32 %v6477, 1.442695
      %v6529 = vpow.pop %v6528
      %v6530 = vmul.f32 %v6478, 1.442695
      %v6531 = vpow.pop %v6530
      %v6532 = vmul.f32 %v6479, 1.442695
      %v6533 = vpow.pop %v6532
      %v6534 = vmul.f32 %v6480, 1.442695
      %v6535 = vpow.pop %v6534
      %v6536 = vmul.f32 %v6481, 1.442695
      %v6537 = vpow.pop %v6536
      %v6538 = vmul.f32 %v6482, 1.442695
      %v6539 = vpow.pop %v6538
      %v6540 = vmul.f32 %v6483, 1.442695
      %v6541 = vpow.pop %v6540
      %v6542 = vmul.f32 %v6484, 1.442695
      %v6543 = vpow.pop %v6542
      %v6544 = vmul.f32 %v6485, 1.442695
      %v6545 = vpow.pop %v6544
      %v6546 = vmul.f32 %v6486, 1.442695
      %v6547 = vpow.pop %v6546
      %v6548 = vmul.f32 %v6487, 1.442695
      %v6549 = vpow.pop %v6548
      %v6550 = vmul.f32 %v6488, 1.442695
      %v6551 = vpow.pop %v6550
      %v6552 = vmul.f32 %v6489, 1.442695
      %v6553 = vpow.pop %v6552
      %v6554 = vsel %vm398, %v6491, 0.0
      %6555 = vadd.xlane.f32.xlu0 %v6554
      %v6556 = vpop.xlane.xlu0 %6555
      %v6557 = vsel %vm398, %v6493, 0.0
      %6558 = vadd.xlane.f32.xlu0 %v6557
      %v6559 = vpop.xlane.xlu0 %6558
      %v6560 = vsel %vm398, %v6495, 0.0
      %6561 = vadd.xlane.f32.xlu0 %v6560
      %v6562 = vpop.xlane.xlu0 %6561
      %v6563 = vsel %vm398, %v6497, 0.0
      %6564 = vadd.xlane.f32.xlu0 %v6563
      %v6565 = vpop.xlane.xlu0 %6564
      %v6566 = vsel %vm398, %v6499, 0.0
      %6567 = vadd.xlane.f32.xlu0 %v6566
      %v6568 = vpop.xlane.xlu0 %6567
      %v6569 = vsel %vm398, %v6501, 0.0
      %6570 = vadd.xlane.f32.xlu0 %v6569
      %v6571 = vpop.xlane.xlu0 %6570
      %v6572 = vsel %vm398, %v6503, 0.0
      %6573 = vadd.xlane.f32.xlu0 %v6572
      %v6574 = vpop.xlane.xlu0 %6573
      %v6575 = vsel %vm398, %v6505, 0.0
      %6576 = vadd.xlane.f32.xlu0 %v6575
      %v6577 = vpop.xlane.xlu0 %6576
      %v6578 = vsel %vm398, %v6507, 0.0
      %6579 = vadd.xlane.f32.xlu0 %v6578
      %v6580 = vpop.xlane.xlu0 %6579
      %v6581 = vsel %vm398, %v6509, 0.0
      %6582 = vadd.xlane.f32.xlu0 %v6581
      %v6583 = vpop.xlane.xlu0 %6582
      %v6584 = vsel %vm398, %v6511, 0.0
      %6585 = vadd.xlane.f32.xlu0 %v6584
      %v6586 = vpop.xlane.xlu0 %6585
      %v6587 = vsel %vm398, %v6513, 0.0
      %6588 = vadd.xlane.f32.xlu0 %v6587
      %v6589 = vpop.xlane.xlu0 %6588
      %v6590 = vsel %vm398, %v6515, 0.0
      %6591 = vadd.xlane.f32.xlu0 %v6590
      %v6592 = vpop.xlane.xlu0 %6591
      %v6593 = vsel %vm398, %v6517, 0.0
      %6594 = vadd.xlane.f32.xlu0 %v6593
      %v6595 = vpop.xlane.xlu0 %6594
      %v6596 = vsel %vm398, %v6519, 0.0
      %6597 = vadd.xlane.f32.xlu0 %v6596
      %v6598 = vpop.xlane.xlu0 %6597
      %v6599 = vsel %vm398, %v6521, 0.0
      %6600 = vadd.xlane.f32.xlu0 %v6599
      %v6601 = vpop.xlane.xlu0 %6600
      %v6602 = vsel %vm398, %v6523, 0.0
      %6603 = vadd.xlane.f32.xlu0 %v6602
      %v6604 = vpop.xlane.xlu0 %6603
      %v6605 = vsel %vm398, %v6525, 0.0
      %6606 = vadd.xlane.f32.xlu0 %v6605
      %v6607 = vpop.xlane.xlu0 %6606
      %v6608 = vsel %vm398, %v6527, 0.0
      %6609 = vadd.xlane.f32.xlu0 %v6608
      %v6610 = vpop.xlane.xlu0 %6609
      %v6611 = vsel %vm398, %v6529, 0.0
      %6612 = vadd.xlane.f32.xlu0 %v6611
      %v6613 = vpop.xlane.xlu0 %6612
      %v6614 = vsel %vm398, %v6531, 0.0
      %6615 = vadd.xlane.f32.xlu0 %v6614
      %v6616 = vpop.xlane.xlu0 %6615
      %v6617 = vsel %vm398, %v6533, 0.0
      %6618 = vadd.xlane.f32.xlu0 %v6617
      %v6619 = vpop.xlane.xlu0 %6618
      %v6620 = vsel %vm398, %v6535, 0.0
      %6621 = vadd.xlane.f32.xlu0 %v6620
      %v6622 = vpop.xlane.xlu0 %6621
      %v6623 = vsel %vm398, %v6537, 0.0
      %6624 = vadd.xlane.f32.xlu0 %v6623
      %v6625 = vpop.xlane.xlu0 %6624
      %v6626 = vsel %vm398, %v6539, 0.0
      %6627 = vadd.xlane.f32.xlu0 %v6626
      %v6628 = vpop.xlane.xlu0 %6627
      %v6629 = vsel %vm398, %v6541, 0.0
      %6630 = vadd.xlane.f32.xlu0 %v6629
      %v6631 = vpop.xlane.xlu0 %6630
      %v6632 = vsel %vm398, %v6543, 0.0
      %6633 = vadd.xlane.f32.xlu0 %v6632
      %v6634 = vpop.xlane.xlu0 %6633
      %v6635 = vsel %vm398, %v6545, 0.0
      %6636 = vadd.xlane.f32.xlu0 %v6635
      %v6637 = vpop.xlane.xlu0 %6636
      %v6638 = vsel %vm398, %v6547, 0.0
      %6639 = vadd.xlane.f32.xlu0 %v6638
      %v6640 = vpop.xlane.xlu0 %6639
      %v6641 = vsel %vm398, %v6549, 0.0
      %6642 = vadd.xlane.f32.xlu0 %v6641
      %v6643 = vpop.xlane.xlu0 %6642
      %v6644 = vsel %vm398, %v6551, 0.0
      %6645 = vadd.xlane.f32.xlu0 %v6644
      %v6646 = vpop.xlane.xlu0 %6645
      %v6647 = vsel %vm398, %v6553, 0.0
      %6648 = vadd.xlane.f32.xlu0 %v6647
      %v6649 = vpop.xlane.xlu0 %6648
      %v6650 = vrcp.pop %v6556
      %v6651 = vrcp.pop %v6559
      %v6652 = vrcp.pop %v6562
      %v6653 = vrcp.pop %v6565
      %v6654 = vrcp.pop %v6568
      %v6655 = vrcp.pop %v6571
      %v6656 = vrcp.pop %v6574
      %v6657 = vrcp.pop %v6577
      %v6658 = vrcp.pop %v6580
      %v6659 = vrcp.pop %v6583
      %v6660 = vrcp.pop %v6586
      %v6661 = vrcp.pop %v6589
      %v6662 = vrcp.pop %v6592
      %v6663 = vrcp.pop %v6595
      %v6664 = vrcp.pop %v6598
      %v6665 = vrcp.pop %v6601
      %v6666 = vrcp.pop %v6604
      %v6667 = vrcp.pop %v6607
      %v6668 = vrcp.pop %v6610
      %v6669 = vrcp.pop %v6613
      %v6670 = vrcp.pop %v6616
      %v6671 = vrcp.pop %v6619
      %v6672 = vrcp.pop %v6622
      %v6673 = vrcp.pop %v6625
      %v6674 = vrcp.pop %v6628
      %v6675 = vrcp.pop %v6631
      %v6676 = vrcp.pop %v6634
      %v6677 = vrcp.pop %v6637
      %v6678 = vrcp.pop %v6640
      %v6679 = vrcp.pop %v6643
      %v6680 = vrcp.pop %v6646
      %v6681 = vrcp.pop %v6649
      %v6682 = vmul.f32 %v6491, %v6650
      %v6683 = vmul.f32 %v6493, %v6651
      %v6684 = vmul.f32 %v6495, %v6652
      %v6685 = vmul.f32 %v6497, %v6653
      %v6686 = vmul.f32 %v6499, %v6654
      %v6687 = vmul.f32 %v6501, %v6655
      %v6688 = vmul.f32 %v6503, %v6656
      %v6689 = vmul.f32 %v6505, %v6657
      %v6690 = vmul.f32 %v6507, %v6658
      %v6691 = vmul.f32 %v6509, %v6659
      %v6692 = vmul.f32 %v6511, %v6660
      %v6693 = vmul.f32 %v6513, %v6661
      %v6694 = vmul.f32 %v6515, %v6662
      %v6695 = vmul.f32 %v6517, %v6663
      %v6696 = vmul.f32 %v6519, %v6664
      %v6697 = vmul.f32 %v6521, %v6665
      %v6698 = vmul.f32 %v6523, %v6666
      %v6699 = vmul.f32 %v6525, %v6667
      %v6700 = vmul.f32 %v6527, %v6668
      %v6701 = vmul.f32 %v6529, %v6669
      %v6702 = vmul.f32 %v6531, %v6670
      %v6703 = vmul.f32 %v6533, %v6671
      %v6704 = vmul.f32 %v6535, %v6672
      %v6705 = vmul.f32 %v6537, %v6673
      %v6706 = vmul.f32 %v6539, %v6674
      %v6707 = vmul.f32 %v6541, %v6675
      %v6708 = vmul.f32 %v6543, %v6676
      %v6709 = vmul.f32 %v6545, %v6677
      %v6710 = vmul.f32 %v6547, %v6678
      %v6711 = vmul.f32 %v6549, %v6679
      %v6712 = vmul.f32 %v6551, %v6680
      %v6713 = vmul.f32 %v6553, %v6681
      %v6714 = vpack.c.bf16 %v6683, %v6682
      %v6715 = vpack.c.bf16 %v6685, %v6684
      %v6716 = vpack.c.bf16 %v6687, %v6686
      %v6717 = vpack.c.bf16 %v6689, %v6688
      %v6718 = vpack.c.bf16 %v6691, %v6690
      %v6719 = vpack.c.bf16 %v6693, %v6692
      %v6720 = vpack.c.bf16 %v6695, %v6694
      %v6721 = vpack.c.bf16 %v6697, %v6696
      %v6722 = vpack.c.bf16 %v6699, %v6698
      %v6723 = vpack.c.bf16 %v6701, %v6700
      %v6724 = vpack.c.bf16 %v6703, %v6702
      %v6725 = vpack.c.bf16 %v6705, %v6704
      %v6726 = vpack.c.bf16 %v6707, %v6706
      %v6727 = vpack.c.bf16 %v6709, %v6708
      %v6728 = vpack.c.bf16 %v6711, %v6710
      %v6729 = vpack.c.bf16 %v6713, %v6712
      %6730 = vrot.lane.b32.xlu0 %v1390, 32
      %v6731 = vpop.permute.xlu0 %6730
      %6732 = vrot.lane.b32.xlu0 %v1391, 32
      %v6733 = vpop.permute.xlu0 %6732
      %v6737 = vsel %vm398, %v6714, 0
      %v6740 = vsel %vm398, %v6715, 0
      %6742 = vmatprep.subr.bf16.mxu0 0
      %6743 = vmatpush1.bf16.msra.mxu0 0
      %6744 = vmatprep.subr.bf16.mxu0 0
      %6745 = vmatpush1.bf16.msra.mxu0 0
      %6746 = vmatprep.subr.bf16.mxu0 0
      %6747 = vmatpush1.bf16.msra.mxu0 0
      %6748 = vmatprep.subr.bf16.mxu0 0
      %6749 = vmatpush1.bf16.msra.mxu0 0
      %6750 = vmatprep.subr.bf16.mxu0 0
      %6751 = vmatpush1.bf16.msra.mxu0 0
      %6752 = vmatprep.subr.bf16.mxu0 0
      %6753 = vmatpush1.bf16.msra.mxu0 0
      %6754 = vmatprep.subr.bf16.mxu0 0
      %6755 = vmatpush1.bf16.msra.mxu0 %v6733
      %6756 = vmatprep.subr.bf16.mxu0 0
      %6757 = vmatpush1.bf16.msra.mxu0 %v6731
      %6758 = vmatprep.subr.bf16.mxu0 0
      %6759 = vmatpush2.bf16.msra.mxu0 0
      %6760 = vmatprep.subr.bf16.mxu0 0
      %6761 = vmatpush2.bf16.msra.mxu0 0
      %6762 = vmatprep.subr.bf16.mxu0 0
      %6763 = vmatpush2.bf16.msra.mxu0 0
      %6764 = vmatprep.subr.bf16.mxu0 0
      %6765 = vmatpush2.bf16.msra.mxu0 0
      %6766 = vmatprep.subr.bf16.mxu0 0
      %6767 = vmatpush2.bf16.msra.mxu0 0
      %6768 = vmatprep.subr.bf16.mxu0 0
      %6769 = vmatpush2.bf16.msra.mxu0 0
      %6770 = vmatprep.subr.bf16.mxu0 0
      %6771 = vmatpush2.bf16.msra.mxu0 0
      %6772 = vmatprep.subr.bf16.mxu0 0
      %6773 = vmatpush2.bf16.msra.mxu0 0
      %6774 = vmatprep.mubr.bf16.mxu0 0
      %6775 = vmatmul.mubr.bf16.gmra.mxu0 %v6737
      %v6776 = vpop.f32.mrf.mxu0
      %v6777 = vadd.f32 0.0, %v6776
      %v6778 = vpop.f32.mrf.mxu0
      %v6779 = vpop.f32.mrf.mxu0
      %v6780 = vadd.f32 0.0, %v6779
      %v6781 = vpop.f32.mrf.mxu0
      %6782 = vmatprep.mubr.bf16.mxu0 0
      %6783 = vmatmul.mubr.bf16.gmra.mxu0 %v6740
      %v6784 = vpop.f32.mrf.mxu0
      %v6785 = vadd.f32 0.0, %v6784
      %v6786 = vpop.f32.mrf.mxu0
      %v6787 = vpop.f32.mrf.mxu0
      %v6788 = vadd.f32 0.0, %v6787
      %v6789 = vpop.f32.mrf.mxu0
      %6790 = vdwg.mxu0
      %6791 = vrot.lane.b32.xlu0 %v1392, 32
      %v6792 = vpop.permute.xlu0 %6791
      %6793 = vrot.lane.b32.xlu0 %v1393, 32
      %v6794 = vpop.permute.xlu0 %6793
      %v6798 = vsel %vm398, %v6716, 0
      %v6801 = vsel %vm398, %v6717, 0
      %6803 = vmatprep.subr.bf16.mxu0 0
      %6804 = vmatpush1.bf16.msra.mxu0 0
      %6805 = vmatprep.subr.bf16.mxu0 0
      %6806 = vmatpush1.bf16.msra.mxu0 0
      %6807 = vmatprep.subr.bf16.mxu0 0
      %6808 = vmatpush1.bf16.msra.mxu0 0
      %6809 = vmatprep.subr.bf16.mxu0 0
      %6810 = vmatpush1.bf16.msra.mxu0 0
      %6811 = vmatprep.subr.bf16.mxu0 0
      %6812 = vmatpush1.bf16.msra.mxu0 0
      %6813 = vmatprep.subr.bf16.mxu0 0
      %6814 = vmatpush1.bf16.msra.mxu0 0
      %6815 = vmatprep.subr.bf16.mxu0 0
      %6816 = vmatpush1.bf16.msra.mxu0 %v6794
      %6817 = vmatprep.subr.bf16.mxu0 0
      %6818 = vmatpush1.bf16.msra.mxu0 %v6792
      %6819 = vmatprep.subr.bf16.mxu0 0
      %6820 = vmatpush2.bf16.msra.mxu0 0
      %6821 = vmatprep.subr.bf16.mxu0 0
      %6822 = vmatpush2.bf16.msra.mxu0 0
      %6823 = vmatprep.subr.bf16.mxu0 0
      %6824 = vmatpush2.bf16.msra.mxu0 0
      %6825 = vmatprep.subr.bf16.mxu0 0
      %6826 = vmatpush2.bf16.msra.mxu0 0
      %6827 = vmatprep.subr.bf16.mxu0 0
      %6828 = vmatpush2.bf16.msra.mxu0 0
      %6829 = vmatprep.subr.bf16.mxu0 0
      %6830 = vmatpush2.bf16.msra.mxu0 0
      %6831 = vmatprep.subr.bf16.mxu0 0
      %6832 = vmatpush2.bf16.msra.mxu0 0
      %6833 = vmatprep.subr.bf16.mxu0 0
      %6834 = vmatpush2.bf16.msra.mxu0 0
      %6835 = vmatprep.mubr.bf16.mxu0 0
      %6836 = vmatmul.mubr.bf16.gmra.mxu0 %v6798
      %v6837 = vpop.f32.mrf.mxu0
      %v6838 = vadd.f32 0.0, %v6837
      %v6839 = vpop.f32.mrf.mxu0
      %v6840 = vpop.f32.mrf.mxu0
      %v6841 = vadd.f32 0.0, %v6840
      %v6842 = vpop.f32.mrf.mxu0
      %6843 = vmatprep.mubr.bf16.mxu0 0
      %6844 = vmatmul.mubr.bf16.gmra.mxu0 %v6801
      %v6845 = vpop.f32.mrf.mxu0
      %v6846 = vadd.f32 0.0, %v6845
      %v6847 = vpop.f32.mrf.mxu0
      %v6848 = vpop.f32.mrf.mxu0
      %v6849 = vadd.f32 0.0, %v6848
      %v6850 = vpop.f32.mrf.mxu0
      %6851 = vdwg.mxu0
      %6852 = vrot.lane.b32.xlu0 %v1394, 32
      %v6853 = vpop.permute.xlu0 %6852
      %6854 = vrot.lane.b32.xlu0 %v1395, 32
      %v6855 = vpop.permute.xlu0 %6854
      %v6859 = vsel %vm398, %v6718, 0
      %v6862 = vsel %vm398, %v6719, 0
      %6864 = vmatprep.subr.bf16.mxu0 0
      %6865 = vmatpush1.bf16.msra.mxu0 0
      %6866 = vmatprep.subr.bf16.mxu0 0
      %6867 = vmatpush1.bf16.msra.mxu0 0
      %6868 = vmatprep.subr.bf16.mxu0 0
      %6869 = vmatpush1.bf16.msra.mxu0 0
      %6870 = vmatprep.subr.bf16.mxu0 0
      %6871 = vmatpush1.bf16.msra.mxu0 0
      %6872 = vmatprep.subr.bf16.mxu0 0
      %6873 = vmatpush1.bf16.msra.mxu0 0
      %6874 = vmatprep.subr.bf16.mxu0 0
      %6875 = vmatpush1.bf16.msra.mxu0 0
      %6876 = vmatprep.subr.bf16.mxu0 0
      %6877 = vmatpush1.bf16.msra.mxu0 %v6855
      %6878 = vmatprep.subr.bf16.mxu0 0
      %6879 = vmatpush1.bf16.msra.mxu0 %v6853
      %6880 = vmatprep.subr.bf16.mxu0 0
      %6881 = vmatpush2.bf16.msra.mxu0 0
      %6882 = vmatprep.subr.bf16.mxu0 0
      %6883 = vmatpush2.bf16.msra.mxu0 0
      %6884 = vmatprep.subr.bf16.mxu0 0
      %6885 = vmatpush2.bf16.msra.mxu0 0
      %6886 = vmatprep.subr.bf16.mxu0 0
      %6887 = vmatpush2.bf16.msra.mxu0 0
      %6888 = vmatprep.subr.bf16.mxu0 0
      %6889 = vmatpush2.bf16.msra.mxu0 0
      %6890 = vmatprep.subr.bf16.mxu0 0
      %6891 = vmatpush2.bf16.msra.mxu0 0
      %6892 = vmatprep.subr.bf16.mxu0 0
      %6893 = vmatpush2.bf16.msra.mxu0 0
      %6894 = vmatprep.subr.bf16.mxu0 0
      %6895 = vmatpush2.bf16.msra.mxu0 0
      %6896 = vmatprep.mubr.bf16.mxu0 0
      %6897 = vmatmul.mubr.bf16.gmra.mxu0 %v6859
      %v6898 = vpop.f32.mrf.mxu0
      %v6899 = vadd.f32 0.0, %v6898
      %v6900 = vpop.f32.mrf.mxu0
      %v6901 = vpop.f32.mrf.mxu0
      %v6902 = vadd.f32 0.0, %v6901
      %v6903 = vpop.f32.mrf.mxu0
      %6904 = vmatprep.mubr.bf16.mxu0 0
      %6905 = vmatmul.mubr.bf16.gmra.mxu0 %v6862
      %v6906 = vpop.f32.mrf.mxu0
      %v6907 = vadd.f32 0.0, %v6906
      %v6908 = vpop.f32.mrf.mxu0
      %v6909 = vpop.f32.mrf.mxu0
      %v6910 = vadd.f32 0.0, %v6909
      %v6911 = vpop.f32.mrf.mxu0
      %6912 = vdwg.mxu0
      %6913 = vrot.lane.b32.xlu0 %v1396, 32
      %v6914 = vpop.permute.xlu0 %6913
      %6915 = vrot.lane.b32.xlu0 %v1397, 32
      %v6916 = vpop.permute.xlu0 %6915
      %v6920 = vsel %vm398, %v6720, 0
      %v6923 = vsel %vm398, %v6721, 0
      %6925 = vmatprep.subr.bf16.mxu0 0
      %6926 = vmatpush1.bf16.msra.mxu0 0
      %6927 = vmatprep.subr.bf16.mxu0 0
      %6928 = vmatpush1.bf16.msra.mxu0 0
      %6929 = vmatprep.subr.bf16.mxu0 0
      %6930 = vmatpush1.bf16.msra.mxu0 0
      %6931 = vmatprep.subr.bf16.mxu0 0
      %6932 = vmatpush1.bf16.msra.mxu0 0
      %6933 = vmatprep.subr.bf16.mxu0 0
      %6934 = vmatpush1.bf16.msra.mxu0 0
      %6935 = vmatprep.subr.bf16.mxu0 0
      %6936 = vmatpush1.bf16.msra.mxu0 0
      %6937 = vmatprep.subr.bf16.mxu0 0
      %6938 = vmatpush1.bf16.msra.mxu0 %v6916
      %6939 = vmatprep.subr.bf16.mxu0 0
      %6940 = vmatpush1.bf16.msra.mxu0 %v6914
      %6941 = vmatprep.subr.bf16.mxu0 0
      %6942 = vmatpush2.bf16.msra.mxu0 0
      %6943 = vmatprep.subr.bf16.mxu0 0
      %6944 = vmatpush2.bf16.msra.mxu0 0
      %6945 = vmatprep.subr.bf16.mxu0 0
      %6946 = vmatpush2.bf16.msra.mxu0 0
      %6947 = vmatprep.subr.bf16.mxu0 0
      %6948 = vmatpush2.bf16.msra.mxu0 0
      %6949 = vmatprep.subr.bf16.mxu0 0
      %6950 = vmatpush2.bf16.msra.mxu0 0
      %6951 = vmatprep.subr.bf16.mxu0 0
      %6952 = vmatpush2.bf16.msra.mxu0 0
      %6953 = vmatprep.subr.bf16.mxu0 0
      %6954 = vmatpush2.bf16.msra.mxu0 0
      %6955 = vmatprep.subr.bf16.mxu0 0
      %6956 = vmatpush2.bf16.msra.mxu0 0
      %6957 = vmatprep.mubr.bf16.mxu0 0
      %6958 = vmatmul.mubr.bf16.gmra.mxu0 %v6920
      %v6959 = vpop.f32.mrf.mxu0
      %v6960 = vadd.f32 0.0, %v6959
      %v6961 = vpop.f32.mrf.mxu0
      %v6962 = vpop.f32.mrf.mxu0
      %v6963 = vadd.f32 0.0, %v6962
      %v6964 = vpop.f32.mrf.mxu0
      %6965 = vmatprep.mubr.bf16.mxu0 0
      %6966 = vmatmul.mubr.bf16.gmra.mxu0 %v6923
      %v6967 = vpop.f32.mrf.mxu0
      %v6968 = vadd.f32 0.0, %v6967
      %v6969 = vpop.f32.mrf.mxu0
      %v6970 = vpop.f32.mrf.mxu0
      %v6971 = vadd.f32 0.0, %v6970
      %v6972 = vpop.f32.mrf.mxu0
      %6973 = vdwg.mxu0
      %6974 = vrot.lane.b32.xlu0 %v1398, 32
      %v6975 = vpop.permute.xlu0 %6974
      %6976 = vrot.lane.b32.xlu0 %v1399, 32
      %v6977 = vpop.permute.xlu0 %6976
      %v6981 = vsel %vm398, %v6722, 0
      %v6984 = vsel %vm398, %v6723, 0
      %6986 = vmatprep.subr.bf16.mxu0 0
      %6987 = vmatpush1.bf16.msra.mxu0 0
      %6988 = vmatprep.subr.bf16.mxu0 0
      %6989 = vmatpush1.bf16.msra.mxu0 0
      %6990 = vmatprep.subr.bf16.mxu0 0
      %6991 = vmatpush1.bf16.msra.mxu0 0
      %6992 = vmatprep.subr.bf16.mxu0 0
      %6993 = vmatpush1.bf16.msra.mxu0 0
      %6994 = vmatprep.subr.bf16.mxu0 0
      %6995 = vmatpush1.bf16.msra.mxu0 0
      %6996 = vmatprep.subr.bf16.mxu0 0
      %6997 = vmatpush1.bf16.msra.mxu0 0
      %6998 = vmatprep.subr.bf16.mxu0 0
      %6999 = vmatpush1.bf16.msra.mxu0 %v6977
      %7000 = vmatprep.subr.bf16.mxu0 0
      %7001 = vmatpush1.bf16.msra.mxu0 %v6975
      %7002 = vmatprep.subr.bf16.mxu0 0
      %7003 = vmatpush2.bf16.msra.mxu0 0
      %7004 = vmatprep.subr.bf16.mxu0 0
      %7005 = vmatpush2.bf16.msra.mxu0 0
      %7006 = vmatprep.subr.bf16.mxu0 0
      %7007 = vmatpush2.bf16.msra.mxu0 0
      %7008 = vmatprep.subr.bf16.mxu0 0
      %7009 = vmatpush2.bf16.msra.mxu0 0
      %7010 = vmatprep.subr.bf16.mxu0 0
      %7011 = vmatpush2.bf16.msra.mxu0 0
      %7012 = vmatprep.subr.bf16.mxu0 0
      %7013 = vmatpush2.bf16.msra.mxu0 0
      %7014 = vmatprep.subr.bf16.mxu0 0
      %7015 = vmatpush2.bf16.msra.mxu0 0
      %7016 = vmatprep.subr.bf16.mxu0 0
      %7017 = vmatpush2.bf16.msra.mxu0 0
      %7018 = vmatprep.mubr.bf16.mxu0 0
      %7019 = vmatmul.mubr.bf16.gmra.mxu0 %v6981
      %v7020 = vpop.f32.mrf.mxu0
      %v7021 = vadd.f32 0.0, %v7020
      %v7022 = vpop.f32.mrf.mxu0
      %v7023 = vpop.f32.mrf.mxu0
      %v7024 = vadd.f32 0.0, %v7023
      %v7025 = vpop.f32.mrf.mxu0
      %7026 = vmatprep.mubr.bf16.mxu0 0
      %7027 = vmatmul.mubr.bf16.gmra.mxu0 %v6984
      %v7028 = vpop.f32.mrf.mxu0
      %v7029 = vadd.f32 0.0, %v7028
      %v7030 = vpop.f32.mrf.mxu0
      %v7031 = vpop.f32.mrf.mxu0
      %v7032 = vadd.f32 0.0, %v7031
      %v7033 = vpop.f32.mrf.mxu0
      %7034 = vdwg.mxu0
      %7035 = vrot.lane.b32.xlu0 %v1400, 32
      %v7036 = vpop.permute.xlu0 %7035
      %7037 = vrot.lane.b32.xlu0 %v1401, 32
      %v7038 = vpop.permute.xlu0 %7037
      %v7042 = vsel %vm398, %v6724, 0
      %v7045 = vsel %vm398, %v6725, 0
      %7047 = vmatprep.subr.bf16.mxu0 0
      %7048 = vmatpush1.bf16.msra.mxu0 0
      %7049 = vmatprep.subr.bf16.mxu0 0
      %7050 = vmatpush1.bf16.msra.mxu0 0
      %7051 = vmatprep.subr.bf16.mxu0 0
      %7052 = vmatpush1.bf16.msra.mxu0 0
      %7053 = vmatprep.subr.bf16.mxu0 0
      %7054 = vmatpush1.bf16.msra.mxu0 0
      %7055 = vmatprep.subr.bf16.mxu0 0
      %7056 = vmatpush1.bf16.msra.mxu0 0
      %7057 = vmatprep.subr.bf16.mxu0 0
      %7058 = vmatpush1.bf16.msra.mxu0 0
      %7059 = vmatprep.subr.bf16.mxu0 0
      %7060 = vmatpush1.bf16.msra.mxu0 %v7038
      %7061 = vmatprep.subr.bf16.mxu0 0
      %7062 = vmatpush1.bf16.msra.mxu0 %v7036
      %7063 = vmatprep.subr.bf16.mxu0 0
      %7064 = vmatpush2.bf16.msra.mxu0 0
      %7065 = vmatprep.subr.bf16.mxu0 0
      %7066 = vmatpush2.bf16.msra.mxu0 0
      %7067 = vmatprep.subr.bf16.mxu0 0
      %7068 = vmatpush2.bf16.msra.mxu0 0
      %7069 = vmatprep.subr.bf16.mxu0 0
      %7070 = vmatpush2.bf16.msra.mxu0 0
      %7071 = vmatprep.subr.bf16.mxu0 0
      %7072 = vmatpush2.bf16.msra.mxu0 0
      %7073 = vmatprep.subr.bf16.mxu0 0
      %7074 = vmatpush2.bf16.msra.mxu0 0
      %7075 = vmatprep.subr.bf16.mxu0 0
      %7076 = vmatpush2.bf16.msra.mxu0 0
      %7077 = vmatprep.subr.bf16.mxu0 0
      %7078 = vmatpush2.bf16.msra.mxu0 0
      %7079 = vmatprep.mubr.bf16.mxu0 0
      %7080 = vmatmul.mubr.bf16.gmra.mxu0 %v7042
      %v7081 = vpop.f32.mrf.mxu0
      %v7082 = vadd.f32 0.0, %v7081
      %v7083 = vpop.f32.mrf.mxu0
      %v7084 = vpop.f32.mrf.mxu0
      %v7085 = vadd.f32 0.0, %v7084
      %v7086 = vpop.f32.mrf.mxu0
      %7087 = vmatprep.mubr.bf16.mxu0 0
      %7088 = vmatmul.mubr.bf16.gmra.mxu0 %v7045
      %v7089 = vpop.f32.mrf.mxu0
      %v7090 = vadd.f32 0.0, %v7089
      %v7091 = vpop.f32.mrf.mxu0
      %v7092 = vpop.f32.mrf.mxu0
      %v7093 = vadd.f32 0.0, %v7092
      %v7094 = vpop.f32.mrf.mxu0
      %7095 = vdwg.mxu0
      %7096 = vrot.lane.b32.xlu0 %v1402, 32
      %v7097 = vpop.permute.xlu0 %7096
      %7098 = vrot.lane.b32.xlu0 %v1403, 32
      %v7099 = vpop.permute.xlu0 %7098
      %v7103 = vsel %vm398, %v6726, 0
      %v7106 = vsel %vm398, %v6727, 0
      %7108 = vmatprep.subr.bf16.mxu0 0
      %7109 = vmatpush1.bf16.msra.mxu0 0
      %7110 = vmatprep.subr.bf16.mxu0 0
      %7111 = vmatpush1.bf16.msra.mxu0 0
      %7112 = vmatprep.subr.bf16.mxu0 0
      %7113 = vmatpush1.bf16.msra.mxu0 0
      %7114 = vmatprep.subr.bf16.mxu0 0
      %7115 = vmatpush1.bf16.msra.mxu0 0
      %7116 = vmatprep.subr.bf16.mxu0 0
      %7117 = vmatpush1.bf16.msra.mxu0 0
      %7118 = vmatprep.subr.bf16.mxu0 0
      %7119 = vmatpush1.bf16.msra.mxu0 0
      %7120 = vmatprep.subr.bf16.mxu0 0
      %7121 = vmatpush1.bf16.msra.mxu0 %v7099
      %7122 = vmatprep.subr.bf16.mxu0 0
      %7123 = vmatpush1.bf16.msra.mxu0 %v7097
      %7124 = vmatprep.subr.bf16.mxu0 0
      %7125 = vmatpush2.bf16.msra.mxu0 0
      %7126 = vmatprep.subr.bf16.mxu0 0
      %7127 = vmatpush2.bf16.msra.mxu0 0
      %7128 = vmatprep.subr.bf16.mxu0 0
      %7129 = vmatpush2.bf16.msra.mxu0 0
      %7130 = vmatprep.subr.bf16.mxu0 0
      %7131 = vmatpush2.bf16.msra.mxu0 0
      %7132 = vmatprep.subr.bf16.mxu0 0
      %7133 = vmatpush2.bf16.msra.mxu0 0
      %7134 = vmatprep.subr.bf16.mxu0 0
      %7135 = vmatpush2.bf16.msra.mxu0 0
      %7136 = vmatprep.subr.bf16.mxu0 0
      %7137 = vmatpush2.bf16.msra.mxu0 0
      %7138 = vmatprep.subr.bf16.mxu0 0
      %7139 = vmatpush2.bf16.msra.mxu0 0
      %7140 = vmatprep.mubr.bf16.mxu0 0
      %7141 = vmatmul.mubr.bf16.gmra.mxu0 %v7103
      %v7142 = vpop.f32.mrf.mxu0
      %v7143 = vadd.f32 0.0, %v7142
      %v7144 = vpop.f32.mrf.mxu0
      %v7145 = vpop.f32.mrf.mxu0
      %v7146 = vadd.f32 0.0, %v7145
      %v7147 = vpop.f32.mrf.mxu0
      %7148 = vmatprep.mubr.bf16.mxu0 0
      %7149 = vmatmul.mubr.bf16.gmra.mxu0 %v7106
      %v7150 = vpop.f32.mrf.mxu0
      %v7151 = vadd.f32 0.0, %v7150
      %v7152 = vpop.f32.mrf.mxu0
      %v7153 = vpop.f32.mrf.mxu0
      %v7154 = vadd.f32 0.0, %v7153
      %v7155 = vpop.f32.mrf.mxu0
      %7156 = vdwg.mxu0
      %7157 = vrot.lane.b32.xlu0 %v1404, 32
      %v7158 = vpop.permute.xlu0 %7157
      %7159 = vrot.lane.b32.xlu0 %v1405, 32
      %v7160 = vpop.permute.xlu0 %7159
      %v7164 = vsel %vm398, %v6728, 0
      %v7167 = vsel %vm398, %v6729, 0
      %7169 = vmatprep.subr.bf16.mxu0 0
      %7170 = vmatpush1.bf16.msra.mxu0 0
      %7171 = vmatprep.subr.bf16.mxu0 0
      %7172 = vmatpush1.bf16.msra.mxu0 0
      %7173 = vmatprep.subr.bf16.mxu0 0
      %7174 = vmatpush1.bf16.msra.mxu0 0
      %7175 = vmatprep.subr.bf16.mxu0 0
      %7176 = vmatpush1.bf16.msra.mxu0 0
      %7177 = vmatprep.subr.bf16.mxu0 0
      %7178 = vmatpush1.bf16.msra.mxu0 0
      %7179 = vmatprep.subr.bf16.mxu0 0
      %7180 = vmatpush1.bf16.msra.mxu0 0
      %7181 = vmatprep.subr.bf16.mxu0 0
      %7182 = vmatpush1.bf16.msra.mxu0 %v7160
      %7183 = vmatprep.subr.bf16.mxu0 0
      %7184 = vmatpush1.bf16.msra.mxu0 %v7158
      %7185 = vmatprep.subr.bf16.mxu0 0
      %7186 = vmatpush2.bf16.msra.mxu0 0
      %7187 = vmatprep.subr.bf16.mxu0 0
      %7188 = vmatpush2.bf16.msra.mxu0 0
      %7189 = vmatprep.subr.bf16.mxu0 0
      %7190 = vmatpush2.bf16.msra.mxu0 0
      %7191 = vmatprep.subr.bf16.mxu0 0
      %7192 = vmatpush2.bf16.msra.mxu0 0
      %7193 = vmatprep.subr.bf16.mxu0 0
      %7194 = vmatpush2.bf16.msra.mxu0 0
      %7195 = vmatprep.subr.bf16.mxu0 0
      %7196 = vmatpush2.bf16.msra.mxu0 0
      %7197 = vmatprep.subr.bf16.mxu0 0
      %7198 = vmatpush2.bf16.msra.mxu0 0
      %7199 = vmatprep.subr.bf16.mxu0 0
      %7200 = vmatpush2.bf16.msra.mxu0 0
      %7201 = vmatprep.mubr.bf16.mxu0 0
      %7202 = vmatmul.mubr.bf16.gmra.mxu0 %v7164
      %v7203 = vpop.f32.mrf.mxu0
      %v7204 = vadd.f32 0.0, %v7203
      %v7205 = vpop.f32.mrf.mxu0
      %v7206 = vpop.f32.mrf.mxu0
      %v7207 = vadd.f32 0.0, %v7206
      %v7208 = vpop.f32.mrf.mxu0
      %7209 = vmatprep.mubr.bf16.mxu0 0
      %7210 = vmatmul.mubr.bf16.gmra.mxu0 %v7167
      %v7211 = vpop.f32.mrf.mxu0
      %v7212 = vadd.f32 0.0, %v7211
      %v7213 = vpop.f32.mrf.mxu0
      %v7214 = vpop.f32.mrf.mxu0
      %v7215 = vadd.f32 0.0, %v7214
      %v7216 = vpop.f32.mrf.mxu0
      %7217 = vdwg.mxu0
      %v7218 = vadd.f32 %v5741, %v6777
      %v7219 = vadd.f32 %v5742, %v6780
      %v7220 = vadd.f32 %v5743, %v6785
      %v7221 = vadd.f32 %v5744, %v6788
      %v7222 = vadd.f32 %v5745, %v6838
      %v7223 = vadd.f32 %v5746, %v6841
      %v7224 = vadd.f32 %v5747, %v6846
      %v7225 = vadd.f32 %v5748, %v6849
      %v7226 = vadd.f32 %v5749, %v6899
      %v7227 = vadd.f32 %v5750, %v6902
      %v7228 = vadd.f32 %v5751, %v6907
      %v7229 = vadd.f32 %v5752, %v6910
      %v7230 = vadd.f32 %v5753, %v6960
      %v7231 = vadd.f32 %v5754, %v6963
      %v7232 = vadd.f32 %v5755, %v6968
      %v7233 = vadd.f32 %v5756, %v6971
      %v7234 = vadd.f32 %v5757, %v7021
      %v7235 = vadd.f32 %v5758, %v7024
      %v7236 = vadd.f32 %v5759, %v7029
      %v7237 = vadd.f32 %v5760, %v7032
      %v7238 = vadd.f32 %v5761, %v7082
      %v7239 = vadd.f32 %v5762, %v7085
      %v7240 = vadd.f32 %v5763, %v7090
      %v7241 = vadd.f32 %v5764, %v7093
      %v7242 = vadd.f32 %v5765, %v7143
      %v7243 = vadd.f32 %v5766, %v7146
      %v7244 = vadd.f32 %v5767, %v7151
      %v7245 = vadd.f32 %v5768, %v7154
      %v7246 = vadd.f32 %v5769, %v7204
      %v7247 = vadd.f32 %v5770, %v7207
      %v7248 = vadd.f32 %v5771, %v7212
      %v7249 = vadd.f32 %v5772, %v7215
      %v7250 = vld [vmem:[%s8] sm:$0x1]
      %v7252 = vlaneseq
      %v7253 = vshrl.u32 %v7252, 7
      %v7254 = vsub.s32 0, %v7253
      %v7255 = vrot.slane %v7250, %v7254
      %v7257 = vadd.f32 %v7218, %v7255
      %v7258 = vadd.f32 %v7219, %v7255
      %v7259 = vadd.f32 %v7220, %v7255
      %v7260 = vadd.f32 %v7221, %v7255
      %v7261 = vadd.f32 %v7222, %v7255
      %v7262 = vadd.f32 %v7223, %v7255
      %v7263 = vadd.f32 %v7224, %v7255
      %v7264 = vadd.f32 %v7225, %v7255
      %v7265 = vadd.f32 %v7226, %v7255
      %v7266 = vadd.f32 %v7227, %v7255
      %v7267 = vadd.f32 %v7228, %v7255
      %v7268 = vadd.f32 %v7229, %v7255
      %v7269 = vadd.f32 %v7230, %v7255
      %v7270 = vadd.f32 %v7231, %v7255
      %v7271 = vadd.f32 %v7232, %v7255
      %v7272 = vadd.f32 %v7233, %v7255
      %v7273 = vadd.f32 %v7234, %v7255
      %v7274 = vadd.f32 %v7235, %v7255
      %v7275 = vadd.f32 %v7236, %v7255
      %v7276 = vadd.f32 %v7237, %v7255
      %v7277 = vadd.f32 %v7238, %v7255
      %v7278 = vadd.f32 %v7239, %v7255
      %v7279 = vadd.f32 %v7240, %v7255
      %v7280 = vadd.f32 %v7241, %v7255
      %v7281 = vadd.f32 %v7242, %v7255
      %v7282 = vadd.f32 %v7243, %v7255
      %v7283 = vadd.f32 %v7244, %v7255
      %v7284 = vadd.f32 %v7245, %v7255
      %v7285 = vadd.f32 %v7246, %v7255
      %v7286 = vadd.f32 %v7247, %v7255
      %v7287 = vadd.f32 %v7248, %v7255
      %v7288 = vadd.f32 %v7249, %v7255
      %v7289 = vcombine.low %v7257, %v7265
      %v7290 = vcombine.high %v7257, %v7265
      %v7292 = vunpack.c.l.s4 1983009808
      %v7293 = vunpack.c.0.s8 %v7292
      %v7294 = vlaneseq
      %v7295 = vshrl.u32 %v7294, 7
      %v7296 = vsub.s32 %v7293, %v7295
      %v7297 = vrot.slane %v7289, %v7296
      %v7299 = vunpack.c.l.s4 1983009808
      %v7300 = vunpack.c.0.s8 %v7299
      %v7301 = vlaneseq
      %v7302 = vshrl.u32 %v7301, 7
      %v7303 = vsub.s32 %v7300, %v7302
      %v7304 = vrot.slane %v7290, %v7303
      %v7305 = vcombine.low %v7261, %v7269
      %v7306 = vcombine.high %v7261, %v7269
      %v7308 = vunpack.c.l.s4 1983009808
      %v7309 = vunpack.c.0.s8 %v7308
      %v7310 = vlaneseq
      %v7311 = vshrl.u32 %v7310, 7
      %v7312 = vsub.s32 %v7309, %v7311
      %v7313 = vrot.slane %v7305, %v7312
      %v7315 = vunpack.c.l.s4 1983009808
      %v7316 = vunpack.c.0.s8 %v7315
      %v7317 = vlaneseq
      %v7318 = vshrl.u32 %v7317, 7
      %v7319 = vsub.s32 %v7316, %v7318
      %v7320 = vrot.slane %v7306, %v7319
      %v7321 = vcombine.low %v7273, %v7281
      %v7322 = vcombine.high %v7273, %v7281
      %v7324 = vunpack.c.l.s4 1983009808
      %v7325 = vunpack.c.0.s8 %v7324
      %v7326 = vlaneseq
      %v7327 = vshrl.u32 %v7326, 7
      %v7328 = vsub.s32 %v7325, %v7327
      %v7329 = vrot.slane %v7321, %v7328
      %v7331 = vunpack.c.l.s4 1983009808
      %v7332 = vunpack.c.0.s8 %v7331
      %v7333 = vlaneseq
      %v7334 = vshrl.u32 %v7333, 7
      %v7335 = vsub.s32 %v7332, %v7334
      %v7336 = vrot.slane %v7322, %v7335
      %v7337 = vcombine.low %v7277, %v7285
      %v7338 = vcombine.high %v7277, %v7285
      %v7340 = vunpack.c.l.s4 1983009808
      %v7341 = vunpack.c.0.s8 %v7340
      %v7342 = vlaneseq
      %v7343 = vshrl.u32 %v7342, 7
      %v7344 = vsub.s32 %v7341, %v7343
      %v7345 = vrot.slane %v7337, %v7344
      %v7347 = vunpack.c.l.s4 1983009808
      %v7348 = vunpack.c.0.s8 %v7347
      %v7349 = vlaneseq
      %v7350 = vshrl.u32 %v7349, 7
      %v7351 = vsub.s32 %v7348, %v7350
      %v7352 = vrot.slane %v7338, %v7351
      %v7353 = vcombine.low %v7297, %v7313
      %v7354 = vcombine.high %v7297, %v7313
      %v7356 = vunpack.c.l.s4 1934713408
      %v7357 = vunpack.c.0.s8 %v7356
      %v7358 = vlaneseq
      %v7359 = vshrl.u32 %v7358, 7
      %v7360 = vsub.s32 %v7357, %v7359
      %v7361 = vrot.slane %v7353, %v7360
      %v7363 = vunpack.c.l.s4 1934713408
      %v7364 = vunpack.c.0.s8 %v7363
      %v7365 = vlaneseq
      %v7366 = vshrl.u32 %v7365, 7
      %v7367 = vsub.s32 %v7364, %v7366
      %v7368 = vrot.slane %v7354, %v7367
      %v7369 = vcombine.low %v7304, %v7320
      %v7370 = vcombine.high %v7304, %v7320
      %v7372 = vunpack.c.l.s4 1934713408
      %v7373 = vunpack.c.0.s8 %v7372
      %v7374 = vlaneseq
      %v7375 = vshrl.u32 %v7374, 7
      %v7376 = vsub.s32 %v7373, %v7375
      %v7377 = vrot.slane %v7369, %v7376
      %v7379 = vunpack.c.l.s4 1934713408
      %v7380 = vunpack.c.0.s8 %v7379
      %v7381 = vlaneseq
      %v7382 = vshrl.u32 %v7381, 7
      %v7383 = vsub.s32 %v7380, %v7382
      %v7384 = vrot.slane %v7370, %v7383
      %v7385 = vcombine.low %v7329, %v7345
      %v7386 = vcombine.high %v7329, %v7345
      %v7388 = vunpack.c.l.s4 1934713408
      %v7389 = vunpack.c.0.s8 %v7388
      %v7390 = vlaneseq
      %v7391 = vshrl.u32 %v7390, 7
      %v7392 = vsub.s32 %v7389, %v7391
      %v7393 = vrot.slane %v7385, %v7392
      %v7395 = vunpack.c.l.s4 1934713408
      %v7396 = vunpack.c.0.s8 %v7395
      %v7397 = vlaneseq
      %v7398 = vshrl.u32 %v7397, 7
      %v7399 = vsub.s32 %v7396, %v7398
      %v7400 = vrot.slane %v7386, %v7399
      %v7401 = vcombine.low %v7336, %v7352
      %v7402 = vcombine.high %v7336, %v7352
      %v7404 = vunpack.c.l.s4 1934713408
      %v7405 = vunpack.c.0.s8 %v7404
      %v7406 = vlaneseq
      %v7407 = vshrl.u32 %v7406, 7
      %v7408 = vsub.s32 %v7405, %v7407
      %v7409 = vrot.slane %v7401, %v7408
      %v7411 = vunpack.c.l.s4 1934713408
      %v7412 = vunpack.c.0.s8 %v7411
      %v7413 = vlaneseq
      %v7414 = vshrl.u32 %v7413, 7
      %v7415 = vsub.s32 %v7412, %v7414
      %v7416 = vrot.slane %v7402, %v7415
      %v7417 = vcombine.low %v7361, %v7393
      %v7418 = vcombine.high %v7361, %v7393
      %v7419 = vcombine.low %v7368, %v7400
      %v7420 = vcombine.high %v7368, %v7400
      %v7421 = vcombine.low %v7377, %v7409
      %v7422 = vcombine.high %v7377, %v7409
      %v7423 = vcombine.low %v7384, %v7416
      %v7424 = vcombine.high %v7384, %v7416
      %v7425 = vcombine.low %v7258, %v7266
      %v7426 = vcombine.high %v7258, %v7266
      %v7428 = vunpack.c.l.s4 1983009808
      %v7429 = vunpack.c.0.s8 %v7428
      %v7430 = vlaneseq
      %v7431 = vshrl.u32 %v7430, 7
      %v7432 = vsub.s32 %v7429, %v7431
      %v7433 = vrot.slane %v7425, %v7432
      %v7435 = vunpack.c.l.s4 1983009808
      %v7436 = vunpack.c.0.s8 %v7435
      %v7437 = vlaneseq
      %v7438 = vshrl.u32 %v7437, 7
      %v7439 = vsub.s32 %v7436, %v7438
      %v7440 = vrot.slane %v7426, %v7439
      %v7441 = vcombine.low %v7262, %v7270
      %v7442 = vcombine.high %v7262, %v7270
      %v7444 = vunpack.c.l.s4 1983009808
      %v7445 = vunpack.c.0.s8 %v7444
      %v7446 = vlaneseq
      %v7447 = vshrl.u32 %v7446, 7
      %v7448 = vsub.s32 %v7445, %v7447
      %v7449 = vrot.slane %v7441, %v7448
      %v7451 = vunpack.c.l.s4 1983009808
      %v7452 = vunpack.c.0.s8 %v7451
      %v7453 = vlaneseq
      %v7454 = vshrl.u32 %v7453, 7
      %v7455 = vsub.s32 %v7452, %v7454
      %v7456 = vrot.slane %v7442, %v7455
      %v7457 = vcombine.low %v7274, %v7282
      %v7458 = vcombine.high %v7274, %v7282
      %v7460 = vunpack.c.l.s4 1983009808
      %v7461 = vunpack.c.0.s8 %v7460
      %v7462 = vlaneseq
      %v7463 = vshrl.u32 %v7462, 7
      %v7464 = vsub.s32 %v7461, %v7463
      %v7465 = vrot.slane %v7457, %v7464
      %v7467 = vunpack.c.l.s4 1983009808
      %v7468 = vunpack.c.0.s8 %v7467
      %v7469 = vlaneseq
      %v7470 = vshrl.u32 %v7469, 7
      %v7471 = vsub.s32 %v7468, %v7470
      %v7472 = vrot.slane %v7458, %v7471
      %v7473 = vcombine.low %v7278, %v7286
      %v7474 = vcombine.high %v7278, %v7286
      %v7476 = vunpack.c.l.s4 1983009808
      %v7477 = vunpack.c.0.s8 %v7476
      %v7478 = vlaneseq
      %v7479 = vshrl.u32 %v7478, 7
      %v7480 = vsub.s32 %v7477, %v7479
      %v7481 = vrot.slane %v7473, %v7480
      %v7483 = vunpack.c.l.s4 1983009808
      %v7484 = vunpack.c.0.s8 %v7483
      %v7485 = vlaneseq
      %v7486 = vshrl.u32 %v7485, 7
      %v7487 = vsub.s32 %v7484, %v7486
      %v7488 = vrot.slane %v7474, %v7487
      %v7489 = vcombine.low %v7433, %v7449
      %v7490 = vcombine.high %v7433, %v7449
      %v7492 = vunpack.c.l.s4 1934713408
      %v7493 = vunpack.c.0.s8 %v7492
      %v7494 = vlaneseq
      %v7495 = vshrl.u32 %v7494, 7
      %v7496 = vsub.s32 %v7493, %v7495
      %v7497 = vrot.slane %v7489, %v7496
      %v7499 = vunpack.c.l.s4 1934713408
      %v7500 = vunpack.c.0.s8 %v7499
      %v7501 = vlaneseq
      %v7502 = vshrl.u32 %v7501, 7
      %v7503 = vsub.s32 %v7500, %v7502
      %v7504 = vrot.slane %v7490, %v7503
      %v7505 = vcombine.low %v7440, %v7456
      %v7506 = vcombine.high %v7440, %v7456
      %v7508 = vunpack.c.l.s4 1934713408
      %v7509 = vunpack.c.0.s8 %v7508
      %v7510 = vlaneseq
      %v7511 = vshrl.u32 %v7510, 7
      %v7512 = vsub.s32 %v7509, %v7511
      %v7513 = vrot.slane %v7505, %v7512
      %v7515 = vunpack.c.l.s4 1934713408
      %v7516 = vunpack.c.0.s8 %v7515
      %v7517 = vlaneseq
      %v7518 = vshrl.u32 %v7517, 7
      %v7519 = vsub.s32 %v7516, %v7518
      %v7520 = vrot.slane %v7506, %v7519
      %v7521 = vcombine.low %v7465, %v7481
      %v7522 = vcombine.high %v7465, %v7481
      %v7524 = vunpack.c.l.s4 1934713408
      %v7525 = vunpack.c.0.s8 %v7524
      %v7526 = vlaneseq
      %v7527 = vshrl.u32 %v7526, 7
      %v7528 = vsub.s32 %v7525, %v7527
      %v7529 = vrot.slane %v7521, %v7528
      %v7531 = vunpack.c.l.s4 1934713408
      %v7532 = vunpack.c.0.s8 %v7531
      %v7533 = vlaneseq
      %v7534 = vshrl.u32 %v7533, 7
      %v7535 = vsub.s32 %v7532, %v7534
      %v7536 = vrot.slane %v7522, %v7535
      %v7537 = vcombine.low %v7472, %v7488
      %v7538 = vcombine.high %v7472, %v7488
      %v7540 = vunpack.c.l.s4 1934713408
      %v7541 = vunpack.c.0.s8 %v7540
      %v7542 = vlaneseq
      %v7543 = vshrl.u32 %v7542, 7
      %v7544 = vsub.s32 %v7541, %v7543
      %v7545 = vrot.slane %v7537, %v7544
      %v7547 = vunpack.c.l.s4 1934713408
      %v7548 = vunpack.c.0.s8 %v7547
      %v7549 = vlaneseq
      %v7550 = vshrl.u32 %v7549, 7
      %v7551 = vsub.s32 %v7548, %v7550
      %v7552 = vrot.slane %v7538, %v7551
      %v7553 = vcombine.low %v7497, %v7529
      %v7554 = vcombine.high %v7497, %v7529
      %v7555 = vcombine.low %v7504, %v7536
      %v7556 = vcombine.high %v7504, %v7536
      %v7557 = vcombine.low %v7513, %v7545
      %v7558 = vcombine.high %v7513, %v7545
      %v7559 = vcombine.low %v7520, %v7552
      %v7560 = vcombine.high %v7520, %v7552
      %v7561 = vcombine.low %v7259, %v7267
      %v7562 = vcombine.high %v7259, %v7267
      %v7564 = vunpack.c.l.s4 1983009808
      %v7565 = vunpack.c.0.s8 %v7564
      %v7566 = vlaneseq
      %v7567 = vshrl.u32 %v7566, 7
      %v7568 = vsub.s32 %v7565, %v7567
      %v7569 = vrot.slane %v7561, %v7568
      %v7571 = vunpack.c.l.s4 1983009808
      %v7572 = vunpack.c.0.s8 %v7571
      %v7573 = vlaneseq
      %v7574 = vshrl.u32 %v7573, 7
      %v7575 = vsub.s32 %v7572, %v7574
      %v7576 = vrot.slane %v7562, %v7575
      %v7577 = vcombine.low %v7263, %v7271
      %v7578 = vcombine.high %v7263, %v7271
      %v7580 = vunpack.c.l.s4 1983009808
      %v7581 = vunpack.c.0.s8 %v7580
      %v7582 = vlaneseq
      %v7583 = vshrl.u32 %v7582, 7
      %v7584 = vsub.s32 %v7581, %v7583
      %v7585 = vrot.slane %v7577, %v7584
      %v7587 = vunpack.c.l.s4 1983009808
      %v7588 = vunpack.c.0.s8 %v7587
      %v7589 = vlaneseq
      %v7590 = vshrl.u32 %v7589, 7
      %v7591 = vsub.s32 %v7588, %v7590
      %v7592 = vrot.slane %v7578, %v7591
      %v7593 = vcombine.low %v7275, %v7283
      %v7594 = vcombine.high %v7275, %v7283
      %v7596 = vunpack.c.l.s4 1983009808
      %v7597 = vunpack.c.0.s8 %v7596
      %v7598 = vlaneseq
      %v7599 = vshrl.u32 %v7598, 7
      %v7600 = vsub.s32 %v7597, %v7599
      %v7601 = vrot.slane %v7593, %v7600
      %v7603 = vunpack.c.l.s4 1983009808
      %v7604 = vunpack.c.0.s8 %v7603
      %v7605 = vlaneseq
      %v7606 = vshrl.u32 %v7605, 7
      %v7607 = vsub.s32 %v7604, %v7606
      %v7608 = vrot.slane %v7594, %v7607
      %v7609 = vcombine.low %v7279, %v7287
      %v7610 = vcombine.high %v7279, %v7287
      %v7612 = vunpack.c.l.s4 1983009808
      %v7613 = vunpack.c.0.s8 %v7612
      %v7614 = vlaneseq
      %v7615 = vshrl.u32 %v7614, 7
      %v7616 = vsub.s32 %v7613, %v7615
      %v7617 = vrot.slane %v7609, %v7616
      %v7619 = vunpack.c.l.s4 1983009808
      %v7620 = vunpack.c.0.s8 %v7619
      %v7621 = vlaneseq
      %v7622 = vshrl.u32 %v7621, 7
      %v7623 = vsub.s32 %v7620, %v7622
      %v7624 = vrot.slane %v7610, %v7623
      %v7625 = vcombine.low %v7569, %v7585
      %v7626 = vcombine.high %v7569, %v7585
      %v7628 = vunpack.c.l.s4 1934713408
      %v7629 = vunpack.c.0.s8 %v7628
      %v7630 = vlaneseq
      %v7631 = vshrl.u32 %v7630, 7
      %v7632 = vsub.s32 %v7629, %v7631
      %v7633 = vrot.slane %v7625, %v7632
      %v7635 = vunpack.c.l.s4 1934713408
      %v7636 = vunpack.c.0.s8 %v7635
      %v7637 = vlaneseq
      %v7638 = vshrl.u32 %v7637, 7
      %v7639 = vsub.s32 %v7636, %v7638
      %v7640 = vrot.slane %v7626, %v7639
      %v7641 = vcombine.low %v7576, %v7592
      %v7642 = vcombine.high %v7576, %v7592
      %v7644 = vunpack.c.l.s4 1934713408
      %v7645 = vunpack.c.0.s8 %v7644
      %v7646 = vlaneseq
      %v7647 = vshrl.u32 %v7646, 7
      %v7648 = vsub.s32 %v7645, %v7647
      %v7649 = vrot.slane %v7641, %v7648
      %v7651 = vunpack.c.l.s4 1934713408
      %v7652 = vunpack.c.0.s8 %v7651
      %v7653 = vlaneseq
      %v7654 = vshrl.u32 %v7653, 7
      %v7655 = vsub.s32 %v7652, %v7654
      %v7656 = vrot.slane %v7642, %v7655
      %v7657 = vcombine.low %v7601, %v7617
      %v7658 = vcombine.high %v7601, %v7617
      %v7660 = vunpack.c.l.s4 1934713408
      %v7661 = vunpack.c.0.s8 %v7660
      %v7662 = vlaneseq
      %v7663 = vshrl.u32 %v7662, 7
      %v7664 = vsub.s32 %v7661, %v7663
      %v7665 = vrot.slane %v7657, %v7664
      %v7667 = vunpack.c.l.s4 1934713408
      %v7668 = vunpack.c.0.s8 %v7667
      %v7669 = vlaneseq
      %v7670 = vshrl.u32 %v7669, 7
      %v7671 = vsub.s32 %v7668, %v7670
      %v7672 = vrot.slane %v7658, %v7671
      %v7673 = vcombine.low %v7608, %v7624
      %v7674 = vcombine.high %v7608, %v7624
      %v7676 = vunpack.c.l.s4 1934713408
      %v7677 = vunpack.c.0.s8 %v7676
      %v7678 = vlaneseq
      %v7679 = vshrl.u32 %v7678, 7
      %v7680 = vsub.s32 %v7677, %v7679
      %v7681 = vrot.slane %v7673, %v7680
      %v7683 = vunpack.c.l.s4 1934713408
      %v7684 = vunpack.c.0.s8 %v7683
      %v7685 = vlaneseq
      %v7686 = vshrl.u32 %v7685, 7
      %v7687 = vsub.s32 %v7684, %v7686
      %v7688 = vrot.slane %v7674, %v7687
      %v7689 = vcombine.low %v7633, %v7665
      %v7690 = vcombine.high %v7633, %v7665
      %v7691 = vcombine.low %v7640, %v7672
      %v7692 = vcombine.high %v7640, %v7672
      %v7693 = vcombine.low %v7649, %v7681
      %v7694 = vcombine.high %v7649, %v7681
      %v7695 = vcombine.low %v7656, %v7688
      %v7696 = vcombine.high %v7656, %v7688
      %v7697 = vcombine.low %v7260, %v7268
      %v7698 = vcombine.high %v7260, %v7268
      %v7700 = vunpack.c.l.s4 1983009808
      %v7701 = vunpack.c.0.s8 %v7700
      %v7702 = vlaneseq
      %v7703 = vshrl.u32 %v7702, 7
      %v7704 = vsub.s32 %v7701, %v7703
      %v7705 = vrot.slane %v7697, %v7704
      %v7707 = vunpack.c.l.s4 1983009808
      %v7708 = vunpack.c.0.s8 %v7707
      %v7709 = vlaneseq
      %v7710 = vshrl.u32 %v7709, 7
      %v7711 = vsub.s32 %v7708, %v7710
      %v7712 = vrot.slane %v7698, %v7711
      %v7713 = vcombine.low %v7264, %v7272
      %v7714 = vcombine.high %v7264, %v7272
      %v7716 = vunpack.c.l.s4 1983009808
      %v7717 = vunpack.c.0.s8 %v7716
      %v7718 = vlaneseq
      %v7719 = vshrl.u32 %v7718, 7
      %v7720 = vsub.s32 %v7717, %v7719
      %v7721 = vrot.slane %v7713, %v7720
      %v7723 = vunpack.c.l.s4 1983009808
      %v7724 = vunpack.c.0.s8 %v7723
      %v7725 = vlaneseq
      %v7726 = vshrl.u32 %v7725, 7
      %v7727 = vsub.s32 %v7724, %v7726
      %v7728 = vrot.slane %v7714, %v7727
      %v7729 = vcombine.low %v7276, %v7284
      %v7730 = vcombine.high %v7276, %v7284
      %v7732 = vunpack.c.l.s4 1983009808
      %v7733 = vunpack.c.0.s8 %v7732
      %v7734 = vlaneseq
      %v7735 = vshrl.u32 %v7734, 7
      %v7736 = vsub.s32 %v7733, %v7735
      %v7737 = vrot.slane %v7729, %v7736
      %v7739 = vunpack.c.l.s4 1983009808
      %v7740 = vunpack.c.0.s8 %v7739
      %v7741 = vlaneseq
      %v7742 = vshrl.u32 %v7741, 7
      %v7743 = vsub.s32 %v7740, %v7742
      %v7744 = vrot.slane %v7730, %v7743
      %v7745 = vcombine.low %v7280, %v7288
      %v7746 = vcombine.high %v7280, %v7288
      %v7748 = vunpack.c.l.s4 1983009808
      %v7749 = vunpack.c.0.s8 %v7748
      %v7750 = vlaneseq
      %v7751 = vshrl.u32 %v7750, 7
      %v7752 = vsub.s32 %v7749, %v7751
      %v7753 = vrot.slane %v7745, %v7752
      %v7755 = vunpack.c.l.s4 1983009808
      %v7756 = vunpack.c.0.s8 %v7755
      %v7757 = vlaneseq
      %v7758 = vshrl.u32 %v7757, 7
      %v7759 = vsub.s32 %v7756, %v7758
      %v7760 = vrot.slane %v7746, %v7759
      %v7761 = vcombine.low %v7705, %v7721
      %v7762 = vcombine.high %v7705, %v7721
      %v7764 = vunpack.c.l.s4 1934713408
      %v7765 = vunpack.c.0.s8 %v7764
      %v7766 = vlaneseq
      %v7767 = vshrl.u32 %v7766, 7
      %v7768 = vsub.s32 %v7765, %v7767
      %v7769 = vrot.slane %v7761, %v7768
      %v7771 = vunpack.c.l.s4 1934713408
      %v7772 = vunpack.c.0.s8 %v7771
      %v7773 = vlaneseq
      %v7774 = vshrl.u32 %v7773, 7
      %v7775 = vsub.s32 %v7772, %v7774
      %v7776 = vrot.slane %v7762, %v7775
      %v7777 = vcombine.low %v7712, %v7728
      %v7778 = vcombine.high %v7712, %v7728
      %v7780 = vunpack.c.l.s4 1934713408
      %v7781 = vunpack.c.0.s8 %v7780
      %v7782 = vlaneseq
      %v7783 = vshrl.u32 %v7782, 7
      %v7784 = vsub.s32 %v7781, %v7783
      %v7785 = vrot.slane %v7777, %v7784
      %v7787 = vunpack.c.l.s4 1934713408
      %v7788 = vunpack.c.0.s8 %v7787
      %v7789 = vlaneseq
      %v7790 = vshrl.u32 %v7789, 7
      %v7791 = vsub.s32 %v7788, %v7790
      %v7792 = vrot.slane %v7778, %v7791
      %v7793 = vcombine.low %v7737, %v7753
      %v7794 = vcombine.high %v7737, %v7753
      %v7796 = vunpack.c.l.s4 1934713408
      %v7797 = vunpack.c.0.s8 %v7796
      %v7798 = vlaneseq
      %v7799 = vshrl.u32 %v7798, 7
      %v7800 = vsub.s32 %v7797, %v7799
      %v7801 = vrot.slane %v7793, %v7800
      %v7803 = vunpack.c.l.s4 1934713408
      %v7804 = vunpack.c.0.s8 %v7803
      %v7805 = vlaneseq
      %v7806 = vshrl.u32 %v7805, 7
      %v7807 = vsub.s32 %v7804, %v7806
      %v7808 = vrot.slane %v7794, %v7807
      %v7809 = vcombine.low %v7744, %v7760
      %v7810 = vcombine.high %v7744, %v7760
      %v7812 = vunpack.c.l.s4 1934713408
      %v7813 = vunpack.c.0.s8 %v7812
      %v7814 = vlaneseq
      %v7815 = vshrl.u32 %v7814, 7
      %v7816 = vsub.s32 %v7813, %v7815
      %v7817 = vrot.slane %v7809, %v7816
      %v7819 = vunpack.c.l.s4 1934713408
      %v7820 = vunpack.c.0.s8 %v7819
      %v7821 = vlaneseq
      %v7822 = vshrl.u32 %v7821, 7
      %v7823 = vsub.s32 %v7820, %v7822
      %v7824 = vrot.slane %v7810, %v7823
      %v7825 = vcombine.low %v7769, %v7801
      %v7826 = vcombine.high %v7769, %v7801
      %v7827 = vcombine.low %v7776, %v7808
      %v7828 = vcombine.high %v7776, %v7808
      %v7829 = vcombine.low %v7785, %v7817
      %v7830 = vcombine.high %v7785, %v7817
      %v7831 = vcombine.low %v7792, %v7824
      %v7832 = vcombine.high %v7792, %v7824
      %7834 = vrot.lane.b32.xlu0 %v7418, 32
      %v7835 = vpop.permute.xlu0 %7834
      %7838 = vrot.lane.b32.xlu0 %v7419, 64
      %v7839 = vpop.permute.xlu0 %7838
      %7842 = vrot.lane.b32.xlu0 %v7420, 96
      %v7843 = vpop.permute.xlu0 %7842
      %7846 = vrot.lane.b32.xlu0 %v7422, 32
      %v7847 = vpop.permute.xlu0 %7846
      %7850 = vrot.lane.b32.xlu0 %v7423, 64
      %v7851 = vpop.permute.xlu0 %7850
      %7854 = vrot.lane.b32.xlu0 %v7424, 96
      %v7855 = vpop.permute.xlu0 %7854
      %7858 = vrot.lane.b32.xlu0 %v7554, 32
      %v7859 = vpop.permute.xlu0 %7858
      %7862 = vrot.lane.b32.xlu0 %v7555, 64
      %v7863 = vpop.permute.xlu0 %7862
      %7866 = vrot.lane.b32.xlu0 %v7556, 96
      %v7867 = vpop.permute.xlu0 %7866
      %7870 = vrot.lane.b32.xlu0 %v7558, 32
      %v7871 = vpop.permute.xlu0 %7870
      %7874 = vrot.lane.b32.xlu0 %v7559, 64
      %v7875 = vpop.permute.xlu0 %7874
      %7878 = vrot.lane.b32.xlu0 %v7560, 96
      %v7879 = vpop.permute.xlu0 %7878
      %7882 = vrot.lane.b32.xlu0 %v7690, 32
      %v7883 = vpop.permute.xlu0 %7882
      %7886 = vrot.lane.b32.xlu0 %v7691, 64
      %v7887 = vpop.permute.xlu0 %7886
      %7890 = vrot.lane.b32.xlu0 %v7692, 96
      %v7891 = vpop.permute.xlu0 %7890
      %7894 = vrot.lane.b32.xlu0 %v7694, 32
      %v7895 = vpop.permute.xlu0 %7894
      %7898 = vrot.lane.b32.xlu0 %v7695, 64
      %v7899 = vpop.permute.xlu0 %7898
      %7902 = vrot.lane.b32.xlu0 %v7696, 96
      %v7903 = vpop.permute.xlu0 %7902
      %7906 = vrot.lane.b32.xlu0 %v7826, 32
      %v7907 = vpop.permute.xlu0 %7906
      %7910 = vrot.lane.b32.xlu0 %v7827, 64
      %v7911 = vpop.permute.xlu0 %7910
      %7914 = vrot.lane.b32.xlu0 %v7828, 96
      %v7915 = vpop.permute.xlu0 %7914
      %7918 = vrot.lane.b32.xlu0 %v7830, 32
      %v7919 = vpop.permute.xlu0 %7918
      %7922 = vrot.lane.b32.xlu0 %v7831, 64
      %v7923 = vpop.permute.xlu0 %7922
      %7926 = vrot.lane.b32.xlu0 %v7832, 96
      %v7927 = vpop.permute.xlu0 %7926
      %v7929 = vsel %vm398, %v7417, %v7835
      %vm7930 = vcmask 523264
      %v7931 = vsel %vm7930, %v7929, %v7839
      %vm7932 = vcmask 785408
      %v7933 = vsel %vm7932, %v7931, %v7843
      %v7934 = vsel %vm398, %v7421, %v7847
      %v7935 = vsel %vm7930, %v7934, %v7851
      %v7936 = vsel %vm7932, %v7935, %v7855
      %v7937 = vsel %vm398, %v7553, %v7859
      %v7938 = vsel %vm7930, %v7937, %v7863
      %v7939 = vsel %vm7932, %v7938, %v7867
      %v7940 = vsel %vm398, %v7557, %v7871
      %v7941 = vsel %vm7930, %v7940, %v7875
      %v7942 = vsel %vm7932, %v7941, %v7879
      %v7943 = vsel %vm398, %v7689, %v7883
      %v7944 = vsel %vm7930, %v7943, %v7887
      %v7945 = vsel %vm7932, %v7944, %v7891
      %v7946 = vsel %vm398, %v7693, %v7895
      %v7947 = vsel %vm7930, %v7946, %v7899
      %v7948 = vsel %vm7932, %v7947, %v7903
      %v7949 = vsel %vm398, %v7825, %v7907
      %v7950 = vsel %vm7930, %v7949, %v7911
      %v7951 = vsel %vm7932, %v7950, %v7915
      %v7952 = vsel %vm398, %v7829, %v7919
      %v7953 = vsel %vm7930, %v7952, %v7923
      %v7954 = vsel %vm7932, %v7953, %v7927
      %7955 = vst [vmem:[%s364] sm:$0xff] %v7933
      %7956 = vst [vmem:[%s364 + $0x8] sm:$0xff] %v7936
      %7957 = vst [vmem:[%s364 + $0x10] sm:$0xff] %v7939
      %7958 = vst [vmem:[%s364 + $0x18] sm:$0xff] %v7942
      %7959 = vst [vmem:[%s364 + $0x20] sm:$0xff] %v7945
      %7960 = vst [vmem:[%s364 + $0x28] sm:$0xff] %v7948
      %7961 = vst [vmem:[%s364 + $0x30] sm:$0xff] %v7951
      %7962 = vst [vmem:[%s364 + $0x38] sm:$0xff] %v7954
      %p7963 = scmp.lt.s32.totalorder %s21, 1
      %s7964 = scalar_select %p7963, %s21, 1
      %s7965 = smul.addr %s7964, 8
      %s7966 = smul.addr %s7965, 8
      %s7967 = scalar_lea.vmem %s10, %s7966
      // Predicated region
      $region61: #{swin_block_forward.2} parent=59 // pred_check
        %p7968 = pneg %p254
      $region62: #{swin_block_forward.2} parent=59 // pred_check_branch
        %7970 = sbr.rel (%p7968) target = $region64
      $region63: #{swin_block_forward.2} parent=59 // pred_region
        _
      $region64: #{swin_block_forward.2} parent=59 // pred_fallthru
        _
    $region60: #{swin_block_forward.2} parent=5 // pred_fallthru
      _
    %p7971 = scmp.le.s32.totalorder 2, %s16
    // Predicated region
    $region65: #{swin_block_forward.2} parent=5 // pred_check
      %p7972 = pneg %p7971
    $region66: #{swin_block_forward.2} parent=5 // pred_check_branch
      %7974 = sbr.rel (%p7972) target = $region68
    $region67: #{swin_block_forward.2} parent=5 // pred_region
      %s7975 = ssub.s32 %s16, 2
      // Predicated region
      $region69: #{swin_block_forward.2} parent=67 // pred_check
        %p7976 = pneg %p260
      $region70: #{swin_block_forward.2} parent=67 // pred_check_branch
        %7978 = sbr.rel (%p7976) target = $region72
      $region71: #{swin_block_forward.2} parent=67 // pred_region
        %p7979 = scmp.lt.s32.totalorder %s22, 1
        %s7980 = scalar_select %p7979, %s22, 1
        %s7981 = smul.addr %s7980, 8
        %s7982 = smul.addr %s7981, 8
        %s7983 = scalar_lea.vmem %s10, %s7982
      $region72: #{swin_block_forward.2} parent=67 // pred_fallthru
        _
    $region68: #{swin_block_forward.2} parent=5 // pred_fallthru
      _
  $region6: #{swin_block_forward.2} parent=0 // loop_footer
    %s20 = sadd.s32 1, %s16
  $region7: #{swin_block_forward.2} parent=0 // loop_footer_branch
    %15 = sbr.rel target = $region3
  $region8: #{swin_block_forward.2} parent=0 // loop_exit
    _

</llo_original>
